<compile_context>
chip_gen: v5e
topology: v5e:2x2
jax: 0.10.0
libtpu: 0.0.40
codegen_flags: <defaults>
</compile_context>

<pallas_src>
import functools

import jax
import jax.numpy as jnp
from jax.experimental import pallas as pl
from jax.experimental.pallas import tpu as pltpu

_LANE = 128
_NEG_INF = -1e30


def _ceil_to(x, m):
    return ((x + m - 1) // m) * m


# ----------------------------------------------------------------------------- kernel

def _decoder_kernel(*refs, mat_layout, vec_layout, n_mat_blobs,
                    L, E, D, HS, DHS, HC, DHC, NS, NB_SELF, NB_CROSS, B_TILE):
    """One grid step == B_TILE batch elements.

    refs = (emb_ref, lat_ref, vec_ref, *mat_blob_refs, out_ref)
      emb_ref : (B_TILE*E, dim_ee) f32     entity embeddings (already gathered)
      lat_ref : (B_TILE*L, D)      f32     latent
      vec_ref : (1, TOTAL_V)       f32     all LN params / biases, 128-aligned bands
      mat_*   : (rows_g, cols_g)   bf16    weight blobs grouped by row count
      out_ref : (B_TILE*E, 128)    f32     merged, zero-padded output heads
    """
    emb_ref, lat_ref, vec_ref = refs[:3]
    mat_refs = refs[3:3 + n_mat_blobs]
    out_ref = refs[3 + n_mat_blobs]

    f32, bf16 = jnp.float32, jnp.bfloat16

    # ---- static unpackers (blob slices are 128-lane aligned column bands) ----
    def W(name):
        gi, off, r, c = mat_layout[name]
        return mat_refs[gi][0:r, off:off + c]          # bf16 (r, c)

    def V(name):
        off, n = vec_layout[name]
        return vec_ref[:, off:off + n]                  # f32 (1, n), broadcasts

    # ---- math helpers ----
    def mm(x, w):
        return jnp.dot(x.astype(bf16), w, preferred_element_type=f32)

    def ln(x, g, b):
        mu = jnp.mean(x, axis=-1, keepdims=True)
        xc = x - mu
        var = jnp.mean(xc * xc, axis=-1, keepdims=True)
        return xc * jax.lax.rsqrt(var + 1e-5) * g + b

    def gelu(x):
        c = 0.7978845608028654  # sqrt(2/pi)
        return 0.5 * x * (1.0 + jnp.tanh(c * (x + 0.044715 * x * x * x)))

    def block_mask(per_q, per_k, reps_k=1):
        """Additive mask so batch elements never attend to each other."""
        rows_q, rows_k = B_TILE * per_q, B_TILE * per_k
        ri = jax.lax.broadcasted_iota(jnp.int32, (rows_q, rows_k), 0)
        ci = jax.lax.broadcasted_iota(jnp.int32, (rows_q, rows_k), 1)
        bq = jnp.zeros((rows_q, rows_k), jnp.int32)
        bk = jnp.zeros((rows_q, rows_k), jnp.int32)
        for t in range(1, B_TILE):                      # batch index w/o int division
            bq = bq + (ri >= t * per_q).astype(jnp.int32)
            bk = bk + (ci >= t * per_k).astype(jnp.int32)
        m = jnp.where(bq == bk, 0.0, _NEG_INF).astype(f32)
        if reps_k > 1:
            m = jnp.concatenate([m] * reps_k, axis=1)
        return m

    def attend(q, k, v, wo, bo, mask, H, dh):
        """Multi-head softmax attention (scale pre-folded into Q weights)."""
        outs = []
        for h in range(H):
            sl = slice(h * dh, (h + 1) * dh)
            s = jax.lax.dot_general(
                q[:, sl].astype(bf16), k[:, sl].astype(bf16),
                (((1,), (1,)), ((), ())), preferred_element_type=f32)
            s = s + mask
            s = s - jnp.max(s, axis=-1, keepdims=True)
            p = jnp.exp(s)
            p = p * pl.reciprocal(jnp.sum(p, axis=-1, keepdims=True), approx=True)
            outs.append(jnp.dot(p.astype(bf16), v[:, sl].astype(bf16),
                                preferred_element_type=f32))
        o = outs[0] if H == 1 else jnp.concatenate(outs, axis=-1)
        return mm(o, wo) + bo

    def ffn(x, w1, b1, w2, b2):
        return mm(gelu(mm(x, w1) + b1), w2) + b2

    inner_s = HS * DHS
    inner_c = HC * DHC

    mask_self = block_mask(L, L)                         # (B_TILE*L, B_TILE*L)
    mask_cross = block_mask(L, E)                        # (B_TILE*L, B_TILE*E)
    mask_out = block_mask(E, L, reps_k=NS)               # (B_TILE*E, NS*B_TILE*L)

    # --- queries = Linear(Embedding(entities)); dropout == identity (eval) ---
    queries = mm(emb_ref[...], W("q_w")) + V("q_b")      # (B_TILE*E, DQ)

    # --- self attention blocks over latent ---
    x = lat_ref[...]                                     # (B_TILE*L, D)
    for i in range(NB_SELF):
        pre = f"s{i}_"
        xn = ln(x, V(pre + "ln1_g"), V(pre + "ln1_b"))
        qkv = mm(xn, W(pre + "wqkv"))                    # (B_TILE*L, 3*inner_s)
        q = qkv[:, :inner_s]
        k = qkv[:, inner_s:2 * inner_s]
        v = qkv[:, 2 * inner_s:]
        x = x + attend(q, k, v, W(pre + "wo"), V(pre + "bo"), mask_self, HS, DHS)
        x = x + ffn(ln(x, V(pre + "ln2_g"), V(pre + "ln2_b")),
                    W(pre + "ffw1"), V(pre + "ffb1"),
                    W(pre + "ffw2"), V(pre + "ffb2"))

    def cross_block(xq, ctx, pre, mask):
        xn = ln(xq, V(pre + "lnx_g"), V(pre + "lnx_b"))
        cn = ln(ctx, V(pre + "lnc_g"), V(pre + "lnc_b"))
        q = mm(xn, W(pre + "wq"))                        # (rows_q, inner_c)
        kv = mm(cn, W(pre + "wkv"))                      # (rows_k, 2*inner_c)
        k = kv[:, :inner_c]
        v = kv[:, inner_c:]
        xq = xq + attend(q, k, v, W(pre + "wo"), V(pre + "bo"), mask, HC, DHC)
        xq = xq + ffn(ln(xq, V(pre + "ln2_g"), V(pre + "ln2_b")),
                      W(pre + "ffw1"), V(pre + "ffb1"),
                      W(pre + "ffw2"), V(pre + "ffb2"))
        return xq

    # --- cross attention blocks: latent attends to queries ---
    for i in range(NB_CROSS):
        x = cross_block(x, queries, f"c{i}_", mask_cross)

    # --- extender: per-position 1x1 conv, columns pre-permuted to n-major ---
    ext = mm(x, W("ext_w")) + V("ext_b")                 # (B_TILE*L, NS*D)
    # Extended context in split-major row order (row = n*(B_TILE*L) + b*L + l);
    # the output-block mask is tiled the same way, and key ordering is otherwise
    # irrelevant (attention is permutation invariant over the context).
    ctx = jnp.concatenate([ext[:, n * D:(n + 1) * D] for n in range(NS)], axis=0)

    # --- output block: queries attend to extended latent ---
    out_x = cross_block(queries, ctx, "o0_", mask_out)   # (B_TILE*E, DQ)

    # --- merged output heads (concat W1, block-diag W2 padded to 128 lanes) ---
    h = gelu(mm(out_x, W("ow1")) + V("ob1"))
    out_ref[...] = mm(h, W("ow2")) + V("ob2")            # full-width lane-dense store


# ----------------------------------------------------------------------------- packing

def _pack_matrices(mats):
    """Pack 2-D f32 matrices into bf16 blobs grouped by row count.

    Each matrix occupies a 128-lane-aligned column band (zero padded).
    Returns (blobs, layout) with layout[name] = (blob_idx, col_off, rows, cols)."""
    groups = {}
    for name, a in mats:
        groups.setdefault(int(a.shape[0]), []).append((name, a))
    blobs, layout = [], {}
    for gi, rows in enumerate(sorted(groups)):
        parts, off = [], 0
        for name, a in groups[rows]:
            r, c = a.shape
            cp = _ceil_to(c, _LANE)
            layout[name] = (gi, off, int(r), int(c))
            if cp != c:
                a = jnp.pad(a, ((0, 0), (0, cp - c)))
            parts.append(a)
            off += cp
        blobs.append(jnp.concatenate(parts, axis=1).astype(jnp.bfloat16))
    return blobs, layout


def _pack_vectors(vecs):
    """Pack 1-D f32 vectors into one (1, TOTAL) f32 blob, 128-aligned bands."""
    parts, layout, off = [], {}, 0
    for name, v in vecs:
        n = int(v.shape[0])
        npad = _ceil_to(n, _LANE)
        layout[name] = (off, n)
        parts.append(jnp.pad(v, (0, npad - n)) if npad != n else v)
        off += npad
    blob = jnp.concatenate(parts).reshape(1, -1).astype(jnp.float32)
    return blob, layout


def pack_params(params, cfg):
    """One-time packing: fused QKV/KV, bf16 matrix blobs, f32 vector blob,
    permuted extender, folded attention scales, merged + padded output heads."""
    D = cfg["dim_latent"]
    DQ = cfg["dim_query"]
    N = cfg["num_split"]
    names = list(cfg["outputs"].keys())
    dims = [cfg["outputs"][n] for n in names]
    out_pad = _ceil_to(max(sum(dims), 1), _LANE)
    s_scale = cfg["dim_head_latent"] ** -0.5
    c_scale = cfg["dim_head_cross"] ** -0.5

    mats, vecs = [], []
    mats.append(("q_w", params["q_w"]))
    vecs.append(("q_b", params["q_b"]))

    for i, p in enumerate(params["self_blocks"]):
        pre = f"s{i}_"
        wqkv = jnp.concatenate([p["wq"] * s_scale, p["wk"], p["wv"]], axis=1)
        mats += [(pre + "wqkv", wqkv), (pre + "wo", p["wo"]),
                 (pre + "ffw1", p["ff_w1"]), (pre + "ffw2", p["ff_w2"])]
        vecs += [(pre + "ln1_g", p["norm_x_g"]), (pre + "ln1_b", p["norm_x_b"]),
                 (pre + "bo", p["bo"]),
                 (pre + "ln2_g", p["norm_ff_g"]), (pre + "ln2_b", p["norm_ff_b"]),
                 (pre + "ffb1", p["ff_b1"]), (pre + "ffb2", p["ff_b2"])]

    cross_like = [(f"c{i}_", p) for i, p in enumerate(params["cross_blocks"])]
    cross_like.append(("o0_", params["output_block"]))
    for pre, p in cross_like:
        wkv = jnp.concatenate([p["wk"], p["wv"]], axis=1)
        mats += [(pre + "wq", p["wq"] * c_scale), (pre + "wkv", wkv),
                 (pre + "wo", p["wo"]),
                 (pre + "ffw1", p["ff_w1"]), (pre + "ffw2", p["ff_w2"])]
        vecs += [(pre + "lnx_g", p["norm_x_g"]), (pre + "lnx_b", p["norm_x_b"]),
                 (pre + "lnc_g", p["norm_c_g"]), (pre + "lnc_b", p["norm_c_b"]),
                 (pre + "bo", p["bo"]),
                 (pre + "ln2_g", p["norm_ff_g"]), (pre + "ln2_b", p["norm_ff_b"]),
                 (pre + "ffb1", p["ff_b1"]), (pre + "ffb2", p["ff_b2"])]

    # Extender Conv1d(k=1): permute columns from torch order c = d*N + n to n-major.
    perm = jnp.array([d * N + n for n in range(N) for d in range(D)], dtype=jnp.int32)
    mats.append(("ext_w", params["ext_w"][:, perm]))
    vecs.append(("ext_b", params["ext_b"][perm]))

    # Merged output heads: concat W1, block-diagonal W2 zero-padded to 128 columns.
    w1 = jnp.concatenate([params["output_layers"][n]["w1"] for n in names], axis=1)
    b1 = jnp.concatenate([params["output_layers"][n]["b1"] for n in names])
    w2 = jnp.zeros((len(names) * DQ, out_pad), jnp.float32)
    b2 = jnp.zeros((out_pad,), jnp.float32)
    off = 0
    for i, n in enumerate(names):
        w2 = w2.at[i * DQ:(i + 1) * DQ, off:off + dims[i]].set(
            params["output_layers"][n]["w2"])
        b2 = b2.at[off:off + dims[i]].set(params["output_layers"][n]["b2"])
        off += dims[i]
    mats += [("ow1", w1), ("ow2", w2)]
    vecs += [("ob1", b1), ("ob2", b2)]

    mat_blobs, mat_layout = _pack_matrices(mats)
    vec_blob, vec_layout = _pack_vectors(vecs)

    packed = {"embedding": params["embedding"],
              "vec_blob": vec_blob,
              "mat_blobs": tuple(mat_blobs)}
    meta = {"mat_layout": mat_layout, "vec_layout": vec_layout, "out_pad": out_pad}
    return packed, meta


# ----------------------------------------------------------------------------- forward

def _pick_batch_tile(B, target=8):
    """Largest divisor of B <= target; keep >= 2 grid steps when B >= 2 (v7x)."""
    divs = [t for t in range(1, B + 1) if B % t == 0 and t <= target]
    two_step = [t for t in divs if B // t >= 2]
    if B >= 2 and two_step:
        return max(two_step)
    return max(divs)


def decoder_forward(packed, latent, entities, *, cfg, meta):
    B, L, D = latent.shape
    E = entities.shape[1]
    out_pad = meta["out_pad"]

    # Embedding gather (data-dependent) stays outside the kernel as XLA glue.
    emb = jnp.take(packed["embedding"], entities, axis=0)        # (B, E, dim_ee)
    emb2 = emb.reshape(B * E, -1).astype(jnp.float32)
    lat2 = latent.reshape(B * L, D).astype(jnp.float32)

    B_TILE = _pick_batch_tile(B)
    n_tiles = B // B_TILE
    mat_blobs = packed["mat_blobs"]
    vec_blob = packed["vec_blob"]

    in_specs = [
        pl.BlockSpec((B_TILE * E, emb2.shape[1]), lambda i: (i, 0)),
        pl.BlockSpec((B_TILE * L, D), lambda i: (i, 0)),
        pl.BlockSpec(vec_blob.shape, lambda i: (0, 0)),
    ] + [pl.BlockSpec(b.shape, lambda i: (0, 0)) for b in mat_blobs]
    out_spec = pl.BlockSpec((B_TILE * E, out_pad), lambda i: (i, 0))

    kernel = functools.partial(
        _decoder_kernel,
        mat_layout=meta["mat_layout"], vec_layout=meta["vec_layout"],
        n_mat_blobs=len(mat_blobs),
        L=L, E=E, D=D,
        HS=cfg["num_head_latent"], DHS=cfg["dim_head_latent"],
        HC=cfg["num_head_cross"], DHC=cfg["dim_head_cross"],
        NS=cfg["num_split"],
        NB_SELF=cfg["num_block_attn"], NB_CROSS=cfg["num_block_cross"],
        B_TILE=B_TILE)

    result = pl.pallas_call(
        kernel,
        out_shape=jax.ShapeDtypeStruct((B * E, out_pad), jnp.float32),
        grid=(n_tiles,),
        in_specs=in_specs,
        out_specs=out_spec,
        compiler_params=pltpu.CompilerParams(
            dimension_semantics=("parallel",)),
    )(emb2, lat2, vec_blob, *mat_blobs)

    result = result.reshape(B, E, out_pad)
    outputs = {}
    off = 0
    for name, dim in cfg["outputs"].items():
        outputs[name] = result[:, :, off:off + dim]
        off += dim
    return outputs


# ----------------------------------------------------------------------------- params

def _init_attn_block(key, dim, ctx_dim, heads, dim_head, ff_mult=4):
    ks = jax.random.split(key, 6)
    inner = heads * dim_head
    s = 0.02
    return dict(
        norm_x_g=jnp.ones((dim,), jnp.float32), norm_x_b=jnp.zeros((dim,), jnp.float32),
        norm_c_g=jnp.ones((ctx_dim,), jnp.float32), norm_c_b=jnp.zeros((ctx_dim,), jnp.float32),
        wq=s * jax.random.normal(ks[0], (dim, inner), jnp.float32),
        wk=s * jax.random.normal(ks[1], (ctx_dim, inner), jnp.float32),
        wv=s * jax.random.normal(ks[2], (ctx_dim, inner), jnp.float32),
        wo=s * jax.random.normal(ks[3], (inner, dim), jnp.float32),
        bo=jnp.zeros((dim,), jnp.float32),
        norm_ff_g=jnp.ones((dim,), jnp.float32), norm_ff_b=jnp.zeros((dim,), jnp.float32),
        ff_w1=s * jax.random.normal(ks[4], (dim, dim * ff_mult), jnp.float32),
        ff_b1=jnp.zeros((dim * ff_mult,), jnp.float32),
        ff_w2=s * jax.random.normal(ks[5], (dim * ff_mult, dim), jnp.float32),
        ff_b2=jnp.zeros((dim,), jnp.float32),
    )


def init_params(key, cfg):
    ks = iter(jax.random.split(key, 64))
    s = 0.02
    return dict(
        embedding=s * jax.random.normal(next(ks), (cfg["vocab"], cfg["dim_ee"]), jnp.float32),
        q_w=s * jax.random.normal(next(ks), (cfg["dim_ee"], cfg["dim_query"]), jnp.float32),
        q_b=jnp.zeros((cfg["dim_query"],), jnp.float32),
        self_blocks=[
            _init_attn_block(next(ks), cfg["dim_latent"], cfg["dim_latent"],
                             cfg["num_head_latent"], cfg["dim_head_latent"])
            for _ in range(cfg["num_block_attn"])
        ],
        cross_blocks=[
            _init_attn_block(next(ks), cfg["dim_latent"], cfg["dim_query"],
                             cfg["num_head_cross"], cfg["dim_head_cross"])
            for _ in range(cfg["num_block_cross"])
        ],
        output_block=_init_attn_block(next(ks), cfg["dim_query"], cfg["dim_latent"],
                                      cfg["num_head_cross"], cfg["dim_head_cross"]),
        # Conv1d(D, D*N, 1) as a linear: ext_w[d_in, c] = conv_w[c, d_in, 0], c = d_out*N + n.
        ext_w=s * jax.random.normal(next(ks), (cfg["dim_latent"],
                                               cfg["dim_latent"] * cfg["num_split"]), jnp.float32),
        ext_b=jnp.zeros((cfg["dim_latent"] * cfg["num_split"],), jnp.float32),
        output_layers={
            name: dict(
                w1=s * jax.random.normal(next(ks), (cfg["dim_query"], cfg["dim_query"]), jnp.float32),
                b1=jnp.zeros((cfg["dim_query"],), jnp.float32),
                w2=s * jax.random.normal(next(ks), (cfg["dim_query"], out_dim), jnp.float32),
                b2=jnp.zeros((out_dim,), jnp.float32),
            )
            for name, out_dim in cfg["outputs"].items()
        },
    )


# ----------------------------------------------------------------------------- main

if __name__ == "__main__":
    cfg = dict(
        outputs={"position": 3, "category": 5},
        dim_query=32,
        dim_latent=32,
        dim_ee=16,          # entity_embedding.embedding_dim
        vocab=10,           # entity_embedding num_embeddings
        dim_head_cross=64,
        dim_head_latent=64,
        num_head_cross=1,
        num_head_latent=4,
        num_block_cross=2,
        num_block_attn=4,
        num_split=8,
    )
    B, L, E = 8, 8, 8      # batch folded 4-per-step -> grid=(2,) keeps both v7x TCs busy

    key = jax.random.PRNGKey(0)
    kp, kl, ke = jax.random.split(key, 3)
    params = init_params(kp, cfg)
    packed, meta = pack_params(params, cfg)
    latent = jax.random.normal(kl, (B, L, cfg["dim_latent"]), dtype=jnp.float32)
    entities = jax.random.randint(ke, (B, E), 0, cfg["vocab"])

    forward = jax.jit(functools.partial(decoder_forward, cfg=cfg, meta=meta))
    outputs = forward(packed, latent, entities)
    jax.block_until_ready(outputs)

    assert outputs["position"].shape == (B, E, 3)
    assert outputs["category"].shape == (B, E, 5)
    assert bool(jnp.all(jnp.isfinite(outputs["position"])))
    assert bool(jnp.all(jnp.isfinite(outputs["category"])))
    print("KERNEL_OK")
</pallas_src>

<mosaic_0001>
module attributes {stable_mosaic.version = 11 : i64} {
  func.func @_decoder_kernel(%arg0: i32, %arg1: memref<32x16xf32, #tpu.memory_space<vmem>>, %arg2: memref<32x32xf32, #tpu.memory_space<vmem>>, %arg3: memref<1x7680xf32, #tpu.memory_space<vmem>>, %arg4: memref<16x128xbf16, #tpu.memory_space<vmem>>, %arg5: memref<32x5120xbf16, #tpu.memory_space<vmem>>, %arg6: memref<64x512xbf16, #tpu.memory_space<vmem>>, %arg7: memref<128x896xbf16, #tpu.memory_space<vmem>>, %arg8: memref<256x512xbf16, #tpu.memory_space<vmem>>, %arg9: memref<32x128xf32, #tpu.memory_space<vmem>>) attributes {dimension_semantics = [#tpu.dimension_semantics<parallel>], iteration_bounds = array<i64: 2>, scalar_prefetch = 0 : i64, scratch_operands = 0 : i64, tpu.core_type = #tpu.core_type<tc>, window_params = [{transform_indices = @transform_0, window_bounds = array<i64: 32, 16>}, {transform_indices = @transform_1, window_bounds = array<i64: 32, 32>}, {pipeline_mode = #tpu.pipeline_mode<synchronous>, transform_indices = @transform_2, window_bounds = array<i64: 1, 7680>}, {pipeline_mode = #tpu.pipeline_mode<synchronous>, transform_indices = @transform_3, window_bounds = array<i64: 16, 128>}, {pipeline_mode = #tpu.pipeline_mode<synchronous>, transform_indices = @transform_4, window_bounds = array<i64: 32, 5120>}, {pipeline_mode = #tpu.pipeline_mode<synchronous>, transform_indices = @transform_5, window_bounds = array<i64: 64, 512>}, {pipeline_mode = #tpu.pipeline_mode<synchronous>, transform_indices = @transform_6, window_bounds = array<i64: 128, 896>}, {pipeline_mode = #tpu.pipeline_mode<synchronous>, transform_indices = @transform_7, window_bounds = array<i64: 256, 512>}, {transform_indices = @transform_8, window_bounds = array<i64: 32, 128>}]} {
    %0 = tpu.iota {dimensions = array<i32: 0>} : vector<32x32xi32>
    %1 = tpu.iota {dimensions = array<i32: 1>} : vector<32x32xi32>
    %c0_i32 = arith.constant 0 : i32
    %2 = vector.broadcast %c0_i32 : i32 to vector<32x32xi32>
    %c0_i32_0 = arith.constant 0 : i32
    %3 = vector.broadcast %c0_i32_0 : i32 to vector<32x32xi32>
    %c8_i32 = arith.constant 8 : i32
    %4 = vector.broadcast %c8_i32 : i32 to vector<32x32xi32>
    %5 = arith.cmpi sge, %0, %4 : vector<32x32xi32>
    %6 = arith.extui %5 : vector<32x32xi1> to vector<32x32xi32>
    %7 = arith.addi %2, %6 : vector<32x32xi32>
    %c8_i32_1 = arith.constant 8 : i32
    %8 = vector.broadcast %c8_i32_1 : i32 to vector<32x32xi32>
    %9 = arith.cmpi sge, %1, %8 : vector<32x32xi32>
    %10 = arith.extui %9 : vector<32x32xi1> to vector<32x32xi32>
    %11 = arith.addi %3, %10 : vector<32x32xi32>
    %c16_i32 = arith.constant 16 : i32
    %12 = vector.broadcast %c16_i32 : i32 to vector<32x32xi32>
    %13 = arith.cmpi sge, %0, %12 : vector<32x32xi32>
    %14 = arith.extui %13 : vector<32x32xi1> to vector<32x32xi32>
    %15 = arith.addi %7, %14 : vector<32x32xi32>
    %c16_i32_2 = arith.constant 16 : i32
    %16 = vector.broadcast %c16_i32_2 : i32 to vector<32x32xi32>
    %17 = arith.cmpi sge, %1, %16 : vector<32x32xi32>
    %18 = arith.extui %17 : vector<32x32xi1> to vector<32x32xi32>
    %19 = arith.addi %11, %18 : vector<32x32xi32>
    %c24_i32 = arith.constant 24 : i32
    %20 = vector.broadcast %c24_i32 : i32 to vector<32x32xi32>
    %21 = arith.cmpi sge, %0, %20 : vector<32x32xi32>
    %22 = arith.extui %21 : vector<32x32xi1> to vector<32x32xi32>
    %23 = arith.addi %15, %22 : vector<32x32xi32>
    %c24_i32_3 = arith.constant 24 : i32
    %24 = vector.broadcast %c24_i32_3 : i32 to vector<32x32xi32>
    %25 = arith.cmpi sge, %1, %24 : vector<32x32xi32>
    %26 = arith.extui %25 : vector<32x32xi1> to vector<32x32xi32>
    %27 = arith.addi %19, %26 : vector<32x32xi32>
    %28 = arith.cmpi eq, %23, %27 : vector<32x32xi32>
    %cst = arith.constant 0.000000e+00 : f32
    %cst_4 = arith.constant -1.000000e+30 : f32
    %29 = vector.broadcast %cst : f32 to vector<32x32xf32>
    %30 = vector.broadcast %cst_4 : f32 to vector<32x32xf32>
    %31 = arith.select %28, %29, %30 : vector<32x32xi1>, vector<32x32xf32>
    %32 = tpu.iota {dimensions = array<i32: 0>} : vector<32x32xi32>
    %33 = tpu.iota {dimensions = array<i32: 1>} : vector<32x32xi32>
    %c0_i32_5 = arith.constant 0 : i32
    %34 = vector.broadcast %c0_i32_5 : i32 to vector<32x32xi32>
    %c0_i32_6 = arith.constant 0 : i32
    %35 = vector.broadcast %c0_i32_6 : i32 to vector<32x32xi32>
    %c8_i32_7 = arith.constant 8 : i32
    %36 = vector.broadcast %c8_i32_7 : i32 to vector<32x32xi32>
    %37 = arith.cmpi sge, %32, %36 : vector<32x32xi32>
    %38 = arith.extui %37 : vector<32x32xi1> to vector<32x32xi32>
    %39 = arith.addi %34, %38 : vector<32x32xi32>
    %c8_i32_8 = arith.constant 8 : i32
    %40 = vector.broadcast %c8_i32_8 : i32 to vector<32x32xi32>
    %41 = arith.cmpi sge, %33, %40 : vector<32x32xi32>
    %42 = arith.extui %41 : vector<32x32xi1> to vector<32x32xi32>
    %43 = arith.addi %35, %42 : vector<32x32xi32>
    %c16_i32_9 = arith.constant 16 : i32
    %44 = vector.broadcast %c16_i32_9 : i32 to vector<32x32xi32>
    %45 = arith.cmpi sge, %32, %44 : vector<32x32xi32>
    %46 = arith.extui %45 : vector<32x32xi1> to vector<32x32xi32>
    %47 = arith.addi %39, %46 : vector<32x32xi32>
    %c16_i32_10 = arith.constant 16 : i32
    %48 = vector.broadcast %c16_i32_10 : i32 to vector<32x32xi32>
    %49 = arith.cmpi sge, %33, %48 : vector<32x32xi32>
    %50 = arith.extui %49 : vector<32x32xi1> to vector<32x32xi32>
    %51 = arith.addi %43, %50 : vector<32x32xi32>
    %c24_i32_11 = arith.constant 24 : i32
    %52 = vector.broadcast %c24_i32_11 : i32 to vector<32x32xi32>
    %53 = arith.cmpi sge, %32, %52 : vector<32x32xi32>
    %54 = arith.extui %53 : vector<32x32xi1> to vector<32x32xi32>
    %55 = arith.addi %47, %54 : vector<32x32xi32>
    %c24_i32_12 = arith.constant 24 : i32
    %56 = vector.broadcast %c24_i32_12 : i32 to vector<32x32xi32>
    %57 = arith.cmpi sge, %33, %56 : vector<32x32xi32>
    %58 = arith.extui %57 : vector<32x32xi1> to vector<32x32xi32>
    %59 = arith.addi %51, %58 : vector<32x32xi32>
    %60 = arith.cmpi eq, %55, %59 : vector<32x32xi32>
    %cst_13 = arith.constant 0.000000e+00 : f32
    %cst_14 = arith.constant -1.000000e+30 : f32
    %61 = vector.broadcast %cst_13 : f32 to vector<32x32xf32>
    %62 = vector.broadcast %cst_14 : f32 to vector<32x32xf32>
    %63 = arith.select %60, %61, %62 : vector<32x32xi1>, vector<32x32xf32>
    %64 = tpu.iota {dimensions = array<i32: 0>} : vector<32x32xi32>
    %65 = tpu.iota {dimensions = array<i32: 1>} : vector<32x32xi32>
    %c0_i32_15 = arith.constant 0 : i32
    %66 = vector.broadcast %c0_i32_15 : i32 to vector<32x32xi32>
    %c0_i32_16 = arith.constant 0 : i32
    %67 = vector.broadcast %c0_i32_16 : i32 to vector<32x32xi32>
    %c8_i32_17 = arith.constant 8 : i32
    %68 = vector.broadcast %c8_i32_17 : i32 to vector<32x32xi32>
    %69 = arith.cmpi sge, %64, %68 : vector<32x32xi32>
    %70 = arith.extui %69 : vector<32x32xi1> to vector<32x32xi32>
    %71 = arith.addi %66, %70 : vector<32x32xi32>
    %c8_i32_18 = arith.constant 8 : i32
    %72 = vector.broadcast %c8_i32_18 : i32 to vector<32x32xi32>
    %73 = arith.cmpi sge, %65, %72 : vector<32x32xi32>
    %74 = arith.extui %73 : vector<32x32xi1> to vector<32x32xi32>
    %75 = arith.addi %67, %74 : vector<32x32xi32>
    %c16_i32_19 = arith.constant 16 : i32
    %76 = vector.broadcast %c16_i32_19 : i32 to vector<32x32xi32>
    %77 = arith.cmpi sge, %64, %76 : vector<32x32xi32>
    %78 = arith.extui %77 : vector<32x32xi1> to vector<32x32xi32>
    %79 = arith.addi %71, %78 : vector<32x32xi32>
    %c16_i32_20 = arith.constant 16 : i32
    %80 = vector.broadcast %c16_i32_20 : i32 to vector<32x32xi32>
    %81 = arith.cmpi sge, %65, %80 : vector<32x32xi32>
    %82 = arith.extui %81 : vector<32x32xi1> to vector<32x32xi32>
    %83 = arith.addi %75, %82 : vector<32x32xi32>
    %c24_i32_21 = arith.constant 24 : i32
    %84 = vector.broadcast %c24_i32_21 : i32 to vector<32x32xi32>
    %85 = arith.cmpi sge, %64, %84 : vector<32x32xi32>
    %86 = arith.extui %85 : vector<32x32xi1> to vector<32x32xi32>
    %87 = arith.addi %79, %86 : vector<32x32xi32>
    %c24_i32_22 = arith.constant 24 : i32
    %88 = vector.broadcast %c24_i32_22 : i32 to vector<32x32xi32>
    %89 = arith.cmpi sge, %65, %88 : vector<32x32xi32>
    %90 = arith.extui %89 : vector<32x32xi1> to vector<32x32xi32>
    %91 = arith.addi %83, %90 : vector<32x32xi32>
    %92 = arith.cmpi eq, %87, %91 : vector<32x32xi32>
    %cst_23 = arith.constant 0.000000e+00 : f32
    %cst_24 = arith.constant -1.000000e+30 : f32
    %93 = vector.broadcast %cst_23 : f32 to vector<32x32xf32>
    %94 = vector.broadcast %cst_24 : f32 to vector<32x32xf32>
    %95 = arith.select %92, %93, %94 : vector<32x32xi1>, vector<32x32xf32>
    %96 = tpu.concatenate %95, %95, %95, %95, %95, %95, %95, %95 in 1 : vector<32x32xf32>, vector<32x32xf32>, vector<32x32xf32>, vector<32x32xf32>, vector<32x32xf32>, vector<32x32xf32>, vector<32x32xf32>, vector<32x32xf32> -> vector<32x256xf32>
    %c0 = arith.constant 0 : index
    %c0_25 = arith.constant 0 : index
    %97 = vector.load %arg1[%c0, %c0_25] : memref<32x16xf32, #tpu.memory_space<vmem>>, vector<32x16xf32>
    %c0_26 = arith.constant 0 : index
    %c0_27 = arith.constant 0 : index
    %98 = vector.load %arg4[%c0_26, %c0_27] : memref<16x128xbf16, #tpu.memory_space<vmem>>, vector<16x32xbf16>
    %99 = arith.truncf %97 : vector<32x16xf32> to vector<32x16xbf16>
    %cst_28 = arith.constant dense<0.000000e+00> : vector<32x32xf32>
    %100 = tpu.matmul %99, %98, %cst_28 {dimension_numbers = #tpu.dot_dimension_numbers<[1], [0], [0], [1], [0, 0, 1, 1], [], []>} : vector<32x16xbf16>, vector<16x32xbf16>, vector<32x32xf32> -> vector<32x32xf32>
    %c0_29 = arith.constant 0 : index
    %c0_30 = arith.constant 0 : index
    %101 = vector.load %arg3[%c0_29, %c0_30] : memref<1x7680xf32, #tpu.memory_space<vmem>>, vector<1x32xf32>
    %102 = vector.broadcast %101 : vector<1x32xf32> to vector<32x32xf32>
    %103 = arith.addf %100, %102 : vector<32x32xf32>
    %c0_31 = arith.constant 0 : index
    %c0_32 = arith.constant 0 : index
    %104 = vector.load %arg2[%c0_31, %c0_32] : memref<32x32xf32, #tpu.memory_space<vmem>>, vector<32x32xf32>
    %c0_33 = arith.constant 0 : index
    %c128 = arith.constant 128 : index
    %105 = vector.load %arg3[%c0_33, %c128] : memref<1x7680xf32, #tpu.memory_space<vmem>>, vector<1x32xf32>
    %c0_34 = arith.constant 0 : index
    %c256 = arith.constant 256 : index
    %106 = vector.load %arg3[%c0_34, %c256] : memref<1x7680xf32, #tpu.memory_space<vmem>>, vector<1x32xf32>
    %cst_35 = arith.constant dense<0.000000e+00> : vector<32xf32>
    %107 = vector.multi_reduction <add>, %104, %cst_35 [1] : vector<32x32xf32> to vector<32xf32>
    %108 = vector.shape_cast %107 : vector<32xf32> to vector<32x1xf32>
    %cst_36 = arith.constant 3.200000e+01 : f32
    %109 = vector.broadcast %cst_36 : f32 to vector<32x1xf32>
    %110 = arith.divf %108, %109 : vector<32x1xf32>
    %111 = vector.broadcast %110 : vector<32x1xf32> to vector<32x32xf32>
    %112 = arith.subf %104, %111 : vector<32x32xf32>
    %113 = arith.mulf %112, %112 : vector<32x32xf32>
    %cst_37 = arith.constant dense<0.000000e+00> : vector<32xf32>
    %114 = vector.multi_reduction <add>, %113, %cst_37 [1] : vector<32x32xf32> to vector<32xf32>
    %115 = vector.shape_cast %114 : vector<32xf32> to vector<32x1xf32>
    %cst_38 = arith.constant 3.200000e+01 : f32
    %116 = vector.broadcast %cst_38 : f32 to vector<32x1xf32>
    %117 = arith.divf %115, %116 : vector<32x1xf32>
    %cst_39 = arith.constant 9.99999974E-6 : f32
    %118 = vector.broadcast %cst_39 : f32 to vector<32x1xf32>
    %119 = arith.addf %117, %118 : vector<32x1xf32>
    %120 = math.rsqrt %119 : vector<32x1xf32>
    %121 = vector.broadcast %120 : vector<32x1xf32> to vector<32x32xf32>
    %122 = arith.mulf %112, %121 : vector<32x32xf32>
    %123 = vector.broadcast %105 : vector<1x32xf32> to vector<32x32xf32>
    %124 = arith.mulf %122, %123 : vector<32x32xf32>
    %125 = vector.broadcast %106 : vector<1x32xf32> to vector<32x32xf32>
    %126 = arith.addf %124, %125 : vector<32x32xf32>
    %c0_40 = arith.constant 0 : index
    %c0_41 = arith.constant 0 : index
    %127 = vector.load %arg5[%c0_40, %c0_41] : memref<32x5120xbf16, #tpu.memory_space<vmem>>, vector<32x768xbf16>
    %128 = arith.truncf %126 : vector<32x32xf32> to vector<32x32xbf16>
    %cst_42 = arith.constant dense<0.000000e+00> : vector<32x768xf32>
    %129 = tpu.matmul %128, %127, %cst_42 {dimension_numbers = #tpu.dot_dimension_numbers<[1], [0], [0], [1], [0, 0, 1, 1], [], []>} : vector<32x32xbf16>, vector<32x768xbf16>, vector<32x768xf32> -> vector<32x768xf32>
    %130 = vector.extract_strided_slice %129 {offsets = [0, 0], sizes = [32, 256], strides = [1, 1]} : vector<32x768xf32> to vector<32x256xf32>
    %131 = vector.extract_strided_slice %129 {offsets = [0, 256], sizes = [32, 256], strides = [1, 1]} : vector<32x768xf32> to vector<32x256xf32>
    %132 = vector.extract_strided_slice %129 {offsets = [0, 512], sizes = [32, 256], strides = [1, 1]} : vector<32x768xf32> to vector<32x256xf32>
    %c0_43 = arith.constant 0 : index
    %c0_44 = arith.constant 0 : index
    %133 = vector.load %arg8[%c0_43, %c0_44] : memref<256x512xbf16, #tpu.memory_space<vmem>>, vector<256x32xbf16>
    %c0_45 = arith.constant 0 : index
    %c384 = arith.constant 384 : index
    %134 = vector.load %arg3[%c0_45, %c384] : memref<1x7680xf32, #tpu.memory_space<vmem>>, vector<1x32xf32>
    %135 = vector.extract_strided_slice %130 {offsets = [0, 0], sizes = [32, 64], strides = [1, 1]} : vector<32x256xf32> to vector<32x64xf32>
    %136 = arith.truncf %135 : vector<32x64xf32> to vector<32x64xbf16>
    %137 = vector.extract_strided_slice %131 {offsets = [0, 0], sizes = [32, 64], strides = [1, 1]} : vector<32x256xf32> to vector<32x64xf32>
    %138 = arith.truncf %137 : vector<32x64xf32> to vector<32x64xbf16>
    %cst_46 = arith.constant dense<0.000000e+00> : vector<32x32xf32>
    %139 = tpu.matmul %136, %138, %cst_46 {dimension_numbers = #tpu.dot_dimension_numbers<[1], [1], [0], [0], [0, 0, 1, 0], [], []>} : vector<32x64xbf16>, vector<32x64xbf16>, vector<32x32xf32> -> vector<32x32xf32>
    %140 = arith.addf %139, %31 : vector<32x32xf32>
    %cst_47 = arith.constant dense<0xFF800000> : vector<32xf32>
    %141 = vector.multi_reduction <maximumf>, %140, %cst_47 [1] : vector<32x32xf32> to vector<32xf32>
    %142 = vector.shape_cast %141 : vector<32xf32> to vector<32x1xf32>
    %143 = vector.broadcast %142 : vector<32x1xf32> to vector<32x32xf32>
    %144 = arith.subf %140, %143 : vector<32x32xf32>
    %145 = math.exp %144 : vector<32x32xf32>
    %cst_48 = arith.constant dense<0.000000e+00> : vector<32xf32>
    %146 = vector.multi_reduction <add>, %145, %cst_48 [1] : vector<32x32xf32> to vector<32xf32>
    %147 = vector.shape_cast %146 : vector<32xf32> to vector<32x1xf32>
    %148 = tpu.reciprocal %147 {approx = true} : vector<32x1xf32> -> vector<32x1xf32>
    %149 = vector.broadcast %148 : vector<32x1xf32> to vector<32x32xf32>
    %150 = arith.mulf %145, %149 : vector<32x32xf32>
    %151 = arith.truncf %150 : vector<32x32xf32> to vector<32x32xbf16>
    %152 = vector.extract_strided_slice %132 {offsets = [0, 0], sizes = [32, 64], strides = [1, 1]} : vector<32x256xf32> to vector<32x64xf32>
    %153 = arith.truncf %152 : vector<32x64xf32> to vector<32x64xbf16>
    %cst_49 = arith.constant dense<0.000000e+00> : vector<32x64xf32>
    %154 = tpu.matmul %151, %153, %cst_49 {dimension_numbers = #tpu.dot_dimension_numbers<[1], [0], [0], [1], [0, 0, 1, 1], [], []>} : vector<32x32xbf16>, vector<32x64xbf16>, vector<32x64xf32> -> vector<32x64xf32>
    %155 = vector.extract_strided_slice %130 {offsets = [0, 64], sizes = [32, 64], strides = [1, 1]} : vector<32x256xf32> to vector<32x64xf32>
    %156 = arith.truncf %155 : vector<32x64xf32> to vector<32x64xbf16>
    %157 = vector.extract_strided_slice %131 {offsets = [0, 64], sizes = [32, 64], strides = [1, 1]} : vector<32x256xf32> to vector<32x64xf32>
    %158 = arith.truncf %157 : vector<32x64xf32> to vector<32x64xbf16>
    %cst_50 = arith.constant dense<0.000000e+00> : vector<32x32xf32>
    %159 = tpu.matmul %156, %158, %cst_50 {dimension_numbers = #tpu.dot_dimension_numbers<[1], [1], [0], [0], [0, 0, 1, 0], [], []>} : vector<32x64xbf16>, vector<32x64xbf16>, vector<32x32xf32> -> vector<32x32xf32>
    %160 = arith.addf %159, %31 : vector<32x32xf32>
    %cst_51 = arith.constant dense<0xFF800000> : vector<32xf32>
    %161 = vector.multi_reduction <maximumf>, %160, %cst_51 [1] : vector<32x32xf32> to vector<32xf32>
    %162 = vector.shape_cast %161 : vector<32xf32> to vector<32x1xf32>
    %163 = vector.broadcast %162 : vector<32x1xf32> to vector<32x32xf32>
    %164 = arith.subf %160, %163 : vector<32x32xf32>
    %165 = math.exp %164 : vector<32x32xf32>
    %cst_52 = arith.constant dense<0.000000e+00> : vector<32xf32>
    %166 = vector.multi_reduction <add>, %165, %cst_52 [1] : vector<32x32xf32> to vector<32xf32>
    %167 = vector.shape_cast %166 : vector<32xf32> to vector<32x1xf32>
    %168 = tpu.reciprocal %167 {approx = true} : vector<32x1xf32> -> vector<32x1xf32>
    %169 = vector.broadcast %168 : vector<32x1xf32> to vector<32x32xf32>
    %170 = arith.mulf %165, %169 : vector<32x32xf32>
    %171 = arith.truncf %170 : vector<32x32xf32> to vector<32x32xbf16>
    %172 = vector.extract_strided_slice %132 {offsets = [0, 64], sizes = [32, 64], strides = [1, 1]} : vector<32x256xf32> to vector<32x64xf32>
    %173 = arith.truncf %172 : vector<32x64xf32> to vector<32x64xbf16>
    %cst_53 = arith.constant dense<0.000000e+00> : vector<32x64xf32>
    %174 = tpu.matmul %171, %173, %cst_53 {dimension_numbers = #tpu.dot_dimension_numbers<[1], [0], [0], [1], [0, 0, 1, 1], [], []>} : vector<32x32xbf16>, vector<32x64xbf16>, vector<32x64xf32> -> vector<32x64xf32>
    %175 = vector.extract_strided_slice %130 {offsets = [0, 128], sizes = [32, 64], strides = [1, 1]} : vector<32x256xf32> to vector<32x64xf32>
    %176 = arith.truncf %175 : vector<32x64xf32> to vector<32x64xbf16>
    %177 = vector.extract_strided_slice %131 {offsets = [0, 128], sizes = [32, 64], strides = [1, 1]} : vector<32x256xf32> to vector<32x64xf32>
    %178 = arith.truncf %177 : vector<32x64xf32> to vector<32x64xbf16>
    %cst_54 = arith.constant dense<0.000000e+00> : vector<32x32xf32>
    %179 = tpu.matmul %176, %178, %cst_54 {dimension_numbers = #tpu.dot_dimension_numbers<[1], [1], [0], [0], [0, 0, 1, 0], [], []>} : vector<32x64xbf16>, vector<32x64xbf16>, vector<32x32xf32> -> vector<32x32xf32>
    %180 = arith.addf %179, %31 : vector<32x32xf32>
    %cst_55 = arith.constant dense<0xFF800000> : vector<32xf32>
    %181 = vector.multi_reduction <maximumf>, %180, %cst_55 [1] : vector<32x32xf32> to vector<32xf32>
    %182 = vector.shape_cast %181 : vector<32xf32> to vector<32x1xf32>
    %183 = vector.broadcast %182 : vector<32x1xf32> to vector<32x32xf32>
    %184 = arith.subf %180, %183 : vector<32x32xf32>
    %185 = math.exp %184 : vector<32x32xf32>
    %cst_56 = arith.constant dense<0.000000e+00> : vector<32xf32>
    %186 = vector.multi_reduction <add>, %185, %cst_56 [1] : vector<32x32xf32> to vector<32xf32>
    %187 = vector.shape_cast %186 : vector<32xf32> to vector<32x1xf32>
    %188 = tpu.reciprocal %187 {approx = true} : vector<32x1xf32> -> vector<32x1xf32>
    %189 = vector.broadcast %188 : vector<32x1xf32> to vector<32x32xf32>
    %190 = arith.mulf %185, %189 : vector<32x32xf32>
    %191 = arith.truncf %190 : vector<32x32xf32> to vector<32x32xbf16>
    %192 = vector.extract_strided_slice %132 {offsets = [0, 128], sizes = [32, 64], strides = [1, 1]} : vector<32x256xf32> to vector<32x64xf32>
    %193 = arith.truncf %192 : vector<32x64xf32> to vector<32x64xbf16>
    %cst_57 = arith.constant dense<0.000000e+00> : vector<32x64xf32>
    %194 = tpu.matmul %191, %193, %cst_57 {dimension_numbers = #tpu.dot_dimension_numbers<[1], [0], [0], [1], [0, 0, 1, 1], [], []>} : vector<32x32xbf16>, vector<32x64xbf16>, vector<32x64xf32> -> vector<32x64xf32>
    %195 = vector.extract_strided_slice %130 {offsets = [0, 192], sizes = [32, 64], strides = [1, 1]} : vector<32x256xf32> to vector<32x64xf32>
    %196 = arith.truncf %195 : vector<32x64xf32> to vector<32x64xbf16>
    %197 = vector.extract_strided_slice %131 {offsets = [0, 192], sizes = [32, 64], strides = [1, 1]} : vector<32x256xf32> to vector<32x64xf32>
    %198 = arith.truncf %197 : vector<32x64xf32> to vector<32x64xbf16>
    %cst_58 = arith.constant dense<0.000000e+00> : vector<32x32xf32>
    %199 = tpu.matmul %196, %198, %cst_58 {dimension_numbers = #tpu.dot_dimension_numbers<[1], [1], [0], [0], [0, 0, 1, 0], [], []>} : vector<32x64xbf16>, vector<32x64xbf16>, vector<32x32xf32> -> vector<32x32xf32>
    %200 = arith.addf %199, %31 : vector<32x32xf32>
    %cst_59 = arith.constant dense<0xFF800000> : vector<32xf32>
    %201 = vector.multi_reduction <maximumf>, %200, %cst_59 [1] : vector<32x32xf32> to vector<32xf32>
    %202 = vector.shape_cast %201 : vector<32xf32> to vector<32x1xf32>
    %203 = vector.broadcast %202 : vector<32x1xf32> to vector<32x32xf32>
    %204 = arith.subf %200, %203 : vector<32x32xf32>
    %205 = math.exp %204 : vector<32x32xf32>
    %cst_60 = arith.constant dense<0.000000e+00> : vector<32xf32>
    %206 = vector.multi_reduction <add>, %205, %cst_60 [1] : vector<32x32xf32> to vector<32xf32>
    %207 = vector.shape_cast %206 : vector<32xf32> to vector<32x1xf32>
    %208 = tpu.reciprocal %207 {approx = true} : vector<32x1xf32> -> vector<32x1xf32>
    %209 = vector.broadcast %208 : vector<32x1xf32> to vector<32x32xf32>
    %210 = arith.mulf %205, %209 : vector<32x32xf32>
    %211 = arith.truncf %210 : vector<32x32xf32> to vector<32x32xbf16>
    %212 = vector.extract_strided_slice %132 {offsets = [0, 192], sizes = [32, 64], strides = [1, 1]} : vector<32x256xf32> to vector<32x64xf32>
    %213 = arith.truncf %212 : vector<32x64xf32> to vector<32x64xbf16>
    %cst_61 = arith.constant dense<0.000000e+00> : vector<32x64xf32>
    %214 = tpu.matmul %211, %213, %cst_61 {dimension_numbers = #tpu.dot_dimension_numbers<[1], [0], [0], [1], [0, 0, 1, 1], [], []>} : vector<32x32xbf16>, vector<32x64xbf16>, vector<32x64xf32> -> vector<32x64xf32>
    %215 = tpu.concatenate %154, %174, %194, %214 in 1 : vector<32x64xf32>, vector<32x64xf32>, vector<32x64xf32>, vector<32x64xf32> -> vector<32x256xf32>
    %216 = arith.truncf %215 : vector<32x256xf32> to vector<32x256xbf16>
    %cst_62 = arith.constant dense<0.000000e+00> : vector<32x32xf32>
    %217 = tpu.matmul %216, %133, %cst_62 {dimension_numbers = #tpu.dot_dimension_numbers<[1], [0], [0], [1], [0, 0, 1, 1], [], []>} : vector<32x256xbf16>, vector<256x32xbf16>, vector<32x32xf32> -> vector<32x32xf32>
    %218 = vector.broadcast %134 : vector<1x32xf32> to vector<32x32xf32>
    %219 = arith.addf %217, %218 : vector<32x32xf32>
    %220 = arith.addf %104, %219 : vector<32x32xf32>
    %c0_63 = arith.constant 0 : index
    %c512 = arith.constant 512 : index
    %221 = vector.load %arg3[%c0_63, %c512] : memref<1x7680xf32, #tpu.memory_space<vmem>>, vector<1x32xf32>
    %c0_64 = arith.constant 0 : index
    %c640 = arith.constant 640 : index
    %222 = vector.load %arg3[%c0_64, %c640] : memref<1x7680xf32, #tpu.memory_space<vmem>>, vector<1x32xf32>
    %cst_65 = arith.constant dense<0.000000e+00> : vector<32xf32>
    %223 = vector.multi_reduction <add>, %220, %cst_65 [1] : vector<32x32xf32> to vector<32xf32>
    %224 = vector.shape_cast %223 : vector<32xf32> to vector<32x1xf32>
    %cst_66 = arith.constant 3.200000e+01 : f32
    %225 = vector.broadcast %cst_66 : f32 to vector<32x1xf32>
    %226 = arith.divf %224, %225 : vector<32x1xf32>
    %227 = vector.broadcast %226 : vector<32x1xf32> to vector<32x32xf32>
    %228 = arith.subf %220, %227 : vector<32x32xf32>
    %229 = arith.mulf %228, %228 : vector<32x32xf32>
    %cst_67 = arith.constant dense<0.000000e+00> : vector<32xf32>
    %230 = vector.multi_reduction <add>, %229, %cst_67 [1] : vector<32x32xf32> to vector<32xf32>
    %231 = vector.shape_cast %230 : vector<32xf32> to vector<32x1xf32>
    %cst_68 = arith.constant 3.200000e+01 : f32
    %232 = vector.broadcast %cst_68 : f32 to vector<32x1xf32>
    %233 = arith.divf %231, %232 : vector<32x1xf32>
    %cst_69 = arith.constant 9.99999974E-6 : f32
    %234 = vector.broadcast %cst_69 : f32 to vector<32x1xf32>
    %235 = arith.addf %233, %234 : vector<32x1xf32>
    %236 = math.rsqrt %235 : vector<32x1xf32>
    %237 = vector.broadcast %236 : vector<32x1xf32> to vector<32x32xf32>
    %238 = arith.mulf %228, %237 : vector<32x32xf32>
    %239 = vector.broadcast %221 : vector<1x32xf32> to vector<32x32xf32>
    %240 = arith.mulf %238, %239 : vector<32x32xf32>
    %241 = vector.broadcast %222 : vector<1x32xf32> to vector<32x32xf32>
    %242 = arith.addf %240, %241 : vector<32x32xf32>
    %c0_70 = arith.constant 0 : index
    %c768 = arith.constant 768 : index
    %243 = vector.load %arg5[%c0_70, %c768] : memref<32x5120xbf16, #tpu.memory_space<vmem>>, vector<32x128xbf16>
    %c0_71 = arith.constant 0 : index
    %c768_72 = arith.constant 768 : index
    %244 = vector.load %arg3[%c0_71, %c768_72] : memref<1x7680xf32, #tpu.memory_space<vmem>>, vector<1x128xf32>
    %c0_73 = arith.constant 0 : index
    %c0_74 = arith.constant 0 : index
    %245 = vector.load %arg7[%c0_73, %c0_74] : memref<128x896xbf16, #tpu.memory_space<vmem>>, vector<128x32xbf16>
    %c0_75 = arith.constant 0 : index
    %c896 = arith.constant 896 : index
    %246 = vector.load %arg3[%c0_75, %c896] : memref<1x7680xf32, #tpu.memory_space<vmem>>, vector<1x32xf32>
    %247 = arith.truncf %242 : vector<32x32xf32> to vector<32x32xbf16>
    %cst_76 = arith.constant dense<0.000000e+00> : vector<32x128xf32>
    %248 = tpu.matmul %247, %243, %cst_76 {dimension_numbers = #tpu.dot_dimension_numbers<[1], [0], [0], [1], [0, 0, 1, 1], [], []>} : vector<32x32xbf16>, vector<32x128xbf16>, vector<32x128xf32> -> vector<32x128xf32>
    %249 = vector.broadcast %244 : vector<1x128xf32> to vector<32x128xf32>
    %250 = arith.addf %248, %249 : vector<32x128xf32>
    %cst_77 = arith.constant 5.000000e-01 : f32
    %251 = vector.broadcast %cst_77 : f32 to vector<32x128xf32>
    %252 = arith.mulf %251, %250 : vector<32x128xf32>
    %cst_78 = arith.constant 4.471500e-02 : f32
    %253 = vector.broadcast %cst_78 : f32 to vector<32x128xf32>
    %254 = arith.mulf %253, %250 : vector<32x128xf32>
    %255 = arith.mulf %254, %250 : vector<32x128xf32>
    %256 = arith.mulf %255, %250 : vector<32x128xf32>
    %257 = arith.addf %250, %256 : vector<32x128xf32>
    %cst_79 = arith.constant 0.797884583 : f32
    %258 = vector.broadcast %cst_79 : f32 to vector<32x128xf32>
    %259 = arith.mulf %258, %257 : vector<32x128xf32>
    %260 = math.tanh %259 : vector<32x128xf32>
    %cst_80 = arith.constant 1.000000e+00 : f32
    %261 = vector.broadcast %cst_80 : f32 to vector<32x128xf32>
    %262 = arith.addf %261, %260 : vector<32x128xf32>
    %263 = arith.mulf %252, %262 : vector<32x128xf32>
    %264 = arith.truncf %263 : vector<32x128xf32> to vector<32x128xbf16>
    %cst_81 = arith.constant dense<0.000000e+00> : vector<32x32xf32>
    %265 = tpu.matmul %264, %245, %cst_81 {dimension_numbers = #tpu.dot_dimension_numbers<[1], [0], [0], [1], [0, 0, 1, 1], [], []>} : vector<32x128xbf16>, vector<128x32xbf16>, vector<32x32xf32> -> vector<32x32xf32>
    %266 = vector.broadcast %246 : vector<1x32xf32> to vector<32x32xf32>
    %267 = arith.addf %265, %266 : vector<32x32xf32>
    %268 = arith.addf %220, %267 : vector<32x32xf32>
    %c0_82 = arith.constant 0 : index
    %c1024 = arith.constant 1024 : index
    %269 = vector.load %arg3[%c0_82, %c1024] : memref<1x7680xf32, #tpu.memory_space<vmem>>, vector<1x32xf32>
    %c0_83 = arith.constant 0 : index
    %c1152 = arith.constant 1152 : index
    %270 = vector.load %arg3[%c0_83, %c1152] : memref<1x7680xf32, #tpu.memory_space<vmem>>, vector<1x32xf32>
    %cst_84 = arith.constant dense<0.000000e+00> : vector<32xf32>
    %271 = vector.multi_reduction <add>, %268, %cst_84 [1] : vector<32x32xf32> to vector<32xf32>
    %272 = vector.shape_cast %271 : vector<32xf32> to vector<32x1xf32>
    %cst_85 = arith.constant 3.200000e+01 : f32
    %273 = vector.broadcast %cst_85 : f32 to vector<32x1xf32>
    %274 = arith.divf %272, %273 : vector<32x1xf32>
    %275 = vector.broadcast %274 : vector<32x1xf32> to vector<32x32xf32>
    %276 = arith.subf %268, %275 : vector<32x32xf32>
    %277 = arith.mulf %276, %276 : vector<32x32xf32>
    %cst_86 = arith.constant dense<0.000000e+00> : vector<32xf32>
    %278 = vector.multi_reduction <add>, %277, %cst_86 [1] : vector<32x32xf32> to vector<32xf32>
    %279 = vector.shape_cast %278 : vector<32xf32> to vector<32x1xf32>
    %cst_87 = arith.constant 3.200000e+01 : f32
    %280 = vector.broadcast %cst_87 : f32 to vector<32x1xf32>
    %281 = arith.divf %279, %280 : vector<32x1xf32>
    %cst_88 = arith.constant 9.99999974E-6 : f32
    %282 = vector.broadcast %cst_88 : f32 to vector<32x1xf32>
    %283 = arith.addf %281, %282 : vector<32x1xf32>
    %284 = math.rsqrt %283 : vector<32x1xf32>
    %285 = vector.broadcast %284 : vector<32x1xf32> to vector<32x32xf32>
    %286 = arith.mulf %276, %285 : vector<32x32xf32>
    %287 = vector.broadcast %269 : vector<1x32xf32> to vector<32x32xf32>
    %288 = arith.mulf %286, %287 : vector<32x32xf32>
    %289 = vector.broadcast %270 : vector<1x32xf32> to vector<32x32xf32>
    %290 = arith.addf %288, %289 : vector<32x32xf32>
    %c0_89 = arith.constant 0 : index
    %c896_90 = arith.constant 896 : index
    %291 = vector.load %arg5[%c0_89, %c896_90] : memref<32x5120xbf16, #tpu.memory_space<vmem>>, vector<32x768xbf16>
    %292 = arith.truncf %290 : vector<32x32xf32> to vector<32x32xbf16>
    %cst_91 = arith.constant dense<0.000000e+00> : vector<32x768xf32>
    %293 = tpu.matmul %292, %291, %cst_91 {dimension_numbers = #tpu.dot_dimension_numbers<[1], [0], [0], [1], [0, 0, 1, 1], [], []>} : vector<32x32xbf16>, vector<32x768xbf16>, vector<32x768xf32> -> vector<32x768xf32>
    %294 = vector.extract_strided_slice %293 {offsets = [0, 0], sizes = [32, 256], strides = [1, 1]} : vector<32x768xf32> to vector<32x256xf32>
    %295 = vector.extract_strided_slice %293 {offsets = [0, 256], sizes = [32, 256], strides = [1, 1]} : vector<32x768xf32> to vector<32x256xf32>
    %296 = vector.extract_strided_slice %293 {offsets = [0, 512], sizes = [32, 256], strides = [1, 1]} : vector<32x768xf32> to vector<32x256xf32>
    %c0_92 = arith.constant 0 : index
    %c128_93 = arith.constant 128 : index
    %297 = vector.load %arg8[%c0_92, %c128_93] : memref<256x512xbf16, #tpu.memory_space<vmem>>, vector<256x32xbf16>
    %c0_94 = arith.constant 0 : index
    %c1280 = arith.constant 1280 : index
    %298 = vector.load %arg3[%c0_94, %c1280] : memref<1x7680xf32, #tpu.memory_space<vmem>>, vector<1x32xf32>
    %299 = vector.extract_strided_slice %294 {offsets = [0, 0], sizes = [32, 64], strides = [1, 1]} : vector<32x256xf32> to vector<32x64xf32>
    %300 = arith.truncf %299 : vector<32x64xf32> to vector<32x64xbf16>
    %301 = vector.extract_strided_slice %295 {offsets = [0, 0], sizes = [32, 64], strides = [1, 1]} : vector<32x256xf32> to vector<32x64xf32>
    %302 = arith.truncf %301 : vector<32x64xf32> to vector<32x64xbf16>
    %cst_95 = arith.constant dense<0.000000e+00> : vector<32x32xf32>
    %303 = tpu.matmul %300, %302, %cst_95 {dimension_numbers = #tpu.dot_dimension_numbers<[1], [1], [0], [0], [0, 0, 1, 0], [], []>} : vector<32x64xbf16>, vector<32x64xbf16>, vector<32x32xf32> -> vector<32x32xf32>
    %304 = arith.addf %303, %31 : vector<32x32xf32>
    %cst_96 = arith.constant dense<0xFF800000> : vector<32xf32>
    %305 = vector.multi_reduction <maximumf>, %304, %cst_96 [1] : vector<32x32xf32> to vector<32xf32>
    %306 = vector.shape_cast %305 : vector<32xf32> to vector<32x1xf32>
    %307 = vector.broadcast %306 : vector<32x1xf32> to vector<32x32xf32>
    %308 = arith.subf %304, %307 : vector<32x32xf32>
    %309 = math.exp %308 : vector<32x32xf32>
    %cst_97 = arith.constant dense<0.000000e+00> : vector<32xf32>
    %310 = vector.multi_reduction <add>, %309, %cst_97 [1] : vector<32x32xf32> to vector<32xf32>
    %311 = vector.shape_cast %310 : vector<32xf32> to vector<32x1xf32>
    %312 = tpu.reciprocal %311 {approx = true} : vector<32x1xf32> -> vector<32x1xf32>
    %313 = vector.broadcast %312 : vector<32x1xf32> to vector<32x32xf32>
    %314 = arith.mulf %309, %313 : vector<32x32xf32>
    %315 = arith.truncf %314 : vector<32x32xf32> to vector<32x32xbf16>
    %316 = vector.extract_strided_slice %296 {offsets = [0, 0], sizes = [32, 64], strides = [1, 1]} : vector<32x256xf32> to vector<32x64xf32>
    %317 = arith.truncf %316 : vector<32x64xf32> to vector<32x64xbf16>
    %cst_98 = arith.constant dense<0.000000e+00> : vector<32x64xf32>
    %318 = tpu.matmul %315, %317, %cst_98 {dimension_numbers = #tpu.dot_dimension_numbers<[1], [0], [0], [1], [0, 0, 1, 1], [], []>} : vector<32x32xbf16>, vector<32x64xbf16>, vector<32x64xf32> -> vector<32x64xf32>
    %319 = vector.extract_strided_slice %294 {offsets = [0, 64], sizes = [32, 64], strides = [1, 1]} : vector<32x256xf32> to vector<32x64xf32>
    %320 = arith.truncf %319 : vector<32x64xf32> to vector<32x64xbf16>
    %321 = vector.extract_strided_slice %295 {offsets = [0, 64], sizes = [32, 64], strides = [1, 1]} : vector<32x256xf32> to vector<32x64xf32>
    %322 = arith.truncf %321 : vector<32x64xf32> to vector<32x64xbf16>
    %cst_99 = arith.constant dense<0.000000e+00> : vector<32x32xf32>
    %323 = tpu.matmul %320, %322, %cst_99 {dimension_numbers = #tpu.dot_dimension_numbers<[1], [1], [0], [0], [0, 0, 1, 0], [], []>} : vector<32x64xbf16>, vector<32x64xbf16>, vector<32x32xf32> -> vector<32x32xf32>
    %324 = arith.addf %323, %31 : vector<32x32xf32>
    %cst_100 = arith.constant dense<0xFF800000> : vector<32xf32>
    %325 = vector.multi_reduction <maximumf>, %324, %cst_100 [1] : vector<32x32xf32> to vector<32xf32>
    %326 = vector.shape_cast %325 : vector<32xf32> to vector<32x1xf32>
    %327 = vector.broadcast %326 : vector<32x1xf32> to vector<32x32xf32>
    %328 = arith.subf %324, %327 : vector<32x32xf32>
    %329 = math.exp %328 : vector<32x32xf32>
    %cst_101 = arith.constant dense<0.000000e+00> : vector<32xf32>
    %330 = vector.multi_reduction <add>, %329, %cst_101 [1] : vector<32x32xf32> to vector<32xf32>
    %331 = vector.shape_cast %330 : vector<32xf32> to vector<32x1xf32>
    %332 = tpu.reciprocal %331 {approx = true} : vector<32x1xf32> -> vector<32x1xf32>
    %333 = vector.broadcast %332 : vector<32x1xf32> to vector<32x32xf32>
    %334 = arith.mulf %329, %333 : vector<32x32xf32>
    %335 = arith.truncf %334 : vector<32x32xf32> to vector<32x32xbf16>
    %336 = vector.extract_strided_slice %296 {offsets = [0, 64], sizes = [32, 64], strides = [1, 1]} : vector<32x256xf32> to vector<32x64xf32>
    %337 = arith.truncf %336 : vector<32x64xf32> to vector<32x64xbf16>
    %cst_102 = arith.constant dense<0.000000e+00> : vector<32x64xf32>
    %338 = tpu.matmul %335, %337, %cst_102 {dimension_numbers = #tpu.dot_dimension_numbers<[1], [0], [0], [1], [0, 0, 1, 1], [], []>} : vector<32x32xbf16>, vector<32x64xbf16>, vector<32x64xf32> -> vector<32x64xf32>
    %339 = vector.extract_strided_slice %294 {offsets = [0, 128], sizes = [32, 64], strides = [1, 1]} : vector<32x256xf32> to vector<32x64xf32>
    %340 = arith.truncf %339 : vector<32x64xf32> to vector<32x64xbf16>
    %341 = vector.extract_strided_slice %295 {offsets = [0, 128], sizes = [32, 64], strides = [1, 1]} : vector<32x256xf32> to vector<32x64xf32>
    %342 = arith.truncf %341 : vector<32x64xf32> to vector<32x64xbf16>
    %cst_103 = arith.constant dense<0.000000e+00> : vector<32x32xf32>
    %343 = tpu.matmul %340, %342, %cst_103 {dimension_numbers = #tpu.dot_dimension_numbers<[1], [1], [0], [0], [0, 0, 1, 0], [], []>} : vector<32x64xbf16>, vector<32x64xbf16>, vector<32x32xf32> -> vector<32x32xf32>
    %344 = arith.addf %343, %31 : vector<32x32xf32>
    %cst_104 = arith.constant dense<0xFF800000> : vector<32xf32>
    %345 = vector.multi_reduction <maximumf>, %344, %cst_104 [1] : vector<32x32xf32> to vector<32xf32>
    %346 = vector.shape_cast %345 : vector<32xf32> to vector<32x1xf32>
    %347 = vector.broadcast %346 : vector<32x1xf32> to vector<32x32xf32>
    %348 = arith.subf %344, %347 : vector<32x32xf32>
    %349 = math.exp %348 : vector<32x32xf32>
    %cst_105 = arith.constant dense<0.000000e+00> : vector<32xf32>
    %350 = vector.multi_reduction <add>, %349, %cst_105 [1] : vector<32x32xf32> to vector<32xf32>
    %351 = vector.shape_cast %350 : vector<32xf32> to vector<32x1xf32>
    %352 = tpu.reciprocal %351 {approx = true} : vector<32x1xf32> -> vector<32x1xf32>
    %353 = vector.broadcast %352 : vector<32x1xf32> to vector<32x32xf32>
    %354 = arith.mulf %349, %353 : vector<32x32xf32>
    %355 = arith.truncf %354 : vector<32x32xf32> to vector<32x32xbf16>
    %356 = vector.extract_strided_slice %296 {offsets = [0, 128], sizes = [32, 64], strides = [1, 1]} : vector<32x256xf32> to vector<32x64xf32>
    %357 = arith.truncf %356 : vector<32x64xf32> to vector<32x64xbf16>
    %cst_106 = arith.constant dense<0.000000e+00> : vector<32x64xf32>
    %358 = tpu.matmul %355, %357, %cst_106 {dimension_numbers = #tpu.dot_dimension_numbers<[1], [0], [0], [1], [0, 0, 1, 1], [], []>} : vector<32x32xbf16>, vector<32x64xbf16>, vector<32x64xf32> -> vector<32x64xf32>
    %359 = vector.extract_strided_slice %294 {offsets = [0, 192], sizes = [32, 64], strides = [1, 1]} : vector<32x256xf32> to vector<32x64xf32>
    %360 = arith.truncf %359 : vector<32x64xf32> to vector<32x64xbf16>
    %361 = vector.extract_strided_slice %295 {offsets = [0, 192], sizes = [32, 64], strides = [1, 1]} : vector<32x256xf32> to vector<32x64xf32>
    %362 = arith.truncf %361 : vector<32x64xf32> to vector<32x64xbf16>
    %cst_107 = arith.constant dense<0.000000e+00> : vector<32x32xf32>
    %363 = tpu.matmul %360, %362, %cst_107 {dimension_numbers = #tpu.dot_dimension_numbers<[1], [1], [0], [0], [0, 0, 1, 0], [], []>} : vector<32x64xbf16>, vector<32x64xbf16>, vector<32x32xf32> -> vector<32x32xf32>
    %364 = arith.addf %363, %31 : vector<32x32xf32>
    %cst_108 = arith.constant dense<0xFF800000> : vector<32xf32>
    %365 = vector.multi_reduction <maximumf>, %364, %cst_108 [1] : vector<32x32xf32> to vector<32xf32>
    %366 = vector.shape_cast %365 : vector<32xf32> to vector<32x1xf32>
    %367 = vector.broadcast %366 : vector<32x1xf32> to vector<32x32xf32>
    %368 = arith.subf %364, %367 : vector<32x32xf32>
    %369 = math.exp %368 : vector<32x32xf32>
    %cst_109 = arith.constant dense<0.000000e+00> : vector<32xf32>
    %370 = vector.multi_reduction <add>, %369, %cst_109 [1] : vector<32x32xf32> to vector<32xf32>
    %371 = vector.shape_cast %370 : vector<32xf32> to vector<32x1xf32>
    %372 = tpu.reciprocal %371 {approx = true} : vector<32x1xf32> -> vector<32x1xf32>
    %373 = vector.broadcast %372 : vector<32x1xf32> to vector<32x32xf32>
    %374 = arith.mulf %369, %373 : vector<32x32xf32>
    %375 = arith.truncf %374 : vector<32x32xf32> to vector<32x32xbf16>
    %376 = vector.extract_strided_slice %296 {offsets = [0, 192], sizes = [32, 64], strides = [1, 1]} : vector<32x256xf32> to vector<32x64xf32>
    %377 = arith.truncf %376 : vector<32x64xf32> to vector<32x64xbf16>
    %cst_110 = arith.constant dense<0.000000e+00> : vector<32x64xf32>
    %378 = tpu.matmul %375, %377, %cst_110 {dimension_numbers = #tpu.dot_dimension_numbers<[1], [0], [0], [1], [0, 0, 1, 1], [], []>} : vector<32x32xbf16>, vector<32x64xbf16>, vector<32x64xf32> -> vector<32x64xf32>
    %379 = tpu.concatenate %318, %338, %358, %378 in 1 : vector<32x64xf32>, vector<32x64xf32>, vector<32x64xf32>, vector<32x64xf32> -> vector<32x256xf32>
    %380 = arith.truncf %379 : vector<32x256xf32> to vector<32x256xbf16>
    %cst_111 = arith.constant dense<0.000000e+00> : vector<32x32xf32>
    %381 = tpu.matmul %380, %297, %cst_111 {dimension_numbers = #tpu.dot_dimension_numbers<[1], [0], [0], [1], [0, 0, 1, 1], [], []>} : vector<32x256xbf16>, vector<256x32xbf16>, vector<32x32xf32> -> vector<32x32xf32>
    %382 = vector.broadcast %298 : vector<1x32xf32> to vector<32x32xf32>
    %383 = arith.addf %381, %382 : vector<32x32xf32>
    %384 = arith.addf %268, %383 : vector<32x32xf32>
    %c0_112 = arith.constant 0 : index
    %c1408 = arith.constant 1408 : index
    %385 = vector.load %arg3[%c0_112, %c1408] : memref<1x7680xf32, #tpu.memory_space<vmem>>, vector<1x32xf32>
    %c0_113 = arith.constant 0 : index
    %c1536 = arith.constant 1536 : index
    %386 = vector.load %arg3[%c0_113, %c1536] : memref<1x7680xf32, #tpu.memory_space<vmem>>, vector<1x32xf32>
    %cst_114 = arith.constant dense<0.000000e+00> : vector<32xf32>
    %387 = vector.multi_reduction <add>, %384, %cst_114 [1] : vector<32x32xf32> to vector<32xf32>
    %388 = vector.shape_cast %387 : vector<32xf32> to vector<32x1xf32>
    %cst_115 = arith.constant 3.200000e+01 : f32
    %389 = vector.broadcast %cst_115 : f32 to vector<32x1xf32>
    %390 = arith.divf %388, %389 : vector<32x1xf32>
    %391 = vector.broadcast %390 : vector<32x1xf32> to vector<32x32xf32>
    %392 = arith.subf %384, %391 : vector<32x32xf32>
    %393 = arith.mulf %392, %392 : vector<32x32xf32>
    %cst_116 = arith.constant dense<0.000000e+00> : vector<32xf32>
    %394 = vector.multi_reduction <add>, %393, %cst_116 [1] : vector<32x32xf32> to vector<32xf32>
    %395 = vector.shape_cast %394 : vector<32xf32> to vector<32x1xf32>
    %cst_117 = arith.constant 3.200000e+01 : f32
    %396 = vector.broadcast %cst_117 : f32 to vector<32x1xf32>
    %397 = arith.divf %395, %396 : vector<32x1xf32>
    %cst_118 = arith.constant 9.99999974E-6 : f32
    %398 = vector.broadcast %cst_118 : f32 to vector<32x1xf32>
    %399 = arith.addf %397, %398 : vector<32x1xf32>
    %400 = math.rsqrt %399 : vector<32x1xf32>
    %401 = vector.broadcast %400 : vector<32x1xf32> to vector<32x32xf32>
    %402 = arith.mulf %392, %401 : vector<32x32xf32>
    %403 = vector.broadcast %385 : vector<1x32xf32> to vector<32x32xf32>
    %404 = arith.mulf %402, %403 : vector<32x32xf32>
    %405 = vector.broadcast %386 : vector<1x32xf32> to vector<32x32xf32>
    %406 = arith.addf %404, %405 : vector<32x32xf32>
    %c0_119 = arith.constant 0 : index
    %c1664 = arith.constant 1664 : index
    %407 = vector.load %arg5[%c0_119, %c1664] : memref<32x5120xbf16, #tpu.memory_space<vmem>>, vector<32x128xbf16>
    %c0_120 = arith.constant 0 : index
    %c1664_121 = arith.constant 1664 : index
    %408 = vector.load %arg3[%c0_120, %c1664_121] : memref<1x7680xf32, #tpu.memory_space<vmem>>, vector<1x128xf32>
    %c0_122 = arith.constant 0 : index
    %c128_123 = arith.constant 128 : index
    %409 = vector.load %arg7[%c0_122, %c128_123] : memref<128x896xbf16, #tpu.memory_space<vmem>>, vector<128x32xbf16>
    %c0_124 = arith.constant 0 : index
    %c1792 = arith.constant 1792 : index
    %410 = vector.load %arg3[%c0_124, %c1792] : memref<1x7680xf32, #tpu.memory_space<vmem>>, vector<1x32xf32>
    %411 = arith.truncf %406 : vector<32x32xf32> to vector<32x32xbf16>
    %cst_125 = arith.constant dense<0.000000e+00> : vector<32x128xf32>
    %412 = tpu.matmul %411, %407, %cst_125 {dimension_numbers = #tpu.dot_dimension_numbers<[1], [0], [0], [1], [0, 0, 1, 1], [], []>} : vector<32x32xbf16>, vector<32x128xbf16>, vector<32x128xf32> -> vector<32x128xf32>
    %413 = vector.broadcast %408 : vector<1x128xf32> to vector<32x128xf32>
    %414 = arith.addf %412, %413 : vector<32x128xf32>
    %cst_126 = arith.constant 5.000000e-01 : f32
    %415 = vector.broadcast %cst_126 : f32 to vector<32x128xf32>
    %416 = arith.mulf %415, %414 : vector<32x128xf32>
    %cst_127 = arith.constant 4.471500e-02 : f32
    %417 = vector.broadcast %cst_127 : f32 to vector<32x128xf32>
    %418 = arith.mulf %417, %414 : vector<32x128xf32>
    %419 = arith.mulf %418, %414 : vector<32x128xf32>
    %420 = arith.mulf %419, %414 : vector<32x128xf32>
    %421 = arith.addf %414, %420 : vector<32x128xf32>
    %cst_128 = arith.constant 0.797884583 : f32
    %422 = vector.broadcast %cst_128 : f32 to vector<32x128xf32>
    %423 = arith.mulf %422, %421 : vector<32x128xf32>
    %424 = math.tanh %423 : vector<32x128xf32>
    %cst_129 = arith.constant 1.000000e+00 : f32
    %425 = vector.broadcast %cst_129 : f32 to vector<32x128xf32>
    %426 = arith.addf %425, %424 : vector<32x128xf32>
    %427 = arith.mulf %416, %426 : vector<32x128xf32>
    %428 = arith.truncf %427 : vector<32x128xf32> to vector<32x128xbf16>
    %cst_130 = arith.constant dense<0.000000e+00> : vector<32x32xf32>
    %429 = tpu.matmul %428, %409, %cst_130 {dimension_numbers = #tpu.dot_dimension_numbers<[1], [0], [0], [1], [0, 0, 1, 1], [], []>} : vector<32x128xbf16>, vector<128x32xbf16>, vector<32x32xf32> -> vector<32x32xf32>
    %430 = vector.broadcast %410 : vector<1x32xf32> to vector<32x32xf32>
    %431 = arith.addf %429, %430 : vector<32x32xf32>
    %432 = arith.addf %384, %431 : vector<32x32xf32>
    %c0_131 = arith.constant 0 : index
    %c1920 = arith.constant 1920 : index
    %433 = vector.load %arg3[%c0_131, %c1920] : memref<1x7680xf32, #tpu.memory_space<vmem>>, vector<1x32xf32>
    %c0_132 = arith.constant 0 : index
    %c2048 = arith.constant 2048 : index
    %434 = vector.load %arg3[%c0_132, %c2048] : memref<1x7680xf32, #tpu.memory_space<vmem>>, vector<1x32xf32>
    %cst_133 = arith.constant dense<0.000000e+00> : vector<32xf32>
    %435 = vector.multi_reduction <add>, %432, %cst_133 [1] : vector<32x32xf32> to vector<32xf32>
    %436 = vector.shape_cast %435 : vector<32xf32> to vector<32x1xf32>
    %cst_134 = arith.constant 3.200000e+01 : f32
    %437 = vector.broadcast %cst_134 : f32 to vector<32x1xf32>
    %438 = arith.divf %436, %437 : vector<32x1xf32>
    %439 = vector.broadcast %438 : vector<32x1xf32> to vector<32x32xf32>
    %440 = arith.subf %432, %439 : vector<32x32xf32>
    %441 = arith.mulf %440, %440 : vector<32x32xf32>
    %cst_135 = arith.constant dense<0.000000e+00> : vector<32xf32>
    %442 = vector.multi_reduction <add>, %441, %cst_135 [1] : vector<32x32xf32> to vector<32xf32>
    %443 = vector.shape_cast %442 : vector<32xf32> to vector<32x1xf32>
    %cst_136 = arith.constant 3.200000e+01 : f32
    %444 = vector.broadcast %cst_136 : f32 to vector<32x1xf32>
    %445 = arith.divf %443, %444 : vector<32x1xf32>
    %cst_137 = arith.constant 9.99999974E-6 : f32
    %446 = vector.broadcast %cst_137 : f32 to vector<32x1xf32>
    %447 = arith.addf %445, %446 : vector<32x1xf32>
    %448 = math.rsqrt %447 : vector<32x1xf32>
    %449 = vector.broadcast %448 : vector<32x1xf32> to vector<32x32xf32>
    %450 = arith.mulf %440, %449 : vector<32x32xf32>
    %451 = vector.broadcast %433 : vector<1x32xf32> to vector<32x32xf32>
    %452 = arith.mulf %450, %451 : vector<32x32xf32>
    %453 = vector.broadcast %434 : vector<1x32xf32> to vector<32x32xf32>
    %454 = arith.addf %452, %453 : vector<32x32xf32>
    %c0_138 = arith.constant 0 : index
    %c1792_139 = arith.constant 1792 : index
    %455 = vector.load %arg5[%c0_138, %c1792_139] : memref<32x5120xbf16, #tpu.memory_space<vmem>>, vector<32x768xbf16>
    %456 = arith.truncf %454 : vector<32x32xf32> to vector<32x32xbf16>
    %cst_140 = arith.constant dense<0.000000e+00> : vector<32x768xf32>
    %457 = tpu.matmul %456, %455, %cst_140 {dimension_numbers = #tpu.dot_dimension_numbers<[1], [0], [0], [1], [0, 0, 1, 1], [], []>} : vector<32x32xbf16>, vector<32x768xbf16>, vector<32x768xf32> -> vector<32x768xf32>
    %458 = vector.extract_strided_slice %457 {offsets = [0, 0], sizes = [32, 256], strides = [1, 1]} : vector<32x768xf32> to vector<32x256xf32>
    %459 = vector.extract_strided_slice %457 {offsets = [0, 256], sizes = [32, 256], strides = [1, 1]} : vector<32x768xf32> to vector<32x256xf32>
    %460 = vector.extract_strided_slice %457 {offsets = [0, 512], sizes = [32, 256], strides = [1, 1]} : vector<32x768xf32> to vector<32x256xf32>
    %c0_141 = arith.constant 0 : index
    %c256_142 = arith.constant 256 : index
    %461 = vector.load %arg8[%c0_141, %c256_142] : memref<256x512xbf16, #tpu.memory_space<vmem>>, vector<256x32xbf16>
    %c0_143 = arith.constant 0 : index
    %c2176 = arith.constant 2176 : index
    %462 = vector.load %arg3[%c0_143, %c2176] : memref<1x7680xf32, #tpu.memory_space<vmem>>, vector<1x32xf32>
    %463 = vector.extract_strided_slice %458 {offsets = [0, 0], sizes = [32, 64], strides = [1, 1]} : vector<32x256xf32> to vector<32x64xf32>
    %464 = arith.truncf %463 : vector<32x64xf32> to vector<32x64xbf16>
    %465 = vector.extract_strided_slice %459 {offsets = [0, 0], sizes = [32, 64], strides = [1, 1]} : vector<32x256xf32> to vector<32x64xf32>
    %466 = arith.truncf %465 : vector<32x64xf32> to vector<32x64xbf16>
    %cst_144 = arith.constant dense<0.000000e+00> : vector<32x32xf32>
    %467 = tpu.matmul %464, %466, %cst_144 {dimension_numbers = #tpu.dot_dimension_numbers<[1], [1], [0], [0], [0, 0, 1, 0], [], []>} : vector<32x64xbf16>, vector<32x64xbf16>, vector<32x32xf32> -> vector<32x32xf32>
    %468 = arith.addf %467, %31 : vector<32x32xf32>
    %cst_145 = arith.constant dense<0xFF800000> : vector<32xf32>
    %469 = vector.multi_reduction <maximumf>, %468, %cst_145 [1] : vector<32x32xf32> to vector<32xf32>
    %470 = vector.shape_cast %469 : vector<32xf32> to vector<32x1xf32>
    %471 = vector.broadcast %470 : vector<32x1xf32> to vector<32x32xf32>
    %472 = arith.subf %468, %471 : vector<32x32xf32>
    %473 = math.exp %472 : vector<32x32xf32>
    %cst_146 = arith.constant dense<0.000000e+00> : vector<32xf32>
    %474 = vector.multi_reduction <add>, %473, %cst_146 [1] : vector<32x32xf32> to vector<32xf32>
    %475 = vector.shape_cast %474 : vector<32xf32> to vector<32x1xf32>
    %476 = tpu.reciprocal %475 {approx = true} : vector<32x1xf32> -> vector<32x1xf32>
    %477 = vector.broadcast %476 : vector<32x1xf32> to vector<32x32xf32>
    %478 = arith.mulf %473, %477 : vector<32x32xf32>
    %479 = arith.truncf %478 : vector<32x32xf32> to vector<32x32xbf16>
    %480 = vector.extract_strided_slice %460 {offsets = [0, 0], sizes = [32, 64], strides = [1, 1]} : vector<32x256xf32> to vector<32x64xf32>
    %481 = arith.truncf %480 : vector<32x64xf32> to vector<32x64xbf16>
    %cst_147 = arith.constant dense<0.000000e+00> : vector<32x64xf32>
    %482 = tpu.matmul %479, %481, %cst_147 {dimension_numbers = #tpu.dot_dimension_numbers<[1], [0], [0], [1], [0, 0, 1, 1], [], []>} : vector<32x32xbf16>, vector<32x64xbf16>, vector<32x64xf32> -> vector<32x64xf32>
    %483 = vector.extract_strided_slice %458 {offsets = [0, 64], sizes = [32, 64], strides = [1, 1]} : vector<32x256xf32> to vector<32x64xf32>
    %484 = arith.truncf %483 : vector<32x64xf32> to vector<32x64xbf16>
    %485 = vector.extract_strided_slice %459 {offsets = [0, 64], sizes = [32, 64], strides = [1, 1]} : vector<32x256xf32> to vector<32x64xf32>
    %486 = arith.truncf %485 : vector<32x64xf32> to vector<32x64xbf16>
    %cst_148 = arith.constant dense<0.000000e+00> : vector<32x32xf32>
    %487 = tpu.matmul %484, %486, %cst_148 {dimension_numbers = #tpu.dot_dimension_numbers<[1], [1], [0], [0], [0, 0, 1, 0], [], []>} : vector<32x64xbf16>, vector<32x64xbf16>, vector<32x32xf32> -> vector<32x32xf32>
    %488 = arith.addf %487, %31 : vector<32x32xf32>
    %cst_149 = arith.constant dense<0xFF800000> : vector<32xf32>
    %489 = vector.multi_reduction <maximumf>, %488, %cst_149 [1] : vector<32x32xf32> to vector<32xf32>
    %490 = vector.shape_cast %489 : vector<32xf32> to vector<32x1xf32>
    %491 = vector.broadcast %490 : vector<32x1xf32> to vector<32x32xf32>
    %492 = arith.subf %488, %491 : vector<32x32xf32>
    %493 = math.exp %492 : vector<32x32xf32>
    %cst_150 = arith.constant dense<0.000000e+00> : vector<32xf32>
    %494 = vector.multi_reduction <add>, %493, %cst_150 [1] : vector<32x32xf32> to vector<32xf32>
    %495 = vector.shape_cast %494 : vector<32xf32> to vector<32x1xf32>
    %496 = tpu.reciprocal %495 {approx = true} : vector<32x1xf32> -> vector<32x1xf32>
    %497 = vector.broadcast %496 : vector<32x1xf32> to vector<32x32xf32>
    %498 = arith.mulf %493, %497 : vector<32x32xf32>
    %499 = arith.truncf %498 : vector<32x32xf32> to vector<32x32xbf16>
    %500 = vector.extract_strided_slice %460 {offsets = [0, 64], sizes = [32, 64], strides = [1, 1]} : vector<32x256xf32> to vector<32x64xf32>
    %501 = arith.truncf %500 : vector<32x64xf32> to vector<32x64xbf16>
    %cst_151 = arith.constant dense<0.000000e+00> : vector<32x64xf32>
    %502 = tpu.matmul %499, %501, %cst_151 {dimension_numbers = #tpu.dot_dimension_numbers<[1], [0], [0], [1], [0, 0, 1, 1], [], []>} : vector<32x32xbf16>, vector<32x64xbf16>, vector<32x64xf32> -> vector<32x64xf32>
    %503 = vector.extract_strided_slice %458 {offsets = [0, 128], sizes = [32, 64], strides = [1, 1]} : vector<32x256xf32> to vector<32x64xf32>
    %504 = arith.truncf %503 : vector<32x64xf32> to vector<32x64xbf16>
    %505 = vector.extract_strided_slice %459 {offsets = [0, 128], sizes = [32, 64], strides = [1, 1]} : vector<32x256xf32> to vector<32x64xf32>
    %506 = arith.truncf %505 : vector<32x64xf32> to vector<32x64xbf16>
    %cst_152 = arith.constant dense<0.000000e+00> : vector<32x32xf32>
    %507 = tpu.matmul %504, %506, %cst_152 {dimension_numbers = #tpu.dot_dimension_numbers<[1], [1], [0], [0], [0, 0, 1, 0], [], []>} : vector<32x64xbf16>, vector<32x64xbf16>, vector<32x32xf32> -> vector<32x32xf32>
    %508 = arith.addf %507, %31 : vector<32x32xf32>
    %cst_153 = arith.constant dense<0xFF800000> : vector<32xf32>
    %509 = vector.multi_reduction <maximumf>, %508, %cst_153 [1] : vector<32x32xf32> to vector<32xf32>
    %510 = vector.shape_cast %509 : vector<32xf32> to vector<32x1xf32>
    %511 = vector.broadcast %510 : vector<32x1xf32> to vector<32x32xf32>
    %512 = arith.subf %508, %511 : vector<32x32xf32>
    %513 = math.exp %512 : vector<32x32xf32>
    %cst_154 = arith.constant dense<0.000000e+00> : vector<32xf32>
    %514 = vector.multi_reduction <add>, %513, %cst_154 [1] : vector<32x32xf32> to vector<32xf32>
    %515 = vector.shape_cast %514 : vector<32xf32> to vector<32x1xf32>
    %516 = tpu.reciprocal %515 {approx = true} : vector<32x1xf32> -> vector<32x1xf32>
    %517 = vector.broadcast %516 : vector<32x1xf32> to vector<32x32xf32>
    %518 = arith.mulf %513, %517 : vector<32x32xf32>
    %519 = arith.truncf %518 : vector<32x32xf32> to vector<32x32xbf16>
    %520 = vector.extract_strided_slice %460 {offsets = [0, 128], sizes = [32, 64], strides = [1, 1]} : vector<32x256xf32> to vector<32x64xf32>
    %521 = arith.truncf %520 : vector<32x64xf32> to vector<32x64xbf16>
    %cst_155 = arith.constant dense<0.000000e+00> : vector<32x64xf32>
    %522 = tpu.matmul %519, %521, %cst_155 {dimension_numbers = #tpu.dot_dimension_numbers<[1], [0], [0], [1], [0, 0, 1, 1], [], []>} : vector<32x32xbf16>, vector<32x64xbf16>, vector<32x64xf32> -> vector<32x64xf32>
    %523 = vector.extract_strided_slice %458 {offsets = [0, 192], sizes = [32, 64], strides = [1, 1]} : vector<32x256xf32> to vector<32x64xf32>
    %524 = arith.truncf %523 : vector<32x64xf32> to vector<32x64xbf16>
    %525 = vector.extract_strided_slice %459 {offsets = [0, 192], sizes = [32, 64], strides = [1, 1]} : vector<32x256xf32> to vector<32x64xf32>
    %526 = arith.truncf %525 : vector<32x64xf32> to vector<32x64xbf16>
    %cst_156 = arith.constant dense<0.000000e+00> : vector<32x32xf32>
    %527 = tpu.matmul %524, %526, %cst_156 {dimension_numbers = #tpu.dot_dimension_numbers<[1], [1], [0], [0], [0, 0, 1, 0], [], []>} : vector<32x64xbf16>, vector<32x64xbf16>, vector<32x32xf32> -> vector<32x32xf32>
    %528 = arith.addf %527, %31 : vector<32x32xf32>
    %cst_157 = arith.constant dense<0xFF800000> : vector<32xf32>
    %529 = vector.multi_reduction <maximumf>, %528, %cst_157 [1] : vector<32x32xf32> to vector<32xf32>
    %530 = vector.shape_cast %529 : vector<32xf32> to vector<32x1xf32>
    %531 = vector.broadcast %530 : vector<32x1xf32> to vector<32x32xf32>
    %532 = arith.subf %528, %531 : vector<32x32xf32>
    %533 = math.exp %532 : vector<32x32xf32>
    %cst_158 = arith.constant dense<0.000000e+00> : vector<32xf32>
    %534 = vector.multi_reduction <add>, %533, %cst_158 [1] : vector<32x32xf32> to vector<32xf32>
    %535 = vector.shape_cast %534 : vector<32xf32> to vector<32x1xf32>
    %536 = tpu.reciprocal %535 {approx = true} : vector<32x1xf32> -> vector<32x1xf32>
    %537 = vector.broadcast %536 : vector<32x1xf32> to vector<32x32xf32>
    %538 = arith.mulf %533, %537 : vector<32x32xf32>
    %539 = arith.truncf %538 : vector<32x32xf32> to vector<32x32xbf16>
    %540 = vector.extract_strided_slice %460 {offsets = [0, 192], sizes = [32, 64], strides = [1, 1]} : vector<32x256xf32> to vector<32x64xf32>
    %541 = arith.truncf %540 : vector<32x64xf32> to vector<32x64xbf16>
    %cst_159 = arith.constant dense<0.000000e+00> : vector<32x64xf32>
    %542 = tpu.matmul %539, %541, %cst_159 {dimension_numbers = #tpu.dot_dimension_numbers<[1], [0], [0], [1], [0, 0, 1, 1], [], []>} : vector<32x32xbf16>, vector<32x64xbf16>, vector<32x64xf32> -> vector<32x64xf32>
    %543 = tpu.concatenate %482, %502, %522, %542 in 1 : vector<32x64xf32>, vector<32x64xf32>, vector<32x64xf32>, vector<32x64xf32> -> vector<32x256xf32>
    %544 = arith.truncf %543 : vector<32x256xf32> to vector<32x256xbf16>
    %cst_160 = arith.constant dense<0.000000e+00> : vector<32x32xf32>
    %545 = tpu.matmul %544, %461, %cst_160 {dimension_numbers = #tpu.dot_dimension_numbers<[1], [0], [0], [1], [0, 0, 1, 1], [], []>} : vector<32x256xbf16>, vector<256x32xbf16>, vector<32x32xf32> -> vector<32x32xf32>
    %546 = vector.broadcast %462 : vector<1x32xf32> to vector<32x32xf32>
    %547 = arith.addf %545, %546 : vector<32x32xf32>
    %548 = arith.addf %432, %547 : vector<32x32xf32>
    %c0_161 = arith.constant 0 : index
    %c2304 = arith.constant 2304 : index
    %549 = vector.load %arg3[%c0_161, %c2304] : memref<1x7680xf32, #tpu.memory_space<vmem>>, vector<1x32xf32>
    %c0_162 = arith.constant 0 : index
    %c2432 = arith.constant 2432 : index
    %550 = vector.load %arg3[%c0_162, %c2432] : memref<1x7680xf32, #tpu.memory_space<vmem>>, vector<1x32xf32>
    %cst_163 = arith.constant dense<0.000000e+00> : vector<32xf32>
    %551 = vector.multi_reduction <add>, %548, %cst_163 [1] : vector<32x32xf32> to vector<32xf32>
    %552 = vector.shape_cast %551 : vector<32xf32> to vector<32x1xf32>
    %cst_164 = arith.constant 3.200000e+01 : f32
    %553 = vector.broadcast %cst_164 : f32 to vector<32x1xf32>
    %554 = arith.divf %552, %553 : vector<32x1xf32>
    %555 = vector.broadcast %554 : vector<32x1xf32> to vector<32x32xf32>
    %556 = arith.subf %548, %555 : vector<32x32xf32>
    %557 = arith.mulf %556, %556 : vector<32x32xf32>
    %cst_165 = arith.constant dense<0.000000e+00> : vector<32xf32>
    %558 = vector.multi_reduction <add>, %557, %cst_165 [1] : vector<32x32xf32> to vector<32xf32>
    %559 = vector.shape_cast %558 : vector<32xf32> to vector<32x1xf32>
    %cst_166 = arith.constant 3.200000e+01 : f32
    %560 = vector.broadcast %cst_166 : f32 to vector<32x1xf32>
    %561 = arith.divf %559, %560 : vector<32x1xf32>
    %cst_167 = arith.constant 9.99999974E-6 : f32
    %562 = vector.broadcast %cst_167 : f32 to vector<32x1xf32>
    %563 = arith.addf %561, %562 : vector<32x1xf32>
    %564 = math.rsqrt %563 : vector<32x1xf32>
    %565 = vector.broadcast %564 : vector<32x1xf32> to vector<32x32xf32>
    %566 = arith.mulf %556, %565 : vector<32x32xf32>
    %567 = vector.broadcast %549 : vector<1x32xf32> to vector<32x32xf32>
    %568 = arith.mulf %566, %567 : vector<32x32xf32>
    %569 = vector.broadcast %550 : vector<1x32xf32> to vector<32x32xf32>
    %570 = arith.addf %568, %569 : vector<32x32xf32>
    %c0_168 = arith.constant 0 : index
    %c2560 = arith.constant 2560 : index
    %571 = vector.load %arg5[%c0_168, %c2560] : memref<32x5120xbf16, #tpu.memory_space<vmem>>, vector<32x128xbf16>
    %c0_169 = arith.constant 0 : index
    %c2560_170 = arith.constant 2560 : index
    %572 = vector.load %arg3[%c0_169, %c2560_170] : memref<1x7680xf32, #tpu.memory_space<vmem>>, vector<1x128xf32>
    %c0_171 = arith.constant 0 : index
    %c256_172 = arith.constant 256 : index
    %573 = vector.load %arg7[%c0_171, %c256_172] : memref<128x896xbf16, #tpu.memory_space<vmem>>, vector<128x32xbf16>
    %c0_173 = arith.constant 0 : index
    %c2688 = arith.constant 2688 : index
    %574 = vector.load %arg3[%c0_173, %c2688] : memref<1x7680xf32, #tpu.memory_space<vmem>>, vector<1x32xf32>
    %575 = arith.truncf %570 : vector<32x32xf32> to vector<32x32xbf16>
    %cst_174 = arith.constant dense<0.000000e+00> : vector<32x128xf32>
    %576 = tpu.matmul %575, %571, %cst_174 {dimension_numbers = #tpu.dot_dimension_numbers<[1], [0], [0], [1], [0, 0, 1, 1], [], []>} : vector<32x32xbf16>, vector<32x128xbf16>, vector<32x128xf32> -> vector<32x128xf32>
    %577 = vector.broadcast %572 : vector<1x128xf32> to vector<32x128xf32>
    %578 = arith.addf %576, %577 : vector<32x128xf32>
    %cst_175 = arith.constant 5.000000e-01 : f32
    %579 = vector.broadcast %cst_175 : f32 to vector<32x128xf32>
    %580 = arith.mulf %579, %578 : vector<32x128xf32>
    %cst_176 = arith.constant 4.471500e-02 : f32
    %581 = vector.broadcast %cst_176 : f32 to vector<32x128xf32>
    %582 = arith.mulf %581, %578 : vector<32x128xf32>
    %583 = arith.mulf %582, %578 : vector<32x128xf32>
    %584 = arith.mulf %583, %578 : vector<32x128xf32>
    %585 = arith.addf %578, %584 : vector<32x128xf32>
    %cst_177 = arith.constant 0.797884583 : f32
    %586 = vector.broadcast %cst_177 : f32 to vector<32x128xf32>
    %587 = arith.mulf %586, %585 : vector<32x128xf32>
    %588 = math.tanh %587 : vector<32x128xf32>
    %cst_178 = arith.constant 1.000000e+00 : f32
    %589 = vector.broadcast %cst_178 : f32 to vector<32x128xf32>
    %590 = arith.addf %589, %588 : vector<32x128xf32>
    %591 = arith.mulf %580, %590 : vector<32x128xf32>
    %592 = arith.truncf %591 : vector<32x128xf32> to vector<32x128xbf16>
    %cst_179 = arith.constant dense<0.000000e+00> : vector<32x32xf32>
    %593 = tpu.matmul %592, %573, %cst_179 {dimension_numbers = #tpu.dot_dimension_numbers<[1], [0], [0], [1], [0, 0, 1, 1], [], []>} : vector<32x128xbf16>, vector<128x32xbf16>, vector<32x32xf32> -> vector<32x32xf32>
    %594 = vector.broadcast %574 : vector<1x32xf32> to vector<32x32xf32>
    %595 = arith.addf %593, %594 : vector<32x32xf32>
    %596 = arith.addf %548, %595 : vector<32x32xf32>
    %c0_180 = arith.constant 0 : index
    %c2816 = arith.constant 2816 : index
    %597 = vector.load %arg3[%c0_180, %c2816] : memref<1x7680xf32, #tpu.memory_space<vmem>>, vector<1x32xf32>
    %c0_181 = arith.constant 0 : index
    %c2944 = arith.constant 2944 : index
    %598 = vector.load %arg3[%c0_181, %c2944] : memref<1x7680xf32, #tpu.memory_space<vmem>>, vector<1x32xf32>
    %cst_182 = arith.constant dense<0.000000e+00> : vector<32xf32>
    %599 = vector.multi_reduction <add>, %596, %cst_182 [1] : vector<32x32xf32> to vector<32xf32>
    %600 = vector.shape_cast %599 : vector<32xf32> to vector<32x1xf32>
    %cst_183 = arith.constant 3.200000e+01 : f32
    %601 = vector.broadcast %cst_183 : f32 to vector<32x1xf32>
    %602 = arith.divf %600, %601 : vector<32x1xf32>
    %603 = vector.broadcast %602 : vector<32x1xf32> to vector<32x32xf32>
    %604 = arith.subf %596, %603 : vector<32x32xf32>
    %605 = arith.mulf %604, %604 : vector<32x32xf32>
    %cst_184 = arith.constant dense<0.000000e+00> : vector<32xf32>
    %606 = vector.multi_reduction <add>, %605, %cst_184 [1] : vector<32x32xf32> to vector<32xf32>
    %607 = vector.shape_cast %606 : vector<32xf32> to vector<32x1xf32>
    %cst_185 = arith.constant 3.200000e+01 : f32
    %608 = vector.broadcast %cst_185 : f32 to vector<32x1xf32>
    %609 = arith.divf %607, %608 : vector<32x1xf32>
    %cst_186 = arith.constant 9.99999974E-6 : f32
    %610 = vector.broadcast %cst_186 : f32 to vector<32x1xf32>
    %611 = arith.addf %609, %610 : vector<32x1xf32>
    %612 = math.rsqrt %611 : vector<32x1xf32>
    %613 = vector.broadcast %612 : vector<32x1xf32> to vector<32x32xf32>
    %614 = arith.mulf %604, %613 : vector<32x32xf32>
    %615 = vector.broadcast %597 : vector<1x32xf32> to vector<32x32xf32>
    %616 = arith.mulf %614, %615 : vector<32x32xf32>
    %617 = vector.broadcast %598 : vector<1x32xf32> to vector<32x32xf32>
    %618 = arith.addf %616, %617 : vector<32x32xf32>
    %c0_187 = arith.constant 0 : index
    %c2688_188 = arith.constant 2688 : index
    %619 = vector.load %arg5[%c0_187, %c2688_188] : memref<32x5120xbf16, #tpu.memory_space<vmem>>, vector<32x768xbf16>
    %620 = arith.truncf %618 : vector<32x32xf32> to vector<32x32xbf16>
    %cst_189 = arith.constant dense<0.000000e+00> : vector<32x768xf32>
    %621 = tpu.matmul %620, %619, %cst_189 {dimension_numbers = #tpu.dot_dimension_numbers<[1], [0], [0], [1], [0, 0, 1, 1], [], []>} : vector<32x32xbf16>, vector<32x768xbf16>, vector<32x768xf32> -> vector<32x768xf32>
    %622 = vector.extract_strided_slice %621 {offsets = [0, 0], sizes = [32, 256], strides = [1, 1]} : vector<32x768xf32> to vector<32x256xf32>
    %623 = vector.extract_strided_slice %621 {offsets = [0, 256], sizes = [32, 256], strides = [1, 1]} : vector<32x768xf32> to vector<32x256xf32>
    %624 = vector.extract_strided_slice %621 {offsets = [0, 512], sizes = [32, 256], strides = [1, 1]} : vector<32x768xf32> to vector<32x256xf32>
    %c0_190 = arith.constant 0 : index
    %c384_191 = arith.constant 384 : index
    %625 = vector.load %arg8[%c0_190, %c384_191] : memref<256x512xbf16, #tpu.memory_space<vmem>>, vector<256x32xbf16>
    %c0_192 = arith.constant 0 : index
    %c3072 = arith.constant 3072 : index
    %626 = vector.load %arg3[%c0_192, %c3072] : memref<1x7680xf32, #tpu.memory_space<vmem>>, vector<1x32xf32>
    %627 = vector.extract_strided_slice %622 {offsets = [0, 0], sizes = [32, 64], strides = [1, 1]} : vector<32x256xf32> to vector<32x64xf32>
    %628 = arith.truncf %627 : vector<32x64xf32> to vector<32x64xbf16>
    %629 = vector.extract_strided_slice %623 {offsets = [0, 0], sizes = [32, 64], strides = [1, 1]} : vector<32x256xf32> to vector<32x64xf32>
    %630 = arith.truncf %629 : vector<32x64xf32> to vector<32x64xbf16>
    %cst_193 = arith.constant dense<0.000000e+00> : vector<32x32xf32>
    %631 = tpu.matmul %628, %630, %cst_193 {dimension_numbers = #tpu.dot_dimension_numbers<[1], [1], [0], [0], [0, 0, 1, 0], [], []>} : vector<32x64xbf16>, vector<32x64xbf16>, vector<32x32xf32> -> vector<32x32xf32>
    %632 = arith.addf %631, %31 : vector<32x32xf32>
    %cst_194 = arith.constant dense<0xFF800000> : vector<32xf32>
    %633 = vector.multi_reduction <maximumf>, %632, %cst_194 [1] : vector<32x32xf32> to vector<32xf32>
    %634 = vector.shape_cast %633 : vector<32xf32> to vector<32x1xf32>
    %635 = vector.broadcast %634 : vector<32x1xf32> to vector<32x32xf32>
    %636 = arith.subf %632, %635 : vector<32x32xf32>
    %637 = math.exp %636 : vector<32x32xf32>
    %cst_195 = arith.constant dense<0.000000e+00> : vector<32xf32>
    %638 = vector.multi_reduction <add>, %637, %cst_195 [1] : vector<32x32xf32> to vector<32xf32>
    %639 = vector.shape_cast %638 : vector<32xf32> to vector<32x1xf32>
    %640 = tpu.reciprocal %639 {approx = true} : vector<32x1xf32> -> vector<32x1xf32>
    %641 = vector.broadcast %640 : vector<32x1xf32> to vector<32x32xf32>
    %642 = arith.mulf %637, %641 : vector<32x32xf32>
    %643 = arith.truncf %642 : vector<32x32xf32> to vector<32x32xbf16>
    %644 = vector.extract_strided_slice %624 {offsets = [0, 0], sizes = [32, 64], strides = [1, 1]} : vector<32x256xf32> to vector<32x64xf32>
    %645 = arith.truncf %644 : vector<32x64xf32> to vector<32x64xbf16>
    %cst_196 = arith.constant dense<0.000000e+00> : vector<32x64xf32>
    %646 = tpu.matmul %643, %645, %cst_196 {dimension_numbers = #tpu.dot_dimension_numbers<[1], [0], [0], [1], [0, 0, 1, 1], [], []>} : vector<32x32xbf16>, vector<32x64xbf16>, vector<32x64xf32> -> vector<32x64xf32>
    %647 = vector.extract_strided_slice %622 {offsets = [0, 64], sizes = [32, 64], strides = [1, 1]} : vector<32x256xf32> to vector<32x64xf32>
    %648 = arith.truncf %647 : vector<32x64xf32> to vector<32x64xbf16>
    %649 = vector.extract_strided_slice %623 {offsets = [0, 64], sizes = [32, 64], strides = [1, 1]} : vector<32x256xf32> to vector<32x64xf32>
    %650 = arith.truncf %649 : vector<32x64xf32> to vector<32x64xbf16>
    %cst_197 = arith.constant dense<0.000000e+00> : vector<32x32xf32>
    %651 = tpu.matmul %648, %650, %cst_197 {dimension_numbers = #tpu.dot_dimension_numbers<[1], [1], [0], [0], [0, 0, 1, 0], [], []>} : vector<32x64xbf16>, vector<32x64xbf16>, vector<32x32xf32> -> vector<32x32xf32>
    %652 = arith.addf %651, %31 : vector<32x32xf32>
    %cst_198 = arith.constant dense<0xFF800000> : vector<32xf32>
    %653 = vector.multi_reduction <maximumf>, %652, %cst_198 [1] : vector<32x32xf32> to vector<32xf32>
    %654 = vector.shape_cast %653 : vector<32xf32> to vector<32x1xf32>
    %655 = vector.broadcast %654 : vector<32x1xf32> to vector<32x32xf32>
    %656 = arith.subf %652, %655 : vector<32x32xf32>
    %657 = math.exp %656 : vector<32x32xf32>
    %cst_199 = arith.constant dense<0.000000e+00> : vector<32xf32>
    %658 = vector.multi_reduction <add>, %657, %cst_199 [1] : vector<32x32xf32> to vector<32xf32>
    %659 = vector.shape_cast %658 : vector<32xf32> to vector<32x1xf32>
    %660 = tpu.reciprocal %659 {approx = true} : vector<32x1xf32> -> vector<32x1xf32>
    %661 = vector.broadcast %660 : vector<32x1xf32> to vector<32x32xf32>
    %662 = arith.mulf %657, %661 : vector<32x32xf32>
    %663 = arith.truncf %662 : vector<32x32xf32> to vector<32x32xbf16>
    %664 = vector.extract_strided_slice %624 {offsets = [0, 64], sizes = [32, 64], strides = [1, 1]} : vector<32x256xf32> to vector<32x64xf32>
    %665 = arith.truncf %664 : vector<32x64xf32> to vector<32x64xbf16>
    %cst_200 = arith.constant dense<0.000000e+00> : vector<32x64xf32>
    %666 = tpu.matmul %663, %665, %cst_200 {dimension_numbers = #tpu.dot_dimension_numbers<[1], [0], [0], [1], [0, 0, 1, 1], [], []>} : vector<32x32xbf16>, vector<32x64xbf16>, vector<32x64xf32> -> vector<32x64xf32>
    %667 = vector.extract_strided_slice %622 {offsets = [0, 128], sizes = [32, 64], strides = [1, 1]} : vector<32x256xf32> to vector<32x64xf32>
    %668 = arith.truncf %667 : vector<32x64xf32> to vector<32x64xbf16>
    %669 = vector.extract_strided_slice %623 {offsets = [0, 128], sizes = [32, 64], strides = [1, 1]} : vector<32x256xf32> to vector<32x64xf32>
    %670 = arith.truncf %669 : vector<32x64xf32> to vector<32x64xbf16>
    %cst_201 = arith.constant dense<0.000000e+00> : vector<32x32xf32>
    %671 = tpu.matmul %668, %670, %cst_201 {dimension_numbers = #tpu.dot_dimension_numbers<[1], [1], [0], [0], [0, 0, 1, 0], [], []>} : vector<32x64xbf16>, vector<32x64xbf16>, vector<32x32xf32> -> vector<32x32xf32>
    %672 = arith.addf %671, %31 : vector<32x32xf32>
    %cst_202 = arith.constant dense<0xFF800000> : vector<32xf32>
    %673 = vector.multi_reduction <maximumf>, %672, %cst_202 [1] : vector<32x32xf32> to vector<32xf32>
    %674 = vector.shape_cast %673 : vector<32xf32> to vector<32x1xf32>
    %675 = vector.broadcast %674 : vector<32x1xf32> to vector<32x32xf32>
    %676 = arith.subf %672, %675 : vector<32x32xf32>
    %677 = math.exp %676 : vector<32x32xf32>
    %cst_203 = arith.constant dense<0.000000e+00> : vector<32xf32>
    %678 = vector.multi_reduction <add>, %677, %cst_203 [1] : vector<32x32xf32> to vector<32xf32>
    %679 = vector.shape_cast %678 : vector<32xf32> to vector<32x1xf32>
    %680 = tpu.reciprocal %679 {approx = true} : vector<32x1xf32> -> vector<32x1xf32>
    %681 = vector.broadcast %680 : vector<32x1xf32> to vector<32x32xf32>
    %682 = arith.mulf %677, %681 : vector<32x32xf32>
    %683 = arith.truncf %682 : vector<32x32xf32> to vector<32x32xbf16>
    %684 = vector.extract_strided_slice %624 {offsets = [0, 128], sizes = [32, 64], strides = [1, 1]} : vector<32x256xf32> to vector<32x64xf32>
    %685 = arith.truncf %684 : vector<32x64xf32> to vector<32x64xbf16>
    %cst_204 = arith.constant dense<0.000000e+00> : vector<32x64xf32>
    %686 = tpu.matmul %683, %685, %cst_204 {dimension_numbers = #tpu.dot_dimension_numbers<[1], [0], [0], [1], [0, 0, 1, 1], [], []>} : vector<32x32xbf16>, vector<32x64xbf16>, vector<32x64xf32> -> vector<32x64xf32>
    %687 = vector.extract_strided_slice %622 {offsets = [0, 192], sizes = [32, 64], strides = [1, 1]} : vector<32x256xf32> to vector<32x64xf32>
    %688 = arith.truncf %687 : vector<32x64xf32> to vector<32x64xbf16>
    %689 = vector.extract_strided_slice %623 {offsets = [0, 192], sizes = [32, 64], strides = [1, 1]} : vector<32x256xf32> to vector<32x64xf32>
    %690 = arith.truncf %689 : vector<32x64xf32> to vector<32x64xbf16>
    %cst_205 = arith.constant dense<0.000000e+00> : vector<32x32xf32>
    %691 = tpu.matmul %688, %690, %cst_205 {dimension_numbers = #tpu.dot_dimension_numbers<[1], [1], [0], [0], [0, 0, 1, 0], [], []>} : vector<32x64xbf16>, vector<32x64xbf16>, vector<32x32xf32> -> vector<32x32xf32>
    %692 = arith.addf %691, %31 : vector<32x32xf32>
    %cst_206 = arith.constant dense<0xFF800000> : vector<32xf32>
    %693 = vector.multi_reduction <maximumf>, %692, %cst_206 [1] : vector<32x32xf32> to vector<32xf32>
    %694 = vector.shape_cast %693 : vector<32xf32> to vector<32x1xf32>
    %695 = vector.broadcast %694 : vector<32x1xf32> to vector<32x32xf32>
    %696 = arith.subf %692, %695 : vector<32x32xf32>
    %697 = math.exp %696 : vector<32x32xf32>
    %cst_207 = arith.constant dense<0.000000e+00> : vector<32xf32>
    %698 = vector.multi_reduction <add>, %697, %cst_207 [1] : vector<32x32xf32> to vector<32xf32>
    %699 = vector.shape_cast %698 : vector<32xf32> to vector<32x1xf32>
    %700 = tpu.reciprocal %699 {approx = true} : vector<32x1xf32> -> vector<32x1xf32>
    %701 = vector.broadcast %700 : vector<32x1xf32> to vector<32x32xf32>
    %702 = arith.mulf %697, %701 : vector<32x32xf32>
    %703 = arith.truncf %702 : vector<32x32xf32> to vector<32x32xbf16>
    %704 = vector.extract_strided_slice %624 {offsets = [0, 192], sizes = [32, 64], strides = [1, 1]} : vector<32x256xf32> to vector<32x64xf32>
    %705 = arith.truncf %704 : vector<32x64xf32> to vector<32x64xbf16>
    %cst_208 = arith.constant dense<0.000000e+00> : vector<32x64xf32>
    %706 = tpu.matmul %703, %705, %cst_208 {dimension_numbers = #tpu.dot_dimension_numbers<[1], [0], [0], [1], [0, 0, 1, 1], [], []>} : vector<32x32xbf16>, vector<32x64xbf16>, vector<32x64xf32> -> vector<32x64xf32>
    %707 = tpu.concatenate %646, %666, %686, %706 in 1 : vector<32x64xf32>, vector<32x64xf32>, vector<32x64xf32>, vector<32x64xf32> -> vector<32x256xf32>
    %708 = arith.truncf %707 : vector<32x256xf32> to vector<32x256xbf16>
    %cst_209 = arith.constant dense<0.000000e+00> : vector<32x32xf32>
    %709 = tpu.matmul %708, %625, %cst_209 {dimension_numbers = #tpu.dot_dimension_numbers<[1], [0], [0], [1], [0, 0, 1, 1], [], []>} : vector<32x256xbf16>, vector<256x32xbf16>, vector<32x32xf32> -> vector<32x32xf32>
    %710 = vector.broadcast %626 : vector<1x32xf32> to vector<32x32xf32>
    %711 = arith.addf %709, %710 : vector<32x32xf32>
    %712 = arith.addf %596, %711 : vector<32x32xf32>
    %c0_210 = arith.constant 0 : index
    %c3200 = arith.constant 3200 : index
    %713 = vector.load %arg3[%c0_210, %c3200] : memref<1x7680xf32, #tpu.memory_space<vmem>>, vector<1x32xf32>
    %c0_211 = arith.constant 0 : index
    %c3328 = arith.constant 3328 : index
    %714 = vector.load %arg3[%c0_211, %c3328] : memref<1x7680xf32, #tpu.memory_space<vmem>>, vector<1x32xf32>
    %cst_212 = arith.constant dense<0.000000e+00> : vector<32xf32>
    %715 = vector.multi_reduction <add>, %712, %cst_212 [1] : vector<32x32xf32> to vector<32xf32>
    %716 = vector.shape_cast %715 : vector<32xf32> to vector<32x1xf32>
    %cst_213 = arith.constant 3.200000e+01 : f32
    %717 = vector.broadcast %cst_213 : f32 to vector<32x1xf32>
    %718 = arith.divf %716, %717 : vector<32x1xf32>
    %719 = vector.broadcast %718 : vector<32x1xf32> to vector<32x32xf32>
    %720 = arith.subf %712, %719 : vector<32x32xf32>
    %721 = arith.mulf %720, %720 : vector<32x32xf32>
    %cst_214 = arith.constant dense<0.000000e+00> : vector<32xf32>
    %722 = vector.multi_reduction <add>, %721, %cst_214 [1] : vector<32x32xf32> to vector<32xf32>
    %723 = vector.shape_cast %722 : vector<32xf32> to vector<32x1xf32>
    %cst_215 = arith.constant 3.200000e+01 : f32
    %724 = vector.broadcast %cst_215 : f32 to vector<32x1xf32>
    %725 = arith.divf %723, %724 : vector<32x1xf32>
    %cst_216 = arith.constant 9.99999974E-6 : f32
    %726 = vector.broadcast %cst_216 : f32 to vector<32x1xf32>
    %727 = arith.addf %725, %726 : vector<32x1xf32>
    %728 = math.rsqrt %727 : vector<32x1xf32>
    %729 = vector.broadcast %728 : vector<32x1xf32> to vector<32x32xf32>
    %730 = arith.mulf %720, %729 : vector<32x32xf32>
    %731 = vector.broadcast %713 : vector<1x32xf32> to vector<32x32xf32>
    %732 = arith.mulf %730, %731 : vector<32x32xf32>
    %733 = vector.broadcast %714 : vector<1x32xf32> to vector<32x32xf32>
    %734 = arith.addf %732, %733 : vector<32x32xf32>
    %c0_217 = arith.constant 0 : index
    %c3456 = arith.constant 3456 : index
    %735 = vector.load %arg5[%c0_217, %c3456] : memref<32x5120xbf16, #tpu.memory_space<vmem>>, vector<32x128xbf16>
    %c0_218 = arith.constant 0 : index
    %c3456_219 = arith.constant 3456 : index
    %736 = vector.load %arg3[%c0_218, %c3456_219] : memref<1x7680xf32, #tpu.memory_space<vmem>>, vector<1x128xf32>
    %c0_220 = arith.constant 0 : index
    %c384_221 = arith.constant 384 : index
    %737 = vector.load %arg7[%c0_220, %c384_221] : memref<128x896xbf16, #tpu.memory_space<vmem>>, vector<128x32xbf16>
    %c0_222 = arith.constant 0 : index
    %c3584 = arith.constant 3584 : index
    %738 = vector.load %arg3[%c0_222, %c3584] : memref<1x7680xf32, #tpu.memory_space<vmem>>, vector<1x32xf32>
    %739 = arith.truncf %734 : vector<32x32xf32> to vector<32x32xbf16>
    %cst_223 = arith.constant dense<0.000000e+00> : vector<32x128xf32>
    %740 = tpu.matmul %739, %735, %cst_223 {dimension_numbers = #tpu.dot_dimension_numbers<[1], [0], [0], [1], [0, 0, 1, 1], [], []>} : vector<32x32xbf16>, vector<32x128xbf16>, vector<32x128xf32> -> vector<32x128xf32>
    %741 = vector.broadcast %736 : vector<1x128xf32> to vector<32x128xf32>
    %742 = arith.addf %740, %741 : vector<32x128xf32>
    %cst_224 = arith.constant 5.000000e-01 : f32
    %743 = vector.broadcast %cst_224 : f32 to vector<32x128xf32>
    %744 = arith.mulf %743, %742 : vector<32x128xf32>
    %cst_225 = arith.constant 4.471500e-02 : f32
    %745 = vector.broadcast %cst_225 : f32 to vector<32x128xf32>
    %746 = arith.mulf %745, %742 : vector<32x128xf32>
    %747 = arith.mulf %746, %742 : vector<32x128xf32>
    %748 = arith.mulf %747, %742 : vector<32x128xf32>
    %749 = arith.addf %742, %748 : vector<32x128xf32>
    %cst_226 = arith.constant 0.797884583 : f32
    %750 = vector.broadcast %cst_226 : f32 to vector<32x128xf32>
    %751 = arith.mulf %750, %749 : vector<32x128xf32>
    %752 = math.tanh %751 : vector<32x128xf32>
    %cst_227 = arith.constant 1.000000e+00 : f32
    %753 = vector.broadcast %cst_227 : f32 to vector<32x128xf32>
    %754 = arith.addf %753, %752 : vector<32x128xf32>
    %755 = arith.mulf %744, %754 : vector<32x128xf32>
    %756 = arith.truncf %755 : vector<32x128xf32> to vector<32x128xbf16>
    %cst_228 = arith.constant dense<0.000000e+00> : vector<32x32xf32>
    %757 = tpu.matmul %756, %737, %cst_228 {dimension_numbers = #tpu.dot_dimension_numbers<[1], [0], [0], [1], [0, 0, 1, 1], [], []>} : vector<32x128xbf16>, vector<128x32xbf16>, vector<32x32xf32> -> vector<32x32xf32>
    %758 = vector.broadcast %738 : vector<1x32xf32> to vector<32x32xf32>
    %759 = arith.addf %757, %758 : vector<32x32xf32>
    %760 = arith.addf %712, %759 : vector<32x32xf32>
    %c0_229 = arith.constant 0 : index
    %c3712 = arith.constant 3712 : index
    %761 = vector.load %arg3[%c0_229, %c3712] : memref<1x7680xf32, #tpu.memory_space<vmem>>, vector<1x32xf32>
    %c0_230 = arith.constant 0 : index
    %c3840 = arith.constant 3840 : index
    %762 = vector.load %arg3[%c0_230, %c3840] : memref<1x7680xf32, #tpu.memory_space<vmem>>, vector<1x32xf32>
    %cst_231 = arith.constant dense<0.000000e+00> : vector<32xf32>
    %763 = vector.multi_reduction <add>, %760, %cst_231 [1] : vector<32x32xf32> to vector<32xf32>
    %764 = vector.shape_cast %763 : vector<32xf32> to vector<32x1xf32>
    %cst_232 = arith.constant 3.200000e+01 : f32
    %765 = vector.broadcast %cst_232 : f32 to vector<32x1xf32>
    %766 = arith.divf %764, %765 : vector<32x1xf32>
    %767 = vector.broadcast %766 : vector<32x1xf32> to vector<32x32xf32>
    %768 = arith.subf %760, %767 : vector<32x32xf32>
    %769 = arith.mulf %768, %768 : vector<32x32xf32>
    %cst_233 = arith.constant dense<0.000000e+00> : vector<32xf32>
    %770 = vector.multi_reduction <add>, %769, %cst_233 [1] : vector<32x32xf32> to vector<32xf32>
    %771 = vector.shape_cast %770 : vector<32xf32> to vector<32x1xf32>
    %cst_234 = arith.constant 3.200000e+01 : f32
    %772 = vector.broadcast %cst_234 : f32 to vector<32x1xf32>
    %773 = arith.divf %771, %772 : vector<32x1xf32>
    %cst_235 = arith.constant 9.99999974E-6 : f32
    %774 = vector.broadcast %cst_235 : f32 to vector<32x1xf32>
    %775 = arith.addf %773, %774 : vector<32x1xf32>
    %776 = math.rsqrt %775 : vector<32x1xf32>
    %777 = vector.broadcast %776 : vector<32x1xf32> to vector<32x32xf32>
    %778 = arith.mulf %768, %777 : vector<32x32xf32>
    %779 = vector.broadcast %761 : vector<1x32xf32> to vector<32x32xf32>
    %780 = arith.mulf %778, %779 : vector<32x32xf32>
    %781 = vector.broadcast %762 : vector<1x32xf32> to vector<32x32xf32>
    %782 = arith.addf %780, %781 : vector<32x32xf32>
    %c0_236 = arith.constant 0 : index
    %c3968 = arith.constant 3968 : index
    %783 = vector.load %arg3[%c0_236, %c3968] : memref<1x7680xf32, #tpu.memory_space<vmem>>, vector<1x32xf32>
    %c0_237 = arith.constant 0 : index
    %c4096 = arith.constant 4096 : index
    %784 = vector.load %arg3[%c0_237, %c4096] : memref<1x7680xf32, #tpu.memory_space<vmem>>, vector<1x32xf32>
    %cst_238 = arith.constant dense<0.000000e+00> : vector<32xf32>
    %785 = vector.multi_reduction <add>, %103, %cst_238 [1] : vector<32x32xf32> to vector<32xf32>
    %786 = vector.shape_cast %785 : vector<32xf32> to vector<32x1xf32>
    %cst_239 = arith.constant 3.200000e+01 : f32
    %787 = vector.broadcast %cst_239 : f32 to vector<32x1xf32>
    %788 = arith.divf %786, %787 : vector<32x1xf32>
    %789 = vector.broadcast %788 : vector<32x1xf32> to vector<32x32xf32>
    %790 = arith.subf %103, %789 : vector<32x32xf32>
    %791 = arith.mulf %790, %790 : vector<32x32xf32>
    %cst_240 = arith.constant dense<0.000000e+00> : vector<32xf32>
    %792 = vector.multi_reduction <add>, %791, %cst_240 [1] : vector<32x32xf32> to vector<32xf32>
    %793 = vector.shape_cast %792 : vector<32xf32> to vector<32x1xf32>
    %cst_241 = arith.constant 3.200000e+01 : f32
    %794 = vector.broadcast %cst_241 : f32 to vector<32x1xf32>
    %795 = arith.divf %793, %794 : vector<32x1xf32>
    %cst_242 = arith.constant 9.99999974E-6 : f32
    %796 = vector.broadcast %cst_242 : f32 to vector<32x1xf32>
    %797 = arith.addf %795, %796 : vector<32x1xf32>
    %798 = math.rsqrt %797 : vector<32x1xf32>
    %799 = vector.broadcast %798 : vector<32x1xf32> to vector<32x32xf32>
    %800 = arith.mulf %790, %799 : vector<32x32xf32>
    %801 = vector.broadcast %783 : vector<1x32xf32> to vector<32x32xf32>
    %802 = arith.mulf %800, %801 : vector<32x32xf32>
    %803 = vector.broadcast %784 : vector<1x32xf32> to vector<32x32xf32>
    %804 = arith.addf %802, %803 : vector<32x32xf32>
    %c0_243 = arith.constant 0 : index
    %c3584_244 = arith.constant 3584 : index
    %805 = vector.load %arg5[%c0_243, %c3584_244] : memref<32x5120xbf16, #tpu.memory_space<vmem>>, vector<32x64xbf16>
    %806 = arith.truncf %782 : vector<32x32xf32> to vector<32x32xbf16>
    %cst_245 = arith.constant dense<0.000000e+00> : vector<32x64xf32>
    %807 = tpu.matmul %806, %805, %cst_245 {dimension_numbers = #tpu.dot_dimension_numbers<[1], [0], [0], [1], [0, 0, 1, 1], [], []>} : vector<32x32xbf16>, vector<32x64xbf16>, vector<32x64xf32> -> vector<32x64xf32>
    %c0_246 = arith.constant 0 : index
    %c3712_247 = arith.constant 3712 : index
    %808 = vector.load %arg5[%c0_246, %c3712_247] : memref<32x5120xbf16, #tpu.memory_space<vmem>>, vector<32x128xbf16>
    %809 = arith.truncf %804 : vector<32x32xf32> to vector<32x32xbf16>
    %cst_248 = arith.constant dense<0.000000e+00> : vector<32x128xf32>
    %810 = tpu.matmul %809, %808, %cst_248 {dimension_numbers = #tpu.dot_dimension_numbers<[1], [0], [0], [1], [0, 0, 1, 1], [], []>} : vector<32x32xbf16>, vector<32x128xbf16>, vector<32x128xf32> -> vector<32x128xf32>
    %811 = vector.extract_strided_slice %810 {offsets = [0, 0], sizes = [32, 64], strides = [1, 1]} : vector<32x128xf32> to vector<32x64xf32>
    %812 = vector.extract_strided_slice %810 {offsets = [0, 64], sizes = [32, 64], strides = [1, 1]} : vector<32x128xf32> to vector<32x64xf32>
    %c0_249 = arith.constant 0 : index
    %c0_250 = arith.constant 0 : index
    %813 = vector.load %arg6[%c0_249, %c0_250] : memref<64x512xbf16, #tpu.memory_space<vmem>>, vector<64x32xbf16>
    %c0_251 = arith.constant 0 : index
    %c4224 = arith.constant 4224 : index
    %814 = vector.load %arg3[%c0_251, %c4224] : memref<1x7680xf32, #tpu.memory_space<vmem>>, vector<1x32xf32>
    %815 = arith.truncf %807 : vector<32x64xf32> to vector<32x64xbf16>
    %816 = arith.truncf %811 : vector<32x64xf32> to vector<32x64xbf16>
    %cst_252 = arith.constant dense<0.000000e+00> : vector<32x32xf32>
    %817 = tpu.matmul %815, %816, %cst_252 {dimension_numbers = #tpu.dot_dimension_numbers<[1], [1], [0], [0], [0, 0, 1, 0], [], []>} : vector<32x64xbf16>, vector<32x64xbf16>, vector<32x32xf32> -> vector<32x32xf32>
    %818 = arith.addf %817, %63 : vector<32x32xf32>
    %cst_253 = arith.constant dense<0xFF800000> : vector<32xf32>
    %819 = vector.multi_reduction <maximumf>, %818, %cst_253 [1] : vector<32x32xf32> to vector<32xf32>
    %820 = vector.shape_cast %819 : vector<32xf32> to vector<32x1xf32>
    %821 = vector.broadcast %820 : vector<32x1xf32> to vector<32x32xf32>
    %822 = arith.subf %818, %821 : vector<32x32xf32>
    %823 = math.exp %822 : vector<32x32xf32>
    %cst_254 = arith.constant dense<0.000000e+00> : vector<32xf32>
    %824 = vector.multi_reduction <add>, %823, %cst_254 [1] : vector<32x32xf32> to vector<32xf32>
    %825 = vector.shape_cast %824 : vector<32xf32> to vector<32x1xf32>
    %826 = tpu.reciprocal %825 {approx = true} : vector<32x1xf32> -> vector<32x1xf32>
    %827 = vector.broadcast %826 : vector<32x1xf32> to vector<32x32xf32>
    %828 = arith.mulf %823, %827 : vector<32x32xf32>
    %829 = arith.truncf %828 : vector<32x32xf32> to vector<32x32xbf16>
    %830 = arith.truncf %812 : vector<32x64xf32> to vector<32x64xbf16>
    %cst_255 = arith.constant dense<0.000000e+00> : vector<32x64xf32>
    %831 = tpu.matmul %829, %830, %cst_255 {dimension_numbers = #tpu.dot_dimension_numbers<[1], [0], [0], [1], [0, 0, 1, 1], [], []>} : vector<32x32xbf16>, vector<32x64xbf16>, vector<32x64xf32> -> vector<32x64xf32>
    %832 = arith.truncf %831 : vector<32x64xf32> to vector<32x64xbf16>
    %cst_256 = arith.constant dense<0.000000e+00> : vector<32x32xf32>
    %833 = tpu.matmul %832, %813, %cst_256 {dimension_numbers = #tpu.dot_dimension_numbers<[1], [0], [0], [1], [0, 0, 1, 1], [], []>} : vector<32x64xbf16>, vector<64x32xbf16>, vector<32x32xf32> -> vector<32x32xf32>
    %834 = vector.broadcast %814 : vector<1x32xf32> to vector<32x32xf32>
    %835 = arith.addf %833, %834 : vector<32x32xf32>
    %836 = arith.addf %760, %835 : vector<32x32xf32>
    %c0_257 = arith.constant 0 : index
    %c4352 = arith.constant 4352 : index
    %837 = vector.load %arg3[%c0_257, %c4352] : memref<1x7680xf32, #tpu.memory_space<vmem>>, vector<1x32xf32>
    %c0_258 = arith.constant 0 : index
    %c4480 = arith.constant 4480 : index
    %838 = vector.load %arg3[%c0_258, %c4480] : memref<1x7680xf32, #tpu.memory_space<vmem>>, vector<1x32xf32>
    %cst_259 = arith.constant dense<0.000000e+00> : vector<32xf32>
    %839 = vector.multi_reduction <add>, %836, %cst_259 [1] : vector<32x32xf32> to vector<32xf32>
    %840 = vector.shape_cast %839 : vector<32xf32> to vector<32x1xf32>
    %cst_260 = arith.constant 3.200000e+01 : f32
    %841 = vector.broadcast %cst_260 : f32 to vector<32x1xf32>
    %842 = arith.divf %840, %841 : vector<32x1xf32>
    %843 = vector.broadcast %842 : vector<32x1xf32> to vector<32x32xf32>
    %844 = arith.subf %836, %843 : vector<32x32xf32>
    %845 = arith.mulf %844, %844 : vector<32x32xf32>
    %cst_261 = arith.constant dense<0.000000e+00> : vector<32xf32>
    %846 = vector.multi_reduction <add>, %845, %cst_261 [1] : vector<32x32xf32> to vector<32xf32>
    %847 = vector.shape_cast %846 : vector<32xf32> to vector<32x1xf32>
    %cst_262 = arith.constant 3.200000e+01 : f32
    %848 = vector.broadcast %cst_262 : f32 to vector<32x1xf32>
    %849 = arith.divf %847, %848 : vector<32x1xf32>
    %cst_263 = arith.constant 9.99999974E-6 : f32
    %850 = vector.broadcast %cst_263 : f32 to vector<32x1xf32>
    %851 = arith.addf %849, %850 : vector<32x1xf32>
    %852 = math.rsqrt %851 : vector<32x1xf32>
    %853 = vector.broadcast %852 : vector<32x1xf32> to vector<32x32xf32>
    %854 = arith.mulf %844, %853 : vector<32x32xf32>
    %855 = vector.broadcast %837 : vector<1x32xf32> to vector<32x32xf32>
    %856 = arith.mulf %854, %855 : vector<32x32xf32>
    %857 = vector.broadcast %838 : vector<1x32xf32> to vector<32x32xf32>
    %858 = arith.addf %856, %857 : vector<32x32xf32>
    %c0_264 = arith.constant 0 : index
    %c3840_265 = arith.constant 3840 : index
    %859 = vector.load %arg5[%c0_264, %c3840_265] : memref<32x5120xbf16, #tpu.memory_space<vmem>>, vector<32x128xbf16>
    %c0_266 = arith.constant 0 : index
    %c4608 = arith.constant 4608 : index
    %860 = vector.load %arg3[%c0_266, %c4608] : memref<1x7680xf32, #tpu.memory_space<vmem>>, vector<1x128xf32>
    %c0_267 = arith.constant 0 : index
    %c512_268 = arith.constant 512 : index
    %861 = vector.load %arg7[%c0_267, %c512_268] : memref<128x896xbf16, #tpu.memory_space<vmem>>, vector<128x32xbf16>
    %c0_269 = arith.constant 0 : index
    %c4736 = arith.constant 4736 : index
    %862 = vector.load %arg3[%c0_269, %c4736] : memref<1x7680xf32, #tpu.memory_space<vmem>>, vector<1x32xf32>
    %863 = arith.truncf %858 : vector<32x32xf32> to vector<32x32xbf16>
    %cst_270 = arith.constant dense<0.000000e+00> : vector<32x128xf32>
    %864 = tpu.matmul %863, %859, %cst_270 {dimension_numbers = #tpu.dot_dimension_numbers<[1], [0], [0], [1], [0, 0, 1, 1], [], []>} : vector<32x32xbf16>, vector<32x128xbf16>, vector<32x128xf32> -> vector<32x128xf32>
    %865 = vector.broadcast %860 : vector<1x128xf32> to vector<32x128xf32>
    %866 = arith.addf %864, %865 : vector<32x128xf32>
    %cst_271 = arith.constant 5.000000e-01 : f32
    %867 = vector.broadcast %cst_271 : f32 to vector<32x128xf32>
    %868 = arith.mulf %867, %866 : vector<32x128xf32>
    %cst_272 = arith.constant 4.471500e-02 : f32
    %869 = vector.broadcast %cst_272 : f32 to vector<32x128xf32>
    %870 = arith.mulf %869, %866 : vector<32x128xf32>
    %871 = arith.mulf %870, %866 : vector<32x128xf32>
    %872 = arith.mulf %871, %866 : vector<32x128xf32>
    %873 = arith.addf %866, %872 : vector<32x128xf32>
    %cst_273 = arith.constant 0.797884583 : f32
    %874 = vector.broadcast %cst_273 : f32 to vector<32x128xf32>
    %875 = arith.mulf %874, %873 : vector<32x128xf32>
    %876 = math.tanh %875 : vector<32x128xf32>
    %cst_274 = arith.constant 1.000000e+00 : f32
    %877 = vector.broadcast %cst_274 : f32 to vector<32x128xf32>
    %878 = arith.addf %877, %876 : vector<32x128xf32>
    %879 = arith.mulf %868, %878 : vector<32x128xf32>
    %880 = arith.truncf %879 : vector<32x128xf32> to vector<32x128xbf16>
    %cst_275 = arith.constant dense<0.000000e+00> : vector<32x32xf32>
    %881 = tpu.matmul %880, %861, %cst_275 {dimension_numbers = #tpu.dot_dimension_numbers<[1], [0], [0], [1], [0, 0, 1, 1], [], []>} : vector<32x128xbf16>, vector<128x32xbf16>, vector<32x32xf32> -> vector<32x32xf32>
    %882 = vector.broadcast %862 : vector<1x32xf32> to vector<32x32xf32>
    %883 = arith.addf %881, %882 : vector<32x32xf32>
    %884 = arith.addf %836, %883 : vector<32x32xf32>
    %c0_276 = arith.constant 0 : index
    %c4864 = arith.constant 4864 : index
    %885 = vector.load %arg3[%c0_276, %c4864] : memref<1x7680xf32, #tpu.memory_space<vmem>>, vector<1x32xf32>
    %c0_277 = arith.constant 0 : index
    %c4992 = arith.constant 4992 : index
    %886 = vector.load %arg3[%c0_277, %c4992] : memref<1x7680xf32, #tpu.memory_space<vmem>>, vector<1x32xf32>
    %cst_278 = arith.constant dense<0.000000e+00> : vector<32xf32>
    %887 = vector.multi_reduction <add>, %884, %cst_278 [1] : vector<32x32xf32> to vector<32xf32>
    %888 = vector.shape_cast %887 : vector<32xf32> to vector<32x1xf32>
    %cst_279 = arith.constant 3.200000e+01 : f32
    %889 = vector.broadcast %cst_279 : f32 to vector<32x1xf32>
    %890 = arith.divf %888, %889 : vector<32x1xf32>
    %891 = vector.broadcast %890 : vector<32x1xf32> to vector<32x32xf32>
    %892 = arith.subf %884, %891 : vector<32x32xf32>
    %893 = arith.mulf %892, %892 : vector<32x32xf32>
    %cst_280 = arith.constant dense<0.000000e+00> : vector<32xf32>
    %894 = vector.multi_reduction <add>, %893, %cst_280 [1] : vector<32x32xf32> to vector<32xf32>
    %895 = vector.shape_cast %894 : vector<32xf32> to vector<32x1xf32>
    %cst_281 = arith.constant 3.200000e+01 : f32
    %896 = vector.broadcast %cst_281 : f32 to vector<32x1xf32>
    %897 = arith.divf %895, %896 : vector<32x1xf32>
    %cst_282 = arith.constant 9.99999974E-6 : f32
    %898 = vector.broadcast %cst_282 : f32 to vector<32x1xf32>
    %899 = arith.addf %897, %898 : vector<32x1xf32>
    %900 = math.rsqrt %899 : vector<32x1xf32>
    %901 = vector.broadcast %900 : vector<32x1xf32> to vector<32x32xf32>
    %902 = arith.mulf %892, %901 : vector<32x32xf32>
    %903 = vector.broadcast %885 : vector<1x32xf32> to vector<32x32xf32>
    %904 = arith.mulf %902, %903 : vector<32x32xf32>
    %905 = vector.broadcast %886 : vector<1x32xf32> to vector<32x32xf32>
    %906 = arith.addf %904, %905 : vector<32x32xf32>
    %c0_283 = arith.constant 0 : index
    %c5120 = arith.constant 5120 : index
    %907 = vector.load %arg3[%c0_283, %c5120] : memref<1x7680xf32, #tpu.memory_space<vmem>>, vector<1x32xf32>
    %c0_284 = arith.constant 0 : index
    %c5248 = arith.constant 5248 : index
    %908 = vector.load %arg3[%c0_284, %c5248] : memref<1x7680xf32, #tpu.memory_space<vmem>>, vector<1x32xf32>
    %cst_285 = arith.constant dense<0.000000e+00> : vector<32xf32>
    %909 = vector.multi_reduction <add>, %103, %cst_285 [1] : vector<32x32xf32> to vector<32xf32>
    %910 = vector.shape_cast %909 : vector<32xf32> to vector<32x1xf32>
    %cst_286 = arith.constant 3.200000e+01 : f32
    %911 = vector.broadcast %cst_286 : f32 to vector<32x1xf32>
    %912 = arith.divf %910, %911 : vector<32x1xf32>
    %913 = vector.broadcast %912 : vector<32x1xf32> to vector<32x32xf32>
    %914 = arith.subf %103, %913 : vector<32x32xf32>
    %915 = arith.mulf %914, %914 : vector<32x32xf32>
    %cst_287 = arith.constant dense<0.000000e+00> : vector<32xf32>
    %916 = vector.multi_reduction <add>, %915, %cst_287 [1] : vector<32x32xf32> to vector<32xf32>
    %917 = vector.shape_cast %916 : vector<32xf32> to vector<32x1xf32>
    %cst_288 = arith.constant 3.200000e+01 : f32
    %918 = vector.broadcast %cst_288 : f32 to vector<32x1xf32>
    %919 = arith.divf %917, %918 : vector<32x1xf32>
    %cst_289 = arith.constant 9.99999974E-6 : f32
    %920 = vector.broadcast %cst_289 : f32 to vector<32x1xf32>
    %921 = arith.addf %919, %920 : vector<32x1xf32>
    %922 = math.rsqrt %921 : vector<32x1xf32>
    %923 = vector.broadcast %922 : vector<32x1xf32> to vector<32x32xf32>
    %924 = arith.mulf %914, %923 : vector<32x32xf32>
    %925 = vector.broadcast %907 : vector<1x32xf32> to vector<32x32xf32>
    %926 = arith.mulf %924, %925 : vector<32x32xf32>
    %927 = vector.broadcast %908 : vector<1x32xf32> to vector<32x32xf32>
    %928 = arith.addf %926, %927 : vector<32x32xf32>
    %c0_290 = arith.constant 0 : index
    %c3968_291 = arith.constant 3968 : index
    %929 = vector.load %arg5[%c0_290, %c3968_291] : memref<32x5120xbf16, #tpu.memory_space<vmem>>, vector<32x64xbf16>
    %930 = arith.truncf %906 : vector<32x32xf32> to vector<32x32xbf16>
    %cst_292 = arith.constant dense<0.000000e+00> : vector<32x64xf32>
    %931 = tpu.matmul %930, %929, %cst_292 {dimension_numbers = #tpu.dot_dimension_numbers<[1], [0], [0], [1], [0, 0, 1, 1], [], []>} : vector<32x32xbf16>, vector<32x64xbf16>, vector<32x64xf32> -> vector<32x64xf32>
    %c0_293 = arith.constant 0 : index
    %c4096_294 = arith.constant 4096 : index
    %932 = vector.load %arg5[%c0_293, %c4096_294] : memref<32x5120xbf16, #tpu.memory_space<vmem>>, vector<32x128xbf16>
    %933 = arith.truncf %928 : vector<32x32xf32> to vector<32x32xbf16>
    %cst_295 = arith.constant dense<0.000000e+00> : vector<32x128xf32>
    %934 = tpu.matmul %933, %932, %cst_295 {dimension_numbers = #tpu.dot_dimension_numbers<[1], [0], [0], [1], [0, 0, 1, 1], [], []>} : vector<32x32xbf16>, vector<32x128xbf16>, vector<32x128xf32> -> vector<32x128xf32>
    %935 = vector.extract_strided_slice %934 {offsets = [0, 0], sizes = [32, 64], strides = [1, 1]} : vector<32x128xf32> to vector<32x64xf32>
    %936 = vector.extract_strided_slice %934 {offsets = [0, 64], sizes = [32, 64], strides = [1, 1]} : vector<32x128xf32> to vector<32x64xf32>
    %c0_296 = arith.constant 0 : index
    %c128_297 = arith.constant 128 : index
    %937 = vector.load %arg6[%c0_296, %c128_297] : memref<64x512xbf16, #tpu.memory_space<vmem>>, vector<64x32xbf16>
    %c0_298 = arith.constant 0 : index
    %c5376 = arith.constant 5376 : index
    %938 = vector.load %arg3[%c0_298, %c5376] : memref<1x7680xf32, #tpu.memory_space<vmem>>, vector<1x32xf32>
    %939 = arith.truncf %931 : vector<32x64xf32> to vector<32x64xbf16>
    %940 = arith.truncf %935 : vector<32x64xf32> to vector<32x64xbf16>
    %cst_299 = arith.constant dense<0.000000e+00> : vector<32x32xf32>
    %941 = tpu.matmul %939, %940, %cst_299 {dimension_numbers = #tpu.dot_dimension_numbers<[1], [1], [0], [0], [0, 0, 1, 0], [], []>} : vector<32x64xbf16>, vector<32x64xbf16>, vector<32x32xf32> -> vector<32x32xf32>
    %942 = arith.addf %941, %63 : vector<32x32xf32>
    %cst_300 = arith.constant dense<0xFF800000> : vector<32xf32>
    %943 = vector.multi_reduction <maximumf>, %942, %cst_300 [1] : vector<32x32xf32> to vector<32xf32>
    %944 = vector.shape_cast %943 : vector<32xf32> to vector<32x1xf32>
    %945 = vector.broadcast %944 : vector<32x1xf32> to vector<32x32xf32>
    %946 = arith.subf %942, %945 : vector<32x32xf32>
    %947 = math.exp %946 : vector<32x32xf32>
    %cst_301 = arith.constant dense<0.000000e+00> : vector<32xf32>
    %948 = vector.multi_reduction <add>, %947, %cst_301 [1] : vector<32x32xf32> to vector<32xf32>
    %949 = vector.shape_cast %948 : vector<32xf32> to vector<32x1xf32>
    %950 = tpu.reciprocal %949 {approx = true} : vector<32x1xf32> -> vector<32x1xf32>
    %951 = vector.broadcast %950 : vector<32x1xf32> to vector<32x32xf32>
    %952 = arith.mulf %947, %951 : vector<32x32xf32>
    %953 = arith.truncf %952 : vector<32x32xf32> to vector<32x32xbf16>
    %954 = arith.truncf %936 : vector<32x64xf32> to vector<32x64xbf16>
    %cst_302 = arith.constant dense<0.000000e+00> : vector<32x64xf32>
    %955 = tpu.matmul %953, %954, %cst_302 {dimension_numbers = #tpu.dot_dimension_numbers<[1], [0], [0], [1], [0, 0, 1, 1], [], []>} : vector<32x32xbf16>, vector<32x64xbf16>, vector<32x64xf32> -> vector<32x64xf32>
    %956 = arith.truncf %955 : vector<32x64xf32> to vector<32x64xbf16>
    %cst_303 = arith.constant dense<0.000000e+00> : vector<32x32xf32>
    %957 = tpu.matmul %956, %937, %cst_303 {dimension_numbers = #tpu.dot_dimension_numbers<[1], [0], [0], [1], [0, 0, 1, 1], [], []>} : vector<32x64xbf16>, vector<64x32xbf16>, vector<32x32xf32> -> vector<32x32xf32>
    %958 = vector.broadcast %938 : vector<1x32xf32> to vector<32x32xf32>
    %959 = arith.addf %957, %958 : vector<32x32xf32>
    %960 = arith.addf %884, %959 : vector<32x32xf32>
    %c0_304 = arith.constant 0 : index
    %c5504 = arith.constant 5504 : index
    %961 = vector.load %arg3[%c0_304, %c5504] : memref<1x7680xf32, #tpu.memory_space<vmem>>, vector<1x32xf32>
    %c0_305 = arith.constant 0 : index
    %c5632 = arith.constant 5632 : index
    %962 = vector.load %arg3[%c0_305, %c5632] : memref<1x7680xf32, #tpu.memory_space<vmem>>, vector<1x32xf32>
    %cst_306 = arith.constant dense<0.000000e+00> : vector<32xf32>
    %963 = vector.multi_reduction <add>, %960, %cst_306 [1] : vector<32x32xf32> to vector<32xf32>
    %964 = vector.shape_cast %963 : vector<32xf32> to vector<32x1xf32>
    %cst_307 = arith.constant 3.200000e+01 : f32
    %965 = vector.broadcast %cst_307 : f32 to vector<32x1xf32>
    %966 = arith.divf %964, %965 : vector<32x1xf32>
    %967 = vector.broadcast %966 : vector<32x1xf32> to vector<32x32xf32>
    %968 = arith.subf %960, %967 : vector<32x32xf32>
    %969 = arith.mulf %968, %968 : vector<32x32xf32>
    %cst_308 = arith.constant dense<0.000000e+00> : vector<32xf32>
    %970 = vector.multi_reduction <add>, %969, %cst_308 [1] : vector<32x32xf32> to vector<32xf32>
    %971 = vector.shape_cast %970 : vector<32xf32> to vector<32x1xf32>
    %cst_309 = arith.constant 3.200000e+01 : f32
    %972 = vector.broadcast %cst_309 : f32 to vector<32x1xf32>
    %973 = arith.divf %971, %972 : vector<32x1xf32>
    %cst_310 = arith.constant 9.99999974E-6 : f32
    %974 = vector.broadcast %cst_310 : f32 to vector<32x1xf32>
    %975 = arith.addf %973, %974 : vector<32x1xf32>
    %976 = math.rsqrt %975 : vector<32x1xf32>
    %977 = vector.broadcast %976 : vector<32x1xf32> to vector<32x32xf32>
    %978 = arith.mulf %968, %977 : vector<32x32xf32>
    %979 = vector.broadcast %961 : vector<1x32xf32> to vector<32x32xf32>
    %980 = arith.mulf %978, %979 : vector<32x32xf32>
    %981 = vector.broadcast %962 : vector<1x32xf32> to vector<32x32xf32>
    %982 = arith.addf %980, %981 : vector<32x32xf32>
    %c0_311 = arith.constant 0 : index
    %c4224_312 = arith.constant 4224 : index
    %983 = vector.load %arg5[%c0_311, %c4224_312] : memref<32x5120xbf16, #tpu.memory_space<vmem>>, vector<32x128xbf16>
    %c0_313 = arith.constant 0 : index
    %c5760 = arith.constant 5760 : index
    %984 = vector.load %arg3[%c0_313, %c5760] : memref<1x7680xf32, #tpu.memory_space<vmem>>, vector<1x128xf32>
    %c0_314 = arith.constant 0 : index
    %c640_315 = arith.constant 640 : index
    %985 = vector.load %arg7[%c0_314, %c640_315] : memref<128x896xbf16, #tpu.memory_space<vmem>>, vector<128x32xbf16>
    %c0_316 = arith.constant 0 : index
    %c5888 = arith.constant 5888 : index
    %986 = vector.load %arg3[%c0_316, %c5888] : memref<1x7680xf32, #tpu.memory_space<vmem>>, vector<1x32xf32>
    %987 = arith.truncf %982 : vector<32x32xf32> to vector<32x32xbf16>
    %cst_317 = arith.constant dense<0.000000e+00> : vector<32x128xf32>
    %988 = tpu.matmul %987, %983, %cst_317 {dimension_numbers = #tpu.dot_dimension_numbers<[1], [0], [0], [1], [0, 0, 1, 1], [], []>} : vector<32x32xbf16>, vector<32x128xbf16>, vector<32x128xf32> -> vector<32x128xf32>
    %989 = vector.broadcast %984 : vector<1x128xf32> to vector<32x128xf32>
    %990 = arith.addf %988, %989 : vector<32x128xf32>
    %cst_318 = arith.constant 5.000000e-01 : f32
    %991 = vector.broadcast %cst_318 : f32 to vector<32x128xf32>
    %992 = arith.mulf %991, %990 : vector<32x128xf32>
    %cst_319 = arith.constant 4.471500e-02 : f32
    %993 = vector.broadcast %cst_319 : f32 to vector<32x128xf32>
    %994 = arith.mulf %993, %990 : vector<32x128xf32>
    %995 = arith.mulf %994, %990 : vector<32x128xf32>
    %996 = arith.mulf %995, %990 : vector<32x128xf32>
    %997 = arith.addf %990, %996 : vector<32x128xf32>
    %cst_320 = arith.constant 0.797884583 : f32
    %998 = vector.broadcast %cst_320 : f32 to vector<32x128xf32>
    %999 = arith.mulf %998, %997 : vector<32x128xf32>
    %1000 = math.tanh %999 : vector<32x128xf32>
    %cst_321 = arith.constant 1.000000e+00 : f32
    %1001 = vector.broadcast %cst_321 : f32 to vector<32x128xf32>
    %1002 = arith.addf %1001, %1000 : vector<32x128xf32>
    %1003 = arith.mulf %992, %1002 : vector<32x128xf32>
    %1004 = arith.truncf %1003 : vector<32x128xf32> to vector<32x128xbf16>
    %cst_322 = arith.constant dense<0.000000e+00> : vector<32x32xf32>
    %1005 = tpu.matmul %1004, %985, %cst_322 {dimension_numbers = #tpu.dot_dimension_numbers<[1], [0], [0], [1], [0, 0, 1, 1], [], []>} : vector<32x128xbf16>, vector<128x32xbf16>, vector<32x32xf32> -> vector<32x32xf32>
    %1006 = vector.broadcast %986 : vector<1x32xf32> to vector<32x32xf32>
    %1007 = arith.addf %1005, %1006 : vector<32x32xf32>
    %1008 = arith.addf %960, %1007 : vector<32x32xf32>
    %c0_323 = arith.constant 0 : index
    %c4736_324 = arith.constant 4736 : index
    %1009 = vector.load %arg5[%c0_323, %c4736_324] : memref<32x5120xbf16, #tpu.memory_space<vmem>>, vector<32x256xbf16>
    %1010 = arith.truncf %1008 : vector<32x32xf32> to vector<32x32xbf16>
    %cst_325 = arith.constant dense<0.000000e+00> : vector<32x256xf32>
    %1011 = tpu.matmul %1010, %1009, %cst_325 {dimension_numbers = #tpu.dot_dimension_numbers<[1], [0], [0], [1], [0, 0, 1, 1], [], []>} : vector<32x32xbf16>, vector<32x256xbf16>, vector<32x256xf32> -> vector<32x256xf32>
    %c0_326 = arith.constant 0 : index
    %c7168 = arith.constant 7168 : index
    %1012 = vector.load %arg3[%c0_326, %c7168] : memref<1x7680xf32, #tpu.memory_space<vmem>>, vector<1x256xf32>
    %1013 = vector.broadcast %1012 : vector<1x256xf32> to vector<32x256xf32>
    %1014 = arith.addf %1011, %1013 : vector<32x256xf32>
    %1015 = vector.extract_strided_slice %1014 {offsets = [0, 0], sizes = [32, 32], strides = [1, 1]} : vector<32x256xf32> to vector<32x32xf32>
    %1016 = vector.extract_strided_slice %1014 {offsets = [0, 32], sizes = [32, 32], strides = [1, 1]} : vector<32x256xf32> to vector<32x32xf32>
    %1017 = vector.extract_strided_slice %1014 {offsets = [0, 64], sizes = [32, 32], strides = [1, 1]} : vector<32x256xf32> to vector<32x32xf32>
    %1018 = vector.extract_strided_slice %1014 {offsets = [0, 96], sizes = [32, 32], strides = [1, 1]} : vector<32x256xf32> to vector<32x32xf32>
    %1019 = vector.extract_strided_slice %1014 {offsets = [0, 128], sizes = [32, 32], strides = [1, 1]} : vector<32x256xf32> to vector<32x32xf32>
    %1020 = vector.extract_strided_slice %1014 {offsets = [0, 160], sizes = [32, 32], strides = [1, 1]} : vector<32x256xf32> to vector<32x32xf32>
    %1021 = vector.extract_strided_slice %1014 {offsets = [0, 192], sizes = [32, 32], strides = [1, 1]} : vector<32x256xf32> to vector<32x32xf32>
    %1022 = vector.extract_strided_slice %1014 {offsets = [0, 224], sizes = [32, 32], strides = [1, 1]} : vector<32x256xf32> to vector<32x32xf32>
    %1023 = tpu.concatenate %1015, %1016, %1017, %1018, %1019, %1020, %1021, %1022 in 0 : vector<32x32xf32>, vector<32x32xf32>, vector<32x32xf32>, vector<32x32xf32>, vector<32x32xf32>, vector<32x32xf32>, vector<32x32xf32>, vector<32x32xf32> -> vector<256x32xf32>
    %c0_327 = arith.constant 0 : index
    %c6016 = arith.constant 6016 : index
    %1024 = vector.load %arg3[%c0_327, %c6016] : memref<1x7680xf32, #tpu.memory_space<vmem>>, vector<1x32xf32>
    %c0_328 = arith.constant 0 : index
    %c6144 = arith.constant 6144 : index
    %1025 = vector.load %arg3[%c0_328, %c6144] : memref<1x7680xf32, #tpu.memory_space<vmem>>, vector<1x32xf32>
    %cst_329 = arith.constant dense<0.000000e+00> : vector<32xf32>
    %1026 = vector.multi_reduction <add>, %103, %cst_329 [1] : vector<32x32xf32> to vector<32xf32>
    %1027 = vector.shape_cast %1026 : vector<32xf32> to vector<32x1xf32>
    %cst_330 = arith.constant 3.200000e+01 : f32
    %1028 = vector.broadcast %cst_330 : f32 to vector<32x1xf32>
    %1029 = arith.divf %1027, %1028 : vector<32x1xf32>
    %1030 = vector.broadcast %1029 : vector<32x1xf32> to vector<32x32xf32>
    %1031 = arith.subf %103, %1030 : vector<32x32xf32>
    %1032 = arith.mulf %1031, %1031 : vector<32x32xf32>
    %cst_331 = arith.constant dense<0.000000e+00> : vector<32xf32>
    %1033 = vector.multi_reduction <add>, %1032, %cst_331 [1] : vector<32x32xf32> to vector<32xf32>
    %1034 = vector.shape_cast %1033 : vector<32xf32> to vector<32x1xf32>
    %cst_332 = arith.constant 3.200000e+01 : f32
    %1035 = vector.broadcast %cst_332 : f32 to vector<32x1xf32>
    %1036 = arith.divf %1034, %1035 : vector<32x1xf32>
    %cst_333 = arith.constant 9.99999974E-6 : f32
    %1037 = vector.broadcast %cst_333 : f32 to vector<32x1xf32>
    %1038 = arith.addf %1036, %1037 : vector<32x1xf32>
    %1039 = math.rsqrt %1038 : vector<32x1xf32>
    %1040 = vector.broadcast %1039 : vector<32x1xf32> to vector<32x32xf32>
    %1041 = arith.mulf %1031, %1040 : vector<32x32xf32>
    %1042 = vector.broadcast %1024 : vector<1x32xf32> to vector<32x32xf32>
    %1043 = arith.mulf %1041, %1042 : vector<32x32xf32>
    %1044 = vector.broadcast %1025 : vector<1x32xf32> to vector<32x32xf32>
    %1045 = arith.addf %1043, %1044 : vector<32x32xf32>
    %c0_334 = arith.constant 0 : index
    %c6272 = arith.constant 6272 : index
    %1046 = vector.load %arg3[%c0_334, %c6272] : memref<1x7680xf32, #tpu.memory_space<vmem>>, vector<1x32xf32>
    %c0_335 = arith.constant 0 : index
    %c6400 = arith.constant 6400 : index
    %1047 = vector.load %arg3[%c0_335, %c6400] : memref<1x7680xf32, #tpu.memory_space<vmem>>, vector<1x32xf32>
    %cst_336 = arith.constant dense<0.000000e+00> : vector<256xf32>
    %1048 = vector.multi_reduction <add>, %1023, %cst_336 [1] : vector<256x32xf32> to vector<256xf32>
    %1049 = vector.shape_cast %1048 : vector<256xf32> to vector<256x1xf32>
    %cst_337 = arith.constant 3.200000e+01 : f32
    %1050 = vector.broadcast %cst_337 : f32 to vector<256x1xf32>
    %1051 = arith.divf %1049, %1050 : vector<256x1xf32>
    %1052 = vector.broadcast %1051 : vector<256x1xf32> to vector<256x32xf32>
    %1053 = arith.subf %1023, %1052 : vector<256x32xf32>
    %1054 = arith.mulf %1053, %1053 : vector<256x32xf32>
    %cst_338 = arith.constant dense<0.000000e+00> : vector<256xf32>
    %1055 = vector.multi_reduction <add>, %1054, %cst_338 [1] : vector<256x32xf32> to vector<256xf32>
    %1056 = vector.shape_cast %1055 : vector<256xf32> to vector<256x1xf32>
    %cst_339 = arith.constant 3.200000e+01 : f32
    %1057 = vector.broadcast %cst_339 : f32 to vector<256x1xf32>
    %1058 = arith.divf %1056, %1057 : vector<256x1xf32>
    %cst_340 = arith.constant 9.99999974E-6 : f32
    %1059 = vector.broadcast %cst_340 : f32 to vector<256x1xf32>
    %1060 = arith.addf %1058, %1059 : vector<256x1xf32>
    %1061 = math.rsqrt %1060 : vector<256x1xf32>
    %1062 = vector.broadcast %1061 : vector<256x1xf32> to vector<256x32xf32>
    %1063 = arith.mulf %1053, %1062 : vector<256x32xf32>
    %1064 = vector.broadcast %1046 : vector<1x32xf32> to vector<256x32xf32>
    %1065 = arith.mulf %1063, %1064 : vector<256x32xf32>
    %1066 = vector.broadcast %1047 : vector<1x32xf32> to vector<256x32xf32>
    %1067 = arith.addf %1065, %1066 : vector<256x32xf32>
    %c0_341 = arith.constant 0 : index
    %c4352_342 = arith.constant 4352 : index
    %1068 = vector.load %arg5[%c0_341, %c4352_342] : memref<32x5120xbf16, #tpu.memory_space<vmem>>, vector<32x64xbf16>
    %1069 = arith.truncf %1045 : vector<32x32xf32> to vector<32x32xbf16>
    %cst_343 = arith.constant dense<0.000000e+00> : vector<32x64xf32>
    %1070 = tpu.matmul %1069, %1068, %cst_343 {dimension_numbers = #tpu.dot_dimension_numbers<[1], [0], [0], [1], [0, 0, 1, 1], [], []>} : vector<32x32xbf16>, vector<32x64xbf16>, vector<32x64xf32> -> vector<32x64xf32>
    %c0_344 = arith.constant 0 : index
    %c4480_345 = arith.constant 4480 : index
    %1071 = vector.load %arg5[%c0_344, %c4480_345] : memref<32x5120xbf16, #tpu.memory_space<vmem>>, vector<32x128xbf16>
    %1072 = arith.truncf %1067 : vector<256x32xf32> to vector<256x32xbf16>
    %cst_346 = arith.constant dense<0.000000e+00> : vector<256x128xf32>
    %1073 = tpu.matmul %1072, %1071, %cst_346 {dimension_numbers = #tpu.dot_dimension_numbers<[1], [0], [0], [1], [0, 0, 1, 1], [], []>} : vector<256x32xbf16>, vector<32x128xbf16>, vector<256x128xf32> -> vector<256x128xf32>
    %1074 = vector.extract_strided_slice %1073 {offsets = [0, 0], sizes = [256, 64], strides = [1, 1]} : vector<256x128xf32> to vector<256x64xf32>
    %1075 = vector.extract_strided_slice %1073 {offsets = [0, 64], sizes = [256, 64], strides = [1, 1]} : vector<256x128xf32> to vector<256x64xf32>
    %c0_347 = arith.constant 0 : index
    %c256_348 = arith.constant 256 : index
    %1076 = vector.load %arg6[%c0_347, %c256_348] : memref<64x512xbf16, #tpu.memory_space<vmem>>, vector<64x32xbf16>
    %c0_349 = arith.constant 0 : index
    %c6528 = arith.constant 6528 : index
    %1077 = vector.load %arg3[%c0_349, %c6528] : memref<1x7680xf32, #tpu.memory_space<vmem>>, vector<1x32xf32>
    %1078 = arith.truncf %1070 : vector<32x64xf32> to vector<32x64xbf16>
    %1079 = arith.truncf %1074 : vector<256x64xf32> to vector<256x64xbf16>
    %cst_350 = arith.constant dense<0.000000e+00> : vector<32x256xf32>
    %1080 = tpu.matmul %1078, %1079, %cst_350 {dimension_numbers = #tpu.dot_dimension_numbers<[1], [1], [0], [0], [0, 0, 1, 0], [], []>} : vector<32x64xbf16>, vector<256x64xbf16>, vector<32x256xf32> -> vector<32x256xf32>
    %1081 = arith.addf %1080, %96 : vector<32x256xf32>
    %cst_351 = arith.constant dense<0xFF800000> : vector<32xf32>
    %1082 = vector.multi_reduction <maximumf>, %1081, %cst_351 [1] : vector<32x256xf32> to vector<32xf32>
    %1083 = vector.shape_cast %1082 : vector<32xf32> to vector<32x1xf32>
    %1084 = vector.broadcast %1083 : vector<32x1xf32> to vector<32x256xf32>
    %1085 = arith.subf %1081, %1084 : vector<32x256xf32>
    %1086 = math.exp %1085 : vector<32x256xf32>
    %cst_352 = arith.constant dense<0.000000e+00> : vector<32xf32>
    %1087 = vector.multi_reduction <add>, %1086, %cst_352 [1] : vector<32x256xf32> to vector<32xf32>
    %1088 = vector.shape_cast %1087 : vector<32xf32> to vector<32x1xf32>
    %1089 = tpu.reciprocal %1088 {approx = true} : vector<32x1xf32> -> vector<32x1xf32>
    %1090 = vector.broadcast %1089 : vector<32x1xf32> to vector<32x256xf32>
    %1091 = arith.mulf %1086, %1090 : vector<32x256xf32>
    %1092 = arith.truncf %1091 : vector<32x256xf32> to vector<32x256xbf16>
    %1093 = arith.truncf %1075 : vector<256x64xf32> to vector<256x64xbf16>
    %cst_353 = arith.constant dense<0.000000e+00> : vector<32x64xf32>
    %1094 = tpu.matmul %1092, %1093, %cst_353 {dimension_numbers = #tpu.dot_dimension_numbers<[1], [0], [0], [1], [0, 0, 1, 1], [], []>} : vector<32x256xbf16>, vector<256x64xbf16>, vector<32x64xf32> -> vector<32x64xf32>
    %1095 = arith.truncf %1094 : vector<32x64xf32> to vector<32x64xbf16>
    %cst_354 = arith.constant dense<0.000000e+00> : vector<32x32xf32>
    %1096 = tpu.matmul %1095, %1076, %cst_354 {dimension_numbers = #tpu.dot_dimension_numbers<[1], [0], [0], [1], [0, 0, 1, 1], [], []>} : vector<32x64xbf16>, vector<64x32xbf16>, vector<32x32xf32> -> vector<32x32xf32>
    %1097 = vector.broadcast %1077 : vector<1x32xf32> to vector<32x32xf32>
    %1098 = arith.addf %1096, %1097 : vector<32x32xf32>
    %1099 = arith.addf %103, %1098 : vector<32x32xf32>
    %c0_355 = arith.constant 0 : index
    %c6656 = arith.constant 6656 : index
    %1100 = vector.load %arg3[%c0_355, %c6656] : memref<1x7680xf32, #tpu.memory_space<vmem>>, vector<1x32xf32>
    %c0_356 = arith.constant 0 : index
    %c6784 = arith.constant 6784 : index
    %1101 = vector.load %arg3[%c0_356, %c6784] : memref<1x7680xf32, #tpu.memory_space<vmem>>, vector<1x32xf32>
    %cst_357 = arith.constant dense<0.000000e+00> : vector<32xf32>
    %1102 = vector.multi_reduction <add>, %1099, %cst_357 [1] : vector<32x32xf32> to vector<32xf32>
    %1103 = vector.shape_cast %1102 : vector<32xf32> to vector<32x1xf32>
    %cst_358 = arith.constant 3.200000e+01 : f32
    %1104 = vector.broadcast %cst_358 : f32 to vector<32x1xf32>
    %1105 = arith.divf %1103, %1104 : vector<32x1xf32>
    %1106 = vector.broadcast %1105 : vector<32x1xf32> to vector<32x32xf32>
    %1107 = arith.subf %1099, %1106 : vector<32x32xf32>
    %1108 = arith.mulf %1107, %1107 : vector<32x32xf32>
    %cst_359 = arith.constant dense<0.000000e+00> : vector<32xf32>
    %1109 = vector.multi_reduction <add>, %1108, %cst_359 [1] : vector<32x32xf32> to vector<32xf32>
    %1110 = vector.shape_cast %1109 : vector<32xf32> to vector<32x1xf32>
    %cst_360 = arith.constant 3.200000e+01 : f32
    %1111 = vector.broadcast %cst_360 : f32 to vector<32x1xf32>
    %1112 = arith.divf %1110, %1111 : vector<32x1xf32>
    %cst_361 = arith.constant 9.99999974E-6 : f32
    %1113 = vector.broadcast %cst_361 : f32 to vector<32x1xf32>
    %1114 = arith.addf %1112, %1113 : vector<32x1xf32>
    %1115 = math.rsqrt %1114 : vector<32x1xf32>
    %1116 = vector.broadcast %1115 : vector<32x1xf32> to vector<32x32xf32>
    %1117 = arith.mulf %1107, %1116 : vector<32x32xf32>
    %1118 = vector.broadcast %1100 : vector<1x32xf32> to vector<32x32xf32>
    %1119 = arith.mulf %1117, %1118 : vector<32x32xf32>
    %1120 = vector.broadcast %1101 : vector<1x32xf32> to vector<32x32xf32>
    %1121 = arith.addf %1119, %1120 : vector<32x32xf32>
    %c0_362 = arith.constant 0 : index
    %c4608_363 = arith.constant 4608 : index
    %1122 = vector.load %arg5[%c0_362, %c4608_363] : memref<32x5120xbf16, #tpu.memory_space<vmem>>, vector<32x128xbf16>
    %c0_364 = arith.constant 0 : index
    %c6912 = arith.constant 6912 : index
    %1123 = vector.load %arg3[%c0_364, %c6912] : memref<1x7680xf32, #tpu.memory_space<vmem>>, vector<1x128xf32>
    %c0_365 = arith.constant 0 : index
    %c768_366 = arith.constant 768 : index
    %1124 = vector.load %arg7[%c0_365, %c768_366] : memref<128x896xbf16, #tpu.memory_space<vmem>>, vector<128x32xbf16>
    %c0_367 = arith.constant 0 : index
    %c7040 = arith.constant 7040 : index
    %1125 = vector.load %arg3[%c0_367, %c7040] : memref<1x7680xf32, #tpu.memory_space<vmem>>, vector<1x32xf32>
    %1126 = arith.truncf %1121 : vector<32x32xf32> to vector<32x32xbf16>
    %cst_368 = arith.constant dense<0.000000e+00> : vector<32x128xf32>
    %1127 = tpu.matmul %1126, %1122, %cst_368 {dimension_numbers = #tpu.dot_dimension_numbers<[1], [0], [0], [1], [0, 0, 1, 1], [], []>} : vector<32x32xbf16>, vector<32x128xbf16>, vector<32x128xf32> -> vector<32x128xf32>
    %1128 = vector.broadcast %1123 : vector<1x128xf32> to vector<32x128xf32>
    %1129 = arith.addf %1127, %1128 : vector<32x128xf32>
    %cst_369 = arith.constant 5.000000e-01 : f32
    %1130 = vector.broadcast %cst_369 : f32 to vector<32x128xf32>
    %1131 = arith.mulf %1130, %1129 : vector<32x128xf32>
    %cst_370 = arith.constant 4.471500e-02 : f32
    %1132 = vector.broadcast %cst_370 : f32 to vector<32x128xf32>
    %1133 = arith.mulf %1132, %1129 : vector<32x128xf32>
    %1134 = arith.mulf %1133, %1129 : vector<32x128xf32>
    %1135 = arith.mulf %1134, %1129 : vector<32x128xf32>
    %1136 = arith.addf %1129, %1135 : vector<32x128xf32>
    %cst_371 = arith.constant 0.797884583 : f32
    %1137 = vector.broadcast %cst_371 : f32 to vector<32x128xf32>
    %1138 = arith.mulf %1137, %1136 : vector<32x128xf32>
    %1139 = math.tanh %1138 : vector<32x128xf32>
    %cst_372 = arith.constant 1.000000e+00 : f32
    %1140 = vector.broadcast %cst_372 : f32 to vector<32x128xf32>
    %1141 = arith.addf %1140, %1139 : vector<32x128xf32>
    %1142 = arith.mulf %1131, %1141 : vector<32x128xf32>
    %1143 = arith.truncf %1142 : vector<32x128xf32> to vector<32x128xbf16>
    %cst_373 = arith.constant dense<0.000000e+00> : vector<32x32xf32>
    %1144 = tpu.matmul %1143, %1124, %cst_373 {dimension_numbers = #tpu.dot_dimension_numbers<[1], [0], [0], [1], [0, 0, 1, 1], [], []>} : vector<32x128xbf16>, vector<128x32xbf16>, vector<32x32xf32> -> vector<32x32xf32>
    %1145 = vector.broadcast %1125 : vector<1x32xf32> to vector<32x32xf32>
    %1146 = arith.addf %1144, %1145 : vector<32x32xf32>
    %1147 = arith.addf %1099, %1146 : vector<32x32xf32>
    %c0_374 = arith.constant 0 : index
    %c4992_375 = arith.constant 4992 : index
    %1148 = vector.load %arg5[%c0_374, %c4992_375] : memref<32x5120xbf16, #tpu.memory_space<vmem>>, vector<32x64xbf16>
    %1149 = arith.truncf %1147 : vector<32x32xf32> to vector<32x32xbf16>
    %cst_376 = arith.constant dense<0.000000e+00> : vector<32x64xf32>
    %1150 = tpu.matmul %1149, %1148, %cst_376 {dimension_numbers = #tpu.dot_dimension_numbers<[1], [0], [0], [1], [0, 0, 1, 1], [], []>} : vector<32x32xbf16>, vector<32x64xbf16>, vector<32x64xf32> -> vector<32x64xf32>
    %c0_377 = arith.constant 0 : index
    %c7424 = arith.constant 7424 : index
    %1151 = vector.load %arg3[%c0_377, %c7424] : memref<1x7680xf32, #tpu.memory_space<vmem>>, vector<1x64xf32>
    %1152 = vector.broadcast %1151 : vector<1x64xf32> to vector<32x64xf32>
    %1153 = arith.addf %1150, %1152 : vector<32x64xf32>
    %cst_378 = arith.constant 5.000000e-01 : f32
    %1154 = vector.broadcast %cst_378 : f32 to vector<32x64xf32>
    %1155 = arith.mulf %1154, %1153 : vector<32x64xf32>
    %cst_379 = arith.constant 4.471500e-02 : f32
    %1156 = vector.broadcast %cst_379 : f32 to vector<32x64xf32>
    %1157 = arith.mulf %1156, %1153 : vector<32x64xf32>
    %1158 = arith.mulf %1157, %1153 : vector<32x64xf32>
    %1159 = arith.mulf %1158, %1153 : vector<32x64xf32>
    %1160 = arith.addf %1153, %1159 : vector<32x64xf32>
    %cst_380 = arith.constant 0.797884583 : f32
    %1161 = vector.broadcast %cst_380 : f32 to vector<32x64xf32>
    %1162 = arith.mulf %1161, %1160 : vector<32x64xf32>
    %1163 = math.tanh %1162 : vector<32x64xf32>
    %cst_381 = arith.constant 1.000000e+00 : f32
    %1164 = vector.broadcast %cst_381 : f32 to vector<32x64xf32>
    %1165 = arith.addf %1164, %1163 : vector<32x64xf32>
    %1166 = arith.mulf %1155, %1165 : vector<32x64xf32>
    %c0_382 = arith.constant 0 : index
    %c384_383 = arith.constant 384 : index
    %1167 = vector.load %arg6[%c0_382, %c384_383] : memref<64x512xbf16, #tpu.memory_space<vmem>>, vector<64x128xbf16>
    %1168 = arith.truncf %1166 : vector<32x64xf32> to vector<32x64xbf16>
    %cst_384 = arith.constant dense<0.000000e+00> : vector<32x128xf32>
    %1169 = tpu.matmul %1168, %1167, %cst_384 {dimension_numbers = #tpu.dot_dimension_numbers<[1], [0], [0], [1], [0, 0, 1, 1], [], []>} : vector<32x64xbf16>, vector<64x128xbf16>, vector<32x128xf32> -> vector<32x128xf32>
    %c0_385 = arith.constant 0 : index
    %c7552 = arith.constant 7552 : index
    %1170 = vector.load %arg3[%c0_385, %c7552] : memref<1x7680xf32, #tpu.memory_space<vmem>>, vector<1x128xf32>
    %1171 = vector.broadcast %1170 : vector<1x128xf32> to vector<32x128xf32>
    %1172 = arith.addf %1169, %1171 : vector<32x128xf32>
    %c0_386 = arith.constant 0 : index
    %c0_387 = arith.constant 0 : index
    %1173 = vector.load %arg9[%c0_386, %c0_387] : memref<32x128xf32, #tpu.memory_space<vmem>>, vector<32x128xf32>
    tpu.vector_store %arg9[%c0_386, %c0_387], %1172 {strides = array<i32>} : memref<32x128xf32, #tpu.memory_space<vmem>>, vector<32x128xf32>,
    return
  }
  func.func @transform_0(%arg0: i32) -> (i32, i32) {
    %c0_i32 = arith.constant 0 : i32
    %c0_i32_0 = arith.constant 0 : i32
    return %arg0, %c0_i32 : i32, i32
  }
  func.func @transform_1(%arg0: i32) -> (i32, i32) {
    %c0_i32 = arith.constant 0 : i32
    %c0_i32_0 = arith.constant 0 : i32
    return %arg0, %c0_i32 : i32, i32
  }
  func.func @transform_2(%arg0: i32) -> (i32, i32) {
    %c0_i32 = arith.constant 0 : i32
    %c0_i32_0 = arith.constant 0 : i32
    %c0_i32_1 = arith.constant 0 : i32
    return %c0_i32, %c0_i32_0 : i32, i32
  }
  func.func @transform_3(%arg0: i32) -> (i32, i32) {
    %c0_i32 = arith.constant 0 : i32
    %c0_i32_0 = arith.constant 0 : i32
    %c0_i32_1 = arith.constant 0 : i32
    return %c0_i32, %c0_i32_0 : i32, i32
  }
  func.func @transform_4(%arg0: i32) -> (i32, i32) {
    %c0_i32 = arith.constant 0 : i32
    %c0_i32_0 = arith.constant 0 : i32
    %c0_i32_1 = arith.constant 0 : i32
    return %c0_i32, %c0_i32_0 : i32, i32
  }
  func.func @transform_5(%arg0: i32) -> (i32, i32) {
    %c0_i32 = arith.constant 0 : i32
    %c0_i32_0 = arith.constant 0 : i32
    %c0_i32_1 = arith.constant 0 : i32
    return %c0_i32, %c0_i32_0 : i32, i32
  }
  func.func @transform_6(%arg0: i32) -> (i32, i32) {
    %c0_i32 = arith.constant 0 : i32
    %c0_i32_0 = arith.constant 0 : i32
    %c0_i32_1 = arith.constant 0 : i32
    return %c0_i32, %c0_i32_0 : i32, i32
  }
  func.func @transform_7(%arg0: i32) -> (i32, i32) {
    %c0_i32 = arith.constant 0 : i32
    %c0_i32_0 = arith.constant 0 : i32
    %c0_i32_1 = arith.constant 0 : i32
    return %c0_i32, %c0_i32_0 : i32, i32
  }
  func.func @transform_8(%arg0: i32) -> (i32, i32) {
    %c0_i32 = arith.constant 0 : i32
    %c0_i32_0 = arith.constant 0 : i32
    return %arg0, %c0_i32 : i32, i32
  }
}

</mosaic_0001>

<llo_original>
// kernel: decoder_forward.1
$region0: #{decoder_forward.1}
  #allocation0 [shape = 'u32[]', space=smem, size = 0x4, offset = 0x4, fixed_abs, tag = 'smem constant byte address 0x4 - core index']
  #allocation1 [shape = 'u32[72,128]{1,0:T(1,128)}', space=vmem, size = 0x9000, scoped, tag = 'internal scratch']
  %s0 = inlined_call_operand.vmem [shape: f32[64,16], index: 0, kind: input, shape index: {}]
  %s1 = inlined_call_operand.vmem [shape: f32[64,32], index: 1, kind: input, shape index: {}]
  %s2 = inlined_call_operand.hbm [shape: f32[1,7680], index: 2, kind: input, shape index: {}]
  %s3 = inlined_call_operand.vmem [shape: bf16[16,128], index: 3, kind: input, shape index: {}]
  %s4 = inlined_call_operand.vmem [shape: bf16[32,5120], index: 4, kind: input, shape index: {}]
  %s5 = inlined_call_operand.hbm [shape: bf16[64,512], index: 5, kind: input, shape index: {}]
  %s6 = inlined_call_operand.hbm [shape: bf16[128,896], index: 6, kind: input, shape index: {}]
  %s7 = inlined_call_operand.hbm [shape: bf16[256,512], index: 7, kind: input, shape index: {}]
  %s8 = inlined_call_operand.vmem [shape: f32[64,128], index: 8, kind: output, shape index: {}]
  %s9 = sld [smem:[#allocation0]]
  $region81: #{decoder_forward.1} parent=0
    _
  %s11 = ssub.s32 1, %s9
  %s12 = scalar_select 0, %s11, %s9
  $region1: #{decoder_forward.1} parent=0
    #allocation2 [shape = 'u8[30720]{0}', space=vmem, size = 0x7800, scoped, tag = 'input window, operand 2, single buffered']
    #allocation3 [shape = 's32[2]{0}', space=sflag, size = 0x8, scoped, tag = 'scoped memory for decoder_forward.1']
    #allocation4 [shape = 'u8[65536]{0}', space=vmem, size = 0x10000, scoped, tag = 'input window, operand 5, single buffered']
    #allocation5 [shape = 's32[1]{0}', space=sflag, size = 0x4, scoped, tag = 'scoped memory for decoder_forward.1']
    #allocation6 [shape = 'u8[229376]{0}', space=vmem, size = 0x38000, scoped, tag = 'input window, operand 6, single buffered']
    #allocation7 [shape = 'u8[262144]{0}', space=vmem, size = 0x40000, scoped, tag = 'input window, operand 7, single buffered']
    #allocation8 [shape = 's32[1]{0}', space=sflag, size = 0x4, scoped, tag = 'scoped memory for decoder_forward.1']
    %13 = vsyncpa [#allocation3], 0
    %14 = vsyncpa [#allocation5], 0
    %15 = vsyncpa [#allocation8], 0
    loop: start=0, step=1, limit=4
    $region2: #{decoder_forward.1} parent=1 // loop_pre_header
      _
    $region3: #{decoder_forward.1} parent=1 // loop_header
      %s17 = sphi 0, %s21
      %p18 = scmp.ge.s32.totalorder %s17, 4
      %s27 = sphi 0, %s29
      %s30 = sphi 0, %s27
      %s31 = sphi 0, %s30
      %s47 = sphi 0, %s31
      %s53 = sphi 0, %s55
      %s56 = sphi 0, %s53
      %s57 = sphi 0, %s56
      %s73 = sphi 0, %s57
      %s77 = sphi 0, %s77
      %s79 = sphi 0, %s77
      %s80 = sphi 0, %s79
      %s94 = sphi 0, %s80
      %s98 = sphi 0, %s98
      %s100 = sphi 0, %s98
      %s101 = sphi 0, %s100
      %s115 = sphi 0, %s101
      %s119 = sphi 0, %s119
      %s121 = sphi 0, %s119
      %s122 = sphi 0, %s121
      %s136 = sphi 0, %s122
      %s140 = sphi 0, %s140
      %s142 = sphi 0, %s140
      %s143 = sphi 0, %s142
      %s157 = sphi 0, %s143
      %s161 = sphi 0, %s161
      %s163 = sphi 0, %s161
      %s164 = sphi 0, %s163
      %s178 = sphi 0, %s164
      %s182 = sphi 0, %s182
      %s184 = sphi 0, %s182
      %s185 = sphi 0, %s184
      %s199 = sphi 0, %s185
      %s205 = sphi 0, %s207
      %s208 = sphi 0, %s205
      %s209 = sphi 0, %s208
      %s225 = sphi 0, %s209
    $region4: #{decoder_forward.1} parent=1 // loop_header_branch
      %20 = sbr.rel (%p18) target = $region8
    $region5: #{decoder_forward.1} parent=1 // loop_body
      %s22 = ssub.s32 %s17, 1
      %s23 = ssub.s32 %s17, 2
      %s24 = sadd.s32 %s17, 1
      %s25 = ssub.s32 %s17, %s24
      %p26 = scmp.eq.s32.totalorder %s25, 0
      %s28 = sadd.s32 %s27, 1
      %s29 = scalar_select %p26, %s27, %s28
      %p32 = pneg %p26
      %p33 = scmp.eq.s32.totalorder %s17, 1
      %p34 = por %p32, %p33
      %p35 = scmp.ne.s32.totalorder %s27, %s30
      %p36 = scmp.eq.s32.totalorder %s17, 0
      %p37 = por %p35, %p36
      %p38 = scmp.ne.s32.totalorder %s27, %s30
      %p39 = scmp.eq.s32.totalorder %s22, 1
      %p40 = por %p38, %p39
      %p41 = scmp.ne.s32.totalorder %s30, %s31
      %p42 = scmp.eq.s32.totalorder %s22, 0
      %p43 = por %p41, %p42
      %p44 = scmp.ne.s32.totalorder %s30, %s31
      %p45 = scmp.eq.s32.totalorder %s23, 1
      %p46 = por %p44, %p45
      %p48 = scmp.ne.s32.totalorder %s31, %s47
      %p49 = scmp.eq.s32.totalorder %s23, 0
      %p50 = por %p48, %p49
      %s51 = ssub.s32 %s17, %s24
      %p52 = scmp.eq.s32.totalorder %s51, 0
      %s54 = sadd.s32 %s53, 1
      %s55 = scalar_select %p52, %s53, %s54
      %p58 = pneg %p52
      %p59 = scmp.eq.s32.totalorder %s17, 1
      %p60 = por %p58, %p59
      %p61 = scmp.ne.s32.totalorder %s53, %s56
      %p62 = scmp.eq.s32.totalorder %s17, 0
      %p63 = por %p61, %p62
      %p64 = scmp.ne.s32.totalorder %s53, %s56
      %p65 = scmp.eq.s32.totalorder %s22, 1
      %p66 = por %p64, %p65
      %p67 = scmp.ne.s32.totalorder %s56, %s57
      %p68 = scmp.eq.s32.totalorder %s22, 0
      %p69 = por %p67, %p68
      %p70 = scmp.ne.s32.totalorder %s56, %s57
      %p71 = scmp.eq.s32.totalorder %s23, 1
      %p72 = por %p70, %p71
      %p74 = scmp.ne.s32.totalorder %s57, %s73
      %p75 = scmp.eq.s32.totalorder %s23, 0
      %p76 = por %p74, %p75
      %s78 = sadd.s32 %s77, 1
      %p81 = scmp.eq.s32.totalorder %s17, 1
      %p82 = scmp.ne.s32.totalorder %s77, %s79
      %p83 = scmp.eq.s32.totalorder %s17, 0
      %p84 = por %p82, %p83
      %p85 = scmp.ne.s32.totalorder %s77, %s79
      %p86 = scmp.eq.s32.totalorder %s22, 1
      %p87 = por %p85, %p86
      %p88 = scmp.ne.s32.totalorder %s79, %s80
      %p89 = scmp.eq.s32.totalorder %s22, 0
      %p90 = por %p88, %p89
      %p91 = scmp.ne.s32.totalorder %s79, %s80
      %p92 = scmp.eq.s32.totalorder %s23, 1
      %p93 = por %p91, %p92
      %p95 = scmp.ne.s32.totalorder %s80, %s94
      %p96 = scmp.eq.s32.totalorder %s23, 0
      %p97 = por %p95, %p96
      %s99 = sadd.s32 %s98, 1
      %p102 = scmp.eq.s32.totalorder %s17, 1
      %p103 = scmp.ne.s32.totalorder %s98, %s100
      %p104 = scmp.eq.s32.totalorder %s17, 0
      %p105 = por %p103, %p104
      %p106 = scmp.ne.s32.totalorder %s98, %s100
      %p107 = scmp.eq.s32.totalorder %s22, 1
      %p108 = por %p106, %p107
      %p109 = scmp.ne.s32.totalorder %s100, %s101
      %p110 = scmp.eq.s32.totalorder %s22, 0
      %p111 = por %p109, %p110
      %p112 = scmp.ne.s32.totalorder %s100, %s101
      %p113 = scmp.eq.s32.totalorder %s23, 1
      %p114 = por %p112, %p113
      %p116 = scmp.ne.s32.totalorder %s101, %s115
      %p117 = scmp.eq.s32.totalorder %s23, 0
      %p118 = por %p116, %p117
      %s120 = sadd.s32 %s119, 1
      %p123 = scmp.eq.s32.totalorder %s17, 1
      %p124 = scmp.ne.s32.totalorder %s119, %s121
      %p125 = scmp.eq.s32.totalorder %s17, 0
      %p126 = por %p124, %p125
      %p127 = scmp.ne.s32.totalorder %s119, %s121
      %p128 = scmp.eq.s32.totalorder %s22, 1
      %p129 = por %p127, %p128
      %p130 = scmp.ne.s32.totalorder %s121, %s122
      %p131 = scmp.eq.s32.totalorder %s22, 0
      %p132 = por %p130, %p131
      %p133 = scmp.ne.s32.totalorder %s121, %s122
      %p134 = scmp.eq.s32.totalorder %s23, 1
      %p135 = por %p133, %p134
      %p137 = scmp.ne.s32.totalorder %s122, %s136
      %p138 = scmp.eq.s32.totalorder %s23, 0
      %p139 = por %p137, %p138
      %s141 = sadd.s32 %s140, 1
      %p144 = scmp.eq.s32.totalorder %s17, 1
      %p145 = scmp.ne.s32.totalorder %s140, %s142
      %p146 = scmp.eq.s32.totalorder %s17, 0
      %p147 = por %p145, %p146
      %p148 = scmp.ne.s32.totalorder %s140, %s142
      %p149 = scmp.eq.s32.totalorder %s22, 1
      %p150 = por %p148, %p149
      %p151 = scmp.ne.s32.totalorder %s142, %s143
      %p152 = scmp.eq.s32.totalorder %s22, 0
      %p153 = por %p151, %p152
      %p154 = scmp.ne.s32.totalorder %s142, %s143
      %p155 = scmp.eq.s32.totalorder %s23, 1
      %p156 = por %p154, %p155
      %p158 = scmp.ne.s32.totalorder %s143, %s157
      %p159 = scmp.eq.s32.totalorder %s23, 0
      %p160 = por %p158, %p159
      %s162 = sadd.s32 %s161, 1
      %p165 = scmp.eq.s32.totalorder %s17, 1
      %p166 = scmp.ne.s32.totalorder %s161, %s163
      %p167 = scmp.eq.s32.totalorder %s17, 0
      %p168 = por %p166, %p167
      %p169 = scmp.ne.s32.totalorder %s161, %s163
      %p170 = scmp.eq.s32.totalorder %s22, 1
      %p171 = por %p169, %p170
      %p172 = scmp.ne.s32.totalorder %s163, %s164
      %p173 = scmp.eq.s32.totalorder %s22, 0
      %p174 = por %p172, %p173
      %p175 = scmp.ne.s32.totalorder %s163, %s164
      %p176 = scmp.eq.s32.totalorder %s23, 1
      %p177 = por %p175, %p176
      %p179 = scmp.ne.s32.totalorder %s164, %s178
      %p180 = scmp.eq.s32.totalorder %s23, 0
      %p181 = por %p179, %p180
      %s183 = sadd.s32 %s182, 1
      %p186 = scmp.eq.s32.totalorder %s17, 1
      %p187 = scmp.ne.s32.totalorder %s182, %s184
      %p188 = scmp.eq.s32.totalorder %s17, 0
      %p189 = por %p187, %p188
      %p190 = scmp.ne.s32.totalorder %s182, %s184
      %p191 = scmp.eq.s32.totalorder %s22, 1
      %p192 = por %p190, %p191
      %p193 = scmp.ne.s32.totalorder %s184, %s185
      %p194 = scmp.eq.s32.totalorder %s22, 0
      %p195 = por %p193, %p194
      %p196 = scmp.ne.s32.totalorder %s184, %s185
      %p197 = scmp.eq.s32.totalorder %s23, 1
      %p198 = por %p196, %p197
      %p200 = scmp.ne.s32.totalorder %s185, %s199
      %p201 = scmp.eq.s32.totalorder %s23, 0
      %p202 = por %p200, %p201
      %s203 = ssub.s32 %s17, %s24
      %p204 = scmp.eq.s32.totalorder %s203, 0
      %s206 = sadd.s32 %s205, 1
      %s207 = scalar_select %p204, %s205, %s206
      %p210 = pneg %p204
      %p211 = scmp.eq.s32.totalorder %s17, 1
      %p212 = por %p210, %p211
      %p213 = scmp.ne.s32.totalorder %s205, %s208
      %p214 = scmp.eq.s32.totalorder %s17, 0
      %p215 = por %p213, %p214
      %p216 = scmp.ne.s32.totalorder %s205, %s208
      %p217 = scmp.eq.s32.totalorder %s22, 1
      %p218 = por %p216, %p217
      %p219 = scmp.ne.s32.totalorder %s208, %s209
      %p220 = scmp.eq.s32.totalorder %s22, 0
      %p221 = por %p219, %p220
      %p222 = scmp.ne.s32.totalorder %s208, %s209
      %p223 = scmp.eq.s32.totalorder %s23, 1
      %p224 = por %p222, %p223
      %p226 = scmp.ne.s32.totalorder %s209, %s225
      %p227 = scmp.eq.s32.totalorder %s23, 0
      %p228 = por %p226, %p227
      %p229 = scmp.le.s32.totalorder 1, %s17
      %p230 = scmp.lt.s32.totalorder %s17, 3
      %p231 = pnand %p229, %p230
      %p232 = pneg %p231
      // Predicated region
      $region9: #{decoder_forward.1} parent=5 // pred_check
        _
      $region10: #{decoder_forward.1} parent=5 // pred_check_branch
        %234 = sbr.rel (%p231) target = $region12
      $region11: #{decoder_forward.1} parent=5 // pred_region
        %s235 = ssub.s32 %s17, 1
        // Predicated region
        $region13: #{decoder_forward.1} parent=11 // pred_check
          %p236 = pneg %p90
        $region14: #{decoder_forward.1} parent=11 // pred_check_branch
          %238 = sbr.rel (%p236) target = $region16
        $region15: #{decoder_forward.1} parent=11 // pred_region
          %240 = vsyncadd [#allocation3], 0
          %s242 = sshll.u32 %s2, 4
          %s243 = int_to_ptr.hbm [resolvable:$true] %s242
          %s244 = sshll.u32 [#allocation2], 4
          %s245 = int_to_ptr.vmem [resolvable:$true] %s244
          %247 = dma.hbm_to_vmem [thread:$0]  %s243, 960, %s245, [#allocation3]
        $region16: #{decoder_forward.1} parent=11 // pred_fallthru
          _
        // Predicated region
        $region17: #{decoder_forward.1} parent=11 // pred_check
          %p248 = pneg %p111
        $region18: #{decoder_forward.1} parent=11 // pred_check_branch
          %250 = sbr.rel (%p248) target = $region20
        $region19: #{decoder_forward.1} parent=11 // pred_region
          _
        $region20: #{decoder_forward.1} parent=11 // pred_fallthru
          _
        // Predicated region
        $region21: #{decoder_forward.1} parent=11 // pred_check
          %p251 = pneg %p132
        $region22: #{decoder_forward.1} parent=11 // pred_check_branch
          %253 = sbr.rel (%p251) target = $region24
        $region23: #{decoder_forward.1} parent=11 // pred_region
          _
        $region24: #{decoder_forward.1} parent=11 // pred_fallthru
          _
        // Predicated region
        $region25: #{decoder_forward.1} parent=11 // pred_check
          %p254 = pneg %p153
        $region26: #{decoder_forward.1} parent=11 // pred_check_branch
          %256 = sbr.rel (%p254) target = $region28
        $region27: #{decoder_forward.1} parent=11 // pred_region
          %258 = vsyncadd [#allocation5], 0
          %s259 = sshll.u32 %s5, 4
          %s260 = int_to_ptr.hbm [resolvable:$true] %s259
          %s261 = sshll.u32 [#allocation4], 4
          %s262 = int_to_ptr.vmem [resolvable:$true] %s261
          %267 = dma.hbm_to_vmem [thread:$0]  %s260, 2048, %s262, [#allocation5], 256, 256, 16
        $region28: #{decoder_forward.1} parent=11 // pred_fallthru
          _
        // Predicated region
        $region29: #{decoder_forward.1} parent=11 // pred_check
          %p268 = pneg %p174
        $region30: #{decoder_forward.1} parent=11 // pred_check_branch
          %270 = sbr.rel (%p268) target = $region32
        $region31: #{decoder_forward.1} parent=11 // pred_region
          %272 = vsyncadd [#allocation5], 0
          %s273 = sshll.u32 %s6, 4
          %s274 = int_to_ptr.hbm [resolvable:$true] %s273
          %s275 = sshll.u32 [#allocation6], 4
          %s276 = int_to_ptr.vmem [resolvable:$true] %s275
          %281 = dma.hbm_to_vmem [thread:$0]  %s274, 7168, %s276, [#allocation5], 448, 448, 28
        $region32: #{decoder_forward.1} parent=11 // pred_fallthru
          _
        // Predicated region
        $region33: #{decoder_forward.1} parent=11 // pred_check
          %p282 = pneg %p195
        $region34: #{decoder_forward.1} parent=11 // pred_check_branch
          %284 = sbr.rel (%p282) target = $region36
        $region35: #{decoder_forward.1} parent=11 // pred_region
          %286 = vsyncadd [#allocation8], 0
          %s287 = sshll.u32 %s7, 4
          %s288 = int_to_ptr.hbm [resolvable:$true] %s287
          %s289 = sshll.u32 [#allocation7], 4
          %s290 = int_to_ptr.vmem [resolvable:$true] %s289
          %295 = dma.hbm_to_vmem [thread:$0]  %s288, 8192, %s290, [#allocation8], 256, 256, 16
        $region36: #{decoder_forward.1} parent=11 // pred_fallthru
          _
      $region12: #{decoder_forward.1} parent=5 // pred_fallthru
        _
      %p296 = scmp.lt.s32.totalorder %s17, 2
      // Predicated region
      $region37: #{decoder_forward.1} parent=5 // pred_check
        %p297 = pneg %p296
      $region38: #{decoder_forward.1} parent=5 // pred_check_branch
        %299 = sbr.rel (%p297) target = $region40
      $region39: #{decoder_forward.1} parent=5 // pred_region
        // Predicated region
        $region41: #{decoder_forward.1} parent=39 // pred_check
          %p300 = pneg %p37
        $region42: #{decoder_forward.1} parent=39 // pred_check_branch
          %302 = sbr.rel (%p300) target = $region44
        $region43: #{decoder_forward.1} parent=39 // pred_region
          %s303 = smul.u32 4, %s17
          %p304 = scmp.lt.s32.totalorder %s303, 7
          %s305 = scalar_select %p304, %s303, 7
          %s306 = smul.addr %s305, 8
          %s307 = scalar_lea.vmem %s0, %s306
          %s308 = smul.u32 4, %s17
        $region44: #{decoder_forward.1} parent=39 // pred_fallthru
          _
        // Predicated region
        $region45: #{decoder_forward.1} parent=39 // pred_check
          %p309 = pneg %p63
        $region46: #{decoder_forward.1} parent=39 // pred_check_branch
          %311 = sbr.rel (%p309) target = $region48
        $region47: #{decoder_forward.1} parent=39 // pred_region
          %s312 = smul.u32 4, %s17
          %p313 = scmp.lt.s32.totalorder %s312, 7
          %s314 = scalar_select %p313, %s312, 7
          %s315 = smul.addr %s314, 8
          %s316 = scalar_lea.vmem %s1, %s315
          %s317 = smul.u32 4, %s17
        $region48: #{decoder_forward.1} parent=39 // pred_fallthru
          _
      $region40: #{decoder_forward.1} parent=5 // pred_fallthru
        _
      %p318 = scmp.le.s32.totalorder 1, %s17
      %p319 = scmp.lt.s32.totalorder %s17, 3
      %p320 = pnand %p318, %p319
      %p321 = pneg %p320
      // Predicated region
      $region49: #{decoder_forward.1} parent=5 // pred_check
        _
      $region50: #{decoder_forward.1} parent=5 // pred_check_branch
        %323 = sbr.rel (%p320) target = $region52
      $region51: #{decoder_forward.1} parent=5 // pred_region
        %s324 = ssub.s32 %s17, 1
        // Predicated region
        $region53: #{decoder_forward.1} parent=51 // pred_check
          %p325 = pneg %p90
        $region54: #{decoder_forward.1} parent=51 // pred_check_branch
          %327 = sbr.rel (%p325) target = $region56
        $region55: #{decoder_forward.1} parent=51 // pred_region
          %329 = dma.done [#allocation3], 960
        $region56: #{decoder_forward.1} parent=51 // pred_fallthru
          _
        // Predicated region
        $region57: #{decoder_forward.1} parent=51 // pred_check
          %p330 = pneg %p153
        $region58: #{decoder_forward.1} parent=51 // pred_check_branch
          %332 = sbr.rel (%p330) target = $region60
        $region59: #{decoder_forward.1} parent=51 // pred_region
          %334 = dma.done [#allocation5], 2048
        $region60: #{decoder_forward.1} parent=51 // pred_fallthru
          _
        // Predicated region
        $region61: #{decoder_forward.1} parent=51 // pred_check
          %p335 = pneg %p174
        $region62: #{decoder_forward.1} parent=51 // pred_check_branch
          %337 = sbr.rel (%p335) target = $region64
        $region63: #{decoder_forward.1} parent=51 // pred_region
          %339 = dma.done [#allocation5], 7168
        $region64: #{decoder_forward.1} parent=51 // pred_fallthru
          _
        // Predicated region
        $region65: #{decoder_forward.1} parent=51 // pred_check
          %p340 = pneg %p195
        $region66: #{decoder_forward.1} parent=51 // pred_check_branch
          %342 = sbr.rel (%p340) target = $region68
        $region67: #{decoder_forward.1} parent=51 // pred_region
          %344 = dma.done [#allocation8], 8192
        $region68: #{decoder_forward.1} parent=51 // pred_fallthru
          _
        %s345 = smul.u32 4, %s22
        %p346 = scmp.lt.s32.totalorder %s345, 7
        %s347 = scalar_select %p346, %s345, 7
        %s348 = smul.addr %s347, 8
        %s349 = scalar_lea.vmem %s0, %s348
        %p350 = pneg %p43
        %p351 = pneg %p40
        %s352 = smul.u32 4, %s22
        %p353 = scmp.lt.s32.totalorder %s352, 7
        %s354 = scalar_select %p353, %s352, 7
        %s355 = smul.addr %s354, 8
        %s356 = scalar_lea.vmem %s1, %s355
        %p357 = pneg %p69
        %p358 = pneg %p66
        %p359 = pneg %p90
        %p360 = pneg %p87
        %p361 = pneg %p111
        %p362 = pneg %p108
        %p363 = pneg %p132
        %p364 = pneg %p129
        %p365 = pneg %p153
        %p366 = pneg %p150
        %p367 = pneg %p174
        %p368 = pneg %p171
        %p369 = pneg %p195
        %p370 = pneg %p192
        %p371 = pneg %p221
        %p372 = pneg %p218
        %s373 = smul.u32 4, %s22
        %p374 = scmp.lt.s32.totalorder %s373, 7
        %s375 = scalar_select %p374, %s373, 7
        %s376 = smul.addr %s375, 8
        %s377 = scalar_lea.vmem %s8, %s376
        %s378 = smul.u32 4, %s22
        %p379 = scmp.lt.s32.totalorder %s378, 7
        %s380 = scalar_select %p379, %s378, 7
        %s381 = smul.addr %s380, 8
        %s382 = scalar_lea.vmem %s0, %s381
        %s383 = smul.u32 4, %s22
        %s384 = smul.u32 4, %s22
        %p385 = scmp.lt.s32.totalorder %s384, 7
        %s386 = scalar_select %p385, %s384, 7
        %s387 = smul.addr %s386, 8
        %s388 = scalar_lea.vmem %s1, %s387
        %s389 = smul.u32 4, %s22
        %s390 = smul.u32 4, %s22
        %p391 = scmp.lt.s32.totalorder %s390, 7
        %s392 = scalar_select %p391, %s390, 7
        %s393 = smul.addr %s392, 8
        %s394 = scalar_lea.vmem %s8, %s393
        %s395 = smul.u32 4, %s22
        %v397 = vlaneseq
        %v398 = vshrl.u32 %v397, 7
        %v399 = vadd.s32 %v398, 8
        %v400 = vadd.s32 %v398, 16
        %v401 = vadd.s32 %v398, 24
        %v402 = vlaneseq
        %v403 = vand.u32 %v402, 127
        %vm404 = vcmp.ge.s32.totalorder %v398, 8
        %vm405 = vcmp.ge.s32.totalorder %v399, 8
        %vm406 = vcmp.ge.s32.totalorder %v400, 8
        %vm407 = vcmp.ge.s32.totalorder %v401, 8
        %v408 = vsel %vm404, 1, 0
        %v409 = vsel %vm405, 1, 0
        %v410 = vsel %vm406, 1, 0
        %v411 = vsel %vm407, 1, 0
        %vm412 = vcmp.ge.s32.totalorder %v403, 8
        %v413 = vsel %vm412, 1, 0
        %vm414 = vcmp.ge.s32.totalorder %v398, 16
        %vm415 = vcmp.ge.s32.totalorder %v399, 16
        %vm416 = vcmp.ge.s32.totalorder %v400, 16
        %vm417 = vcmp.ge.s32.totalorder %v401, 16
        %v418 = vsel %vm414, 1, 0
        %v419 = vsel %vm415, 1, 0
        %v420 = vsel %vm416, 1, 0
        %v421 = vsel %vm417, 1, 0
        %v422 = vadd.s32 %v408, %v418
        %v423 = vadd.s32 %v409, %v419
        %v424 = vadd.s32 %v410, %v420
        %v425 = vadd.s32 %v411, %v421
        %vm426 = vcmp.ge.s32.totalorder %v403, 16
        %v427 = vsel %vm426, 1, 0
        %v428 = vadd.s32 %v413, %v427
        %vm429 = vcmp.ge.s32.totalorder %v398, 24
        %vm430 = vcmp.ge.s32.totalorder %v399, 24
        %vm431 = vcmp.ge.s32.totalorder %v400, 24
        %vm432 = vcmp.ge.s32.totalorder %v401, 24
        %v433 = vsel %vm429, 1, 0
        %v434 = vsel %vm430, 1, 0
        %v435 = vsel %vm431, 1, 0
        %v436 = vsel %vm432, 1, 0
        %v437 = vadd.s32 %v422, %v433
        %v438 = vadd.s32 %v423, %v434
        %v439 = vadd.s32 %v424, %v435
        %v440 = vadd.s32 %v425, %v436
        %vm441 = vcmp.ge.s32.totalorder %v403, 24
        %v442 = vsel %vm441, 1, 0
        %v443 = vadd.s32 %v428, %v442
        %vm444 = vcmp.eq.s32.totalorder %v437, %v443
        %vm445 = vcmp.eq.s32.totalorder %v438, %v443
        %vm446 = vcmp.eq.s32.totalorder %v439, %v443
        %vm447 = vcmp.eq.s32.totalorder %v440, %v443
        %v448 = vsel %vm444, 0.0, -1e+30
        %v449 = vsel %vm445, 0.0, -1e+30
        %v450 = vsel %vm446, 0.0, -1e+30
        %v451 = vsel %vm447, 0.0, -1e+30
        %456 = vrot.lane.b32.xlu0 %v448, 32
        %v457 = vpop.permute.xlu0 %456
        %458 = vrot.lane.b32.xlu0 %v449, 32
        %v459 = vpop.permute.xlu0 %458
        %460 = vrot.lane.b32.xlu0 %v450, 32
        %v461 = vpop.permute.xlu0 %460
        %462 = vrot.lane.b32.xlu0 %v451, 32
        %v463 = vpop.permute.xlu0 %462
        %468 = vrot.lane.b32.xlu0 %v448, 64
        %v469 = vpop.permute.xlu0 %468
        %470 = vrot.lane.b32.xlu0 %v449, 64
        %v471 = vpop.permute.xlu0 %470
        %472 = vrot.lane.b32.xlu0 %v450, 64
        %v473 = vpop.permute.xlu0 %472
        %474 = vrot.lane.b32.xlu0 %v451, 64
        %v475 = vpop.permute.xlu0 %474
        %480 = vrot.lane.b32.xlu0 %v448, 96
        %v481 = vpop.permute.xlu0 %480
        %482 = vrot.lane.b32.xlu0 %v449, 96
        %v483 = vpop.permute.xlu0 %482
        %484 = vrot.lane.b32.xlu0 %v450, 96
        %v485 = vpop.permute.xlu0 %484
        %486 = vrot.lane.b32.xlu0 %v451, 96
        %v487 = vpop.permute.xlu0 %486
        %vm492 = vcmask 261120
        %v493 = vsel %vm492, %v448, %v457
        %v494 = vsel %vm492, %v449, %v459
        %v495 = vsel %vm492, %v450, %v461
        %v496 = vsel %vm492, %v451, %v463
        %vm497 = vcmask 523264
        %v498 = vsel %vm497, %v493, %v469
        %v499 = vsel %vm497, %v494, %v471
        %v500 = vsel %vm497, %v495, %v473
        %v501 = vsel %vm497, %v496, %v475
        %vm502 = vcmask 785408
        %v503 = vsel %vm502, %v498, %v481
        %v504 = vsel %vm502, %v499, %v483
        %v505 = vsel %vm502, %v500, %v485
        %v506 = vsel %vm502, %v501, %v487
        %v507 = vld [vmem:[%s382] sm:$0xff]
        %v508 = vld [vmem:[%s382 + $0x8] sm:$0xff]
        %v509 = vld [vmem:[%s382 + $0x10] sm:$0xff]
        %v510 = vld [vmem:[%s382 + $0x18] sm:$0xff]
        %v511 = vld [vmem:[%s3] sm:$0xf]
        %v512 = vld [vmem:[%s3 + $0x4] sm:$0xf]
        %v513 = vpack.c.bf16 %v508, %v507
        %v514 = vpack.c.bf16 %v510, %v509
        %v515 = vld [vmem:[#allocation2] sm:$0x1]
        %v517 = vperm.slane %v515, 0
        %v521 = vunpack.c.l.b16 %v511
        %v522 = vunpack.c.l.b16 %v512
        %v523 = vpack.c.b16 %v522, %v521
        %vm525 = vcmask 130048
        %v527 = vsel %vm525, %v513, 0
        %v530 = vsel %vm525, %v514, 0
        %532 = vmatpush.bf16.msra.mxu0 0
        %533 = vmatpush.bf16.msra.mxu0 0
        %534 = vmatpush.bf16.msra.mxu0 0
        %535 = vmatpush.bf16.msra.mxu0 0
        %536 = vmatpush.bf16.msra.mxu0 0
        %537 = vmatpush.bf16.msra.mxu0 0
        %538 = vmatpush.bf16.msra.mxu0 0
        %539 = vmatpush.bf16.msra.mxu0 %v523
        %540 = vmatmul.bf16.gmra.mxu0 %v527
        %v541 = vpop.f32.mrf.mxu0
        %v542 = vadd.f32 %v517, %v541
        %v543 = vpop.f32.mrf.mxu0
        %v544 = vadd.f32 %v517, %v543
        %545 = vmatmul.bf16.gmra.mxu0 %v530
        %v546 = vpop.f32.mrf.mxu0
        %v547 = vadd.f32 %v517, %v546
        %v548 = vpop.f32.mrf.mxu0
        %v549 = vadd.f32 %v517, %v548
        %550 = vdwg.mxu0
        %v551 = vld [vmem:[%s388] sm:$0xff]
        %v552 = vld [vmem:[%s388 + $0x8] sm:$0xff]
        %v553 = vld [vmem:[%s388 + $0x10] sm:$0xff]
        %v554 = vld [vmem:[%s388 + $0x18] sm:$0xff]
        %v555 = vld [vmem:[#allocation2 + $0x1] sm:$0x1]
        %v556 = vld [vmem:[#allocation2 + $0x2] sm:$0x1]
        %v557 = vsel %vm492, %v551, 0.0
        %558 = vadd.xlane.f32.xlu0 %v557
        %v559 = vpop.xlane.xlu0 %558
        %v560 = vsel %vm492, %v552, 0.0
        %561 = vadd.xlane.f32.xlu0 %v560
        %v562 = vpop.xlane.xlu0 %561
        %v563 = vsel %vm492, %v553, 0.0
        %564 = vadd.xlane.f32.xlu0 %v563
        %v565 = vpop.xlane.xlu0 %564
        %v566 = vsel %vm492, %v554, 0.0
        %567 = vadd.xlane.f32.xlu0 %v566
        %v568 = vpop.xlane.xlu0 %567
        %v569 = vrcp.pop 32.0
        %v570 = vmul.f32 32.0, %v569
        %v571 = vsub.f32 1.0, %v570
        %v572 = vmul.f32 %v569, %v571
        %v573 = vadd.f32 %v569, %v572
        %vm574 = vweird.f32 %v569
        %v575 = vsel %vm574, %v569, %v573
        %v576 = vmul.f32 %v559, %v575
        %v577 = vmul.f32 %v562, %v575
        %v578 = vmul.f32 %v565, %v575
        %v579 = vmul.f32 %v568, %v575
        %v580 = vsub.f32 %v551, %v576
        %v581 = vsub.f32 %v552, %v577
        %v582 = vsub.f32 %v553, %v578
        %v583 = vsub.f32 %v554, %v579
        %v584 = vmul.f32 %v580, %v580
        %v585 = vmul.f32 %v581, %v581
        %v586 = vmul.f32 %v582, %v582
        %v587 = vmul.f32 %v583, %v583
        %v588 = vsel %vm492, %v584, 0.0
        %589 = vadd.xlane.f32.xlu0 %v588
        %v590 = vpop.xlane.xlu0 %589
        %v591 = vsel %vm492, %v585, 0.0
        %592 = vadd.xlane.f32.xlu0 %v591
        %v593 = vpop.xlane.xlu0 %592
        %v594 = vsel %vm492, %v586, 0.0
        %595 = vadd.xlane.f32.xlu0 %v594
        %v596 = vpop.xlane.xlu0 %595
        %v597 = vsel %vm492, %v587, 0.0
        %598 = vadd.xlane.f32.xlu0 %v597
        %v599 = vpop.xlane.xlu0 %598
        %v600 = vmul.f32 %v590, %v575
        %v601 = vmul.f32 %v593, %v575
        %v602 = vmul.f32 %v596, %v575
        %v603 = vmul.f32 %v599, %v575
        %v604 = vadd.f32 %v600, 1e-05
        %v605 = vadd.f32 %v601, 1e-05
        %v606 = vadd.f32 %v602, 1e-05
        %v607 = vadd.f32 %v603, 1e-05
        %v608 = vrsqrt.pop %v604
        %v609 = vmul.f32 %v608, %v604
        %v610 = vmul.f32 %v609, %v608
        %v611 = vmul.f32 0.5, %v610
        %v612 = vsub.f32 1.5, %v611
        %v613 = vmul.f32 %v608, %v612
        %vm614 = vweird.f32 %v604
        %vm615 = vweird.f32 %v608
        %vm616 = vmor %vm614, %vm615
        %v617 = vsel %vm616, %v608, %v613
        %v618 = vrsqrt.pop %v605
        %v619 = vmul.f32 %v618, %v605
        %v620 = vmul.f32 %v619, %v618
        %v621 = vmul.f32 0.5, %v620
        %v622 = vsub.f32 1.5, %v621
        %v623 = vmul.f32 %v618, %v622
        %vm624 = vweird.f32 %v605
        %vm625 = vweird.f32 %v618
        %vm626 = vmor %vm624, %vm625
        %v627 = vsel %vm626, %v618, %v623
        %v628 = vrsqrt.pop %v606
        %v629 = vmul.f32 %v628, %v606
        %v630 = vmul.f32 %v629, %v628
        %v631 = vmul.f32 0.5, %v630
        %v632 = vsub.f32 1.5, %v631
        %v633 = vmul.f32 %v628, %v632
        %vm634 = vweird.f32 %v606
        %vm635 = vweird.f32 %v628
        %vm636 = vmor %vm634, %vm635
        %v637 = vsel %vm636, %v628, %v633
        %v638 = vrsqrt.pop %v607
        %v639 = vmul.f32 %v638, %v607
        %v640 = vmul.f32 %v639, %v638
        %v641 = vmul.f32 0.5, %v640
        %v642 = vsub.f32 1.5, %v641
        %v643 = vmul.f32 %v638, %v642
        %vm644 = vweird.f32 %v607
        %vm645 = vweird.f32 %v638
        %vm646 = vmor %vm644, %vm645
        %v647 = vsel %vm646, %v638, %v643
        %v648 = vmul.f32 %v580, %v617
        %v649 = vmul.f32 %v581, %v627
        %v650 = vmul.f32 %v582, %v637
        %v651 = vmul.f32 %v583, %v647
        %v653 = vperm.slane %v555, 0
        %v655 = vmul.f32 %v648, %v653
        %v656 = vmul.f32 %v649, %v653
        %v657 = vmul.f32 %v650, %v653
        %v658 = vmul.f32 %v651, %v653
        %v660 = vperm.slane %v556, 0
        %v662 = vadd.f32 %v655, %v660
        %v663 = vadd.f32 %v656, %v660
        %v664 = vadd.f32 %v657, %v660
        %v665 = vadd.f32 %v658, %v660
        %v666 = vld [vmem:[%s4] sm:$0xff]
        %v667 = vld [vmem:[%s4 + $0x8] sm:$0xff]
        %v668 = vld [vmem:[%s4 + $0x10] sm:$0xff]
        %v669 = vld [vmem:[%s4 + $0xa0] sm:$0xff]
        %v670 = vld [vmem:[%s4 + $0xa8] sm:$0xff]
        %v671 = vld [vmem:[%s4 + $0xb0] sm:$0xff]
        %v672 = vld [vmem:[%s4 + $0x140] sm:$0xff]
        %v673 = vld [vmem:[%s4 + $0x148] sm:$0xff]
        %v674 = vld [vmem:[%s4 + $0x150] sm:$0xff]
        %v675 = vld [vmem:[%s4 + $0x1e0] sm:$0xff]
        %v676 = vld [vmem:[%s4 + $0x1e8] sm:$0xff]
        %v677 = vld [vmem:[%s4 + $0x1f0] sm:$0xff]
        %v678 = vpack.c.bf16 %v663, %v662
        %v679 = vpack.c.bf16 %v665, %v664
        %v692 = vunpack.c.l.b16 %v666
        %v693 = vunpack.c.h.b16 %v666
        %v694 = vunpack.c.l.b16 %v667
        %v695 = vunpack.c.h.b16 %v667
        %v696 = vunpack.c.l.b16 %v668
        %v697 = vunpack.c.h.b16 %v668
        %v698 = vunpack.c.l.b16 %v669
        %v699 = vunpack.c.h.b16 %v669
        %v700 = vunpack.c.l.b16 %v670
        %v701 = vunpack.c.h.b16 %v670
        %v702 = vunpack.c.l.b16 %v671
        %v703 = vunpack.c.h.b16 %v671
        %v704 = vunpack.c.l.b16 %v672
        %v705 = vunpack.c.h.b16 %v672
        %v706 = vunpack.c.l.b16 %v673
        %v707 = vunpack.c.h.b16 %v673
        %v708 = vunpack.c.l.b16 %v674
        %v709 = vunpack.c.h.b16 %v674
        %v710 = vunpack.c.l.b16 %v675
        %v711 = vunpack.c.h.b16 %v675
        %v712 = vunpack.c.l.b16 %v676
        %v713 = vunpack.c.h.b16 %v676
        %v714 = vunpack.c.l.b16 %v677
        %v715 = vunpack.c.h.b16 %v677
        %v716 = vpack.c.b16 %v698, %v692
        %v717 = vpack.c.b16 %v699, %v693
        %v718 = vpack.c.b16 %v700, %v694
        %v719 = vpack.c.b16 %v701, %v695
        %v720 = vpack.c.b16 %v702, %v696
        %v721 = vpack.c.b16 %v703, %v697
        %v722 = vpack.c.b16 %v710, %v704
        %v723 = vpack.c.b16 %v711, %v705
        %v724 = vpack.c.b16 %v712, %v706
        %v725 = vpack.c.b16 %v713, %v707
        %v726 = vpack.c.b16 %v714, %v708
        %v727 = vpack.c.b16 %v715, %v709
        %v741 = vsel %vm492, %v678, 0
        %v744 = vsel %vm492, %v679, 0
        %746 = vmatpush.bf16.msra.mxu0 0
        %747 = vmatpush.bf16.msra.mxu0 0
        %748 = vmatpush.bf16.msra.mxu0 0
        %749 = vmatpush.bf16.msra.mxu0 0
        %750 = vmatpush.bf16.msra.mxu0 0
        %751 = vmatpush.bf16.msra.mxu0 0
        %752 = vmatpush.bf16.msra.mxu0 %v722
        %753 = vmatpush.bf16.msra.mxu0 %v716
        %754 = vmatmul.bf16.gmra.mxu0 %v741
        %v755 = vpop.f32.mrf.mxu0
        %v756 = vadd.f32 0.0, %v755
        %v757 = vpop.f32.mrf.mxu0
        %v758 = vadd.f32 0.0, %v757
        %759 = vmatmul.bf16.gmra.mxu0 %v744
        %v760 = vpop.f32.mrf.mxu0
        %v761 = vadd.f32 0.0, %v760
        %v762 = vpop.f32.mrf.mxu0
        %v763 = vadd.f32 0.0, %v762
        %764 = vdwg.mxu0
        %765 = vmatpush.bf16.msra.mxu0 0
        %766 = vmatpush.bf16.msra.mxu0 0
        %767 = vmatpush.bf16.msra.mxu0 0
        %768 = vmatpush.bf16.msra.mxu0 0
        %769 = vmatpush.bf16.msra.mxu0 0
        %770 = vmatpush.bf16.msra.mxu0 0
        %771 = vmatpush.bf16.msra.mxu0 %v723
        %772 = vmatpush.bf16.msra.mxu0 %v717
        %773 = vmatmul.bf16.gmra.mxu0 %v741
        %v774 = vpop.f32.mrf.mxu0
        %v775 = vadd.f32 0.0, %v774
        %v776 = vpop.f32.mrf.mxu0
        %v777 = vadd.f32 0.0, %v776
        %778 = vmatmul.bf16.gmra.mxu0 %v744
        %v779 = vpop.f32.mrf.mxu0
        %v780 = vadd.f32 0.0, %v779
        %v781 = vpop.f32.mrf.mxu0
        %v782 = vadd.f32 0.0, %v781
        %783 = vdwg.mxu0
        %784 = vmatpush.bf16.msra.mxu0 0
        %785 = vmatpush.bf16.msra.mxu0 0
        %786 = vmatpush.bf16.msra.mxu0 0
        %787 = vmatpush.bf16.msra.mxu0 0
        %788 = vmatpush.bf16.msra.mxu0 0
        %789 = vmatpush.bf16.msra.mxu0 0
        %790 = vmatpush.bf16.msra.mxu0 %v724
        %791 = vmatpush.bf16.msra.mxu0 %v718
        %792 = vmatmul.bf16.gmra.mxu0 %v741
        %v793 = vpop.f32.mrf.mxu0
        %v794 = vadd.f32 0.0, %v793
        %v795 = vpop.f32.mrf.mxu0
        %v796 = vadd.f32 0.0, %v795
        %797 = vmatmul.bf16.gmra.mxu0 %v744
        %v798 = vpop.f32.mrf.mxu0
        %v799 = vadd.f32 0.0, %v798
        %v800 = vpop.f32.mrf.mxu0
        %v801 = vadd.f32 0.0, %v800
        %802 = vdwg.mxu0
        %803 = vmatpush.bf16.msra.mxu0 0
        %804 = vmatpush.bf16.msra.mxu0 0
        %805 = vmatpush.bf16.msra.mxu0 0
        %806 = vmatpush.bf16.msra.mxu0 0
        %807 = vmatpush.bf16.msra.mxu0 0
        %808 = vmatpush.bf16.msra.mxu0 0
        %809 = vmatpush.bf16.msra.mxu0 %v725
        %810 = vmatpush.bf16.msra.mxu0 %v719
        %811 = vmatmul.bf16.gmra.mxu0 %v741
        %v812 = vpop.f32.mrf.mxu0
        %v813 = vadd.f32 0.0, %v812
        %v814 = vpop.f32.mrf.mxu0
        %v815 = vadd.f32 0.0, %v814
        %816 = vmatmul.bf16.gmra.mxu0 %v744
        %v817 = vpop.f32.mrf.mxu0
        %v818 = vadd.f32 0.0, %v817
        %v819 = vpop.f32.mrf.mxu0
        %v820 = vadd.f32 0.0, %v819
        %821 = vdwg.mxu0
        %822 = vmatpush.bf16.msra.mxu0 0
        %823 = vmatpush.bf16.msra.mxu0 0
        %824 = vmatpush.bf16.msra.mxu0 0
        %825 = vmatpush.bf16.msra.mxu0 0
        %826 = vmatpush.bf16.msra.mxu0 0
        %827 = vmatpush.bf16.msra.mxu0 0
        %828 = vmatpush.bf16.msra.mxu0 %v726
        %829 = vmatpush.bf16.msra.mxu0 %v720
        %830 = vmatmul.bf16.gmra.mxu0 %v741
        %v831 = vpop.f32.mrf.mxu0
        %v832 = vadd.f32 0.0, %v831
        %v833 = vpop.f32.mrf.mxu0
        %v834 = vadd.f32 0.0, %v833
        %835 = vmatmul.bf16.gmra.mxu0 %v744
        %v836 = vpop.f32.mrf.mxu0
        %v837 = vadd.f32 0.0, %v836
        %v838 = vpop.f32.mrf.mxu0
        %v839 = vadd.f32 0.0, %v838
        %840 = vdwg.mxu0
        %841 = vmatpush.bf16.msra.mxu0 0
        %842 = vmatpush.bf16.msra.mxu0 0
        %843 = vmatpush.bf16.msra.mxu0 0
        %844 = vmatpush.bf16.msra.mxu0 0
        %845 = vmatpush.bf16.msra.mxu0 0
        %846 = vmatpush.bf16.msra.mxu0 0
        %847 = vmatpush.bf16.msra.mxu0 %v727
        %848 = vmatpush.bf16.msra.mxu0 %v721
        %849 = vmatmul.bf16.gmra.mxu0 %v741
        %v850 = vpop.f32.mrf.mxu0
        %v851 = vadd.f32 0.0, %v850
        %v852 = vpop.f32.mrf.mxu0
        %v853 = vadd.f32 0.0, %v852
        %854 = vmatmul.bf16.gmra.mxu0 %v744
        %v855 = vpop.f32.mrf.mxu0
        %v856 = vadd.f32 0.0, %v855
        %v857 = vpop.f32.mrf.mxu0
        %v858 = vadd.f32 0.0, %v857
        %859 = vdwg.mxu0
        %v860 = vld [vmem:[#allocation7] sm:$0xf]
        %v861 = vld [vmem:[#allocation7 + $0x10] sm:$0xf]
        %v862 = vld [vmem:[#allocation7 + $0x20] sm:$0xf]
        %v863 = vld [vmem:[#allocation7 + $0x30] sm:$0xf]
        %v864 = vld [vmem:[#allocation7 + $0x40] sm:$0xf]
        %v865 = vld [vmem:[#allocation7 + $0x50] sm:$0xf]
        %v866 = vld [vmem:[#allocation7 + $0x60] sm:$0xf]
        %v867 = vld [vmem:[#allocation7 + $0x70] sm:$0xf]
        %v868 = vld [vmem:[#allocation7 + $0x80] sm:$0xf]
        %v869 = vld [vmem:[#allocation7 + $0x90] sm:$0xf]
        %v870 = vld [vmem:[#allocation7 + $0xa0] sm:$0xf]
        %v871 = vld [vmem:[#allocation7 + $0xb0] sm:$0xf]
        %v872 = vld [vmem:[#allocation7 + $0xc0] sm:$0xf]
        %v873 = vld [vmem:[#allocation7 + $0xd0] sm:$0xf]
        %v874 = vld [vmem:[#allocation7 + $0xe0] sm:$0xf]
        %v875 = vld [vmem:[#allocation7 + $0xf0] sm:$0xf]
        %v876 = vld [vmem:[#allocation7 + $0x100] sm:$0xf]
        %v877 = vld [vmem:[#allocation7 + $0x110] sm:$0xf]
        %v878 = vld [vmem:[#allocation7 + $0x120] sm:$0xf]
        %v879 = vld [vmem:[#allocation7 + $0x130] sm:$0xf]
        %v880 = vld [vmem:[#allocation7 + $0x140] sm:$0xf]
        %v881 = vld [vmem:[#allocation7 + $0x150] sm:$0xf]
        %v882 = vld [vmem:[#allocation7 + $0x160] sm:$0xf]
        %v883 = vld [vmem:[#allocation7 + $0x170] sm:$0xf]
        %v884 = vld [vmem:[#allocation7 + $0x180] sm:$0xf]
        %v885 = vld [vmem:[#allocation7 + $0x190] sm:$0xf]
        %v886 = vld [vmem:[#allocation7 + $0x1a0] sm:$0xf]
        %v887 = vld [vmem:[#allocation7 + $0x1b0] sm:$0xf]
        %v888 = vld [vmem:[#allocation7 + $0x1c0] sm:$0xf]
        %v889 = vld [vmem:[#allocation7 + $0x1d0] sm:$0xf]
        %v890 = vld [vmem:[#allocation7 + $0x1e0] sm:$0xf]
        %v891 = vld [vmem:[#allocation7 + $0x1f0] sm:$0xf]
        %v892 = vld [vmem:[#allocation2 + $0x3] sm:$0x1]
        %v893 = vpack.c.bf16 %v758, %v756
        %v894 = vpack.c.bf16 %v763, %v761
        %v895 = vpack.c.bf16 %v796, %v794
        %v896 = vpack.c.bf16 %v801, %v799
        %v898 = vsel %vm497, %v893, 0
        %v901 = vsel %vm497, %v894, 0
        %v904 = vsel %vm497, %v895, 0
        %v907 = vsel %vm497, %v896, 0
        %909 = vmatpush.bf16.xpose.msra.mxu0 0
        %910 = vmatpush.bf16.xpose.msra.mxu0 0
        %911 = vmatpush.bf16.xpose.msra.mxu0 0
        %912 = vmatpush.bf16.xpose.msra.mxu0 0
        %913 = vmatpush.bf16.xpose.msra.mxu0 0
        %914 = vmatpush.bf16.xpose.msra.mxu0 0
        %915 = vmatpush.bf16.xpose.msra.mxu0 %v907
        %916 = vmatpush.bf16.xpose.msra.mxu0 %v904
        %917 = vmatmul.bf16.gmra.mxu0 %v898
        %v918 = vpop.f32.mrf.mxu0
        %v919 = vadd.f32 %v448, %v918
        %v920 = vpop.f32.mrf.mxu0
        %v921 = vadd.f32 %v449, %v920
        %922 = vmatmul.bf16.gmra.mxu0 %v901
        %v923 = vpop.f32.mrf.mxu0
        %v924 = vadd.f32 %v450, %v923
        %v925 = vpop.f32.mrf.mxu0
        %v926 = vadd.f32 %v451, %v925
        %927 = vdwg.mxu0
        %v928 = vsel %vm492, %v919, -inf
        %929 = vmax.xlane.f32.xlu0 %v928
        %v930 = vpop.xlane.xlu0 %929
        %v931 = vsel %vm492, %v921, -inf
        %932 = vmax.xlane.f32.xlu0 %v931
        %v933 = vpop.xlane.xlu0 %932
        %v934 = vsel %vm492, %v924, -inf
        %935 = vmax.xlane.f32.xlu0 %v934
        %v936 = vpop.xlane.xlu0 %935
        %v937 = vsel %vm492, %v926, -inf
        %938 = vmax.xlane.f32.xlu0 %v937
        %v939 = vpop.xlane.xlu0 %938
        %v940 = vsub.f32 %v919, %v930
        %v941 = vsub.f32 %v921, %v933
        %v942 = vsub.f32 %v924, %v936
        %v943 = vsub.f32 %v926, %v939
        %v944 = vmul.f32 %v940, 1.442695
        %v945 = vpow.pop %v944
        %v946 = vmul.f32 %v941, 1.442695
        %v947 = vpow.pop %v946
        %v948 = vmul.f32 %v942, 1.442695
        %v949 = vpow.pop %v948
        %v950 = vmul.f32 %v943, 1.442695
        %v951 = vpow.pop %v950
        %v952 = vsel %vm492, %v945, 0.0
        %953 = vadd.xlane.f32.xlu0 %v952
        %v954 = vpop.xlane.xlu0 %953
        %v955 = vsel %vm492, %v947, 0.0
        %956 = vadd.xlane.f32.xlu0 %v955
        %v957 = vpop.xlane.xlu0 %956
        %v958 = vsel %vm492, %v949, 0.0
        %959 = vadd.xlane.f32.xlu0 %v958
        %v960 = vpop.xlane.xlu0 %959
        %v961 = vsel %vm492, %v951, 0.0
        %962 = vadd.xlane.f32.xlu0 %v961
        %v963 = vpop.xlane.xlu0 %962
        %v964 = vrcp.pop %v954
        %v965 = vrcp.pop %v957
        %v966 = vrcp.pop %v960
        %v967 = vrcp.pop %v963
        %v968 = vmul.f32 %v945, %v964
        %v969 = vmul.f32 %v947, %v965
        %v970 = vmul.f32 %v949, %v966
        %v971 = vmul.f32 %v951, %v967
        %v972 = vpack.c.bf16 %v969, %v968
        %v973 = vpack.c.bf16 %v971, %v970
        %v974 = vpack.c.bf16 %v834, %v832
        %v975 = vpack.c.bf16 %v839, %v837
        %v977 = vsel %vm492, %v972, 0
        %v980 = vsel %vm492, %v973, 0
        %982 = vmatpush.bf16.msra.mxu0 0
        %983 = vmatpush.bf16.msra.mxu0 0
        %984 = vmatpush.bf16.msra.mxu0 0
        %985 = vmatpush.bf16.msra.mxu0 0
        %986 = vmatpush.bf16.msra.mxu0 0
        %987 = vmatpush.bf16.msra.mxu0 0
        %988 = vmatpush.bf16.msra.mxu0 %v975
        %989 = vmatpush.bf16.msra.mxu0 %v974
        %990 = vmatmul.bf16.gmra.mxu0 %v977
        %v991 = vpop.f32.mrf.mxu0
        %v992 = vadd.f32 0.0, %v991
        %v993 = vpop.f32.mrf.mxu0
        %v994 = vadd.f32 0.0, %v993
        %995 = vmatmul.bf16.gmra.mxu0 %v980
        %v996 = vpop.f32.mrf.mxu0
        %v997 = vadd.f32 0.0, %v996
        %v998 = vpop.f32.mrf.mxu0
        %v999 = vadd.f32 0.0, %v998
        %1000 = vdwg.mxu0
        %1003 = vrot.lane.b32.xlu0 %v893, 64
        %v1004 = vpop.permute.xlu0 %1003
        %1005 = vrot.lane.b32.xlu0 %v894, 64
        %v1006 = vpop.permute.xlu0 %1005
        %1009 = vrot.lane.b32.xlu0 %v895, 64
        %v1010 = vpop.permute.xlu0 %1009
        %1011 = vrot.lane.b32.xlu0 %v896, 64
        %v1012 = vpop.permute.xlu0 %1011
        %v1014 = vsel %vm497, %v1004, 0
        %v1017 = vsel %vm497, %v1006, 0
        %v1020 = vsel %vm497, %v1010, 0
        %v1023 = vsel %vm497, %v1012, 0
        %1025 = vmatpush.bf16.xpose.msra.mxu0 0
        %1026 = vmatpush.bf16.xpose.msra.mxu0 0
        %1027 = vmatpush.bf16.xpose.msra.mxu0 0
        %1028 = vmatpush.bf16.xpose.msra.mxu0 0
        %1029 = vmatpush.bf16.xpose.msra.mxu0 0
        %1030 = vmatpush.bf16.xpose.msra.mxu0 0
        %1031 = vmatpush.bf16.xpose.msra.mxu0 %v1023
        %1032 = vmatpush.bf16.xpose.msra.mxu0 %v1020
        %1033 = vmatmul.bf16.gmra.mxu0 %v1014
        %v1034 = vpop.f32.mrf.mxu0
        %v1035 = vadd.f32 %v448, %v1034
        %v1036 = vpop.f32.mrf.mxu0
        %v1037 = vadd.f32 %v449, %v1036
        %1038 = vmatmul.bf16.gmra.mxu0 %v1017
        %v1039 = vpop.f32.mrf.mxu0
        %v1040 = vadd.f32 %v450, %v1039
        %v1041 = vpop.f32.mrf.mxu0
        %v1042 = vadd.f32 %v451, %v1041
        %1043 = vdwg.mxu0
        %v1044 = vsel %vm492, %v1035, -inf
        %1045 = vmax.xlane.f32.xlu0 %v1044
        %v1046 = vpop.xlane.xlu0 %1045
        %v1047 = vsel %vm492, %v1037, -inf
        %1048 = vmax.xlane.f32.xlu0 %v1047
        %v1049 = vpop.xlane.xlu0 %1048
        %v1050 = vsel %vm492, %v1040, -inf
        %1051 = vmax.xlane.f32.xlu0 %v1050
        %v1052 = vpop.xlane.xlu0 %1051
        %v1053 = vsel %vm492, %v1042, -inf
        %1054 = vmax.xlane.f32.xlu0 %v1053
        %v1055 = vpop.xlane.xlu0 %1054
        %v1056 = vsub.f32 %v1035, %v1046
        %v1057 = vsub.f32 %v1037, %v1049
        %v1058 = vsub.f32 %v1040, %v1052
        %v1059 = vsub.f32 %v1042, %v1055
        %v1060 = vmul.f32 %v1056, 1.442695
        %v1061 = vpow.pop %v1060
        %v1062 = vmul.f32 %v1057, 1.442695
        %v1063 = vpow.pop %v1062
        %v1064 = vmul.f32 %v1058, 1.442695
        %v1065 = vpow.pop %v1064
        %v1066 = vmul.f32 %v1059, 1.442695
        %v1067 = vpow.pop %v1066
        %v1068 = vsel %vm492, %v1061, 0.0
        %1069 = vadd.xlane.f32.xlu0 %v1068
        %v1070 = vpop.xlane.xlu0 %1069
        %v1071 = vsel %vm492, %v1063, 0.0
        %1072 = vadd.xlane.f32.xlu0 %v1071
        %v1073 = vpop.xlane.xlu0 %1072
        %v1074 = vsel %vm492, %v1065, 0.0
        %1075 = vadd.xlane.f32.xlu0 %v1074
        %v1076 = vpop.xlane.xlu0 %1075
        %v1077 = vsel %vm492, %v1067, 0.0
        %1078 = vadd.xlane.f32.xlu0 %v1077
        %v1079 = vpop.xlane.xlu0 %1078
        %v1080 = vrcp.pop %v1070
        %v1081 = vrcp.pop %v1073
        %v1082 = vrcp.pop %v1076
        %v1083 = vrcp.pop %v1079
        %v1084 = vmul.f32 %v1061, %v1080
        %v1085 = vmul.f32 %v1063, %v1081
        %v1086 = vmul.f32 %v1065, %v1082
        %v1087 = vmul.f32 %v1067, %v1083
        %v1088 = vpack.c.bf16 %v1085, %v1084
        %v1089 = vpack.c.bf16 %v1087, %v1086
        %1092 = vrot.lane.b32.xlu0 %v974, 64
        %v1093 = vpop.permute.xlu0 %1092
        %1094 = vrot.lane.b32.xlu0 %v975, 64
        %v1095 = vpop.permute.xlu0 %1094
        %v1099 = vsel %vm492, %v1088, 0
        %v1102 = vsel %vm492, %v1089, 0
        %1104 = vmatpush.bf16.msra.mxu0 0
        %1105 = vmatpush.bf16.msra.mxu0 0
        %1106 = vmatpush.bf16.msra.mxu0 0
        %1107 = vmatpush.bf16.msra.mxu0 0
        %1108 = vmatpush.bf16.msra.mxu0 0
        %1109 = vmatpush.bf16.msra.mxu0 0
        %1110 = vmatpush.bf16.msra.mxu0 %v1095
        %1111 = vmatpush.bf16.msra.mxu0 %v1093
        %1112 = vmatmul.bf16.gmra.mxu0 %v1099
        %v1113 = vpop.f32.mrf.mxu0
        %v1114 = vadd.f32 0.0, %v1113
        %v1115 = vpop.f32.mrf.mxu0
        %v1116 = vadd.f32 0.0, %v1115
        %1117 = vmatmul.bf16.gmra.mxu0 %v1102
        %v1118 = vpop.f32.mrf.mxu0
        %v1119 = vadd.f32 0.0, %v1118
        %v1120 = vpop.f32.mrf.mxu0
        %v1121 = vadd.f32 0.0, %v1120
        %1122 = vdwg.mxu0
        %v1123 = vpack.c.bf16 %v777, %v775
        %v1124 = vpack.c.bf16 %v782, %v780
        %v1125 = vpack.c.bf16 %v815, %v813
        %v1126 = vpack.c.bf16 %v820, %v818
        %v1128 = vsel %vm497, %v1123, 0
        %v1131 = vsel %vm497, %v1124, 0
        %v1134 = vsel %vm497, %v1125, 0
        %v1137 = vsel %vm497, %v1126, 0
        %1139 = vmatpush.bf16.xpose.msra.mxu0 0
        %1140 = vmatpush.bf16.xpose.msra.mxu0 0
        %1141 = vmatpush.bf16.xpose.msra.mxu0 0
        %1142 = vmatpush.bf16.xpose.msra.mxu0 0
        %1143 = vmatpush.bf16.xpose.msra.mxu0 0
        %1144 = vmatpush.bf16.xpose.msra.mxu0 0
        %1145 = vmatpush.bf16.xpose.msra.mxu0 %v1137
        %1146 = vmatpush.bf16.xpose.msra.mxu0 %v1134
        %1147 = vmatmul.bf16.gmra.mxu0 %v1128
        %v1148 = vpop.f32.mrf.mxu0
        %v1149 = vadd.f32 %v448, %v1148
        %v1150 = vpop.f32.mrf.mxu0
        %v1151 = vadd.f32 %v449, %v1150
        %1152 = vmatmul.bf16.gmra.mxu0 %v1131
        %v1153 = vpop.f32.mrf.mxu0
        %v1154 = vadd.f32 %v450, %v1153
        %v1155 = vpop.f32.mrf.mxu0
        %v1156 = vadd.f32 %v451, %v1155
        %1157 = vdwg.mxu0
        %v1158 = vsel %vm492, %v1149, -inf
        %1159 = vmax.xlane.f32.xlu0 %v1158
        %v1160 = vpop.xlane.xlu0 %1159
        %v1161 = vsel %vm492, %v1151, -inf
        %1162 = vmax.xlane.f32.xlu0 %v1161
        %v1163 = vpop.xlane.xlu0 %1162
        %v1164 = vsel %vm492, %v1154, -inf
        %1165 = vmax.xlane.f32.xlu0 %v1164
        %v1166 = vpop.xlane.xlu0 %1165
        %v1167 = vsel %vm492, %v1156, -inf
        %1168 = vmax.xlane.f32.xlu0 %v1167
        %v1169 = vpop.xlane.xlu0 %1168
        %v1170 = vsub.f32 %v1149, %v1160
        %v1171 = vsub.f32 %v1151, %v1163
        %v1172 = vsub.f32 %v1154, %v1166
        %v1173 = vsub.f32 %v1156, %v1169
        %v1174 = vmul.f32 %v1170, 1.442695
        %v1175 = vpow.pop %v1174
        %v1176 = vmul.f32 %v1171, 1.442695
        %v1177 = vpow.pop %v1176
        %v1178 = vmul.f32 %v1172, 1.442695
        %v1179 = vpow.pop %v1178
        %v1180 = vmul.f32 %v1173, 1.442695
        %v1181 = vpow.pop %v1180
        %v1182 = vsel %vm492, %v1175, 0.0
        %1183 = vadd.xlane.f32.xlu0 %v1182
        %v1184 = vpop.xlane.xlu0 %1183
        %v1185 = vsel %vm492, %v1177, 0.0
        %1186 = vadd.xlane.f32.xlu0 %v1185
        %v1187 = vpop.xlane.xlu0 %1186
        %v1188 = vsel %vm492, %v1179, 0.0
        %1189 = vadd.xlane.f32.xlu0 %v1188
        %v1190 = vpop.xlane.xlu0 %1189
        %v1191 = vsel %vm492, %v1181, 0.0
        %1192 = vadd.xlane.f32.xlu0 %v1191
        %v1193 = vpop.xlane.xlu0 %1192
        %v1194 = vrcp.pop %v1184
        %v1195 = vrcp.pop %v1187
        %v1196 = vrcp.pop %v1190
        %v1197 = vrcp.pop %v1193
        %v1198 = vmul.f32 %v1175, %v1194
        %v1199 = vmul.f32 %v1177, %v1195
        %v1200 = vmul.f32 %v1179, %v1196
        %v1201 = vmul.f32 %v1181, %v1197
        %v1202 = vpack.c.bf16 %v1199, %v1198
        %v1203 = vpack.c.bf16 %v1201, %v1200
        %v1204 = vpack.c.bf16 %v853, %v851
        %v1205 = vpack.c.bf16 %v858, %v856
        %v1207 = vsel %vm492, %v1202, 0
        %v1210 = vsel %vm492, %v1203, 0
        %1212 = vmatpush.bf16.msra.mxu0 0
        %1213 = vmatpush.bf16.msra.mxu0 0
        %1214 = vmatpush.bf16.msra.mxu0 0
        %1215 = vmatpush.bf16.msra.mxu0 0
        %1216 = vmatpush.bf16.msra.mxu0 0
        %1217 = vmatpush.bf16.msra.mxu0 0
        %1218 = vmatpush.bf16.msra.mxu0 %v1205
        %1219 = vmatpush.bf16.msra.mxu0 %v1204
        %1220 = vmatmul.bf16.gmra.mxu0 %v1207
        %v1221 = vpop.f32.mrf.mxu0
        %v1222 = vadd.f32 0.0, %v1221
        %v1223 = vpop.f32.mrf.mxu0
        %v1224 = vadd.f32 0.0, %v1223
        %1225 = vmatmul.bf16.gmra.mxu0 %v1210
        %v1226 = vpop.f32.mrf.mxu0
        %v1227 = vadd.f32 0.0, %v1226
        %v1228 = vpop.f32.mrf.mxu0
        %v1229 = vadd.f32 0.0, %v1228
        %1230 = vdwg.mxu0
        %1233 = vrot.lane.b32.xlu0 %v1123, 64
        %v1234 = vpop.permute.xlu0 %1233
        %1235 = vrot.lane.b32.xlu0 %v1124, 64
        %v1236 = vpop.permute.xlu0 %1235
        %1239 = vrot.lane.b32.xlu0 %v1125, 64
        %v1240 = vpop.permute.xlu0 %1239
        %1241 = vrot.lane.b32.xlu0 %v1126, 64
        %v1242 = vpop.permute.xlu0 %1241
        %v1244 = vsel %vm497, %v1234, 0
        %v1247 = vsel %vm497, %v1236, 0
        %v1250 = vsel %vm497, %v1240, 0
        %v1253 = vsel %vm497, %v1242, 0
        %1255 = vmatpush.bf16.xpose.msra.mxu0 0
        %1256 = vmatpush.bf16.xpose.msra.mxu0 0
        %1257 = vmatpush.bf16.xpose.msra.mxu0 0
        %1258 = vmatpush.bf16.xpose.msra.mxu0 0
        %1259 = vmatpush.bf16.xpose.msra.mxu0 0
        %1260 = vmatpush.bf16.xpose.msra.mxu0 0
        %1261 = vmatpush.bf16.xpose.msra.mxu0 %v1253
        %1262 = vmatpush.bf16.xpose.msra.mxu0 %v1250
        %1263 = vmatmul.bf16.gmra.mxu0 %v1244
        %v1264 = vpop.f32.mrf.mxu0
        %v1265 = vadd.f32 %v448, %v1264
        %v1266 = vpop.f32.mrf.mxu0
        %v1267 = vadd.f32 %v449, %v1266
        %1268 = vmatmul.bf16.gmra.mxu0 %v1247
        %v1269 = vpop.f32.mrf.mxu0
        %v1270 = vadd.f32 %v450, %v1269
        %v1271 = vpop.f32.mrf.mxu0
        %v1272 = vadd.f32 %v451, %v1271
        %1273 = vdwg.mxu0
        %v1274 = vsel %vm492, %v1265, -inf
        %1275 = vmax.xlane.f32.xlu0 %v1274
        %v1276 = vpop.xlane.xlu0 %1275
        %v1277 = vsel %vm492, %v1267, -inf
        %1278 = vmax.xlane.f32.xlu0 %v1277
        %v1279 = vpop.xlane.xlu0 %1278
        %v1280 = vsel %vm492, %v1270, -inf
        %1281 = vmax.xlane.f32.xlu0 %v1280
        %v1282 = vpop.xlane.xlu0 %1281
        %v1283 = vsel %vm492, %v1272, -inf
        %1284 = vmax.xlane.f32.xlu0 %v1283
        %v1285 = vpop.xlane.xlu0 %1284
        %v1286 = vsub.f32 %v1265, %v1276
        %v1287 = vsub.f32 %v1267, %v1279
        %v1288 = vsub.f32 %v1270, %v1282
        %v1289 = vsub.f32 %v1272, %v1285
        %v1290 = vmul.f32 %v1286, 1.442695
        %v1291 = vpow.pop %v1290
        %v1292 = vmul.f32 %v1287, 1.442695
        %v1293 = vpow.pop %v1292
        %v1294 = vmul.f32 %v1288, 1.442695
        %v1295 = vpow.pop %v1294
        %v1296 = vmul.f32 %v1289, 1.442695
        %v1297 = vpow.pop %v1296
        %v1298 = vsel %vm492, %v1291, 0.0
        %1299 = vadd.xlane.f32.xlu0 %v1298
        %v1300 = vpop.xlane.xlu0 %1299
        %v1301 = vsel %vm492, %v1293, 0.0
        %1302 = vadd.xlane.f32.xlu0 %v1301
        %v1303 = vpop.xlane.xlu0 %1302
        %v1304 = vsel %vm492, %v1295, 0.0
        %1305 = vadd.xlane.f32.xlu0 %v1304
        %v1306 = vpop.xlane.xlu0 %1305
        %v1307 = vsel %vm492, %v1297, 0.0
        %1308 = vadd.xlane.f32.xlu0 %v1307
        %v1309 = vpop.xlane.xlu0 %1308
        %v1310 = vrcp.pop %v1300
        %v1311 = vrcp.pop %v1303
        %v1312 = vrcp.pop %v1306
        %v1313 = vrcp.pop %v1309
        %v1314 = vmul.f32 %v1291, %v1310
        %v1315 = vmul.f32 %v1293, %v1311
        %v1316 = vmul.f32 %v1295, %v1312
        %v1317 = vmul.f32 %v1297, %v1313
        %v1318 = vpack.c.bf16 %v1315, %v1314
        %v1319 = vpack.c.bf16 %v1317, %v1316
        %1322 = vrot.lane.b32.xlu0 %v1204, 64
        %v1323 = vpop.permute.xlu0 %1322
        %1324 = vrot.lane.b32.xlu0 %v1205, 64
        %v1325 = vpop.permute.xlu0 %1324
        %v1329 = vsel %vm492, %v1318, 0
        %v1332 = vsel %vm492, %v1319, 0
        %1334 = vmatpush.bf16.msra.mxu0 0
        %1335 = vmatpush.bf16.msra.mxu0 0
        %1336 = vmatpush.bf16.msra.mxu0 0
        %1337 = vmatpush.bf16.msra.mxu0 0
        %1338 = vmatpush.bf16.msra.mxu0 0
        %1339 = vmatpush.bf16.msra.mxu0 0
        %1340 = vmatpush.bf16.msra.mxu0 %v1325
        %1341 = vmatpush.bf16.msra.mxu0 %v1323
        %1342 = vmatmul.bf16.gmra.mxu0 %v1329
        %v1343 = vpop.f32.mrf.mxu0
        %v1344 = vadd.f32 0.0, %v1343
        %v1345 = vpop.f32.mrf.mxu0
        %v1346 = vadd.f32 0.0, %v1345
        %1347 = vmatmul.bf16.gmra.mxu0 %v1332
        %v1348 = vpop.f32.mrf.mxu0
        %v1349 = vadd.f32 0.0, %v1348
        %v1350 = vpop.f32.mrf.mxu0
        %v1351 = vadd.f32 0.0, %v1350
        %1352 = vdwg.mxu0
        %1357 = vrot.lane.b32.xlu0 %v1114, 64
        %v1358 = vpop.permute.xlu0 %1357
        %1359 = vrot.lane.b32.xlu0 %v1116, 64
        %v1360 = vpop.permute.xlu0 %1359
        %1361 = vrot.lane.b32.xlu0 %v1119, 64
        %v1362 = vpop.permute.xlu0 %1361
        %1363 = vrot.lane.b32.xlu0 %v1121, 64
        %v1364 = vpop.permute.xlu0 %1363
        %1373 = vrot.lane.b32.xlu0 %v1344, 64
        %v1374 = vpop.permute.xlu0 %1373
        %1375 = vrot.lane.b32.xlu0 %v1346, 64
        %v1376 = vpop.permute.xlu0 %1375
        %1377 = vrot.lane.b32.xlu0 %v1349, 64
        %v1378 = vpop.permute.xlu0 %1377
        %1379 = vrot.lane.b32.xlu0 %v1351, 64
        %v1380 = vpop.permute.xlu0 %1379
        %v1385 = vsel %vm497, %v992, %v1358
        %v1386 = vsel %vm497, %v994, %v1360
        %v1387 = vsel %vm497, %v997, %v1362
        %v1388 = vsel %vm497, %v999, %v1364
        %v1389 = vsel %vm497, %v1222, %v1374
        %v1390 = vsel %vm497, %v1224, %v1376
        %v1391 = vsel %vm497, %v1227, %v1378
        %v1392 = vsel %vm497, %v1229, %v1380
        %v1393 = vpack.c.bf16 %v1386, %v1385
        %v1394 = vpack.c.bf16 %v1390, %v1389
        %v1395 = vpack.c.bf16 %v1388, %v1387
        %v1396 = vpack.c.bf16 %v1392, %v1391
        %v1398 = vperm.slane %v892, 0
        %v1432 = vunpack.c.l.b16 %v860
        %v1433 = vunpack.c.l.b16 %v861
        %v1434 = vunpack.c.l.b16 %v862
        %v1435 = vunpack.c.l.b16 %v863
        %v1436 = vunpack.c.l.b16 %v864
        %v1437 = vunpack.c.l.b16 %v865
        %v1438 = vunpack.c.l.b16 %v866
        %v1439 = vunpack.c.l.b16 %v867
        %v1440 = vunpack.c.l.b16 %v868
        %v1441 = vunpack.c.l.b16 %v869
        %v1442 = vunpack.c.l.b16 %v870
        %v1443 = vunpack.c.l.b16 %v871
        %v1444 = vunpack.c.l.b16 %v872
        %v1445 = vunpack.c.l.b16 %v873
        %v1446 = vunpack.c.l.b16 %v874
        %v1447 = vunpack.c.l.b16 %v875
        %v1448 = vunpack.c.l.b16 %v876
        %v1449 = vunpack.c.l.b16 %v877
        %v1450 = vunpack.c.l.b16 %v878
        %v1451 = vunpack.c.l.b16 %v879
        %v1452 = vunpack.c.l.b16 %v880
        %v1453 = vunpack.c.l.b16 %v881
        %v1454 = vunpack.c.l.b16 %v882
        %v1455 = vunpack.c.l.b16 %v883
        %v1456 = vunpack.c.l.b16 %v884
        %v1457 = vunpack.c.l.b16 %v885
        %v1458 = vunpack.c.l.b16 %v886
        %v1459 = vunpack.c.l.b16 %v887
        %v1460 = vunpack.c.l.b16 %v888
        %v1461 = vunpack.c.l.b16 %v889
        %v1462 = vunpack.c.l.b16 %v890
        %v1463 = vunpack.c.l.b16 %v891
        %v1464 = vpack.c.b16 %v1433, %v1432
        %v1465 = vpack.c.b16 %v1435, %v1434
        %v1466 = vpack.c.b16 %v1437, %v1436
        %v1467 = vpack.c.b16 %v1439, %v1438
        %v1468 = vpack.c.b16 %v1441, %v1440
        %v1469 = vpack.c.b16 %v1443, %v1442
        %v1470 = vpack.c.b16 %v1445, %v1444
        %v1471 = vpack.c.b16 %v1447, %v1446
        %v1472 = vpack.c.b16 %v1449, %v1448
        %v1473 = vpack.c.b16 %v1451, %v1450
        %v1474 = vpack.c.b16 %v1453, %v1452
        %v1475 = vpack.c.b16 %v1455, %v1454
        %v1476 = vpack.c.b16 %v1457, %v1456
        %v1477 = vpack.c.b16 %v1459, %v1458
        %v1478 = vpack.c.b16 %v1461, %v1460
        %v1479 = vpack.c.b16 %v1463, %v1462
        %1496 = vmatpush.bf16.msra.mxu0 %v1471
        %1497 = vmatpush.bf16.msra.mxu0 %v1470
        %1498 = vmatpush.bf16.msra.mxu0 %v1469
        %1499 = vmatpush.bf16.msra.mxu0 %v1468
        %1500 = vmatpush.bf16.msra.mxu0 %v1467
        %1501 = vmatpush.bf16.msra.mxu0 %v1466
        %1502 = vmatpush.bf16.msra.mxu0 %v1465
        %1503 = vmatpush.bf16.msra.mxu0 %v1464
        %1504 = vmatmul.bf16.gmra.mxu0 %v1393
        %v1505 = vpop.f32.mrf.mxu0
        %v1506 = vadd.f32 %v1398, %v1505
        %v1507 = vpop.f32.mrf.mxu0
        %v1508 = vadd.f32 %v1398, %v1507
        %1509 = vmatmul.bf16.gmra.mxu0 %v1395
        %v1510 = vpop.f32.mrf.mxu0
        %v1511 = vadd.f32 %v1398, %v1510
        %v1512 = vpop.f32.mrf.mxu0
        %v1513 = vadd.f32 %v1398, %v1512
        %1514 = vdwg.mxu0
        %1515 = vmatpush.bf16.msra.mxu0 %v1479
        %1516 = vmatpush.bf16.msra.mxu0 %v1478
        %1517 = vmatpush.bf16.msra.mxu0 %v1477
        %1518 = vmatpush.bf16.msra.mxu0 %v1476
        %1519 = vmatpush.bf16.msra.mxu0 %v1475
        %1520 = vmatpush.bf16.msra.mxu0 %v1474
        %1521 = vmatpush.bf16.msra.mxu0 %v1473
        %1522 = vmatpush.bf16.msra.mxu0 %v1472
        %1523 = vmatmul.bf16.gmra.mxu0 %v1394
        %v1524 = vpop.f32.mrf.mxu0
        %v1525 = vadd.f32 %v1506, %v1524
        %v1526 = vpop.f32.mrf.mxu0
        %v1527 = vadd.f32 %v1508, %v1526
        %1528 = vmatmul.bf16.gmra.mxu0 %v1396
        %v1529 = vpop.f32.mrf.mxu0
        %v1530 = vadd.f32 %v1511, %v1529
        %v1531 = vpop.f32.mrf.mxu0
        %v1532 = vadd.f32 %v1513, %v1531
        %1533 = vdwg.mxu0
        %v1534 = vadd.f32 %v551, %v1525
        %v1535 = vadd.f32 %v552, %v1527
        %v1536 = vadd.f32 %v553, %v1530
        %v1537 = vadd.f32 %v554, %v1532
        %v1538 = vld [vmem:[#allocation2 + $0x4] sm:$0x1]
        %v1539 = vld [vmem:[#allocation2 + $0x5] sm:$0x1]
        %v1540 = vsel %vm492, %v1534, 0.0
        %1541 = vadd.xlane.f32.xlu0 %v1540
        %v1542 = vpop.xlane.xlu0 %1541
        %v1543 = vsel %vm492, %v1535, 0.0
        %1544 = vadd.xlane.f32.xlu0 %v1543
        %v1545 = vpop.xlane.xlu0 %1544
        %v1546 = vsel %vm492, %v1536, 0.0
        %1547 = vadd.xlane.f32.xlu0 %v1546
        %v1548 = vpop.xlane.xlu0 %1547
        %v1549 = vsel %vm492, %v1537, 0.0
        %1550 = vadd.xlane.f32.xlu0 %v1549
        %v1551 = vpop.xlane.xlu0 %1550
        %v1552 = vmul.f32 %v1542, %v575
        %v1553 = vmul.f32 %v1545, %v575
        %v1554 = vmul.f32 %v1548, %v575
        %v1555 = vmul.f32 %v1551, %v575
        %v1556 = vsub.f32 %v1534, %v1552
        %v1557 = vsub.f32 %v1535, %v1553
        %v1558 = vsub.f32 %v1536, %v1554
        %v1559 = vsub.f32 %v1537, %v1555
        %v1560 = vmul.f32 %v1556, %v1556
        %v1561 = vmul.f32 %v1557, %v1557
        %v1562 = vmul.f32 %v1558, %v1558
        %v1563 = vmul.f32 %v1559, %v1559
        %v1564 = vsel %vm492, %v1560, 0.0
        %1565 = vadd.xlane.f32.xlu0 %v1564
        %v1566 = vpop.xlane.xlu0 %1565
        %v1567 = vsel %vm492, %v1561, 0.0
        %1568 = vadd.xlane.f32.xlu0 %v1567
        %v1569 = vpop.xlane.xlu0 %1568
        %v1570 = vsel %vm492, %v1562, 0.0
        %1571 = vadd.xlane.f32.xlu0 %v1570
        %v1572 = vpop.xlane.xlu0 %1571
        %v1573 = vsel %vm492, %v1563, 0.0
        %1574 = vadd.xlane.f32.xlu0 %v1573
        %v1575 = vpop.xlane.xlu0 %1574
        %v1576 = vmul.f32 %v1566, %v575
        %v1577 = vmul.f32 %v1569, %v575
        %v1578 = vmul.f32 %v1572, %v575
        %v1579 = vmul.f32 %v1575, %v575
        %v1580 = vadd.f32 %v1576, 1e-05
        %v1581 = vadd.f32 %v1577, 1e-05
        %v1582 = vadd.f32 %v1578, 1e-05
        %v1583 = vadd.f32 %v1579, 1e-05
        %v1584 = vrsqrt.pop %v1580
        %v1585 = vmul.f32 %v1584, %v1580
        %v1586 = vmul.f32 %v1585, %v1584
        %v1587 = vmul.f32 0.5, %v1586
        %v1588 = vsub.f32 1.5, %v1587
        %v1589 = vmul.f32 %v1584, %v1588
        %vm1590 = vweird.f32 %v1580
        %vm1591 = vweird.f32 %v1584
        %vm1592 = vmor %vm1590, %vm1591
        %v1593 = vsel %vm1592, %v1584, %v1589
        %v1594 = vrsqrt.pop %v1581
        %v1595 = vmul.f32 %v1594, %v1581
        %v1596 = vmul.f32 %v1595, %v1594
        %v1597 = vmul.f32 0.5, %v1596
        %v1598 = vsub.f32 1.5, %v1597
        %v1599 = vmul.f32 %v1594, %v1598
        %vm1600 = vweird.f32 %v1581
        %vm1601 = vweird.f32 %v1594
        %vm1602 = vmor %vm1600, %vm1601
        %v1603 = vsel %vm1602, %v1594, %v1599
        %v1604 = vrsqrt.pop %v1582
        %v1605 = vmul.f32 %v1604, %v1582
        %v1606 = vmul.f32 %v1605, %v1604
        %v1607 = vmul.f32 0.5, %v1606
        %v1608 = vsub.f32 1.5, %v1607
        %v1609 = vmul.f32 %v1604, %v1608
        %vm1610 = vweird.f32 %v1582
        %vm1611 = vweird.f32 %v1604
        %vm1612 = vmor %vm1610, %vm1611
        %v1613 = vsel %vm1612, %v1604, %v1609
        %v1614 = vrsqrt.pop %v1583
        %v1615 = vmul.f32 %v1614, %v1583
        %v1616 = vmul.f32 %v1615, %v1614
        %v1617 = vmul.f32 0.5, %v1616
        %v1618 = vsub.f32 1.5, %v1617
        %v1619 = vmul.f32 %v1614, %v1618
        %vm1620 = vweird.f32 %v1583
        %vm1621 = vweird.f32 %v1614
        %vm1622 = vmor %vm1620, %vm1621
        %v1623 = vsel %vm1622, %v1614, %v1619
        %v1624 = vmul.f32 %v1556, %v1593
        %v1625 = vmul.f32 %v1557, %v1603
        %v1626 = vmul.f32 %v1558, %v1613
        %v1627 = vmul.f32 %v1559, %v1623
        %v1629 = vperm.slane %v1538, 0
        %v1631 = vmul.f32 %v1624, %v1629
        %v1632 = vmul.f32 %v1625, %v1629
        %v1633 = vmul.f32 %v1626, %v1629
        %v1634 = vmul.f32 %v1627, %v1629
        %v1636 = vperm.slane %v1539, 0
        %v1638 = vadd.f32 %v1631, %v1636
        %v1639 = vadd.f32 %v1632, %v1636
        %v1640 = vadd.f32 %v1633, %v1636
        %v1641 = vadd.f32 %v1634, %v1636
        %v1642 = vld [vmem:[%s4 + $0x18] sm:$0xf]
        %v1643 = vld [vmem:[%s4 + $0xb8] sm:$0xf]
        %v1644 = vld [vmem:[%s4 + $0x158] sm:$0xf]
        %v1645 = vld [vmem:[%s4 + $0x1f8] sm:$0xf]
        %v1646 = vld [vmem:[#allocation2 + $0x6] sm:$0x1]
        %v1647 = vld [vmem:[#allocation6] sm:$0xf]
        %v1648 = vld [vmem:[#allocation6 + $0x1c] sm:$0xf]
        %v1649 = vld [vmem:[#allocation6 + $0x38] sm:$0xf]
        %v1650 = vld [vmem:[#allocation6 + $0x54] sm:$0xf]
        %v1651 = vld [vmem:[#allocation6 + $0x70] sm:$0xf]
        %v1652 = vld [vmem:[#allocation6 + $0x8c] sm:$0xf]
        %v1653 = vld [vmem:[#allocation6 + $0xa8] sm:$0xf]
        %v1654 = vld [vmem:[#allocation6 + $0xc4] sm:$0xf]
        %v1655 = vld [vmem:[#allocation6 + $0xe0] sm:$0xf]
        %v1656 = vld [vmem:[#allocation6 + $0xfc] sm:$0xf]
        %v1657 = vld [vmem:[#allocation6 + $0x118] sm:$0xf]
        %v1658 = vld [vmem:[#allocation6 + $0x134] sm:$0xf]
        %v1659 = vld [vmem:[#allocation6 + $0x150] sm:$0xf]
        %v1660 = vld [vmem:[#allocation6 + $0x16c] sm:$0xf]
        %v1661 = vld [vmem:[#allocation6 + $0x188] sm:$0xf]
        %v1662 = vld [vmem:[#allocation6 + $0x1a4] sm:$0xf]
        %v1663 = vld [vmem:[#allocation2 + $0x7] sm:$0x1]
        %v1664 = vpack.c.bf16 %v1639, %v1638
        %v1665 = vpack.c.bf16 %v1641, %v1640
        %v1667 = vperm.slane %v1646, 0
        %v1673 = vunpack.c.l.b16 %v1642
        %v1674 = vunpack.c.l.b16 %v1643
        %v1675 = vunpack.c.l.b16 %v1644
        %v1676 = vunpack.c.l.b16 %v1645
        %v1677 = vpack.c.b16 %v1674, %v1673
        %v1678 = vpack.c.b16 %v1676, %v1675
        %v1682 = vsel %vm492, %v1664, 0
        %v1685 = vsel %vm492, %v1665, 0
        %1687 = vmatpush.bf16.msra.mxu0 0
        %1688 = vmatpush.bf16.msra.mxu0 0
        %1689 = vmatpush.bf16.msra.mxu0 0
        %1690 = vmatpush.bf16.msra.mxu0 0
        %1691 = vmatpush.bf16.msra.mxu0 0
        %1692 = vmatpush.bf16.msra.mxu0 0
        %1693 = vmatpush.bf16.msra.mxu0 %v1678
        %1694 = vmatpush.bf16.msra.mxu0 %v1677
        %1695 = vmatmul.bf16.gmra.mxu0 %v1682
        %v1696 = vpop.f32.mrf.mxu0
        %v1697 = vadd.f32 %v1667, %v1696
        %v1698 = vpop.f32.mrf.mxu0
        %v1699 = vadd.f32 %v1667, %v1698
        %1700 = vmatmul.bf16.gmra.mxu0 %v1685
        %v1701 = vpop.f32.mrf.mxu0
        %v1702 = vadd.f32 %v1667, %v1701
        %v1703 = vpop.f32.mrf.mxu0
        %v1704 = vadd.f32 %v1667, %v1703
        %1705 = vdwg.mxu0
        %v1706 = vmul.f32 %v1697, 0.5
        %v1707 = vmul.f32 %v1699, 0.5
        %v1708 = vmul.f32 %v1702, 0.5
        %v1709 = vmul.f32 %v1704, 0.5
        %v1710 = vmul.f32 %v1697, 0.044715
        %v1711 = vmul.f32 %v1699, 0.044715
        %v1712 = vmul.f32 %v1702, 0.044715
        %v1713 = vmul.f32 %v1704, 0.044715
        %v1714 = vmul.f32 %v1710, %v1697
        %v1715 = vmul.f32 %v1711, %v1699
        %v1716 = vmul.f32 %v1712, %v1702
        %v1717 = vmul.f32 %v1713, %v1704
        %v1718 = vmul.f32 %v1714, %v1697
        %v1719 = vmul.f32 %v1715, %v1699
        %v1720 = vmul.f32 %v1716, %v1702
        %v1721 = vmul.f32 %v1717, %v1704
        %v1722 = vadd.f32 %v1697, %v1718
        %v1723 = vadd.f32 %v1699, %v1719
        %v1724 = vadd.f32 %v1702, %v1720
        %v1725 = vadd.f32 %v1704, %v1721
        %v1726 = vmul.f32 %v1722, 0.7978846
        %v1727 = vmul.f32 %v1723, 0.7978846
        %v1728 = vmul.f32 %v1724, 0.7978846
        %v1729 = vmul.f32 %v1725, 0.7978846
        %v1730 = vtanh.pop %v1726
        %v1731 = vtanh.pop %v1727
        %v1732 = vtanh.pop %v1728
        %v1733 = vtanh.pop %v1729
        %v1734 = vadd.f32 %v1730, 1.0
        %v1735 = vadd.f32 %v1731, 1.0
        %v1736 = vadd.f32 %v1732, 1.0
        %v1737 = vadd.f32 %v1733, 1.0
        %v1738 = vmul.f32 %v1706, %v1734
        %v1739 = vmul.f32 %v1707, %v1735
        %v1740 = vmul.f32 %v1708, %v1736
        %v1741 = vmul.f32 %v1709, %v1737
        %v1742 = vpack.c.bf16 %v1739, %v1738
        %v1743 = vpack.c.bf16 %v1741, %v1740
        %v1745 = vperm.slane %v1663, 0
        %v1763 = vunpack.c.l.b16 %v1647
        %v1764 = vunpack.c.l.b16 %v1648
        %v1765 = vunpack.c.l.b16 %v1649
        %v1766 = vunpack.c.l.b16 %v1650
        %v1767 = vunpack.c.l.b16 %v1651
        %v1768 = vunpack.c.l.b16 %v1652
        %v1769 = vunpack.c.l.b16 %v1653
        %v1770 = vunpack.c.l.b16 %v1654
        %v1771 = vunpack.c.l.b16 %v1655
        %v1772 = vunpack.c.l.b16 %v1656
        %v1773 = vunpack.c.l.b16 %v1657
        %v1774 = vunpack.c.l.b16 %v1658
        %v1775 = vunpack.c.l.b16 %v1659
        %v1776 = vunpack.c.l.b16 %v1660
        %v1777 = vunpack.c.l.b16 %v1661
        %v1778 = vunpack.c.l.b16 %v1662
        %v1779 = vpack.c.b16 %v1764, %v1763
        %v1780 = vpack.c.b16 %v1766, %v1765
        %v1781 = vpack.c.b16 %v1768, %v1767
        %v1782 = vpack.c.b16 %v1770, %v1769
        %v1783 = vpack.c.b16 %v1772, %v1771
        %v1784 = vpack.c.b16 %v1774, %v1773
        %v1785 = vpack.c.b16 %v1776, %v1775
        %v1786 = vpack.c.b16 %v1778, %v1777
        %1795 = vmatpush.bf16.msra.mxu0 %v1786
        %1796 = vmatpush.bf16.msra.mxu0 %v1785
        %1797 = vmatpush.bf16.msra.mxu0 %v1784
        %1798 = vmatpush.bf16.msra.mxu0 %v1783
        %1799 = vmatpush.bf16.msra.mxu0 %v1782
        %1800 = vmatpush.bf16.msra.mxu0 %v1781
        %1801 = vmatpush.bf16.msra.mxu0 %v1780
        %1802 = vmatpush.bf16.msra.mxu0 %v1779
        %1803 = vmatmul.bf16.gmra.mxu0 %v1742
        %v1804 = vpop.f32.mrf.mxu0
        %v1805 = vadd.f32 %v1745, %v1804
        %v1806 = vpop.f32.mrf.mxu0
        %v1807 = vadd.f32 %v1745, %v1806
        %1808 = vmatmul.bf16.gmra.mxu0 %v1743
        %v1809 = vpop.f32.mrf.mxu0
        %v1810 = vadd.f32 %v1745, %v1809
        %v1811 = vpop.f32.mrf.mxu0
        %v1812 = vadd.f32 %v1745, %v1811
        %1813 = vdwg.mxu0
        %v1814 = vadd.f32 %v1534, %v1805
        %v1815 = vadd.f32 %v1535, %v1807
        %v1816 = vadd.f32 %v1536, %v1810
        %v1817 = vadd.f32 %v1537, %v1812
        %v1818 = vld [vmem:[#allocation2 + $0x8] sm:$0x1]
        %v1819 = vld [vmem:[#allocation2 + $0x9] sm:$0x1]
        %v1820 = vsel %vm492, %v1814, 0.0
        %1821 = vadd.xlane.f32.xlu0 %v1820
        %v1822 = vpop.xlane.xlu0 %1821
        %v1823 = vsel %vm492, %v1815, 0.0
        %1824 = vadd.xlane.f32.xlu0 %v1823
        %v1825 = vpop.xlane.xlu0 %1824
        %v1826 = vsel %vm492, %v1816, 0.0
        %1827 = vadd.xlane.f32.xlu0 %v1826
        %v1828 = vpop.xlane.xlu0 %1827
        %v1829 = vsel %vm492, %v1817, 0.0
        %1830 = vadd.xlane.f32.xlu0 %v1829
        %v1831 = vpop.xlane.xlu0 %1830
        %v1832 = vmul.f32 %v1822, %v575
        %v1833 = vmul.f32 %v1825, %v575
        %v1834 = vmul.f32 %v1828, %v575
        %v1835 = vmul.f32 %v1831, %v575
        %v1836 = vsub.f32 %v1814, %v1832
        %v1837 = vsub.f32 %v1815, %v1833
        %v1838 = vsub.f32 %v1816, %v1834
        %v1839 = vsub.f32 %v1817, %v1835
        %v1840 = vmul.f32 %v1836, %v1836
        %v1841 = vmul.f32 %v1837, %v1837
        %v1842 = vmul.f32 %v1838, %v1838
        %v1843 = vmul.f32 %v1839, %v1839
        %v1844 = vsel %vm492, %v1840, 0.0
        %1845 = vadd.xlane.f32.xlu0 %v1844
        %v1846 = vpop.xlane.xlu0 %1845
        %v1847 = vsel %vm492, %v1841, 0.0
        %1848 = vadd.xlane.f32.xlu0 %v1847
        %v1849 = vpop.xlane.xlu0 %1848
        %v1850 = vsel %vm492, %v1842, 0.0
        %1851 = vadd.xlane.f32.xlu0 %v1850
        %v1852 = vpop.xlane.xlu0 %1851
        %v1853 = vsel %vm492, %v1843, 0.0
        %1854 = vadd.xlane.f32.xlu0 %v1853
        %v1855 = vpop.xlane.xlu0 %1854
        %v1856 = vmul.f32 %v1846, %v575
        %v1857 = vmul.f32 %v1849, %v575
        %v1858 = vmul.f32 %v1852, %v575
        %v1859 = vmul.f32 %v1855, %v575
        %v1860 = vadd.f32 %v1856, 1e-05
        %v1861 = vadd.f32 %v1857, 1e-05
        %v1862 = vadd.f32 %v1858, 1e-05
        %v1863 = vadd.f32 %v1859, 1e-05
        %v1864 = vrsqrt.pop %v1860
        %v1865 = vmul.f32 %v1864, %v1860
        %v1866 = vmul.f32 %v1865, %v1864
        %v1867 = vmul.f32 0.5, %v1866
        %v1868 = vsub.f32 1.5, %v1867
        %v1869 = vmul.f32 %v1864, %v1868
        %vm1870 = vweird.f32 %v1860
        %vm1871 = vweird.f32 %v1864
        %vm1872 = vmor %vm1870, %vm1871
        %v1873 = vsel %vm1872, %v1864, %v1869
        %v1874 = vrsqrt.pop %v1861
        %v1875 = vmul.f32 %v1874, %v1861
        %v1876 = vmul.f32 %v1875, %v1874
        %v1877 = vmul.f32 0.5, %v1876
        %v1878 = vsub.f32 1.5, %v1877
        %v1879 = vmul.f32 %v1874, %v1878
        %vm1880 = vweird.f32 %v1861
        %vm1881 = vweird.f32 %v1874
        %vm1882 = vmor %vm1880, %vm1881
        %v1883 = vsel %vm1882, %v1874, %v1879
        %v1884 = vrsqrt.pop %v1862
        %v1885 = vmul.f32 %v1884, %v1862
        %v1886 = vmul.f32 %v1885, %v1884
        %v1887 = vmul.f32 0.5, %v1886
        %v1888 = vsub.f32 1.5, %v1887
        %v1889 = vmul.f32 %v1884, %v1888
        %vm1890 = vweird.f32 %v1862
        %vm1891 = vweird.f32 %v1884
        %vm1892 = vmor %vm1890, %vm1891
        %v1893 = vsel %vm1892, %v1884, %v1889
        %v1894 = vrsqrt.pop %v1863
        %v1895 = vmul.f32 %v1894, %v1863
        %v1896 = vmul.f32 %v1895, %v1894
        %v1897 = vmul.f32 0.5, %v1896
        %v1898 = vsub.f32 1.5, %v1897
        %v1899 = vmul.f32 %v1894, %v1898
        %vm1900 = vweird.f32 %v1863
        %vm1901 = vweird.f32 %v1894
        %vm1902 = vmor %vm1900, %vm1901
        %v1903 = vsel %vm1902, %v1894, %v1899
        %v1904 = vmul.f32 %v1836, %v1873
        %v1905 = vmul.f32 %v1837, %v1883
        %v1906 = vmul.f32 %v1838, %v1893
        %v1907 = vmul.f32 %v1839, %v1903
        %v1909 = vperm.slane %v1818, 0
        %v1911 = vmul.f32 %v1904, %v1909
        %v1912 = vmul.f32 %v1905, %v1909
        %v1913 = vmul.f32 %v1906, %v1909
        %v1914 = vmul.f32 %v1907, %v1909
        %v1916 = vperm.slane %v1819, 0
        %v1918 = vadd.f32 %v1911, %v1916
        %v1919 = vadd.f32 %v1912, %v1916
        %v1920 = vadd.f32 %v1913, %v1916
        %v1921 = vadd.f32 %v1914, %v1916
        %v1922 = vld [vmem:[%s4 + $0x1c] sm:$0xff]
        %v1923 = vld [vmem:[%s4 + $0x24] sm:$0xff]
        %v1924 = vld [vmem:[%s4 + $0x2c] sm:$0xff]
        %v1925 = vld [vmem:[%s4 + $0xbc] sm:$0xff]
        %v1926 = vld [vmem:[%s4 + $0xc4] sm:$0xff]
        %v1927 = vld [vmem:[%s4 + $0xcc] sm:$0xff]
        %v1928 = vld [vmem:[%s4 + $0x15c] sm:$0xff]
        %v1929 = vld [vmem:[%s4 + $0x164] sm:$0xff]
        %v1930 = vld [vmem:[%s4 + $0x16c] sm:$0xff]
        %v1931 = vld [vmem:[%s4 + $0x1fc] sm:$0xff]
        %v1932 = vld [vmem:[%s4 + $0x204] sm:$0xff]
        %v1933 = vld [vmem:[%s4 + $0x20c] sm:$0xff]
        %v1934 = vpack.c.bf16 %v1919, %v1918
        %v1935 = vpack.c.bf16 %v1921, %v1920
        %v1948 = vunpack.c.l.b16 %v1922
        %v1949 = vunpack.c.h.b16 %v1922
        %v1950 = vunpack.c.l.b16 %v1923
        %v1951 = vunpack.c.h.b16 %v1923
        %v1952 = vunpack.c.l.b16 %v1924
        %v1953 = vunpack.c.h.b16 %v1924
        %v1954 = vunpack.c.l.b16 %v1925
        %v1955 = vunpack.c.h.b16 %v1925
        %v1956 = vunpack.c.l.b16 %v1926
        %v1957 = vunpack.c.h.b16 %v1926
        %v1958 = vunpack.c.l.b16 %v1927
        %v1959 = vunpack.c.h.b16 %v1927
        %v1960 = vunpack.c.l.b16 %v1928
        %v1961 = vunpack.c.h.b16 %v1928
        %v1962 = vunpack.c.l.b16 %v1929
        %v1963 = vunpack.c.h.b16 %v1929
        %v1964 = vunpack.c.l.b16 %v1930
        %v1965 = vunpack.c.h.b16 %v1930
        %v1966 = vunpack.c.l.b16 %v1931
        %v1967 = vunpack.c.h.b16 %v1931
        %v1968 = vunpack.c.l.b16 %v1932
        %v1969 = vunpack.c.h.b16 %v1932
        %v1970 = vunpack.c.l.b16 %v1933
        %v1971 = vunpack.c.h.b16 %v1933
        %v1972 = vpack.c.b16 %v1954, %v1948
        %v1973 = vpack.c.b16 %v1955, %v1949
        %v1974 = vpack.c.b16 %v1956, %v1950
        %v1975 = vpack.c.b16 %v1957, %v1951
        %v1976 = vpack.c.b16 %v1958, %v1952
        %v1977 = vpack.c.b16 %v1959, %v1953
        %v1978 = vpack.c.b16 %v1966, %v1960
        %v1979 = vpack.c.b16 %v1967, %v1961
        %v1980 = vpack.c.b16 %v1968, %v1962
        %v1981 = vpack.c.b16 %v1969, %v1963
        %v1982 = vpack.c.b16 %v1970, %v1964
        %v1983 = vpack.c.b16 %v1971, %v1965
        %v1997 = vsel %vm492, %v1934, 0
        %v2000 = vsel %vm492, %v1935, 0
        %2002 = vmatpush.bf16.msra.mxu0 0
        %2003 = vmatpush.bf16.msra.mxu0 0
        %2004 = vmatpush.bf16.msra.mxu0 0
        %2005 = vmatpush.bf16.msra.mxu0 0
        %2006 = vmatpush.bf16.msra.mxu0 0
        %2007 = vmatpush.bf16.msra.mxu0 0
        %2008 = vmatpush.bf16.msra.mxu0 %v1978
        %2009 = vmatpush.bf16.msra.mxu0 %v1972
        %2010 = vmatmul.bf16.gmra.mxu0 %v1997
        %v2011 = vpop.f32.mrf.mxu0
        %v2012 = vadd.f32 0.0, %v2011
        %v2013 = vpop.f32.mrf.mxu0
        %v2014 = vadd.f32 0.0, %v2013
        %2015 = vmatmul.bf16.gmra.mxu0 %v2000
        %v2016 = vpop.f32.mrf.mxu0
        %v2017 = vadd.f32 0.0, %v2016
        %v2018 = vpop.f32.mrf.mxu0
        %v2019 = vadd.f32 0.0, %v2018
        %2020 = vdwg.mxu0
        %2021 = vmatpush.bf16.msra.mxu0 0
        %2022 = vmatpush.bf16.msra.mxu0 0
        %2023 = vmatpush.bf16.msra.mxu0 0
        %2024 = vmatpush.bf16.msra.mxu0 0
        %2025 = vmatpush.bf16.msra.mxu0 0
        %2026 = vmatpush.bf16.msra.mxu0 0
        %2027 = vmatpush.bf16.msra.mxu0 %v1979
        %2028 = vmatpush.bf16.msra.mxu0 %v1973
        %2029 = vmatmul.bf16.gmra.mxu0 %v1997
        %v2030 = vpop.f32.mrf.mxu0
        %v2031 = vadd.f32 0.0, %v2030
        %v2032 = vpop.f32.mrf.mxu0
        %v2033 = vadd.f32 0.0, %v2032
        %2034 = vmatmul.bf16.gmra.mxu0 %v2000
        %v2035 = vpop.f32.mrf.mxu0
        %v2036 = vadd.f32 0.0, %v2035
        %v2037 = vpop.f32.mrf.mxu0
        %v2038 = vadd.f32 0.0, %v2037
        %2039 = vdwg.mxu0
        %2040 = vmatpush.bf16.msra.mxu0 0
        %2041 = vmatpush.bf16.msra.mxu0 0
        %2042 = vmatpush.bf16.msra.mxu0 0
        %2043 = vmatpush.bf16.msra.mxu0 0
        %2044 = vmatpush.bf16.msra.mxu0 0
        %2045 = vmatpush.bf16.msra.mxu0 0
        %2046 = vmatpush.bf16.msra.mxu0 %v1980
        %2047 = vmatpush.bf16.msra.mxu0 %v1974
        %2048 = vmatmul.bf16.gmra.mxu0 %v1997
        %v2049 = vpop.f32.mrf.mxu0
        %v2050 = vadd.f32 0.0, %v2049
        %v2051 = vpop.f32.mrf.mxu0
        %v2052 = vadd.f32 0.0, %v2051
        %2053 = vmatmul.bf16.gmra.mxu0 %v2000
        %v2054 = vpop.f32.mrf.mxu0
        %v2055 = vadd.f32 0.0, %v2054
        %v2056 = vpop.f32.mrf.mxu0
        %v2057 = vadd.f32 0.0, %v2056
        %2058 = vdwg.mxu0
        %2059 = vmatpush.bf16.msra.mxu0 0
        %2060 = vmatpush.bf16.msra.mxu0 0
        %2061 = vmatpush.bf16.msra.mxu0 0
        %2062 = vmatpush.bf16.msra.mxu0 0
        %2063 = vmatpush.bf16.msra.mxu0 0
        %2064 = vmatpush.bf16.msra.mxu0 0
        %2065 = vmatpush.bf16.msra.mxu0 %v1981
        %2066 = vmatpush.bf16.msra.mxu0 %v1975
        %2067 = vmatmul.bf16.gmra.mxu0 %v1997
        %v2068 = vpop.f32.mrf.mxu0
        %v2069 = vadd.f32 0.0, %v2068
        %v2070 = vpop.f32.mrf.mxu0
        %v2071 = vadd.f32 0.0, %v2070
        %2072 = vmatmul.bf16.gmra.mxu0 %v2000
        %v2073 = vpop.f32.mrf.mxu0
        %v2074 = vadd.f32 0.0, %v2073
        %v2075 = vpop.f32.mrf.mxu0
        %v2076 = vadd.f32 0.0, %v2075
        %2077 = vdwg.mxu0
        %2078 = vmatpush.bf16.msra.mxu0 0
        %2079 = vmatpush.bf16.msra.mxu0 0
        %2080 = vmatpush.bf16.msra.mxu0 0
        %2081 = vmatpush.bf16.msra.mxu0 0
        %2082 = vmatpush.bf16.msra.mxu0 0
        %2083 = vmatpush.bf16.msra.mxu0 0
        %2084 = vmatpush.bf16.msra.mxu0 %v1982
        %2085 = vmatpush.bf16.msra.mxu0 %v1976
        %2086 = vmatmul.bf16.gmra.mxu0 %v1997
        %v2087 = vpop.f32.mrf.mxu0
        %v2088 = vadd.f32 0.0, %v2087
        %v2089 = vpop.f32.mrf.mxu0
        %v2090 = vadd.f32 0.0, %v2089
        %2091 = vmatmul.bf16.gmra.mxu0 %v2000
        %v2092 = vpop.f32.mrf.mxu0
        %v2093 = vadd.f32 0.0, %v2092
        %v2094 = vpop.f32.mrf.mxu0
        %v2095 = vadd.f32 0.0, %v2094
        %2096 = vdwg.mxu0
        %2097 = vmatpush.bf16.msra.mxu0 0
        %2098 = vmatpush.bf16.msra.mxu0 0
        %2099 = vmatpush.bf16.msra.mxu0 0
        %2100 = vmatpush.bf16.msra.mxu0 0
        %2101 = vmatpush.bf16.msra.mxu0 0
        %2102 = vmatpush.bf16.msra.mxu0 0
        %2103 = vmatpush.bf16.msra.mxu0 %v1983
        %2104 = vmatpush.bf16.msra.mxu0 %v1977
        %2105 = vmatmul.bf16.gmra.mxu0 %v1997
        %v2106 = vpop.f32.mrf.mxu0
        %v2107 = vadd.f32 0.0, %v2106
        %v2108 = vpop.f32.mrf.mxu0
        %v2109 = vadd.f32 0.0, %v2108
        %2110 = vmatmul.bf16.gmra.mxu0 %v2000
        %v2111 = vpop.f32.mrf.mxu0
        %v2112 = vadd.f32 0.0, %v2111
        %v2113 = vpop.f32.mrf.mxu0
        %v2114 = vadd.f32 0.0, %v2113
        %2115 = vdwg.mxu0
        %v2116 = vld [vmem:[#allocation7 + $0x4] sm:$0xf]
        %v2117 = vld [vmem:[#allocation7 + $0x14] sm:$0xf]
        %v2118 = vld [vmem:[#allocation7 + $0x24] sm:$0xf]
        %v2119 = vld [vmem:[#allocation7 + $0x34] sm:$0xf]
        %v2120 = vld [vmem:[#allocation7 + $0x44] sm:$0xf]
        %v2121 = vld [vmem:[#allocation7 + $0x54] sm:$0xf]
        %v2122 = vld [vmem:[#allocation7 + $0x64] sm:$0xf]
        %v2123 = vld [vmem:[#allocation7 + $0x74] sm:$0xf]
        %v2124 = vld [vmem:[#allocation7 + $0x84] sm:$0xf]
        %v2125 = vld [vmem:[#allocation7 + $0x94] sm:$0xf]
        %v2126 = vld [vmem:[#allocation7 + $0xa4] sm:$0xf]
        %v2127 = vld [vmem:[#allocation7 + $0xb4] sm:$0xf]
        %v2128 = vld [vmem:[#allocation7 + $0xc4] sm:$0xf]
        %v2129 = vld [vmem:[#allocation7 + $0xd4] sm:$0xf]
        %v2130 = vld [vmem:[#allocation7 + $0xe4] sm:$0xf]
        %v2131 = vld [vmem:[#allocation7 + $0xf4] sm:$0xf]
        %v2132 = vld [vmem:[#allocation7 + $0x104] sm:$0xf]
        %v2133 = vld [vmem:[#allocation7 + $0x114] sm:$0xf]
        %v2134 = vld [vmem:[#allocation7 + $0x124] sm:$0xf]
        %v2135 = vld [vmem:[#allocation7 + $0x134] sm:$0xf]
        %v2136 = vld [vmem:[#allocation7 + $0x144] sm:$0xf]
        %v2137 = vld [vmem:[#allocation7 + $0x154] sm:$0xf]
        %v2138 = vld [vmem:[#allocation7 + $0x164] sm:$0xf]
        %v2139 = vld [vmem:[#allocation7 + $0x174] sm:$0xf]
        %v2140 = vld [vmem:[#allocation7 + $0x184] sm:$0xf]
        %v2141 = vld [vmem:[#allocation7 + $0x194] sm:$0xf]
        %v2142 = vld [vmem:[#allocation7 + $0x1a4] sm:$0xf]
        %v2143 = vld [vmem:[#allocation7 + $0x1b4] sm:$0xf]
        %v2144 = vld [vmem:[#allocation7 + $0x1c4] sm:$0xf]
        %v2145 = vld [vmem:[#allocation7 + $0x1d4] sm:$0xf]
        %v2146 = vld [vmem:[#allocation7 + $0x1e4] sm:$0xf]
        %v2147 = vld [vmem:[#allocation7 + $0x1f4] sm:$0xf]
        %v2148 = vld [vmem:[#allocation2 + $0xa] sm:$0x1]
        %v2149 = vpack.c.bf16 %v2014, %v2012
        %v2150 = vpack.c.bf16 %v2019, %v2017
        %v2151 = vpack.c.bf16 %v2052, %v2050
        %v2152 = vpack.c.bf16 %v2057, %v2055
        %v2154 = vsel %vm497, %v2149, 0
        %v2157 = vsel %vm497, %v2150, 0
        %v2160 = vsel %vm497, %v2151, 0
        %v2163 = vsel %vm497, %v2152, 0
        %2165 = vmatpush.bf16.xpose.msra.mxu0 0
        %2166 = vmatpush.bf16.xpose.msra.mxu0 0
        %2167 = vmatpush.bf16.xpose.msra.mxu0 0
        %2168 = vmatpush.bf16.xpose.msra.mxu0 0
        %2169 = vmatpush.bf16.xpose.msra.mxu0 0
        %2170 = vmatpush.bf16.xpose.msra.mxu0 0
        %2171 = vmatpush.bf16.xpose.msra.mxu0 %v2163
        %2172 = vmatpush.bf16.xpose.msra.mxu0 %v2160
        %2173 = vmatmul.bf16.gmra.mxu0 %v2154
        %v2174 = vpop.f32.mrf.mxu0
        %v2175 = vadd.f32 %v448, %v2174
        %v2176 = vpop.f32.mrf.mxu0
        %v2177 = vadd.f32 %v449, %v2176
        %2178 = vmatmul.bf16.gmra.mxu0 %v2157
        %v2179 = vpop.f32.mrf.mxu0
        %v2180 = vadd.f32 %v450, %v2179
        %v2181 = vpop.f32.mrf.mxu0
        %v2182 = vadd.f32 %v451, %v2181
        %2183 = vdwg.mxu0
        %v2184 = vsel %vm492, %v2175, -inf
        %2185 = vmax.xlane.f32.xlu0 %v2184
        %v2186 = vpop.xlane.xlu0 %2185
        %v2187 = vsel %vm492, %v2177, -inf
        %2188 = vmax.xlane.f32.xlu0 %v2187
        %v2189 = vpop.xlane.xlu0 %2188
        %v2190 = vsel %vm492, %v2180, -inf
        %2191 = vmax.xlane.f32.xlu0 %v2190
        %v2192 = vpop.xlane.xlu0 %2191
        %v2193 = vsel %vm492, %v2182, -inf
        %2194 = vmax.xlane.f32.xlu0 %v2193
        %v2195 = vpop.xlane.xlu0 %2194
        %v2196 = vsub.f32 %v2175, %v2186
        %v2197 = vsub.f32 %v2177, %v2189
        %v2198 = vsub.f32 %v2180, %v2192
        %v2199 = vsub.f32 %v2182, %v2195
        %v2200 = vmul.f32 %v2196, 1.442695
        %v2201 = vpow.pop %v2200
        %v2202 = vmul.f32 %v2197, 1.442695
        %v2203 = vpow.pop %v2202
        %v2204 = vmul.f32 %v2198, 1.442695
        %v2205 = vpow.pop %v2204
        %v2206 = vmul.f32 %v2199, 1.442695
        %v2207 = vpow.pop %v2206
        %v2208 = vsel %vm492, %v2201, 0.0
        %2209 = vadd.xlane.f32.xlu0 %v2208
        %v2210 = vpop.xlane.xlu0 %2209
        %v2211 = vsel %vm492, %v2203, 0.0
        %2212 = vadd.xlane.f32.xlu0 %v2211
        %v2213 = vpop.xlane.xlu0 %2212
        %v2214 = vsel %vm492, %v2205, 0.0
        %2215 = vadd.xlane.f32.xlu0 %v2214
        %v2216 = vpop.xlane.xlu0 %2215
        %v2217 = vsel %vm492, %v2207, 0.0
        %2218 = vadd.xlane.f32.xlu0 %v2217
        %v2219 = vpop.xlane.xlu0 %2218
        %v2220 = vrcp.pop %v2210
        %v2221 = vrcp.pop %v2213
        %v2222 = vrcp.pop %v2216
        %v2223 = vrcp.pop %v2219
        %v2224 = vmul.f32 %v2201, %v2220
        %v2225 = vmul.f32 %v2203, %v2221
        %v2226 = vmul.f32 %v2205, %v2222
        %v2227 = vmul.f32 %v2207, %v2223
        %v2228 = vpack.c.bf16 %v2225, %v2224
        %v2229 = vpack.c.bf16 %v2227, %v2226
        %v2230 = vpack.c.bf16 %v2090, %v2088
        %v2231 = vpack.c.bf16 %v2095, %v2093
        %v2233 = vsel %vm492, %v2228, 0
        %v2236 = vsel %vm492, %v2229, 0
        %2238 = vmatpush.bf16.msra.mxu0 0
        %2239 = vmatpush.bf16.msra.mxu0 0
        %2240 = vmatpush.bf16.msra.mxu0 0
        %2241 = vmatpush.bf16.msra.mxu0 0
        %2242 = vmatpush.bf16.msra.mxu0 0
        %2243 = vmatpush.bf16.msra.mxu0 0
        %2244 = vmatpush.bf16.msra.mxu0 %v2231
        %2245 = vmatpush.bf16.msra.mxu0 %v2230
        %2246 = vmatmul.bf16.gmra.mxu0 %v2233
        %v2247 = vpop.f32.mrf.mxu0
        %v2248 = vadd.f32 0.0, %v2247
        %v2249 = vpop.f32.mrf.mxu0
        %v2250 = vadd.f32 0.0, %v2249
        %2251 = vmatmul.bf16.gmra.mxu0 %v2236
        %v2252 = vpop.f32.mrf.mxu0
        %v2253 = vadd.f32 0.0, %v2252
        %v2254 = vpop.f32.mrf.mxu0
        %v2255 = vadd.f32 0.0, %v2254
        %2256 = vdwg.mxu0
        %2259 = vrot.lane.b32.xlu0 %v2149, 64
        %v2260 = vpop.permute.xlu0 %2259
        %2261 = vrot.lane.b32.xlu0 %v2150, 64
        %v2262 = vpop.permute.xlu0 %2261
        %2265 = vrot.lane.b32.xlu0 %v2151, 64
        %v2266 = vpop.permute.xlu0 %2265
        %2267 = vrot.lane.b32.xlu0 %v2152, 64
        %v2268 = vpop.permute.xlu0 %2267
        %v2270 = vsel %vm497, %v2260, 0
        %v2273 = vsel %vm497, %v2262, 0
        %v2276 = vsel %vm497, %v2266, 0
        %v2279 = vsel %vm497, %v2268, 0
        %2281 = vmatpush.bf16.xpose.msra.mxu0 0
        %2282 = vmatpush.bf16.xpose.msra.mxu0 0
        %2283 = vmatpush.bf16.xpose.msra.mxu0 0
        %2284 = vmatpush.bf16.xpose.msra.mxu0 0
        %2285 = vmatpush.bf16.xpose.msra.mxu0 0
        %2286 = vmatpush.bf16.xpose.msra.mxu0 0
        %2287 = vmatpush.bf16.xpose.msra.mxu0 %v2279
        %2288 = vmatpush.bf16.xpose.msra.mxu0 %v2276
        %2289 = vmatmul.bf16.gmra.mxu0 %v2270
        %v2290 = vpop.f32.mrf.mxu0
        %v2291 = vadd.f32 %v448, %v2290
        %v2292 = vpop.f32.mrf.mxu0
        %v2293 = vadd.f32 %v449, %v2292
        %2294 = vmatmul.bf16.gmra.mxu0 %v2273
        %v2295 = vpop.f32.mrf.mxu0
        %v2296 = vadd.f32 %v450, %v2295
        %v2297 = vpop.f32.mrf.mxu0
        %v2298 = vadd.f32 %v451, %v2297
        %2299 = vdwg.mxu0
        %v2300 = vsel %vm492, %v2291, -inf
        %2301 = vmax.xlane.f32.xlu0 %v2300
        %v2302 = vpop.xlane.xlu0 %2301
        %v2303 = vsel %vm492, %v2293, -inf
        %2304 = vmax.xlane.f32.xlu0 %v2303
        %v2305 = vpop.xlane.xlu0 %2304
        %v2306 = vsel %vm492, %v2296, -inf
        %2307 = vmax.xlane.f32.xlu0 %v2306
        %v2308 = vpop.xlane.xlu0 %2307
        %v2309 = vsel %vm492, %v2298, -inf
        %2310 = vmax.xlane.f32.xlu0 %v2309
        %v2311 = vpop.xlane.xlu0 %2310
        %v2312 = vsub.f32 %v2291, %v2302
        %v2313 = vsub.f32 %v2293, %v2305
        %v2314 = vsub.f32 %v2296, %v2308
        %v2315 = vsub.f32 %v2298, %v2311
        %v2316 = vmul.f32 %v2312, 1.442695
        %v2317 = vpow.pop %v2316
        %v2318 = vmul.f32 %v2313, 1.442695
        %v2319 = vpow.pop %v2318
        %v2320 = vmul.f32 %v2314, 1.442695
        %v2321 = vpow.pop %v2320
        %v2322 = vmul.f32 %v2315, 1.442695
        %v2323 = vpow.pop %v2322
        %v2324 = vsel %vm492, %v2317, 0.0
        %2325 = vadd.xlane.f32.xlu0 %v2324
        %v2326 = vpop.xlane.xlu0 %2325
        %v2327 = vsel %vm492, %v2319, 0.0
        %2328 = vadd.xlane.f32.xlu0 %v2327
        %v2329 = vpop.xlane.xlu0 %2328
        %v2330 = vsel %vm492, %v2321, 0.0
        %2331 = vadd.xlane.f32.xlu0 %v2330
        %v2332 = vpop.xlane.xlu0 %2331
        %v2333 = vsel %vm492, %v2323, 0.0
        %2334 = vadd.xlane.f32.xlu0 %v2333
        %v2335 = vpop.xlane.xlu0 %2334
        %v2336 = vrcp.pop %v2326
        %v2337 = vrcp.pop %v2329
        %v2338 = vrcp.pop %v2332
        %v2339 = vrcp.pop %v2335
        %v2340 = vmul.f32 %v2317, %v2336
        %v2341 = vmul.f32 %v2319, %v2337
        %v2342 = vmul.f32 %v2321, %v2338
        %v2343 = vmul.f32 %v2323, %v2339
        %v2344 = vpack.c.bf16 %v2341, %v2340
        %v2345 = vpack.c.bf16 %v2343, %v2342
        %2348 = vrot.lane.b32.xlu0 %v2230, 64
        %v2349 = vpop.permute.xlu0 %2348
        %2350 = vrot.lane.b32.xlu0 %v2231, 64
        %v2351 = vpop.permute.xlu0 %2350
        %v2355 = vsel %vm492, %v2344, 0
        %v2358 = vsel %vm492, %v2345, 0
        %2360 = vmatpush.bf16.msra.mxu0 0
        %2361 = vmatpush.bf16.msra.mxu0 0
        %2362 = vmatpush.bf16.msra.mxu0 0
        %2363 = vmatpush.bf16.msra.mxu0 0
        %2364 = vmatpush.bf16.msra.mxu0 0
        %2365 = vmatpush.bf16.msra.mxu0 0
        %2366 = vmatpush.bf16.msra.mxu0 %v2351
        %2367 = vmatpush.bf16.msra.mxu0 %v2349
        %2368 = vmatmul.bf16.gmra.mxu0 %v2355
        %v2369 = vpop.f32.mrf.mxu0
        %v2370 = vadd.f32 0.0, %v2369
        %v2371 = vpop.f32.mrf.mxu0
        %v2372 = vadd.f32 0.0, %v2371
        %2373 = vmatmul.bf16.gmra.mxu0 %v2358
        %v2374 = vpop.f32.mrf.mxu0
        %v2375 = vadd.f32 0.0, %v2374
        %v2376 = vpop.f32.mrf.mxu0
        %v2377 = vadd.f32 0.0, %v2376
        %2378 = vdwg.mxu0
        %v2379 = vpack.c.bf16 %v2033, %v2031
        %v2380 = vpack.c.bf16 %v2038, %v2036
        %v2381 = vpack.c.bf16 %v2071, %v2069
        %v2382 = vpack.c.bf16 %v2076, %v2074
        %v2384 = vsel %vm497, %v2379, 0
        %v2387 = vsel %vm497, %v2380, 0
        %v2390 = vsel %vm497, %v2381, 0
        %v2393 = vsel %vm497, %v2382, 0
        %2395 = vmatpush.bf16.xpose.msra.mxu0 0
        %2396 = vmatpush.bf16.xpose.msra.mxu0 0
        %2397 = vmatpush.bf16.xpose.msra.mxu0 0
        %2398 = vmatpush.bf16.xpose.msra.mxu0 0
        %2399 = vmatpush.bf16.xpose.msra.mxu0 0
        %2400 = vmatpush.bf16.xpose.msra.mxu0 0
        %2401 = vmatpush.bf16.xpose.msra.mxu0 %v2393
        %2402 = vmatpush.bf16.xpose.msra.mxu0 %v2390
        %2403 = vmatmul.bf16.gmra.mxu0 %v2384
        %v2404 = vpop.f32.mrf.mxu0
        %v2405 = vadd.f32 %v448, %v2404
        %v2406 = vpop.f32.mrf.mxu0
        %v2407 = vadd.f32 %v449, %v2406
        %2408 = vmatmul.bf16.gmra.mxu0 %v2387
        %v2409 = vpop.f32.mrf.mxu0
        %v2410 = vadd.f32 %v450, %v2409
        %v2411 = vpop.f32.mrf.mxu0
        %v2412 = vadd.f32 %v451, %v2411
        %2413 = vdwg.mxu0
        %v2414 = vsel %vm492, %v2405, -inf
        %2415 = vmax.xlane.f32.xlu0 %v2414
        %v2416 = vpop.xlane.xlu0 %2415
        %v2417 = vsel %vm492, %v2407, -inf
        %2418 = vmax.xlane.f32.xlu0 %v2417
        %v2419 = vpop.xlane.xlu0 %2418
        %v2420 = vsel %vm492, %v2410, -inf
        %2421 = vmax.xlane.f32.xlu0 %v2420
        %v2422 = vpop.xlane.xlu0 %2421
        %v2423 = vsel %vm492, %v2412, -inf
        %2424 = vmax.xlane.f32.xlu0 %v2423
        %v2425 = vpop.xlane.xlu0 %2424
        %v2426 = vsub.f32 %v2405, %v2416
        %v2427 = vsub.f32 %v2407, %v2419
        %v2428 = vsub.f32 %v2410, %v2422
        %v2429 = vsub.f32 %v2412, %v2425
        %v2430 = vmul.f32 %v2426, 1.442695
        %v2431 = vpow.pop %v2430
        %v2432 = vmul.f32 %v2427, 1.442695
        %v2433 = vpow.pop %v2432
        %v2434 = vmul.f32 %v2428, 1.442695
        %v2435 = vpow.pop %v2434
        %v2436 = vmul.f32 %v2429, 1.442695
        %v2437 = vpow.pop %v2436
        %v2438 = vsel %vm492, %v2431, 0.0
        %2439 = vadd.xlane.f32.xlu0 %v2438
        %v2440 = vpop.xlane.xlu0 %2439
        %v2441 = vsel %vm492, %v2433, 0.0
        %2442 = vadd.xlane.f32.xlu0 %v2441
        %v2443 = vpop.xlane.xlu0 %2442
        %v2444 = vsel %vm492, %v2435, 0.0
        %2445 = vadd.xlane.f32.xlu0 %v2444
        %v2446 = vpop.xlane.xlu0 %2445
        %v2447 = vsel %vm492, %v2437, 0.0
        %2448 = vadd.xlane.f32.xlu0 %v2447
        %v2449 = vpop.xlane.xlu0 %2448
        %v2450 = vrcp.pop %v2440
        %v2451 = vrcp.pop %v2443
        %v2452 = vrcp.pop %v2446
        %v2453 = vrcp.pop %v2449
        %v2454 = vmul.f32 %v2431, %v2450
        %v2455 = vmul.f32 %v2433, %v2451
        %v2456 = vmul.f32 %v2435, %v2452
        %v2457 = vmul.f32 %v2437, %v2453
        %v2458 = vpack.c.bf16 %v2455, %v2454
        %v2459 = vpack.c.bf16 %v2457, %v2456
        %v2460 = vpack.c.bf16 %v2109, %v2107
        %v2461 = vpack.c.bf16 %v2114, %v2112
        %v2463 = vsel %vm492, %v2458, 0
        %v2466 = vsel %vm492, %v2459, 0
        %2468 = vmatpush.bf16.msra.mxu0 0
        %2469 = vmatpush.bf16.msra.mxu0 0
        %2470 = vmatpush.bf16.msra.mxu0 0
        %2471 = vmatpush.bf16.msra.mxu0 0
        %2472 = vmatpush.bf16.msra.mxu0 0
        %2473 = vmatpush.bf16.msra.mxu0 0
        %2474 = vmatpush.bf16.msra.mxu0 %v2461
        %2475 = vmatpush.bf16.msra.mxu0 %v2460
        %2476 = vmatmul.bf16.gmra.mxu0 %v2463
        %v2477 = vpop.f32.mrf.mxu0
        %v2478 = vadd.f32 0.0, %v2477
        %v2479 = vpop.f32.mrf.mxu0
        %v2480 = vadd.f32 0.0, %v2479
        %2481 = vmatmul.bf16.gmra.mxu0 %v2466
        %v2482 = vpop.f32.mrf.mxu0
        %v2483 = vadd.f32 0.0, %v2482
        %v2484 = vpop.f32.mrf.mxu0
        %v2485 = vadd.f32 0.0, %v2484
        %2486 = vdwg.mxu0
        %2489 = vrot.lane.b32.xlu0 %v2379, 64
        %v2490 = vpop.permute.xlu0 %2489
        %2491 = vrot.lane.b32.xlu0 %v2380, 64
        %v2492 = vpop.permute.xlu0 %2491
        %2495 = vrot.lane.b32.xlu0 %v2381, 64
        %v2496 = vpop.permute.xlu0 %2495
        %2497 = vrot.lane.b32.xlu0 %v2382, 64
        %v2498 = vpop.permute.xlu0 %2497
        %v2500 = vsel %vm497, %v2490, 0
        %v2503 = vsel %vm497, %v2492, 0
        %v2506 = vsel %vm497, %v2496, 0
        %v2509 = vsel %vm497, %v2498, 0
        %2511 = vmatpush.bf16.xpose.msra.mxu0 0
        %2512 = vmatpush.bf16.xpose.msra.mxu0 0
        %2513 = vmatpush.bf16.xpose.msra.mxu0 0
        %2514 = vmatpush.bf16.xpose.msra.mxu0 0
        %2515 = vmatpush.bf16.xpose.msra.mxu0 0
        %2516 = vmatpush.bf16.xpose.msra.mxu0 0
        %2517 = vmatpush.bf16.xpose.msra.mxu0 %v2509
        %2518 = vmatpush.bf16.xpose.msra.mxu0 %v2506
        %2519 = vmatmul.bf16.gmra.mxu0 %v2500
        %v2520 = vpop.f32.mrf.mxu0
        %v2521 = vadd.f32 %v448, %v2520
        %v2522 = vpop.f32.mrf.mxu0
        %v2523 = vadd.f32 %v449, %v2522
        %2524 = vmatmul.bf16.gmra.mxu0 %v2503
        %v2525 = vpop.f32.mrf.mxu0
        %v2526 = vadd.f32 %v450, %v2525
        %v2527 = vpop.f32.mrf.mxu0
        %v2528 = vadd.f32 %v451, %v2527
        %2529 = vdwg.mxu0
        %v2530 = vsel %vm492, %v2521, -inf
        %2531 = vmax.xlane.f32.xlu0 %v2530
        %v2532 = vpop.xlane.xlu0 %2531
        %v2533 = vsel %vm492, %v2523, -inf
        %2534 = vmax.xlane.f32.xlu0 %v2533
        %v2535 = vpop.xlane.xlu0 %2534
        %v2536 = vsel %vm492, %v2526, -inf
        %2537 = vmax.xlane.f32.xlu0 %v2536
        %v2538 = vpop.xlane.xlu0 %2537
        %v2539 = vsel %vm492, %v2528, -inf
        %2540 = vmax.xlane.f32.xlu0 %v2539
        %v2541 = vpop.xlane.xlu0 %2540
        %v2542 = vsub.f32 %v2521, %v2532
        %v2543 = vsub.f32 %v2523, %v2535
        %v2544 = vsub.f32 %v2526, %v2538
        %v2545 = vsub.f32 %v2528, %v2541
        %v2546 = vmul.f32 %v2542, 1.442695
        %v2547 = vpow.pop %v2546
        %v2548 = vmul.f32 %v2543, 1.442695
        %v2549 = vpow.pop %v2548
        %v2550 = vmul.f32 %v2544, 1.442695
        %v2551 = vpow.pop %v2550
        %v2552 = vmul.f32 %v2545, 1.442695
        %v2553 = vpow.pop %v2552
        %v2554 = vsel %vm492, %v2547, 0.0
        %2555 = vadd.xlane.f32.xlu0 %v2554
        %v2556 = vpop.xlane.xlu0 %2555
        %v2557 = vsel %vm492, %v2549, 0.0
        %2558 = vadd.xlane.f32.xlu0 %v2557
        %v2559 = vpop.xlane.xlu0 %2558
        %v2560 = vsel %vm492, %v2551, 0.0
        %2561 = vadd.xlane.f32.xlu0 %v2560
        %v2562 = vpop.xlane.xlu0 %2561
        %v2563 = vsel %vm492, %v2553, 0.0
        %2564 = vadd.xlane.f32.xlu0 %v2563
        %v2565 = vpop.xlane.xlu0 %2564
        %v2566 = vrcp.pop %v2556
        %v2567 = vrcp.pop %v2559
        %v2568 = vrcp.pop %v2562
        %v2569 = vrcp.pop %v2565
        %v2570 = vmul.f32 %v2547, %v2566
        %v2571 = vmul.f32 %v2549, %v2567
        %v2572 = vmul.f32 %v2551, %v2568
        %v2573 = vmul.f32 %v2553, %v2569
        %v2574 = vpack.c.bf16 %v2571, %v2570
        %v2575 = vpack.c.bf16 %v2573, %v2572
        %2578 = vrot.lane.b32.xlu0 %v2460, 64
        %v2579 = vpop.permute.xlu0 %2578
        %2580 = vrot.lane.b32.xlu0 %v2461, 64
        %v2581 = vpop.permute.xlu0 %2580
        %v2585 = vsel %vm492, %v2574, 0
        %v2588 = vsel %vm492, %v2575, 0
        %2590 = vmatpush.bf16.msra.mxu0 0
        %2591 = vmatpush.bf16.msra.mxu0 0
        %2592 = vmatpush.bf16.msra.mxu0 0
        %2593 = vmatpush.bf16.msra.mxu0 0
        %2594 = vmatpush.bf16.msra.mxu0 0
        %2595 = vmatpush.bf16.msra.mxu0 0
        %2596 = vmatpush.bf16.msra.mxu0 %v2581
        %2597 = vmatpush.bf16.msra.mxu0 %v2579
        %2598 = vmatmul.bf16.gmra.mxu0 %v2585
        %v2599 = vpop.f32.mrf.mxu0
        %v2600 = vadd.f32 0.0, %v2599
        %v2601 = vpop.f32.mrf.mxu0
        %v2602 = vadd.f32 0.0, %v2601
        %2603 = vmatmul.bf16.gmra.mxu0 %v2588
        %v2604 = vpop.f32.mrf.mxu0
        %v2605 = vadd.f32 0.0, %v2604
        %v2606 = vpop.f32.mrf.mxu0
        %v2607 = vadd.f32 0.0, %v2606
        %2608 = vdwg.mxu0
        %2613 = vrot.lane.b32.xlu0 %v2370, 64
        %v2614 = vpop.permute.xlu0 %2613
        %2615 = vrot.lane.b32.xlu0 %v2372, 64
        %v2616 = vpop.permute.xlu0 %2615
        %2617 = vrot.lane.b32.xlu0 %v2375, 64
        %v2618 = vpop.permute.xlu0 %2617
        %2619 = vrot.lane.b32.xlu0 %v2377, 64
        %v2620 = vpop.permute.xlu0 %2619
        %2629 = vrot.lane.b32.xlu0 %v2600, 64
        %v2630 = vpop.permute.xlu0 %2629
        %2631 = vrot.lane.b32.xlu0 %v2602, 64
        %v2632 = vpop.permute.xlu0 %2631
        %2633 = vrot.lane.b32.xlu0 %v2605, 64
        %v2634 = vpop.permute.xlu0 %2633
        %2635 = vrot.lane.b32.xlu0 %v2607, 64
        %v2636 = vpop.permute.xlu0 %2635
        %v2641 = vsel %vm497, %v2248, %v2614
        %v2642 = vsel %vm497, %v2250, %v2616
        %v2643 = vsel %vm497, %v2253, %v2618
        %v2644 = vsel %vm497, %v2255, %v2620
        %v2645 = vsel %vm497, %v2478, %v2630
        %v2646 = vsel %vm497, %v2480, %v2632
        %v2647 = vsel %vm497, %v2483, %v2634
        %v2648 = vsel %vm497, %v2485, %v2636
        %v2649 = vpack.c.bf16 %v2642, %v2641
        %v2650 = vpack.c.bf16 %v2646, %v2645
        %v2651 = vpack.c.bf16 %v2644, %v2643
        %v2652 = vpack.c.bf16 %v2648, %v2647
        %v2654 = vperm.slane %v2148, 0
        %v2688 = vunpack.c.l.b16 %v2116
        %v2689 = vunpack.c.l.b16 %v2117
        %v2690 = vunpack.c.l.b16 %v2118
        %v2691 = vunpack.c.l.b16 %v2119
        %v2692 = vunpack.c.l.b16 %v2120
        %v2693 = vunpack.c.l.b16 %v2121
        %v2694 = vunpack.c.l.b16 %v2122
        %v2695 = vunpack.c.l.b16 %v2123
        %v2696 = vunpack.c.l.b16 %v2124
        %v2697 = vunpack.c.l.b16 %v2125
        %v2698 = vunpack.c.l.b16 %v2126
        %v2699 = vunpack.c.l.b16 %v2127
        %v2700 = vunpack.c.l.b16 %v2128
        %v2701 = vunpack.c.l.b16 %v2129
        %v2702 = vunpack.c.l.b16 %v2130
        %v2703 = vunpack.c.l.b16 %v2131
        %v2704 = vunpack.c.l.b16 %v2132
        %v2705 = vunpack.c.l.b16 %v2133
        %v2706 = vunpack.c.l.b16 %v2134
        %v2707 = vunpack.c.l.b16 %v2135
        %v2708 = vunpack.c.l.b16 %v2136
        %v2709 = vunpack.c.l.b16 %v2137
        %v2710 = vunpack.c.l.b16 %v2138
        %v2711 = vunpack.c.l.b16 %v2139
        %v2712 = vunpack.c.l.b16 %v2140
        %v2713 = vunpack.c.l.b16 %v2141
        %v2714 = vunpack.c.l.b16 %v2142
        %v2715 = vunpack.c.l.b16 %v2143
        %v2716 = vunpack.c.l.b16 %v2144
        %v2717 = vunpack.c.l.b16 %v2145
        %v2718 = vunpack.c.l.b16 %v2146
        %v2719 = vunpack.c.l.b16 %v2147
        %v2720 = vpack.c.b16 %v2689, %v2688
        %v2721 = vpack.c.b16 %v2691, %v2690
        %v2722 = vpack.c.b16 %v2693, %v2692
        %v2723 = vpack.c.b16 %v2695, %v2694
        %v2724 = vpack.c.b16 %v2697, %v2696
        %v2725 = vpack.c.b16 %v2699, %v2698
        %v2726 = vpack.c.b16 %v2701, %v2700
        %v2727 = vpack.c.b16 %v2703, %v2702
        %v2728 = vpack.c.b16 %v2705, %v2704
        %v2729 = vpack.c.b16 %v2707, %v2706
        %v2730 = vpack.c.b16 %v2709, %v2708
        %v2731 = vpack.c.b16 %v2711, %v2710
        %v2732 = vpack.c.b16 %v2713, %v2712
        %v2733 = vpack.c.b16 %v2715, %v2714
        %v2734 = vpack.c.b16 %v2717, %v2716
        %v2735 = vpack.c.b16 %v2719, %v2718
        %2752 = vmatpush.bf16.msra.mxu0 %v2727
        %2753 = vmatpush.bf16.msra.mxu0 %v2726
        %2754 = vmatpush.bf16.msra.mxu0 %v2725
        %2755 = vmatpush.bf16.msra.mxu0 %v2724
        %2756 = vmatpush.bf16.msra.mxu0 %v2723
        %2757 = vmatpush.bf16.msra.mxu0 %v2722
        %2758 = vmatpush.bf16.msra.mxu0 %v2721
        %2759 = vmatpush.bf16.msra.mxu0 %v2720
        %2760 = vmatmul.bf16.gmra.mxu0 %v2649
        %v2761 = vpop.f32.mrf.mxu0
        %v2762 = vadd.f32 %v2654, %v2761
        %v2763 = vpop.f32.mrf.mxu0
        %v2764 = vadd.f32 %v2654, %v2763
        %2765 = vmatmul.bf16.gmra.mxu0 %v2651
        %v2766 = vpop.f32.mrf.mxu0
        %v2767 = vadd.f32 %v2654, %v2766
        %v2768 = vpop.f32.mrf.mxu0
        %v2769 = vadd.f32 %v2654, %v2768
        %2770 = vdwg.mxu0
        %2771 = vmatpush.bf16.msra.mxu0 %v2735
        %2772 = vmatpush.bf16.msra.mxu0 %v2734
        %2773 = vmatpush.bf16.msra.mxu0 %v2733
        %2774 = vmatpush.bf16.msra.mxu0 %v2732
        %2775 = vmatpush.bf16.msra.mxu0 %v2731
        %2776 = vmatpush.bf16.msra.mxu0 %v2730
        %2777 = vmatpush.bf16.msra.mxu0 %v2729
        %2778 = vmatpush.bf16.msra.mxu0 %v2728
        %2779 = vmatmul.bf16.gmra.mxu0 %v2650
        %v2780 = vpop.f32.mrf.mxu0
        %v2781 = vadd.f32 %v2762, %v2780
        %v2782 = vpop.f32.mrf.mxu0
        %v2783 = vadd.f32 %v2764, %v2782
        %2784 = vmatmul.bf16.gmra.mxu0 %v2652
        %v2785 = vpop.f32.mrf.mxu0
        %v2786 = vadd.f32 %v2767, %v2785
        %v2787 = vpop.f32.mrf.mxu0
        %v2788 = vadd.f32 %v2769, %v2787
        %2789 = vdwg.mxu0
        %v2790 = vadd.f32 %v1814, %v2781
        %v2791 = vadd.f32 %v1815, %v2783
        %v2792 = vadd.f32 %v1816, %v2786
        %v2793 = vadd.f32 %v1817, %v2788
        %v2794 = vld [vmem:[#allocation2 + $0xb] sm:$0x1]
        %v2795 = vld [vmem:[#allocation2 + $0xc] sm:$0x1]
        %v2796 = vsel %vm492, %v2790, 0.0
        %2797 = vadd.xlane.f32.xlu0 %v2796
        %v2798 = vpop.xlane.xlu0 %2797
        %v2799 = vsel %vm492, %v2791, 0.0
        %2800 = vadd.xlane.f32.xlu0 %v2799
        %v2801 = vpop.xlane.xlu0 %2800
        %v2802 = vsel %vm492, %v2792, 0.0
        %2803 = vadd.xlane.f32.xlu0 %v2802
        %v2804 = vpop.xlane.xlu0 %2803
        %v2805 = vsel %vm492, %v2793, 0.0
        %2806 = vadd.xlane.f32.xlu0 %v2805
        %v2807 = vpop.xlane.xlu0 %2806
        %v2808 = vmul.f32 %v2798, %v575
        %v2809 = vmul.f32 %v2801, %v575
        %v2810 = vmul.f32 %v2804, %v575
        %v2811 = vmul.f32 %v2807, %v575
        %v2812 = vsub.f32 %v2790, %v2808
        %v2813 = vsub.f32 %v2791, %v2809
        %v2814 = vsub.f32 %v2792, %v2810
        %v2815 = vsub.f32 %v2793, %v2811
        %v2816 = vmul.f32 %v2812, %v2812
        %v2817 = vmul.f32 %v2813, %v2813
        %v2818 = vmul.f32 %v2814, %v2814
        %v2819 = vmul.f32 %v2815, %v2815
        %v2820 = vsel %vm492, %v2816, 0.0
        %2821 = vadd.xlane.f32.xlu0 %v2820
        %v2822 = vpop.xlane.xlu0 %2821
        %v2823 = vsel %vm492, %v2817, 0.0
        %2824 = vadd.xlane.f32.xlu0 %v2823
        %v2825 = vpop.xlane.xlu0 %2824
        %v2826 = vsel %vm492, %v2818, 0.0
        %2827 = vadd.xlane.f32.xlu0 %v2826
        %v2828 = vpop.xlane.xlu0 %2827
        %v2829 = vsel %vm492, %v2819, 0.0
        %2830 = vadd.xlane.f32.xlu0 %v2829
        %v2831 = vpop.xlane.xlu0 %2830
        %v2832 = vmul.f32 %v2822, %v575
        %v2833 = vmul.f32 %v2825, %v575
        %v2834 = vmul.f32 %v2828, %v575
        %v2835 = vmul.f32 %v2831, %v575
        %v2836 = vadd.f32 %v2832, 1e-05
        %v2837 = vadd.f32 %v2833, 1e-05
        %v2838 = vadd.f32 %v2834, 1e-05
        %v2839 = vadd.f32 %v2835, 1e-05
        %v2840 = vrsqrt.pop %v2836
        %v2841 = vmul.f32 %v2840, %v2836
        %v2842 = vmul.f32 %v2841, %v2840
        %v2843 = vmul.f32 0.5, %v2842
        %v2844 = vsub.f32 1.5, %v2843
        %v2845 = vmul.f32 %v2840, %v2844
        %vm2846 = vweird.f32 %v2836
        %vm2847 = vweird.f32 %v2840
        %vm2848 = vmor %vm2846, %vm2847
        %v2849 = vsel %vm2848, %v2840, %v2845
        %v2850 = vrsqrt.pop %v2837
        %v2851 = vmul.f32 %v2850, %v2837
        %v2852 = vmul.f32 %v2851, %v2850
        %v2853 = vmul.f32 0.5, %v2852
        %v2854 = vsub.f32 1.5, %v2853
        %v2855 = vmul.f32 %v2850, %v2854
        %vm2856 = vweird.f32 %v2837
        %vm2857 = vweird.f32 %v2850
        %vm2858 = vmor %vm2856, %vm2857
        %v2859 = vsel %vm2858, %v2850, %v2855
        %v2860 = vrsqrt.pop %v2838
        %v2861 = vmul.f32 %v2860, %v2838
        %v2862 = vmul.f32 %v2861, %v2860
        %v2863 = vmul.f32 0.5, %v2862
        %v2864 = vsub.f32 1.5, %v2863
        %v2865 = vmul.f32 %v2860, %v2864
        %vm2866 = vweird.f32 %v2838
        %vm2867 = vweird.f32 %v2860
        %vm2868 = vmor %vm2866, %vm2867
        %v2869 = vsel %vm2868, %v2860, %v2865
        %v2870 = vrsqrt.pop %v2839
        %v2871 = vmul.f32 %v2870, %v2839
        %v2872 = vmul.f32 %v2871, %v2870
        %v2873 = vmul.f32 0.5, %v2872
        %v2874 = vsub.f32 1.5, %v2873
        %v2875 = vmul.f32 %v2870, %v2874
        %vm2876 = vweird.f32 %v2839
        %vm2877 = vweird.f32 %v2870
        %vm2878 = vmor %vm2876, %vm2877
        %v2879 = vsel %vm2878, %v2870, %v2875
        %v2880 = vmul.f32 %v2812, %v2849
        %v2881 = vmul.f32 %v2813, %v2859
        %v2882 = vmul.f32 %v2814, %v2869
        %v2883 = vmul.f32 %v2815, %v2879
        %v2885 = vperm.slane %v2794, 0
        %v2887 = vmul.f32 %v2880, %v2885
        %v2888 = vmul.f32 %v2881, %v2885
        %v2889 = vmul.f32 %v2882, %v2885
        %v2890 = vmul.f32 %v2883, %v2885
        %v2892 = vperm.slane %v2795, 0
        %v2894 = vadd.f32 %v2887, %v2892
        %v2895 = vadd.f32 %v2888, %v2892
        %v2896 = vadd.f32 %v2889, %v2892
        %v2897 = vadd.f32 %v2890, %v2892
        %v2898 = vld [vmem:[%s4 + $0x34] sm:$0xf]
        %v2899 = vld [vmem:[%s4 + $0xd4] sm:$0xf]
        %v2900 = vld [vmem:[%s4 + $0x174] sm:$0xf]
        %v2901 = vld [vmem:[%s4 + $0x214] sm:$0xf]
        %v2902 = vld [vmem:[#allocation2 + $0xd] sm:$0x1]
        %v2903 = vld [vmem:[#allocation6 + $0x4] sm:$0xf]
        %v2904 = vld [vmem:[#allocation6 + $0x20] sm:$0xf]
        %v2905 = vld [vmem:[#allocation6 + $0x3c] sm:$0xf]
        %v2906 = vld [vmem:[#allocation6 + $0x58] sm:$0xf]
        %v2907 = vld [vmem:[#allocation6 + $0x74] sm:$0xf]
        %v2908 = vld [vmem:[#allocation6 + $0x90] sm:$0xf]
        %v2909 = vld [vmem:[#allocation6 + $0xac] sm:$0xf]
        %v2910 = vld [vmem:[#allocation6 + $0xc8] sm:$0xf]
        %v2911 = vld [vmem:[#allocation6 + $0xe4] sm:$0xf]
        %v2912 = vld [vmem:[#allocation6 + $0x100] sm:$0xf]
        %v2913 = vld [vmem:[#allocation6 + $0x11c] sm:$0xf]
        %v2914 = vld [vmem:[#allocation6 + $0x138] sm:$0xf]
        %v2915 = vld [vmem:[#allocation6 + $0x154] sm:$0xf]
        %v2916 = vld [vmem:[#allocation6 + $0x170] sm:$0xf]
        %v2917 = vld [vmem:[#allocation6 + $0x18c] sm:$0xf]
        %v2918 = vld [vmem:[#allocation6 + $0x1a8] sm:$0xf]
        %v2919 = vld [vmem:[#allocation2 + $0xe] sm:$0x1]
        %v2920 = vpack.c.bf16 %v2895, %v2894
        %v2921 = vpack.c.bf16 %v2897, %v2896
        %v2923 = vperm.slane %v2902, 0
        %v2929 = vunpack.c.l.b16 %v2898
        %v2930 = vunpack.c.l.b16 %v2899
        %v2931 = vunpack.c.l.b16 %v2900
        %v2932 = vunpack.c.l.b16 %v2901
        %v2933 = vpack.c.b16 %v2930, %v2929
        %v2934 = vpack.c.b16 %v2932, %v2931
        %v2938 = vsel %vm492, %v2920, 0
        %v2941 = vsel %vm492, %v2921, 0
        %2943 = vmatpush.bf16.msra.mxu0 0
        %2944 = vmatpush.bf16.msra.mxu0 0
        %2945 = vmatpush.bf16.msra.mxu0 0
        %2946 = vmatpush.bf16.msra.mxu0 0
        %2947 = vmatpush.bf16.msra.mxu0 0
        %2948 = vmatpush.bf16.msra.mxu0 0
        %2949 = vmatpush.bf16.msra.mxu0 %v2934
        %2950 = vmatpush.bf16.msra.mxu0 %v2933
        %2951 = vmatmul.bf16.gmra.mxu0 %v2938
        %v2952 = vpop.f32.mrf.mxu0
        %v2953 = vadd.f32 %v2923, %v2952
        %v2954 = vpop.f32.mrf.mxu0
        %v2955 = vadd.f32 %v2923, %v2954
        %2956 = vmatmul.bf16.gmra.mxu0 %v2941
        %v2957 = vpop.f32.mrf.mxu0
        %v2958 = vadd.f32 %v2923, %v2957
        %v2959 = vpop.f32.mrf.mxu0
        %v2960 = vadd.f32 %v2923, %v2959
        %2961 = vdwg.mxu0
        %v2962 = vmul.f32 %v2953, 0.5
        %v2963 = vmul.f32 %v2955, 0.5
        %v2964 = vmul.f32 %v2958, 0.5
        %v2965 = vmul.f32 %v2960, 0.5
        %v2966 = vmul.f32 %v2953, 0.044715
        %v2967 = vmul.f32 %v2955, 0.044715
        %v2968 = vmul.f32 %v2958, 0.044715
        %v2969 = vmul.f32 %v2960, 0.044715
        %v2970 = vmul.f32 %v2966, %v2953
        %v2971 = vmul.f32 %v2967, %v2955
        %v2972 = vmul.f32 %v2968, %v2958
        %v2973 = vmul.f32 %v2969, %v2960
        %v2974 = vmul.f32 %v2970, %v2953
        %v2975 = vmul.f32 %v2971, %v2955
        %v2976 = vmul.f32 %v2972, %v2958
        %v2977 = vmul.f32 %v2973, %v2960
        %v2978 = vadd.f32 %v2953, %v2974
        %v2979 = vadd.f32 %v2955, %v2975
        %v2980 = vadd.f32 %v2958, %v2976
        %v2981 = vadd.f32 %v2960, %v2977
        %v2982 = vmul.f32 %v2978, 0.7978846
        %v2983 = vmul.f32 %v2979, 0.7978846
        %v2984 = vmul.f32 %v2980, 0.7978846
        %v2985 = vmul.f32 %v2981, 0.7978846
        %v2986 = vtanh.pop %v2982
        %v2987 = vtanh.pop %v2983
        %v2988 = vtanh.pop %v2984
        %v2989 = vtanh.pop %v2985
        %v2990 = vadd.f32 %v2986, 1.0
        %v2991 = vadd.f32 %v2987, 1.0
        %v2992 = vadd.f32 %v2988, 1.0
        %v2993 = vadd.f32 %v2989, 1.0
        %v2994 = vmul.f32 %v2962, %v2990
        %v2995 = vmul.f32 %v2963, %v2991
        %v2996 = vmul.f32 %v2964, %v2992
        %v2997 = vmul.f32 %v2965, %v2993
        %v2998 = vpack.c.bf16 %v2995, %v2994
        %v2999 = vpack.c.bf16 %v2997, %v2996
        %v3001 = vperm.slane %v2919, 0
        %v3019 = vunpack.c.l.b16 %v2903
        %v3020 = vunpack.c.l.b16 %v2904
        %v3021 = vunpack.c.l.b16 %v2905
        %v3022 = vunpack.c.l.b16 %v2906
        %v3023 = vunpack.c.l.b16 %v2907
        %v3024 = vunpack.c.l.b16 %v2908
        %v3025 = vunpack.c.l.b16 %v2909
        %v3026 = vunpack.c.l.b16 %v2910
        %v3027 = vunpack.c.l.b16 %v2911
        %v3028 = vunpack.c.l.b16 %v2912
        %v3029 = vunpack.c.l.b16 %v2913
        %v3030 = vunpack.c.l.b16 %v2914
        %v3031 = vunpack.c.l.b16 %v2915
        %v3032 = vunpack.c.l.b16 %v2916
        %v3033 = vunpack.c.l.b16 %v2917
        %v3034 = vunpack.c.l.b16 %v2918
        %v3035 = vpack.c.b16 %v3020, %v3019
        %v3036 = vpack.c.b16 %v3022, %v3021
        %v3037 = vpack.c.b16 %v3024, %v3023
        %v3038 = vpack.c.b16 %v3026, %v3025
        %v3039 = vpack.c.b16 %v3028, %v3027
        %v3040 = vpack.c.b16 %v3030, %v3029
        %v3041 = vpack.c.b16 %v3032, %v3031
        %v3042 = vpack.c.b16 %v3034, %v3033
        %3051 = vmatpush.bf16.msra.mxu0 %v3042
        %3052 = vmatpush.bf16.msra.mxu0 %v3041
        %3053 = vmatpush.bf16.msra.mxu0 %v3040
        %3054 = vmatpush.bf16.msra.mxu0 %v3039
        %3055 = vmatpush.bf16.msra.mxu0 %v3038
        %3056 = vmatpush.bf16.msra.mxu0 %v3037
        %3057 = vmatpush.bf16.msra.mxu0 %v3036
        %3058 = vmatpush.bf16.msra.mxu0 %v3035
        %3059 = vmatmul.bf16.gmra.mxu0 %v2998
        %v3060 = vpop.f32.mrf.mxu0
        %v3061 = vadd.f32 %v3001, %v3060
        %v3062 = vpop.f32.mrf.mxu0
        %v3063 = vadd.f32 %v3001, %v3062
        %3064 = vmatmul.bf16.gmra.mxu0 %v2999
        %v3065 = vpop.f32.mrf.mxu0
        %v3066 = vadd.f32 %v3001, %v3065
        %v3067 = vpop.f32.mrf.mxu0
        %v3068 = vadd.f32 %v3001, %v3067
        %3069 = vdwg.mxu0
        %v3070 = vadd.f32 %v2790, %v3061
        %v3071 = vadd.f32 %v2791, %v3063
        %v3072 = vadd.f32 %v2792, %v3066
        %v3073 = vadd.f32 %v2793, %v3068
        %v3074 = vld [vmem:[#allocation2 + $0xf] sm:$0x1]
        %v3075 = vld [vmem:[#allocation2 + $0x10] sm:$0x1]
        %v3076 = vsel %vm492, %v3070, 0.0
        %3077 = vadd.xlane.f32.xlu0 %v3076
        %v3078 = vpop.xlane.xlu0 %3077
        %v3079 = vsel %vm492, %v3071, 0.0
        %3080 = vadd.xlane.f32.xlu0 %v3079
        %v3081 = vpop.xlane.xlu0 %3080
        %v3082 = vsel %vm492, %v3072, 0.0
        %3083 = vadd.xlane.f32.xlu0 %v3082
        %v3084 = vpop.xlane.xlu0 %3083
        %v3085 = vsel %vm492, %v3073, 0.0
        %3086 = vadd.xlane.f32.xlu0 %v3085
        %v3087 = vpop.xlane.xlu0 %3086
        %v3088 = vmul.f32 %v3078, %v575
        %v3089 = vmul.f32 %v3081, %v575
        %v3090 = vmul.f32 %v3084, %v575
        %v3091 = vmul.f32 %v3087, %v575
        %v3092 = vsub.f32 %v3070, %v3088
        %v3093 = vsub.f32 %v3071, %v3089
        %v3094 = vsub.f32 %v3072, %v3090
        %v3095 = vsub.f32 %v3073, %v3091
        %v3096 = vmul.f32 %v3092, %v3092
        %v3097 = vmul.f32 %v3093, %v3093
        %v3098 = vmul.f32 %v3094, %v3094
        %v3099 = vmul.f32 %v3095, %v3095
        %v3100 = vsel %vm492, %v3096, 0.0
        %3101 = vadd.xlane.f32.xlu0 %v3100
        %v3102 = vpop.xlane.xlu0 %3101
        %v3103 = vsel %vm492, %v3097, 0.0
        %3104 = vadd.xlane.f32.xlu0 %v3103
        %v3105 = vpop.xlane.xlu0 %3104
        %v3106 = vsel %vm492, %v3098, 0.0
        %3107 = vadd.xlane.f32.xlu0 %v3106
        %v3108 = vpop.xlane.xlu0 %3107
        %v3109 = vsel %vm492, %v3099, 0.0
        %3110 = vadd.xlane.f32.xlu0 %v3109
        %v3111 = vpop.xlane.xlu0 %3110
        %v3112 = vmul.f32 %v3102, %v575
        %v3113 = vmul.f32 %v3105, %v575
        %v3114 = vmul.f32 %v3108, %v575
        %v3115 = vmul.f32 %v3111, %v575
        %v3116 = vadd.f32 %v3112, 1e-05
        %v3117 = vadd.f32 %v3113, 1e-05
        %v3118 = vadd.f32 %v3114, 1e-05
        %v3119 = vadd.f32 %v3115, 1e-05
        %v3120 = vrsqrt.pop %v3116
        %v3121 = vmul.f32 %v3120, %v3116
        %v3122 = vmul.f32 %v3121, %v3120
        %v3123 = vmul.f32 0.5, %v3122
        %v3124 = vsub.f32 1.5, %v3123
        %v3125 = vmul.f32 %v3120, %v3124
        %vm3126 = vweird.f32 %v3116
        %vm3127 = vweird.f32 %v3120
        %vm3128 = vmor %vm3126, %vm3127
        %v3129 = vsel %vm3128, %v3120, %v3125
        %v3130 = vrsqrt.pop %v3117
        %v3131 = vmul.f32 %v3130, %v3117
        %v3132 = vmul.f32 %v3131, %v3130
        %v3133 = vmul.f32 0.5, %v3132
        %v3134 = vsub.f32 1.5, %v3133
        %v3135 = vmul.f32 %v3130, %v3134
        %vm3136 = vweird.f32 %v3117
        %vm3137 = vweird.f32 %v3130
        %vm3138 = vmor %vm3136, %vm3137
        %v3139 = vsel %vm3138, %v3130, %v3135
        %v3140 = vrsqrt.pop %v3118
        %v3141 = vmul.f32 %v3140, %v3118
        %v3142 = vmul.f32 %v3141, %v3140
        %v3143 = vmul.f32 0.5, %v3142
        %v3144 = vsub.f32 1.5, %v3143
        %v3145 = vmul.f32 %v3140, %v3144
        %vm3146 = vweird.f32 %v3118
        %vm3147 = vweird.f32 %v3140
        %vm3148 = vmor %vm3146, %vm3147
        %v3149 = vsel %vm3148, %v3140, %v3145
        %v3150 = vrsqrt.pop %v3119
        %v3151 = vmul.f32 %v3150, %v3119
        %v3152 = vmul.f32 %v3151, %v3150
        %v3153 = vmul.f32 0.5, %v3152
        %v3154 = vsub.f32 1.5, %v3153
        %v3155 = vmul.f32 %v3150, %v3154
        %vm3156 = vweird.f32 %v3119
        %vm3157 = vweird.f32 %v3150
        %vm3158 = vmor %vm3156, %vm3157
        %v3159 = vsel %vm3158, %v3150, %v3155
        %v3160 = vmul.f32 %v3092, %v3129
        %v3161 = vmul.f32 %v3093, %v3139
        %v3162 = vmul.f32 %v3094, %v3149
        %v3163 = vmul.f32 %v3095, %v3159
        %v3165 = vperm.slane %v3074, 0
        %v3167 = vmul.f32 %v3160, %v3165
        %v3168 = vmul.f32 %v3161, %v3165
        %v3169 = vmul.f32 %v3162, %v3165
        %v3170 = vmul.f32 %v3163, %v3165
        %v3172 = vperm.slane %v3075, 0
        %v3174 = vadd.f32 %v3167, %v3172
        %v3175 = vadd.f32 %v3168, %v3172
        %v3176 = vadd.f32 %v3169, %v3172
        %v3177 = vadd.f32 %v3170, %v3172
        %v3178 = vld [vmem:[%s4 + $0x38] sm:$0xff]
        %v3179 = vld [vmem:[%s4 + $0x40] sm:$0xff]
        %v3180 = vld [vmem:[%s4 + $0x48] sm:$0xff]
        %v3181 = vld [vmem:[%s4 + $0xd8] sm:$0xff]
        %v3182 = vld [vmem:[%s4 + $0xe0] sm:$0xff]
        %v3183 = vld [vmem:[%s4 + $0xe8] sm:$0xff]
        %v3184 = vld [vmem:[%s4 + $0x178] sm:$0xff]
        %v3185 = vld [vmem:[%s4 + $0x180] sm:$0xff]
        %v3186 = vld [vmem:[%s4 + $0x188] sm:$0xff]
        %v3187 = vld [vmem:[%s4 + $0x218] sm:$0xff]
        %v3188 = vld [vmem:[%s4 + $0x220] sm:$0xff]
        %v3189 = vld [vmem:[%s4 + $0x228] sm:$0xff]
        %v3190 = vpack.c.bf16 %v3175, %v3174
        %v3191 = vpack.c.bf16 %v3177, %v3176
        %v3204 = vunpack.c.l.b16 %v3178
        %v3205 = vunpack.c.h.b16 %v3178
        %v3206 = vunpack.c.l.b16 %v3179
        %v3207 = vunpack.c.h.b16 %v3179
        %v3208 = vunpack.c.l.b16 %v3180
        %v3209 = vunpack.c.h.b16 %v3180
        %v3210 = vunpack.c.l.b16 %v3181
        %v3211 = vunpack.c.h.b16 %v3181
        %v3212 = vunpack.c.l.b16 %v3182
        %v3213 = vunpack.c.h.b16 %v3182
        %v3214 = vunpack.c.l.b16 %v3183
        %v3215 = vunpack.c.h.b16 %v3183
        %v3216 = vunpack.c.l.b16 %v3184
        %v3217 = vunpack.c.h.b16 %v3184
        %v3218 = vunpack.c.l.b16 %v3185
        %v3219 = vunpack.c.h.b16 %v3185
        %v3220 = vunpack.c.l.b16 %v3186
        %v3221 = vunpack.c.h.b16 %v3186
        %v3222 = vunpack.c.l.b16 %v3187
        %v3223 = vunpack.c.h.b16 %v3187
        %v3224 = vunpack.c.l.b16 %v3188
        %v3225 = vunpack.c.h.b16 %v3188
        %v3226 = vunpack.c.l.b16 %v3189
        %v3227 = vunpack.c.h.b16 %v3189
        %v3228 = vpack.c.b16 %v3210, %v3204
        %v3229 = vpack.c.b16 %v3211, %v3205
        %v3230 = vpack.c.b16 %v3212, %v3206
        %v3231 = vpack.c.b16 %v3213, %v3207
        %v3232 = vpack.c.b16 %v3214, %v3208
        %v3233 = vpack.c.b16 %v3215, %v3209
        %v3234 = vpack.c.b16 %v3222, %v3216
        %v3235 = vpack.c.b16 %v3223, %v3217
        %v3236 = vpack.c.b16 %v3224, %v3218
        %v3237 = vpack.c.b16 %v3225, %v3219
        %v3238 = vpack.c.b16 %v3226, %v3220
        %v3239 = vpack.c.b16 %v3227, %v3221
        %v3253 = vsel %vm492, %v3190, 0
        %v3256 = vsel %vm492, %v3191, 0
        %3258 = vmatpush.bf16.msra.mxu0 0
        %3259 = vmatpush.bf16.msra.mxu0 0
        %3260 = vmatpush.bf16.msra.mxu0 0
        %3261 = vmatpush.bf16.msra.mxu0 0
        %3262 = vmatpush.bf16.msra.mxu0 0
        %3263 = vmatpush.bf16.msra.mxu0 0
        %3264 = vmatpush.bf16.msra.mxu0 %v3234
        %3265 = vmatpush.bf16.msra.mxu0 %v3228
        %3266 = vmatmul.bf16.gmra.mxu0 %v3253
        %v3267 = vpop.f32.mrf.mxu0
        %v3268 = vadd.f32 0.0, %v3267
        %v3269 = vpop.f32.mrf.mxu0
        %v3270 = vadd.f32 0.0, %v3269
        %3271 = vmatmul.bf16.gmra.mxu0 %v3256
        %v3272 = vpop.f32.mrf.mxu0
        %v3273 = vadd.f32 0.0, %v3272
        %v3274 = vpop.f32.mrf.mxu0
        %v3275 = vadd.f32 0.0, %v3274
        %3276 = vdwg.mxu0
        %3277 = vmatpush.bf16.msra.mxu0 0
        %3278 = vmatpush.bf16.msra.mxu0 0
        %3279 = vmatpush.bf16.msra.mxu0 0
        %3280 = vmatpush.bf16.msra.mxu0 0
        %3281 = vmatpush.bf16.msra.mxu0 0
        %3282 = vmatpush.bf16.msra.mxu0 0
        %3283 = vmatpush.bf16.msra.mxu0 %v3235
        %3284 = vmatpush.bf16.msra.mxu0 %v3229
        %3285 = vmatmul.bf16.gmra.mxu0 %v3253
        %v3286 = vpop.f32.mrf.mxu0
        %v3287 = vadd.f32 0.0, %v3286
        %v3288 = vpop.f32.mrf.mxu0
        %v3289 = vadd.f32 0.0, %v3288
        %3290 = vmatmul.bf16.gmra.mxu0 %v3256
        %v3291 = vpop.f32.mrf.mxu0
        %v3292 = vadd.f32 0.0, %v3291
        %v3293 = vpop.f32.mrf.mxu0
        %v3294 = vadd.f32 0.0, %v3293
        %3295 = vdwg.mxu0
        %3296 = vmatpush.bf16.msra.mxu0 0
        %3297 = vmatpush.bf16.msra.mxu0 0
        %3298 = vmatpush.bf16.msra.mxu0 0
        %3299 = vmatpush.bf16.msra.mxu0 0
        %3300 = vmatpush.bf16.msra.mxu0 0
        %3301 = vmatpush.bf16.msra.mxu0 0
        %3302 = vmatpush.bf16.msra.mxu0 %v3236
        %3303 = vmatpush.bf16.msra.mxu0 %v3230
        %3304 = vmatmul.bf16.gmra.mxu0 %v3253
        %v3305 = vpop.f32.mrf.mxu0
        %v3306 = vadd.f32 0.0, %v3305
        %v3307 = vpop.f32.mrf.mxu0
        %v3308 = vadd.f32 0.0, %v3307
        %3309 = vmatmul.bf16.gmra.mxu0 %v3256
        %v3310 = vpop.f32.mrf.mxu0
        %v3311 = vadd.f32 0.0, %v3310
        %v3312 = vpop.f32.mrf.mxu0
        %v3313 = vadd.f32 0.0, %v3312
        %3314 = vdwg.mxu0
        %3315 = vmatpush.bf16.msra.mxu0 0
        %3316 = vmatpush.bf16.msra.mxu0 0
        %3317 = vmatpush.bf16.msra.mxu0 0
        %3318 = vmatpush.bf16.msra.mxu0 0
        %3319 = vmatpush.bf16.msra.mxu0 0
        %3320 = vmatpush.bf16.msra.mxu0 0
        %3321 = vmatpush.bf16.msra.mxu0 %v3237
        %3322 = vmatpush.bf16.msra.mxu0 %v3231
        %3323 = vmatmul.bf16.gmra.mxu0 %v3253
        %v3324 = vpop.f32.mrf.mxu0
        %v3325 = vadd.f32 0.0, %v3324
        %v3326 = vpop.f32.mrf.mxu0
        %v3327 = vadd.f32 0.0, %v3326
        %3328 = vmatmul.bf16.gmra.mxu0 %v3256
        %v3329 = vpop.f32.mrf.mxu0
        %v3330 = vadd.f32 0.0, %v3329
        %v3331 = vpop.f32.mrf.mxu0
        %v3332 = vadd.f32 0.0, %v3331
        %3333 = vdwg.mxu0
        %3334 = vmatpush.bf16.msra.mxu0 0
        %3335 = vmatpush.bf16.msra.mxu0 0
        %3336 = vmatpush.bf16.msra.mxu0 0
        %3337 = vmatpush.bf16.msra.mxu0 0
        %3338 = vmatpush.bf16.msra.mxu0 0
        %3339 = vmatpush.bf16.msra.mxu0 0
        %3340 = vmatpush.bf16.msra.mxu0 %v3238
        %3341 = vmatpush.bf16.msra.mxu0 %v3232
        %3342 = vmatmul.bf16.gmra.mxu0 %v3253
        %v3343 = vpop.f32.mrf.mxu0
        %v3344 = vadd.f32 0.0, %v3343
        %v3345 = vpop.f32.mrf.mxu0
        %v3346 = vadd.f32 0.0, %v3345
        %3347 = vmatmul.bf16.gmra.mxu0 %v3256
        %v3348 = vpop.f32.mrf.mxu0
        %v3349 = vadd.f32 0.0, %v3348
        %v3350 = vpop.f32.mrf.mxu0
        %v3351 = vadd.f32 0.0, %v3350
        %3352 = vdwg.mxu0
        %3353 = vmatpush.bf16.msra.mxu0 0
        %3354 = vmatpush.bf16.msra.mxu0 0
        %3355 = vmatpush.bf16.msra.mxu0 0
        %3356 = vmatpush.bf16.msra.mxu0 0
        %3357 = vmatpush.bf16.msra.mxu0 0
        %3358 = vmatpush.bf16.msra.mxu0 0
        %3359 = vmatpush.bf16.msra.mxu0 %v3239
        %3360 = vmatpush.bf16.msra.mxu0 %v3233
        %3361 = vmatmul.bf16.gmra.mxu0 %v3253
        %v3362 = vpop.f32.mrf.mxu0
        %v3363 = vadd.f32 0.0, %v3362
        %v3364 = vpop.f32.mrf.mxu0
        %v3365 = vadd.f32 0.0, %v3364
        %3366 = vmatmul.bf16.gmra.mxu0 %v3256
        %v3367 = vpop.f32.mrf.mxu0
        %v3368 = vadd.f32 0.0, %v3367
        %v3369 = vpop.f32.mrf.mxu0
        %v3370 = vadd.f32 0.0, %v3369
        %3371 = vdwg.mxu0
        %v3372 = vld [vmem:[#allocation7 + $0x8] sm:$0xf]
        %v3373 = vld [vmem:[#allocation7 + $0x18] sm:$0xf]
        %v3374 = vld [vmem:[#allocation7 + $0x28] sm:$0xf]
        %v3375 = vld [vmem:[#allocation7 + $0x38] sm:$0xf]
        %v3376 = vld [vmem:[#allocation7 + $0x48] sm:$0xf]
        %v3377 = vld [vmem:[#allocation7 + $0x58] sm:$0xf]
        %v3378 = vld [vmem:[#allocation7 + $0x68] sm:$0xf]
        %v3379 = vld [vmem:[#allocation7 + $0x78] sm:$0xf]
        %v3380 = vld [vmem:[#allocation7 + $0x88] sm:$0xf]
        %v3381 = vld [vmem:[#allocation7 + $0x98] sm:$0xf]
        %v3382 = vld [vmem:[#allocation7 + $0xa8] sm:$0xf]
        %v3383 = vld [vmem:[#allocation7 + $0xb8] sm:$0xf]
        %v3384 = vld [vmem:[#allocation7 + $0xc8] sm:$0xf]
        %v3385 = vld [vmem:[#allocation7 + $0xd8] sm:$0xf]
        %v3386 = vld [vmem:[#allocation7 + $0xe8] sm:$0xf]
        %v3387 = vld [vmem:[#allocation7 + $0xf8] sm:$0xf]
        %v3388 = vld [vmem:[#allocation7 + $0x108] sm:$0xf]
        %v3389 = vld [vmem:[#allocation7 + $0x118] sm:$0xf]
        %v3390 = vld [vmem:[#allocation7 + $0x128] sm:$0xf]
        %v3391 = vld [vmem:[#allocation7 + $0x138] sm:$0xf]
        %v3392 = vld [vmem:[#allocation7 + $0x148] sm:$0xf]
        %v3393 = vld [vmem:[#allocation7 + $0x158] sm:$0xf]
        %v3394 = vld [vmem:[#allocation7 + $0x168] sm:$0xf]
        %v3395 = vld [vmem:[#allocation7 + $0x178] sm:$0xf]
        %v3396 = vld [vmem:[#allocation7 + $0x188] sm:$0xf]
        %v3397 = vld [vmem:[#allocation7 + $0x198] sm:$0xf]
        %v3398 = vld [vmem:[#allocation7 + $0x1a8] sm:$0xf]
        %v3399 = vld [vmem:[#allocation7 + $0x1b8] sm:$0xf]
        %v3400 = vld [vmem:[#allocation7 + $0x1c8] sm:$0xf]
        %v3401 = vld [vmem:[#allocation7 + $0x1d8] sm:$0xf]
        %v3402 = vld [vmem:[#allocation7 + $0x1e8] sm:$0xf]
        %v3403 = vld [vmem:[#allocation7 + $0x1f8] sm:$0xf]
        %v3404 = vld [vmem:[#allocation2 + $0x11] sm:$0x1]
        %v3405 = vpack.c.bf16 %v3270, %v3268
        %v3406 = vpack.c.bf16 %v3275, %v3273
        %v3407 = vpack.c.bf16 %v3308, %v3306
        %v3408 = vpack.c.bf16 %v3313, %v3311
        %v3410 = vsel %vm497, %v3405, 0
        %v3413 = vsel %vm497, %v3406, 0
        %v3416 = vsel %vm497, %v3407, 0
        %v3419 = vsel %vm497, %v3408, 0
        %3421 = vmatpush.bf16.xpose.msra.mxu0 0
        %3422 = vmatpush.bf16.xpose.msra.mxu0 0
        %3423 = vmatpush.bf16.xpose.msra.mxu0 0
        %3424 = vmatpush.bf16.xpose.msra.mxu0 0
        %3425 = vmatpush.bf16.xpose.msra.mxu0 0
        %3426 = vmatpush.bf16.xpose.msra.mxu0 0
        %3427 = vmatpush.bf16.xpose.msra.mxu0 %v3419
        %3428 = vmatpush.bf16.xpose.msra.mxu0 %v3416
        %3429 = vmatmul.bf16.gmra.mxu0 %v3410
        %v3430 = vpop.f32.mrf.mxu0
        %v3431 = vadd.f32 %v448, %v3430
        %v3432 = vpop.f32.mrf.mxu0
        %v3433 = vadd.f32 %v449, %v3432
        %3434 = vmatmul.bf16.gmra.mxu0 %v3413
        %v3435 = vpop.f32.mrf.mxu0
        %v3436 = vadd.f32 %v450, %v3435
        %v3437 = vpop.f32.mrf.mxu0
        %v3438 = vadd.f32 %v451, %v3437
        %3439 = vdwg.mxu0
        %v3440 = vsel %vm492, %v3431, -inf
        %3441 = vmax.xlane.f32.xlu0 %v3440
        %v3442 = vpop.xlane.xlu0 %3441
        %v3443 = vsel %vm492, %v3433, -inf
        %3444 = vmax.xlane.f32.xlu0 %v3443
        %v3445 = vpop.xlane.xlu0 %3444
        %v3446 = vsel %vm492, %v3436, -inf
        %3447 = vmax.xlane.f32.xlu0 %v3446
        %v3448 = vpop.xlane.xlu0 %3447
        %v3449 = vsel %vm492, %v3438, -inf
        %3450 = vmax.xlane.f32.xlu0 %v3449
        %v3451 = vpop.xlane.xlu0 %3450
        %v3452 = vsub.f32 %v3431, %v3442
        %v3453 = vsub.f32 %v3433, %v3445
        %v3454 = vsub.f32 %v3436, %v3448
        %v3455 = vsub.f32 %v3438, %v3451
        %v3456 = vmul.f32 %v3452, 1.442695
        %v3457 = vpow.pop %v3456
        %v3458 = vmul.f32 %v3453, 1.442695
        %v3459 = vpow.pop %v3458
        %v3460 = vmul.f32 %v3454, 1.442695
        %v3461 = vpow.pop %v3460
        %v3462 = vmul.f32 %v3455, 1.442695
        %v3463 = vpow.pop %v3462
        %v3464 = vsel %vm492, %v3457, 0.0
        %3465 = vadd.xlane.f32.xlu0 %v3464
        %v3466 = vpop.xlane.xlu0 %3465
        %v3467 = vsel %vm492, %v3459, 0.0
        %3468 = vadd.xlane.f32.xlu0 %v3467
        %v3469 = vpop.xlane.xlu0 %3468
        %v3470 = vsel %vm492, %v3461, 0.0
        %3471 = vadd.xlane.f32.xlu0 %v3470
        %v3472 = vpop.xlane.xlu0 %3471
        %v3473 = vsel %vm492, %v3463, 0.0
        %3474 = vadd.xlane.f32.xlu0 %v3473
        %v3475 = vpop.xlane.xlu0 %3474
        %v3476 = vrcp.pop %v3466
        %v3477 = vrcp.pop %v3469
        %v3478 = vrcp.pop %v3472
        %v3479 = vrcp.pop %v3475
        %v3480 = vmul.f32 %v3457, %v3476
        %v3481 = vmul.f32 %v3459, %v3477
        %v3482 = vmul.f32 %v3461, %v3478
        %v3483 = vmul.f32 %v3463, %v3479
        %v3484 = vpack.c.bf16 %v3481, %v3480
        %v3485 = vpack.c.bf16 %v3483, %v3482
        %v3486 = vpack.c.bf16 %v3346, %v3344
        %v3487 = vpack.c.bf16 %v3351, %v3349
        %v3489 = vsel %vm492, %v3484, 0
        %v3492 = vsel %vm492, %v3485, 0
        %3494 = vmatpush.bf16.msra.mxu0 0
        %3495 = vmatpush.bf16.msra.mxu0 0
        %3496 = vmatpush.bf16.msra.mxu0 0
        %3497 = vmatpush.bf16.msra.mxu0 0
        %3498 = vmatpush.bf16.msra.mxu0 0
        %3499 = vmatpush.bf16.msra.mxu0 0
        %3500 = vmatpush.bf16.msra.mxu0 %v3487
        %3501 = vmatpush.bf16.msra.mxu0 %v3486
        %3502 = vmatmul.bf16.gmra.mxu0 %v3489
        %v3503 = vpop.f32.mrf.mxu0
        %v3504 = vadd.f32 0.0, %v3503
        %v3505 = vpop.f32.mrf.mxu0
        %v3506 = vadd.f32 0.0, %v3505
        %3507 = vmatmul.bf16.gmra.mxu0 %v3492
        %v3508 = vpop.f32.mrf.mxu0
        %v3509 = vadd.f32 0.0, %v3508
        %v3510 = vpop.f32.mrf.mxu0
        %v3511 = vadd.f32 0.0, %v3510
        %3512 = vdwg.mxu0
        %3515 = vrot.lane.b32.xlu0 %v3405, 64
        %v3516 = vpop.permute.xlu0 %3515
        %3517 = vrot.lane.b32.xlu0 %v3406, 64
        %v3518 = vpop.permute.xlu0 %3517
        %3521 = vrot.lane.b32.xlu0 %v3407, 64
        %v3522 = vpop.permute.xlu0 %3521
        %3523 = vrot.lane.b32.xlu0 %v3408, 64
        %v3524 = vpop.permute.xlu0 %3523
        %v3526 = vsel %vm497, %v3516, 0
        %v3529 = vsel %vm497, %v3518, 0
        %v3532 = vsel %vm497, %v3522, 0
        %v3535 = vsel %vm497, %v3524, 0
        %3537 = vmatpush.bf16.xpose.msra.mxu0 0
        %3538 = vmatpush.bf16.xpose.msra.mxu0 0
        %3539 = vmatpush.bf16.xpose.msra.mxu0 0
        %3540 = vmatpush.bf16.xpose.msra.mxu0 0
        %3541 = vmatpush.bf16.xpose.msra.mxu0 0
        %3542 = vmatpush.bf16.xpose.msra.mxu0 0
        %3543 = vmatpush.bf16.xpose.msra.mxu0 %v3535
        %3544 = vmatpush.bf16.xpose.msra.mxu0 %v3532
        %3545 = vmatmul.bf16.gmra.mxu0 %v3526
        %v3546 = vpop.f32.mrf.mxu0
        %v3547 = vadd.f32 %v448, %v3546
        %v3548 = vpop.f32.mrf.mxu0
        %v3549 = vadd.f32 %v449, %v3548
        %3550 = vmatmul.bf16.gmra.mxu0 %v3529
        %v3551 = vpop.f32.mrf.mxu0
        %v3552 = vadd.f32 %v450, %v3551
        %v3553 = vpop.f32.mrf.mxu0
        %v3554 = vadd.f32 %v451, %v3553
        %3555 = vdwg.mxu0
        %v3556 = vsel %vm492, %v3547, -inf
        %3557 = vmax.xlane.f32.xlu0 %v3556
        %v3558 = vpop.xlane.xlu0 %3557
        %v3559 = vsel %vm492, %v3549, -inf
        %3560 = vmax.xlane.f32.xlu0 %v3559
        %v3561 = vpop.xlane.xlu0 %3560
        %v3562 = vsel %vm492, %v3552, -inf
        %3563 = vmax.xlane.f32.xlu0 %v3562
        %v3564 = vpop.xlane.xlu0 %3563
        %v3565 = vsel %vm492, %v3554, -inf
        %3566 = vmax.xlane.f32.xlu0 %v3565
        %v3567 = vpop.xlane.xlu0 %3566
        %v3568 = vsub.f32 %v3547, %v3558
        %v3569 = vsub.f32 %v3549, %v3561
        %v3570 = vsub.f32 %v3552, %v3564
        %v3571 = vsub.f32 %v3554, %v3567
        %v3572 = vmul.f32 %v3568, 1.442695
        %v3573 = vpow.pop %v3572
        %v3574 = vmul.f32 %v3569, 1.442695
        %v3575 = vpow.pop %v3574
        %v3576 = vmul.f32 %v3570, 1.442695
        %v3577 = vpow.pop %v3576
        %v3578 = vmul.f32 %v3571, 1.442695
        %v3579 = vpow.pop %v3578
        %v3580 = vsel %vm492, %v3573, 0.0
        %3581 = vadd.xlane.f32.xlu0 %v3580
        %v3582 = vpop.xlane.xlu0 %3581
        %v3583 = vsel %vm492, %v3575, 0.0
        %3584 = vadd.xlane.f32.xlu0 %v3583
        %v3585 = vpop.xlane.xlu0 %3584
        %v3586 = vsel %vm492, %v3577, 0.0
        %3587 = vadd.xlane.f32.xlu0 %v3586
        %v3588 = vpop.xlane.xlu0 %3587
        %v3589 = vsel %vm492, %v3579, 0.0
        %3590 = vadd.xlane.f32.xlu0 %v3589
        %v3591 = vpop.xlane.xlu0 %3590
        %v3592 = vrcp.pop %v3582
        %v3593 = vrcp.pop %v3585
        %v3594 = vrcp.pop %v3588
        %v3595 = vrcp.pop %v3591
        %v3596 = vmul.f32 %v3573, %v3592
        %v3597 = vmul.f32 %v3575, %v3593
        %v3598 = vmul.f32 %v3577, %v3594
        %v3599 = vmul.f32 %v3579, %v3595
        %v3600 = vpack.c.bf16 %v3597, %v3596
        %v3601 = vpack.c.bf16 %v3599, %v3598
        %3604 = vrot.lane.b32.xlu0 %v3486, 64
        %v3605 = vpop.permute.xlu0 %3604
        %3606 = vrot.lane.b32.xlu0 %v3487, 64
        %v3607 = vpop.permute.xlu0 %3606
        %v3611 = vsel %vm492, %v3600, 0
        %v3614 = vsel %vm492, %v3601, 0
        %3616 = vmatpush.bf16.msra.mxu0 0
        %3617 = vmatpush.bf16.msra.mxu0 0
        %3618 = vmatpush.bf16.msra.mxu0 0
        %3619 = vmatpush.bf16.msra.mxu0 0
        %3620 = vmatpush.bf16.msra.mxu0 0
        %3621 = vmatpush.bf16.msra.mxu0 0
        %3622 = vmatpush.bf16.msra.mxu0 %v3607
        %3623 = vmatpush.bf16.msra.mxu0 %v3605
        %3624 = vmatmul.bf16.gmra.mxu0 %v3611
        %v3625 = vpop.f32.mrf.mxu0
        %v3626 = vadd.f32 0.0, %v3625
        %v3627 = vpop.f32.mrf.mxu0
        %v3628 = vadd.f32 0.0, %v3627
        %3629 = vmatmul.bf16.gmra.mxu0 %v3614
        %v3630 = vpop.f32.mrf.mxu0
        %v3631 = vadd.f32 0.0, %v3630
        %v3632 = vpop.f32.mrf.mxu0
        %v3633 = vadd.f32 0.0, %v3632
        %3634 = vdwg.mxu0
        %v3635 = vpack.c.bf16 %v3289, %v3287
        %v3636 = vpack.c.bf16 %v3294, %v3292
        %v3637 = vpack.c.bf16 %v3327, %v3325
        %v3638 = vpack.c.bf16 %v3332, %v3330
        %v3640 = vsel %vm497, %v3635, 0
        %v3643 = vsel %vm497, %v3636, 0
        %v3646 = vsel %vm497, %v3637, 0
        %v3649 = vsel %vm497, %v3638, 0
        %3651 = vmatpush.bf16.xpose.msra.mxu0 0
        %3652 = vmatpush.bf16.xpose.msra.mxu0 0
        %3653 = vmatpush.bf16.xpose.msra.mxu0 0
        %3654 = vmatpush.bf16.xpose.msra.mxu0 0
        %3655 = vmatpush.bf16.xpose.msra.mxu0 0
        %3656 = vmatpush.bf16.xpose.msra.mxu0 0
        %3657 = vmatpush.bf16.xpose.msra.mxu0 %v3649
        %3658 = vmatpush.bf16.xpose.msra.mxu0 %v3646
        %3659 = vmatmul.bf16.gmra.mxu0 %v3640
        %v3660 = vpop.f32.mrf.mxu0
        %v3661 = vadd.f32 %v448, %v3660
        %v3662 = vpop.f32.mrf.mxu0
        %v3663 = vadd.f32 %v449, %v3662
        %3664 = vmatmul.bf16.gmra.mxu0 %v3643
        %v3665 = vpop.f32.mrf.mxu0
        %v3666 = vadd.f32 %v450, %v3665
        %v3667 = vpop.f32.mrf.mxu0
        %v3668 = vadd.f32 %v451, %v3667
        %3669 = vdwg.mxu0
        %v3670 = vsel %vm492, %v3661, -inf
        %3671 = vmax.xlane.f32.xlu0 %v3670
        %v3672 = vpop.xlane.xlu0 %3671
        %v3673 = vsel %vm492, %v3663, -inf
        %3674 = vmax.xlane.f32.xlu0 %v3673
        %v3675 = vpop.xlane.xlu0 %3674
        %v3676 = vsel %vm492, %v3666, -inf
        %3677 = vmax.xlane.f32.xlu0 %v3676
        %v3678 = vpop.xlane.xlu0 %3677
        %v3679 = vsel %vm492, %v3668, -inf
        %3680 = vmax.xlane.f32.xlu0 %v3679
        %v3681 = vpop.xlane.xlu0 %3680
        %v3682 = vsub.f32 %v3661, %v3672
        %v3683 = vsub.f32 %v3663, %v3675
        %v3684 = vsub.f32 %v3666, %v3678
        %v3685 = vsub.f32 %v3668, %v3681
        %v3686 = vmul.f32 %v3682, 1.442695
        %v3687 = vpow.pop %v3686
        %v3688 = vmul.f32 %v3683, 1.442695
        %v3689 = vpow.pop %v3688
        %v3690 = vmul.f32 %v3684, 1.442695
        %v3691 = vpow.pop %v3690
        %v3692 = vmul.f32 %v3685, 1.442695
        %v3693 = vpow.pop %v3692
        %v3694 = vsel %vm492, %v3687, 0.0
        %3695 = vadd.xlane.f32.xlu0 %v3694
        %v3696 = vpop.xlane.xlu0 %3695
        %v3697 = vsel %vm492, %v3689, 0.0
        %3698 = vadd.xlane.f32.xlu0 %v3697
        %v3699 = vpop.xlane.xlu0 %3698
        %v3700 = vsel %vm492, %v3691, 0.0
        %3701 = vadd.xlane.f32.xlu0 %v3700
        %v3702 = vpop.xlane.xlu0 %3701
        %v3703 = vsel %vm492, %v3693, 0.0
        %3704 = vadd.xlane.f32.xlu0 %v3703
        %v3705 = vpop.xlane.xlu0 %3704
        %v3706 = vrcp.pop %v3696
        %v3707 = vrcp.pop %v3699
        %v3708 = vrcp.pop %v3702
        %v3709 = vrcp.pop %v3705
        %v3710 = vmul.f32 %v3687, %v3706
        %v3711 = vmul.f32 %v3689, %v3707
        %v3712 = vmul.f32 %v3691, %v3708
        %v3713 = vmul.f32 %v3693, %v3709
        %v3714 = vpack.c.bf16 %v3711, %v3710
        %v3715 = vpack.c.bf16 %v3713, %v3712
        %v3716 = vpack.c.bf16 %v3365, %v3363
        %v3717 = vpack.c.bf16 %v3370, %v3368
        %v3719 = vsel %vm492, %v3714, 0
        %v3722 = vsel %vm492, %v3715, 0
        %3724 = vmatpush.bf16.msra.mxu0 0
        %3725 = vmatpush.bf16.msra.mxu0 0
        %3726 = vmatpush.bf16.msra.mxu0 0
        %3727 = vmatpush.bf16.msra.mxu0 0
        %3728 = vmatpush.bf16.msra.mxu0 0
        %3729 = vmatpush.bf16.msra.mxu0 0
        %3730 = vmatpush.bf16.msra.mxu0 %v3717
        %3731 = vmatpush.bf16.msra.mxu0 %v3716
        %3732 = vmatmul.bf16.gmra.mxu0 %v3719
        %v3733 = vpop.f32.mrf.mxu0
        %v3734 = vadd.f32 0.0, %v3733
        %v3735 = vpop.f32.mrf.mxu0
        %v3736 = vadd.f32 0.0, %v3735
        %3737 = vmatmul.bf16.gmra.mxu0 %v3722
        %v3738 = vpop.f32.mrf.mxu0
        %v3739 = vadd.f32 0.0, %v3738
        %v3740 = vpop.f32.mrf.mxu0
        %v3741 = vadd.f32 0.0, %v3740
        %3742 = vdwg.mxu0
        %3745 = vrot.lane.b32.xlu0 %v3635, 64
        %v3746 = vpop.permute.xlu0 %3745
        %3747 = vrot.lane.b32.xlu0 %v3636, 64
        %v3748 = vpop.permute.xlu0 %3747
        %3751 = vrot.lane.b32.xlu0 %v3637, 64
        %v3752 = vpop.permute.xlu0 %3751
        %3753 = vrot.lane.b32.xlu0 %v3638, 64
        %v3754 = vpop.permute.xlu0 %3753
        %v3756 = vsel %vm497, %v3746, 0
        %v3759 = vsel %vm497, %v3748, 0
        %v3762 = vsel %vm497, %v3752, 0
        %v3765 = vsel %vm497, %v3754, 0
        %3767 = vmatpush.bf16.xpose.msra.mxu0 0
        %3768 = vmatpush.bf16.xpose.msra.mxu0 0
        %3769 = vmatpush.bf16.xpose.msra.mxu0 0
        %3770 = vmatpush.bf16.xpose.msra.mxu0 0
        %3771 = vmatpush.bf16.xpose.msra.mxu0 0
        %3772 = vmatpush.bf16.xpose.msra.mxu0 0
        %3773 = vmatpush.bf16.xpose.msra.mxu0 %v3765
        %3774 = vmatpush.bf16.xpose.msra.mxu0 %v3762
        %3775 = vmatmul.bf16.gmra.mxu0 %v3756
        %v3776 = vpop.f32.mrf.mxu0
        %v3777 = vadd.f32 %v448, %v3776
        %v3778 = vpop.f32.mrf.mxu0
        %v3779 = vadd.f32 %v449, %v3778
        %3780 = vmatmul.bf16.gmra.mxu0 %v3759
        %v3781 = vpop.f32.mrf.mxu0
        %v3782 = vadd.f32 %v450, %v3781
        %v3783 = vpop.f32.mrf.mxu0
        %v3784 = vadd.f32 %v451, %v3783
        %3785 = vdwg.mxu0
        %v3786 = vsel %vm492, %v3777, -inf
        %3787 = vmax.xlane.f32.xlu0 %v3786
        %v3788 = vpop.xlane.xlu0 %3787
        %v3789 = vsel %vm492, %v3779, -inf
        %3790 = vmax.xlane.f32.xlu0 %v3789
        %v3791 = vpop.xlane.xlu0 %3790
        %v3792 = vsel %vm492, %v3782, -inf
        %3793 = vmax.xlane.f32.xlu0 %v3792
        %v3794 = vpop.xlane.xlu0 %3793
        %v3795 = vsel %vm492, %v3784, -inf
        %3796 = vmax.xlane.f32.xlu0 %v3795
        %v3797 = vpop.xlane.xlu0 %3796
        %v3798 = vsub.f32 %v3777, %v3788
        %v3799 = vsub.f32 %v3779, %v3791
        %v3800 = vsub.f32 %v3782, %v3794
        %v3801 = vsub.f32 %v3784, %v3797
        %v3802 = vmul.f32 %v3798, 1.442695
        %v3803 = vpow.pop %v3802
        %v3804 = vmul.f32 %v3799, 1.442695
        %v3805 = vpow.pop %v3804
        %v3806 = vmul.f32 %v3800, 1.442695
        %v3807 = vpow.pop %v3806
        %v3808 = vmul.f32 %v3801, 1.442695
        %v3809 = vpow.pop %v3808
        %v3810 = vsel %vm492, %v3803, 0.0
        %3811 = vadd.xlane.f32.xlu0 %v3810
        %v3812 = vpop.xlane.xlu0 %3811
        %v3813 = vsel %vm492, %v3805, 0.0
        %3814 = vadd.xlane.f32.xlu0 %v3813
        %v3815 = vpop.xlane.xlu0 %3814
        %v3816 = vsel %vm492, %v3807, 0.0
        %3817 = vadd.xlane.f32.xlu0 %v3816
        %v3818 = vpop.xlane.xlu0 %3817
        %v3819 = vsel %vm492, %v3809, 0.0
        %3820 = vadd.xlane.f32.xlu0 %v3819
        %v3821 = vpop.xlane.xlu0 %3820
        %v3822 = vrcp.pop %v3812
        %v3823 = vrcp.pop %v3815
        %v3824 = vrcp.pop %v3818
        %v3825 = vrcp.pop %v3821
        %v3826 = vmul.f32 %v3803, %v3822
        %v3827 = vmul.f32 %v3805, %v3823
        %v3828 = vmul.f32 %v3807, %v3824
        %v3829 = vmul.f32 %v3809, %v3825
        %v3830 = vpack.c.bf16 %v3827, %v3826
        %v3831 = vpack.c.bf16 %v3829, %v3828
        %3834 = vrot.lane.b32.xlu0 %v3716, 64
        %v3835 = vpop.permute.xlu0 %3834
        %3836 = vrot.lane.b32.xlu0 %v3717, 64
        %v3837 = vpop.permute.xlu0 %3836
        %v3841 = vsel %vm492, %v3830, 0
        %v3844 = vsel %vm492, %v3831, 0
        %3846 = vmatpush.bf16.msra.mxu0 0
        %3847 = vmatpush.bf16.msra.mxu0 0
        %3848 = vmatpush.bf16.msra.mxu0 0
        %3849 = vmatpush.bf16.msra.mxu0 0
        %3850 = vmatpush.bf16.msra.mxu0 0
        %3851 = vmatpush.bf16.msra.mxu0 0
        %3852 = vmatpush.bf16.msra.mxu0 %v3837
        %3853 = vmatpush.bf16.msra.mxu0 %v3835
        %3854 = vmatmul.bf16.gmra.mxu0 %v3841
        %v3855 = vpop.f32.mrf.mxu0
        %v3856 = vadd.f32 0.0, %v3855
        %v3857 = vpop.f32.mrf.mxu0
        %v3858 = vadd.f32 0.0, %v3857
        %3859 = vmatmul.bf16.gmra.mxu0 %v3844
        %v3860 = vpop.f32.mrf.mxu0
        %v3861 = vadd.f32 0.0, %v3860
        %v3862 = vpop.f32.mrf.mxu0
        %v3863 = vadd.f32 0.0, %v3862
        %3864 = vdwg.mxu0
        %3869 = vrot.lane.b32.xlu0 %v3626, 64
        %v3870 = vpop.permute.xlu0 %3869
        %3871 = vrot.lane.b32.xlu0 %v3628, 64
        %v3872 = vpop.permute.xlu0 %3871
        %3873 = vrot.lane.b32.xlu0 %v3631, 64
        %v3874 = vpop.permute.xlu0 %3873
        %3875 = vrot.lane.b32.xlu0 %v3633, 64
        %v3876 = vpop.permute.xlu0 %3875
        %3885 = vrot.lane.b32.xlu0 %v3856, 64
        %v3886 = vpop.permute.xlu0 %3885
        %3887 = vrot.lane.b32.xlu0 %v3858, 64
        %v3888 = vpop.permute.xlu0 %3887
        %3889 = vrot.lane.b32.xlu0 %v3861, 64
        %v3890 = vpop.permute.xlu0 %3889
        %3891 = vrot.lane.b32.xlu0 %v3863, 64
        %v3892 = vpop.permute.xlu0 %3891
        %v3897 = vsel %vm497, %v3504, %v3870
        %v3898 = vsel %vm497, %v3506, %v3872
        %v3899 = vsel %vm497, %v3509, %v3874
        %v3900 = vsel %vm497, %v3511, %v3876
        %v3901 = vsel %vm497, %v3734, %v3886
        %v3902 = vsel %vm497, %v3736, %v3888
        %v3903 = vsel %vm497, %v3739, %v3890
        %v3904 = vsel %vm497, %v3741, %v3892
        %v3905 = vpack.c.bf16 %v3898, %v3897
        %v3906 = vpack.c.bf16 %v3902, %v3901
        %v3907 = vpack.c.bf16 %v3900, %v3899
        %v3908 = vpack.c.bf16 %v3904, %v3903
        %v3910 = vperm.slane %v3404, 0
        %v3944 = vunpack.c.l.b16 %v3372
        %v3945 = vunpack.c.l.b16 %v3373
        %v3946 = vunpack.c.l.b16 %v3374
        %v3947 = vunpack.c.l.b16 %v3375
        %v3948 = vunpack.c.l.b16 %v3376
        %v3949 = vunpack.c.l.b16 %v3377
        %v3950 = vunpack.c.l.b16 %v3378
        %v3951 = vunpack.c.l.b16 %v3379
        %v3952 = vunpack.c.l.b16 %v3380
        %v3953 = vunpack.c.l.b16 %v3381
        %v3954 = vunpack.c.l.b16 %v3382
        %v3955 = vunpack.c.l.b16 %v3383
        %v3956 = vunpack.c.l.b16 %v3384
        %v3957 = vunpack.c.l.b16 %v3385
        %v3958 = vunpack.c.l.b16 %v3386
        %v3959 = vunpack.c.l.b16 %v3387
        %v3960 = vunpack.c.l.b16 %v3388
        %v3961 = vunpack.c.l.b16 %v3389
        %v3962 = vunpack.c.l.b16 %v3390
        %v3963 = vunpack.c.l.b16 %v3391
        %v3964 = vunpack.c.l.b16 %v3392
        %v3965 = vunpack.c.l.b16 %v3393
        %v3966 = vunpack.c.l.b16 %v3394
        %v3967 = vunpack.c.l.b16 %v3395
        %v3968 = vunpack.c.l.b16 %v3396
        %v3969 = vunpack.c.l.b16 %v3397
        %v3970 = vunpack.c.l.b16 %v3398
        %v3971 = vunpack.c.l.b16 %v3399
        %v3972 = vunpack.c.l.b16 %v3400
        %v3973 = vunpack.c.l.b16 %v3401
        %v3974 = vunpack.c.l.b16 %v3402
        %v3975 = vunpack.c.l.b16 %v3403
        %v3976 = vpack.c.b16 %v3945, %v3944
        %v3977 = vpack.c.b16 %v3947, %v3946
        %v3978 = vpack.c.b16 %v3949, %v3948
        %v3979 = vpack.c.b16 %v3951, %v3950
        %v3980 = vpack.c.b16 %v3953, %v3952
        %v3981 = vpack.c.b16 %v3955, %v3954
        %v3982 = vpack.c.b16 %v3957, %v3956
        %v3983 = vpack.c.b16 %v3959, %v3958
        %v3984 = vpack.c.b16 %v3961, %v3960
        %v3985 = vpack.c.b16 %v3963, %v3962
        %v3986 = vpack.c.b16 %v3965, %v3964
        %v3987 = vpack.c.b16 %v3967, %v3966
        %v3988 = vpack.c.b16 %v3969, %v3968
        %v3989 = vpack.c.b16 %v3971, %v3970
        %v3990 = vpack.c.b16 %v3973, %v3972
        %v3991 = vpack.c.b16 %v3975, %v3974
        %4008 = vmatpush.bf16.msra.mxu0 %v3983
        %4009 = vmatpush.bf16.msra.mxu0 %v3982
        %4010 = vmatpush.bf16.msra.mxu0 %v3981
        %4011 = vmatpush.bf16.msra.mxu0 %v3980
        %4012 = vmatpush.bf16.msra.mxu0 %v3979
        %4013 = vmatpush.bf16.msra.mxu0 %v3978
        %4014 = vmatpush.bf16.msra.mxu0 %v3977
        %4015 = vmatpush.bf16.msra.mxu0 %v3976
        %4016 = vmatmul.bf16.gmra.mxu0 %v3905
        %v4017 = vpop.f32.mrf.mxu0
        %v4018 = vadd.f32 %v3910, %v4017
        %v4019 = vpop.f32.mrf.mxu0
        %v4020 = vadd.f32 %v3910, %v4019
        %4021 = vmatmul.bf16.gmra.mxu0 %v3907
        %v4022 = vpop.f32.mrf.mxu0
        %v4023 = vadd.f32 %v3910, %v4022
        %v4024 = vpop.f32.mrf.mxu0
        %v4025 = vadd.f32 %v3910, %v4024
        %4026 = vdwg.mxu0
        %4027 = vmatpush.bf16.msra.mxu0 %v3991
        %4028 = vmatpush.bf16.msra.mxu0 %v3990
        %4029 = vmatpush.bf16.msra.mxu0 %v3989
        %4030 = vmatpush.bf16.msra.mxu0 %v3988
        %4031 = vmatpush.bf16.msra.mxu0 %v3987
        %4032 = vmatpush.bf16.msra.mxu0 %v3986
        %4033 = vmatpush.bf16.msra.mxu0 %v3985
        %4034 = vmatpush.bf16.msra.mxu0 %v3984
        %4035 = vmatmul.bf16.gmra.mxu0 %v3906
        %v4036 = vpop.f32.mrf.mxu0
        %v4037 = vadd.f32 %v4018, %v4036
        %v4038 = vpop.f32.mrf.mxu0
        %v4039 = vadd.f32 %v4020, %v4038
        %4040 = vmatmul.bf16.gmra.mxu0 %v3908
        %v4041 = vpop.f32.mrf.mxu0
        %v4042 = vadd.f32 %v4023, %v4041
        %v4043 = vpop.f32.mrf.mxu0
        %v4044 = vadd.f32 %v4025, %v4043
        %4045 = vdwg.mxu0
        %v4046 = vadd.f32 %v3070, %v4037
        %v4047 = vadd.f32 %v3071, %v4039
        %v4048 = vadd.f32 %v3072, %v4042
        %v4049 = vadd.f32 %v3073, %v4044
        %v4050 = vld [vmem:[#allocation2 + $0x12] sm:$0x1]
        %v4051 = vld [vmem:[#allocation2 + $0x13] sm:$0x1]
        %v4052 = vsel %vm492, %v4046, 0.0
        %4053 = vadd.xlane.f32.xlu0 %v4052
        %v4054 = vpop.xlane.xlu0 %4053
        %v4055 = vsel %vm492, %v4047, 0.0
        %4056 = vadd.xlane.f32.xlu0 %v4055
        %v4057 = vpop.xlane.xlu0 %4056
        %v4058 = vsel %vm492, %v4048, 0.0
        %4059 = vadd.xlane.f32.xlu0 %v4058
        %v4060 = vpop.xlane.xlu0 %4059
        %v4061 = vsel %vm492, %v4049, 0.0
        %4062 = vadd.xlane.f32.xlu0 %v4061
        %v4063 = vpop.xlane.xlu0 %4062
        %v4064 = vmul.f32 %v4054, %v575
        %v4065 = vmul.f32 %v4057, %v575
        %v4066 = vmul.f32 %v4060, %v575
        %v4067 = vmul.f32 %v4063, %v575
        %v4068 = vsub.f32 %v4046, %v4064
        %v4069 = vsub.f32 %v4047, %v4065
        %v4070 = vsub.f32 %v4048, %v4066
        %v4071 = vsub.f32 %v4049, %v4067
        %v4072 = vmul.f32 %v4068, %v4068
        %v4073 = vmul.f32 %v4069, %v4069
        %v4074 = vmul.f32 %v4070, %v4070
        %v4075 = vmul.f32 %v4071, %v4071
        %v4076 = vsel %vm492, %v4072, 0.0
        %4077 = vadd.xlane.f32.xlu0 %v4076
        %v4078 = vpop.xlane.xlu0 %4077
        %v4079 = vsel %vm492, %v4073, 0.0
        %4080 = vadd.xlane.f32.xlu0 %v4079
        %v4081 = vpop.xlane.xlu0 %4080
        %v4082 = vsel %vm492, %v4074, 0.0
        %4083 = vadd.xlane.f32.xlu0 %v4082
        %v4084 = vpop.xlane.xlu0 %4083
        %v4085 = vsel %vm492, %v4075, 0.0
        %4086 = vadd.xlane.f32.xlu0 %v4085
        %v4087 = vpop.xlane.xlu0 %4086
        %v4088 = vmul.f32 %v4078, %v575
        %v4089 = vmul.f32 %v4081, %v575
        %v4090 = vmul.f32 %v4084, %v575
        %v4091 = vmul.f32 %v4087, %v575
        %v4092 = vadd.f32 %v4088, 1e-05
        %v4093 = vadd.f32 %v4089, 1e-05
        %v4094 = vadd.f32 %v4090, 1e-05
        %v4095 = vadd.f32 %v4091, 1e-05
        %v4096 = vrsqrt.pop %v4092
        %v4097 = vmul.f32 %v4096, %v4092
        %v4098 = vmul.f32 %v4097, %v4096
        %v4099 = vmul.f32 0.5, %v4098
        %v4100 = vsub.f32 1.5, %v4099
        %v4101 = vmul.f32 %v4096, %v4100
        %vm4102 = vweird.f32 %v4092
        %vm4103 = vweird.f32 %v4096
        %vm4104 = vmor %vm4102, %vm4103
        %v4105 = vsel %vm4104, %v4096, %v4101
        %v4106 = vrsqrt.pop %v4093
        %v4107 = vmul.f32 %v4106, %v4093
        %v4108 = vmul.f32 %v4107, %v4106
        %v4109 = vmul.f32 0.5, %v4108
        %v4110 = vsub.f32 1.5, %v4109
        %v4111 = vmul.f32 %v4106, %v4110
        %vm4112 = vweird.f32 %v4093
        %vm4113 = vweird.f32 %v4106
        %vm4114 = vmor %vm4112, %vm4113
        %v4115 = vsel %vm4114, %v4106, %v4111
        %v4116 = vrsqrt.pop %v4094
        %v4117 = vmul.f32 %v4116, %v4094
        %v4118 = vmul.f32 %v4117, %v4116
        %v4119 = vmul.f32 0.5, %v4118
        %v4120 = vsub.f32 1.5, %v4119
        %v4121 = vmul.f32 %v4116, %v4120
        %vm4122 = vweird.f32 %v4094
        %vm4123 = vweird.f32 %v4116
        %vm4124 = vmor %vm4122, %vm4123
        %v4125 = vsel %vm4124, %v4116, %v4121
        %v4126 = vrsqrt.pop %v4095
        %v4127 = vmul.f32 %v4126, %v4095
        %v4128 = vmul.f32 %v4127, %v4126
        %v4129 = vmul.f32 0.5, %v4128
        %v4130 = vsub.f32 1.5, %v4129
        %v4131 = vmul.f32 %v4126, %v4130
        %vm4132 = vweird.f32 %v4095
        %vm4133 = vweird.f32 %v4126
        %vm4134 = vmor %vm4132, %vm4133
        %v4135 = vsel %vm4134, %v4126, %v4131
        %v4136 = vmul.f32 %v4068, %v4105
        %v4137 = vmul.f32 %v4069, %v4115
        %v4138 = vmul.f32 %v4070, %v4125
        %v4139 = vmul.f32 %v4071, %v4135
        %v4141 = vperm.slane %v4050, 0
        %v4143 = vmul.f32 %v4136, %v4141
        %v4144 = vmul.f32 %v4137, %v4141
        %v4145 = vmul.f32 %v4138, %v4141
        %v4146 = vmul.f32 %v4139, %v4141
        %v4148 = vperm.slane %v4051, 0
        %v4150 = vadd.f32 %v4143, %v4148
        %v4151 = vadd.f32 %v4144, %v4148
        %v4152 = vadd.f32 %v4145, %v4148
        %v4153 = vadd.f32 %v4146, %v4148
        %v4154 = vld [vmem:[%s4 + $0x50] sm:$0xf]
        %v4155 = vld [vmem:[%s4 + $0xf0] sm:$0xf]
        %v4156 = vld [vmem:[%s4 + $0x190] sm:$0xf]
        %v4157 = vld [vmem:[%s4 + $0x230] sm:$0xf]
        %v4158 = vld [vmem:[#allocation2 + $0x14] sm:$0x1]
        %v4159 = vld [vmem:[#allocation6 + $0x8] sm:$0xf]
        %v4160 = vld [vmem:[#allocation6 + $0x24] sm:$0xf]
        %v4161 = vld [vmem:[#allocation6 + $0x40] sm:$0xf]
        %v4162 = vld [vmem:[#allocation6 + $0x5c] sm:$0xf]
        %v4163 = vld [vmem:[#allocation6 + $0x78] sm:$0xf]
        %v4164 = vld [vmem:[#allocation6 + $0x94] sm:$0xf]
        %v4165 = vld [vmem:[#allocation6 + $0xb0] sm:$0xf]
        %v4166 = vld [vmem:[#allocation6 + $0xcc] sm:$0xf]
        %v4167 = vld [vmem:[#allocation6 + $0xe8] sm:$0xf]
        %v4168 = vld [vmem:[#allocation6 + $0x104] sm:$0xf]
        %v4169 = vld [vmem:[#allocation6 + $0x120] sm:$0xf]
        %v4170 = vld [vmem:[#allocation6 + $0x13c] sm:$0xf]
        %v4171 = vld [vmem:[#allocation6 + $0x158] sm:$0xf]
        %v4172 = vld [vmem:[#allocation6 + $0x174] sm:$0xf]
        %v4173 = vld [vmem:[#allocation6 + $0x190] sm:$0xf]
        %v4174 = vld [vmem:[#allocation6 + $0x1ac] sm:$0xf]
        %v4175 = vld [vmem:[#allocation2 + $0x15] sm:$0x1]
        %v4176 = vpack.c.bf16 %v4151, %v4150
        %v4177 = vpack.c.bf16 %v4153, %v4152
        %v4179 = vperm.slane %v4158, 0
        %v4185 = vunpack.c.l.b16 %v4154
        %v4186 = vunpack.c.l.b16 %v4155
        %v4187 = vunpack.c.l.b16 %v4156
        %v4188 = vunpack.c.l.b16 %v4157
        %v4189 = vpack.c.b16 %v4186, %v4185
        %v4190 = vpack.c.b16 %v4188, %v4187
        %v4194 = vsel %vm492, %v4176, 0
        %v4197 = vsel %vm492, %v4177, 0
        %4199 = vmatpush.bf16.msra.mxu0 0
        %4200 = vmatpush.bf16.msra.mxu0 0
        %4201 = vmatpush.bf16.msra.mxu0 0
        %4202 = vmatpush.bf16.msra.mxu0 0
        %4203 = vmatpush.bf16.msra.mxu0 0
        %4204 = vmatpush.bf16.msra.mxu0 0
        %4205 = vmatpush.bf16.msra.mxu0 %v4190
        %4206 = vmatpush.bf16.msra.mxu0 %v4189
        %4207 = vmatmul.bf16.gmra.mxu0 %v4194
        %v4208 = vpop.f32.mrf.mxu0
        %v4209 = vadd.f32 %v4179, %v4208
        %v4210 = vpop.f32.mrf.mxu0
        %v4211 = vadd.f32 %v4179, %v4210
        %4212 = vmatmul.bf16.gmra.mxu0 %v4197
        %v4213 = vpop.f32.mrf.mxu0
        %v4214 = vadd.f32 %v4179, %v4213
        %v4215 = vpop.f32.mrf.mxu0
        %v4216 = vadd.f32 %v4179, %v4215
        %4217 = vdwg.mxu0
        %v4218 = vmul.f32 %v4209, 0.5
        %v4219 = vmul.f32 %v4211, 0.5
        %v4220 = vmul.f32 %v4214, 0.5
        %v4221 = vmul.f32 %v4216, 0.5
        %v4222 = vmul.f32 %v4209, 0.044715
        %v4223 = vmul.f32 %v4211, 0.044715
        %v4224 = vmul.f32 %v4214, 0.044715
        %v4225 = vmul.f32 %v4216, 0.044715
        %v4226 = vmul.f32 %v4222, %v4209
        %v4227 = vmul.f32 %v4223, %v4211
        %v4228 = vmul.f32 %v4224, %v4214
        %v4229 = vmul.f32 %v4225, %v4216
        %v4230 = vmul.f32 %v4226, %v4209
        %v4231 = vmul.f32 %v4227, %v4211
        %v4232 = vmul.f32 %v4228, %v4214
        %v4233 = vmul.f32 %v4229, %v4216
        %v4234 = vadd.f32 %v4209, %v4230
        %v4235 = vadd.f32 %v4211, %v4231
        %v4236 = vadd.f32 %v4214, %v4232
        %v4237 = vadd.f32 %v4216, %v4233
        %v4238 = vmul.f32 %v4234, 0.7978846
        %v4239 = vmul.f32 %v4235, 0.7978846
        %v4240 = vmul.f32 %v4236, 0.7978846
        %v4241 = vmul.f32 %v4237, 0.7978846
        %v4242 = vtanh.pop %v4238
        %v4243 = vtanh.pop %v4239
        %v4244 = vtanh.pop %v4240
        %v4245 = vtanh.pop %v4241
        %v4246 = vadd.f32 %v4242, 1.0
        %v4247 = vadd.f32 %v4243, 1.0
        %v4248 = vadd.f32 %v4244, 1.0
        %v4249 = vadd.f32 %v4245, 1.0
        %v4250 = vmul.f32 %v4218, %v4246
        %v4251 = vmul.f32 %v4219, %v4247
        %v4252 = vmul.f32 %v4220, %v4248
        %v4253 = vmul.f32 %v4221, %v4249
        %v4254 = vpack.c.bf16 %v4251, %v4250
        %v4255 = vpack.c.bf16 %v4253, %v4252
        %v4257 = vperm.slane %v4175, 0
        %v4275 = vunpack.c.l.b16 %v4159
        %v4276 = vunpack.c.l.b16 %v4160
        %v4277 = vunpack.c.l.b16 %v4161
        %v4278 = vunpack.c.l.b16 %v4162
        %v4279 = vunpack.c.l.b16 %v4163
        %v4280 = vunpack.c.l.b16 %v4164
        %v4281 = vunpack.c.l.b16 %v4165
        %v4282 = vunpack.c.l.b16 %v4166
        %v4283 = vunpack.c.l.b16 %v4167
        %v4284 = vunpack.c.l.b16 %v4168
        %v4285 = vunpack.c.l.b16 %v4169
        %v4286 = vunpack.c.l.b16 %v4170
        %v4287 = vunpack.c.l.b16 %v4171
        %v4288 = vunpack.c.l.b16 %v4172
        %v4289 = vunpack.c.l.b16 %v4173
        %v4290 = vunpack.c.l.b16 %v4174
        %v4291 = vpack.c.b16 %v4276, %v4275
        %v4292 = vpack.c.b16 %v4278, %v4277
        %v4293 = vpack.c.b16 %v4280, %v4279
        %v4294 = vpack.c.b16 %v4282, %v4281
        %v4295 = vpack.c.b16 %v4284, %v4283
        %v4296 = vpack.c.b16 %v4286, %v4285
        %v4297 = vpack.c.b16 %v4288, %v4287
        %v4298 = vpack.c.b16 %v4290, %v4289
        %4307 = vmatpush.bf16.msra.mxu0 %v4298
        %4308 = vmatpush.bf16.msra.mxu0 %v4297
        %4309 = vmatpush.bf16.msra.mxu0 %v4296
        %4310 = vmatpush.bf16.msra.mxu0 %v4295
        %4311 = vmatpush.bf16.msra.mxu0 %v4294
        %4312 = vmatpush.bf16.msra.mxu0 %v4293
        %4313 = vmatpush.bf16.msra.mxu0 %v4292
        %4314 = vmatpush.bf16.msra.mxu0 %v4291
        %4315 = vmatmul.bf16.gmra.mxu0 %v4254
        %v4316 = vpop.f32.mrf.mxu0
        %v4317 = vadd.f32 %v4257, %v4316
        %v4318 = vpop.f32.mrf.mxu0
        %v4319 = vadd.f32 %v4257, %v4318
        %4320 = vmatmul.bf16.gmra.mxu0 %v4255
        %v4321 = vpop.f32.mrf.mxu0
        %v4322 = vadd.f32 %v4257, %v4321
        %v4323 = vpop.f32.mrf.mxu0
        %v4324 = vadd.f32 %v4257, %v4323
        %4325 = vdwg.mxu0
        %v4326 = vadd.f32 %v4046, %v4317
        %v4327 = vadd.f32 %v4047, %v4319
        %v4328 = vadd.f32 %v4048, %v4322
        %v4329 = vadd.f32 %v4049, %v4324
        %v4330 = vld [vmem:[#allocation2 + $0x16] sm:$0x1]
        %v4331 = vld [vmem:[#allocation2 + $0x17] sm:$0x1]
        %v4332 = vsel %vm492, %v4326, 0.0
        %4333 = vadd.xlane.f32.xlu0 %v4332
        %v4334 = vpop.xlane.xlu0 %4333
        %v4335 = vsel %vm492, %v4327, 0.0
        %4336 = vadd.xlane.f32.xlu0 %v4335
        %v4337 = vpop.xlane.xlu0 %4336
        %v4338 = vsel %vm492, %v4328, 0.0
        %4339 = vadd.xlane.f32.xlu0 %v4338
        %v4340 = vpop.xlane.xlu0 %4339
        %v4341 = vsel %vm492, %v4329, 0.0
        %4342 = vadd.xlane.f32.xlu0 %v4341
        %v4343 = vpop.xlane.xlu0 %4342
        %v4344 = vmul.f32 %v4334, %v575
        %v4345 = vmul.f32 %v4337, %v575
        %v4346 = vmul.f32 %v4340, %v575
        %v4347 = vmul.f32 %v4343, %v575
        %v4348 = vsub.f32 %v4326, %v4344
        %v4349 = vsub.f32 %v4327, %v4345
        %v4350 = vsub.f32 %v4328, %v4346
        %v4351 = vsub.f32 %v4329, %v4347
        %v4352 = vmul.f32 %v4348, %v4348
        %v4353 = vmul.f32 %v4349, %v4349
        %v4354 = vmul.f32 %v4350, %v4350
        %v4355 = vmul.f32 %v4351, %v4351
        %v4356 = vsel %vm492, %v4352, 0.0
        %4357 = vadd.xlane.f32.xlu0 %v4356
        %v4358 = vpop.xlane.xlu0 %4357
        %v4359 = vsel %vm492, %v4353, 0.0
        %4360 = vadd.xlane.f32.xlu0 %v4359
        %v4361 = vpop.xlane.xlu0 %4360
        %v4362 = vsel %vm492, %v4354, 0.0
        %4363 = vadd.xlane.f32.xlu0 %v4362
        %v4364 = vpop.xlane.xlu0 %4363
        %v4365 = vsel %vm492, %v4355, 0.0
        %4366 = vadd.xlane.f32.xlu0 %v4365
        %v4367 = vpop.xlane.xlu0 %4366
        %v4368 = vmul.f32 %v4358, %v575
        %v4369 = vmul.f32 %v4361, %v575
        %v4370 = vmul.f32 %v4364, %v575
        %v4371 = vmul.f32 %v4367, %v575
        %v4372 = vadd.f32 %v4368, 1e-05
        %v4373 = vadd.f32 %v4369, 1e-05
        %v4374 = vadd.f32 %v4370, 1e-05
        %v4375 = vadd.f32 %v4371, 1e-05
        %v4376 = vrsqrt.pop %v4372
        %v4377 = vmul.f32 %v4376, %v4372
        %v4378 = vmul.f32 %v4377, %v4376
        %v4379 = vmul.f32 0.5, %v4378
        %v4380 = vsub.f32 1.5, %v4379
        %v4381 = vmul.f32 %v4376, %v4380
        %vm4382 = vweird.f32 %v4372
        %vm4383 = vweird.f32 %v4376
        %vm4384 = vmor %vm4382, %vm4383
        %v4385 = vsel %vm4384, %v4376, %v4381
        %v4386 = vrsqrt.pop %v4373
        %v4387 = vmul.f32 %v4386, %v4373
        %v4388 = vmul.f32 %v4387, %v4386
        %v4389 = vmul.f32 0.5, %v4388
        %v4390 = vsub.f32 1.5, %v4389
        %v4391 = vmul.f32 %v4386, %v4390
        %vm4392 = vweird.f32 %v4373
        %vm4393 = vweird.f32 %v4386
        %vm4394 = vmor %vm4392, %vm4393
        %v4395 = vsel %vm4394, %v4386, %v4391
        %v4396 = vrsqrt.pop %v4374
        %v4397 = vmul.f32 %v4396, %v4374
        %v4398 = vmul.f32 %v4397, %v4396
        %v4399 = vmul.f32 0.5, %v4398
        %v4400 = vsub.f32 1.5, %v4399
        %v4401 = vmul.f32 %v4396, %v4400
        %vm4402 = vweird.f32 %v4374
        %vm4403 = vweird.f32 %v4396
        %vm4404 = vmor %vm4402, %vm4403
        %v4405 = vsel %vm4404, %v4396, %v4401
        %v4406 = vrsqrt.pop %v4375
        %v4407 = vmul.f32 %v4406, %v4375
        %v4408 = vmul.f32 %v4407, %v4406
        %v4409 = vmul.f32 0.5, %v4408
        %v4410 = vsub.f32 1.5, %v4409
        %v4411 = vmul.f32 %v4406, %v4410
        %vm4412 = vweird.f32 %v4375
        %vm4413 = vweird.f32 %v4406
        %vm4414 = vmor %vm4412, %vm4413
        %v4415 = vsel %vm4414, %v4406, %v4411
        %v4416 = vmul.f32 %v4348, %v4385
        %v4417 = vmul.f32 %v4349, %v4395
        %v4418 = vmul.f32 %v4350, %v4405
        %v4419 = vmul.f32 %v4351, %v4415
        %v4421 = vperm.slane %v4330, 0
        %v4423 = vmul.f32 %v4416, %v4421
        %v4424 = vmul.f32 %v4417, %v4421
        %v4425 = vmul.f32 %v4418, %v4421
        %v4426 = vmul.f32 %v4419, %v4421
        %v4428 = vperm.slane %v4331, 0
        %v4430 = vadd.f32 %v4423, %v4428
        %v4431 = vadd.f32 %v4424, %v4428
        %v4432 = vadd.f32 %v4425, %v4428
        %v4433 = vadd.f32 %v4426, %v4428
        %v4434 = vld [vmem:[%s4 + $0x54] sm:$0xff]
        %v4435 = vld [vmem:[%s4 + $0x5c] sm:$0xff]
        %v4436 = vld [vmem:[%s4 + $0x64] sm:$0xff]
        %v4437 = vld [vmem:[%s4 + $0xf4] sm:$0xff]
        %v4438 = vld [vmem:[%s4 + $0xfc] sm:$0xff]
        %v4439 = vld [vmem:[%s4 + $0x104] sm:$0xff]
        %v4440 = vld [vmem:[%s4 + $0x194] sm:$0xff]
        %v4441 = vld [vmem:[%s4 + $0x19c] sm:$0xff]
        %v4442 = vld [vmem:[%s4 + $0x1a4] sm:$0xff]
        %v4443 = vld [vmem:[%s4 + $0x234] sm:$0xff]
        %v4444 = vld [vmem:[%s4 + $0x23c] sm:$0xff]
        %v4445 = vld [vmem:[%s4 + $0x244] sm:$0xff]
        %v4446 = vpack.c.bf16 %v4431, %v4430
        %v4447 = vpack.c.bf16 %v4433, %v4432
        %v4460 = vunpack.c.l.b16 %v4434
        %v4461 = vunpack.c.h.b16 %v4434
        %v4462 = vunpack.c.l.b16 %v4435
        %v4463 = vunpack.c.h.b16 %v4435
        %v4464 = vunpack.c.l.b16 %v4436
        %v4465 = vunpack.c.h.b16 %v4436
        %v4466 = vunpack.c.l.b16 %v4437
        %v4467 = vunpack.c.h.b16 %v4437
        %v4468 = vunpack.c.l.b16 %v4438
        %v4469 = vunpack.c.h.b16 %v4438
        %v4470 = vunpack.c.l.b16 %v4439
        %v4471 = vunpack.c.h.b16 %v4439
        %v4472 = vunpack.c.l.b16 %v4440
        %v4473 = vunpack.c.h.b16 %v4440
        %v4474 = vunpack.c.l.b16 %v4441
        %v4475 = vunpack.c.h.b16 %v4441
        %v4476 = vunpack.c.l.b16 %v4442
        %v4477 = vunpack.c.h.b16 %v4442
        %v4478 = vunpack.c.l.b16 %v4443
        %v4479 = vunpack.c.h.b16 %v4443
        %v4480 = vunpack.c.l.b16 %v4444
        %v4481 = vunpack.c.h.b16 %v4444
        %v4482 = vunpack.c.l.b16 %v4445
        %v4483 = vunpack.c.h.b16 %v4445
        %v4484 = vpack.c.b16 %v4466, %v4460
        %v4485 = vpack.c.b16 %v4467, %v4461
        %v4486 = vpack.c.b16 %v4468, %v4462
        %v4487 = vpack.c.b16 %v4469, %v4463
        %v4488 = vpack.c.b16 %v4470, %v4464
        %v4489 = vpack.c.b16 %v4471, %v4465
        %v4490 = vpack.c.b16 %v4478, %v4472
        %v4491 = vpack.c.b16 %v4479, %v4473
        %v4492 = vpack.c.b16 %v4480, %v4474
        %v4493 = vpack.c.b16 %v4481, %v4475
        %v4494 = vpack.c.b16 %v4482, %v4476
        %v4495 = vpack.c.b16 %v4483, %v4477
        %v4509 = vsel %vm492, %v4446, 0
        %v4512 = vsel %vm492, %v4447, 0
        %4514 = vmatpush.bf16.msra.mxu0 0
        %4515 = vmatpush.bf16.msra.mxu0 0
        %4516 = vmatpush.bf16.msra.mxu0 0
        %4517 = vmatpush.bf16.msra.mxu0 0
        %4518 = vmatpush.bf16.msra.mxu0 0
        %4519 = vmatpush.bf16.msra.mxu0 0
        %4520 = vmatpush.bf16.msra.mxu0 %v4490
        %4521 = vmatpush.bf16.msra.mxu0 %v4484
        %4522 = vmatmul.bf16.gmra.mxu0 %v4509
        %v4523 = vpop.f32.mrf.mxu0
        %v4524 = vadd.f32 0.0, %v4523
        %v4525 = vpop.f32.mrf.mxu0
        %v4526 = vadd.f32 0.0, %v4525
        %4527 = vmatmul.bf16.gmra.mxu0 %v4512
        %v4528 = vpop.f32.mrf.mxu0
        %v4529 = vadd.f32 0.0, %v4528
        %v4530 = vpop.f32.mrf.mxu0
        %v4531 = vadd.f32 0.0, %v4530
        %4532 = vdwg.mxu0
        %4533 = vmatpush.bf16.msra.mxu0 0
        %4534 = vmatpush.bf16.msra.mxu0 0
        %4535 = vmatpush.bf16.msra.mxu0 0
        %4536 = vmatpush.bf16.msra.mxu0 0
        %4537 = vmatpush.bf16.msra.mxu0 0
        %4538 = vmatpush.bf16.msra.mxu0 0
        %4539 = vmatpush.bf16.msra.mxu0 %v4491
        %4540 = vmatpush.bf16.msra.mxu0 %v4485
        %4541 = vmatmul.bf16.gmra.mxu0 %v4509
        %v4542 = vpop.f32.mrf.mxu0
        %v4543 = vadd.f32 0.0, %v4542
        %v4544 = vpop.f32.mrf.mxu0
        %v4545 = vadd.f32 0.0, %v4544
        %4546 = vmatmul.bf16.gmra.mxu0 %v4512
        %v4547 = vpop.f32.mrf.mxu0
        %v4548 = vadd.f32 0.0, %v4547
        %v4549 = vpop.f32.mrf.mxu0
        %v4550 = vadd.f32 0.0, %v4549
        %4551 = vdwg.mxu0
        %4552 = vmatpush.bf16.msra.mxu0 0
        %4553 = vmatpush.bf16.msra.mxu0 0
        %4554 = vmatpush.bf16.msra.mxu0 0
        %4555 = vmatpush.bf16.msra.mxu0 0
        %4556 = vmatpush.bf16.msra.mxu0 0
        %4557 = vmatpush.bf16.msra.mxu0 0
        %4558 = vmatpush.bf16.msra.mxu0 %v4492
        %4559 = vmatpush.bf16.msra.mxu0 %v4486
        %4560 = vmatmul.bf16.gmra.mxu0 %v4509
        %v4561 = vpop.f32.mrf.mxu0
        %v4562 = vadd.f32 0.0, %v4561
        %v4563 = vpop.f32.mrf.mxu0
        %v4564 = vadd.f32 0.0, %v4563
        %4565 = vmatmul.bf16.gmra.mxu0 %v4512
        %v4566 = vpop.f32.mrf.mxu0
        %v4567 = vadd.f32 0.0, %v4566
        %v4568 = vpop.f32.mrf.mxu0
        %v4569 = vadd.f32 0.0, %v4568
        %4570 = vdwg.mxu0
        %4571 = vmatpush.bf16.msra.mxu0 0
        %4572 = vmatpush.bf16.msra.mxu0 0
        %4573 = vmatpush.bf16.msra.mxu0 0
        %4574 = vmatpush.bf16.msra.mxu0 0
        %4575 = vmatpush.bf16.msra.mxu0 0
        %4576 = vmatpush.bf16.msra.mxu0 0
        %4577 = vmatpush.bf16.msra.mxu0 %v4493
        %4578 = vmatpush.bf16.msra.mxu0 %v4487
        %4579 = vmatmul.bf16.gmra.mxu0 %v4509
        %v4580 = vpop.f32.mrf.mxu0
        %v4581 = vadd.f32 0.0, %v4580
        %v4582 = vpop.f32.mrf.mxu0
        %v4583 = vadd.f32 0.0, %v4582
        %4584 = vmatmul.bf16.gmra.mxu0 %v4512
        %v4585 = vpop.f32.mrf.mxu0
        %v4586 = vadd.f32 0.0, %v4585
        %v4587 = vpop.f32.mrf.mxu0
        %v4588 = vadd.f32 0.0, %v4587
        %4589 = vdwg.mxu0
        %4590 = vmatpush.bf16.msra.mxu0 0
        %4591 = vmatpush.bf16.msra.mxu0 0
        %4592 = vmatpush.bf16.msra.mxu0 0
        %4593 = vmatpush.bf16.msra.mxu0 0
        %4594 = vmatpush.bf16.msra.mxu0 0
        %4595 = vmatpush.bf16.msra.mxu0 0
        %4596 = vmatpush.bf16.msra.mxu0 %v4494
        %4597 = vmatpush.bf16.msra.mxu0 %v4488
        %4598 = vmatmul.bf16.gmra.mxu0 %v4509
        %v4599 = vpop.f32.mrf.mxu0
        %v4600 = vadd.f32 0.0, %v4599
        %v4601 = vpop.f32.mrf.mxu0
        %v4602 = vadd.f32 0.0, %v4601
        %4603 = vmatmul.bf16.gmra.mxu0 %v4512
        %v4604 = vpop.f32.mrf.mxu0
        %v4605 = vadd.f32 0.0, %v4604
        %v4606 = vpop.f32.mrf.mxu0
        %v4607 = vadd.f32 0.0, %v4606
        %4608 = vdwg.mxu0
        %4609 = vmatpush.bf16.msra.mxu0 0
        %4610 = vmatpush.bf16.msra.mxu0 0
        %4611 = vmatpush.bf16.msra.mxu0 0
        %4612 = vmatpush.bf16.msra.mxu0 0
        %4613 = vmatpush.bf16.msra.mxu0 0
        %4614 = vmatpush.bf16.msra.mxu0 0
        %4615 = vmatpush.bf16.msra.mxu0 %v4495
        %4616 = vmatpush.bf16.msra.mxu0 %v4489
        %4617 = vmatmul.bf16.gmra.mxu0 %v4509
        %v4618 = vpop.f32.mrf.mxu0
        %v4619 = vadd.f32 0.0, %v4618
        %v4620 = vpop.f32.mrf.mxu0
        %v4621 = vadd.f32 0.0, %v4620
        %4622 = vmatmul.bf16.gmra.mxu0 %v4512
        %v4623 = vpop.f32.mrf.mxu0
        %v4624 = vadd.f32 0.0, %v4623
        %v4625 = vpop.f32.mrf.mxu0
        %v4626 = vadd.f32 0.0, %v4625
        %4627 = vdwg.mxu0
        %v4628 = vld [vmem:[#allocation7 + $0xc] sm:$0xf]
        %v4629 = vld [vmem:[#allocation7 + $0x1c] sm:$0xf]
        %v4630 = vld [vmem:[#allocation7 + $0x2c] sm:$0xf]
        %v4631 = vld [vmem:[#allocation7 + $0x3c] sm:$0xf]
        %v4632 = vld [vmem:[#allocation7 + $0x4c] sm:$0xf]
        %v4633 = vld [vmem:[#allocation7 + $0x5c] sm:$0xf]
        %v4634 = vld [vmem:[#allocation7 + $0x6c] sm:$0xf]
        %v4635 = vld [vmem:[#allocation7 + $0x7c] sm:$0xf]
        %v4636 = vld [vmem:[#allocation7 + $0x8c] sm:$0xf]
        %v4637 = vld [vmem:[#allocation7 + $0x9c] sm:$0xf]
        %v4638 = vld [vmem:[#allocation7 + $0xac] sm:$0xf]
        %v4639 = vld [vmem:[#allocation7 + $0xbc] sm:$0xf]
        %v4640 = vld [vmem:[#allocation7 + $0xcc] sm:$0xf]
        %v4641 = vld [vmem:[#allocation7 + $0xdc] sm:$0xf]
        %v4642 = vld [vmem:[#allocation7 + $0xec] sm:$0xf]
        %v4643 = vld [vmem:[#allocation7 + $0xfc] sm:$0xf]
        %v4644 = vld [vmem:[#allocation7 + $0x10c] sm:$0xf]
        %v4645 = vld [vmem:[#allocation7 + $0x11c] sm:$0xf]
        %v4646 = vld [vmem:[#allocation7 + $0x12c] sm:$0xf]
        %v4647 = vld [vmem:[#allocation7 + $0x13c] sm:$0xf]
        %v4648 = vld [vmem:[#allocation7 + $0x14c] sm:$0xf]
        %v4649 = vld [vmem:[#allocation7 + $0x15c] sm:$0xf]
        %v4650 = vld [vmem:[#allocation7 + $0x16c] sm:$0xf]
        %v4651 = vld [vmem:[#allocation7 + $0x17c] sm:$0xf]
        %v4652 = vld [vmem:[#allocation7 + $0x18c] sm:$0xf]
        %v4653 = vld [vmem:[#allocation7 + $0x19c] sm:$0xf]
        %v4654 = vld [vmem:[#allocation7 + $0x1ac] sm:$0xf]
        %v4655 = vld [vmem:[#allocation7 + $0x1bc] sm:$0xf]
        %v4656 = vld [vmem:[#allocation7 + $0x1cc] sm:$0xf]
        %v4657 = vld [vmem:[#allocation7 + $0x1dc] sm:$0xf]
        %v4658 = vld [vmem:[#allocation7 + $0x1ec] sm:$0xf]
        %v4659 = vld [vmem:[#allocation7 + $0x1fc] sm:$0xf]
        %v4660 = vld [vmem:[#allocation2 + $0x18] sm:$0x1]
        %v4661 = vpack.c.bf16 %v4526, %v4524
        %v4662 = vpack.c.bf16 %v4531, %v4529
        %v4663 = vpack.c.bf16 %v4564, %v4562
        %v4664 = vpack.c.bf16 %v4569, %v4567
        %v4666 = vsel %vm497, %v4661, 0
        %v4669 = vsel %vm497, %v4662, 0
        %v4672 = vsel %vm497, %v4663, 0
        %v4675 = vsel %vm497, %v4664, 0
        %4677 = vmatpush.bf16.xpose.msra.mxu0 0
        %4678 = vmatpush.bf16.xpose.msra.mxu0 0
        %4679 = vmatpush.bf16.xpose.msra.mxu0 0
        %4680 = vmatpush.bf16.xpose.msra.mxu0 0
        %4681 = vmatpush.bf16.xpose.msra.mxu0 0
        %4682 = vmatpush.bf16.xpose.msra.mxu0 0
        %4683 = vmatpush.bf16.xpose.msra.mxu0 %v4675
        %4684 = vmatpush.bf16.xpose.msra.mxu0 %v4672
        %4685 = vmatmul.bf16.gmra.mxu0 %v4666
        %v4686 = vpop.f32.mrf.mxu0
        %v4687 = vadd.f32 %v448, %v4686
        %v4688 = vpop.f32.mrf.mxu0
        %v4689 = vadd.f32 %v449, %v4688
        %4690 = vmatmul.bf16.gmra.mxu0 %v4669
        %v4691 = vpop.f32.mrf.mxu0
        %v4692 = vadd.f32 %v450, %v4691
        %v4693 = vpop.f32.mrf.mxu0
        %v4694 = vadd.f32 %v451, %v4693
        %4695 = vdwg.mxu0
        %v4696 = vsel %vm492, %v4687, -inf
        %4697 = vmax.xlane.f32.xlu0 %v4696
        %v4698 = vpop.xlane.xlu0 %4697
        %v4699 = vsel %vm492, %v4689, -inf
        %4700 = vmax.xlane.f32.xlu0 %v4699
        %v4701 = vpop.xlane.xlu0 %4700
        %v4702 = vsel %vm492, %v4692, -inf
        %4703 = vmax.xlane.f32.xlu0 %v4702
        %v4704 = vpop.xlane.xlu0 %4703
        %v4705 = vsel %vm492, %v4694, -inf
        %4706 = vmax.xlane.f32.xlu0 %v4705
        %v4707 = vpop.xlane.xlu0 %4706
        %v4708 = vsub.f32 %v4687, %v4698
        %v4709 = vsub.f32 %v4689, %v4701
        %v4710 = vsub.f32 %v4692, %v4704
        %v4711 = vsub.f32 %v4694, %v4707
        %v4712 = vmul.f32 %v4708, 1.442695
        %v4713 = vpow.pop %v4712
        %v4714 = vmul.f32 %v4709, 1.442695
        %v4715 = vpow.pop %v4714
        %v4716 = vmul.f32 %v4710, 1.442695
        %v4717 = vpow.pop %v4716
        %v4718 = vmul.f32 %v4711, 1.442695
        %v4719 = vpow.pop %v4718
        %v4720 = vsel %vm492, %v4713, 0.0
        %4721 = vadd.xlane.f32.xlu0 %v4720
        %v4722 = vpop.xlane.xlu0 %4721
        %v4723 = vsel %vm492, %v4715, 0.0
        %4724 = vadd.xlane.f32.xlu0 %v4723
        %v4725 = vpop.xlane.xlu0 %4724
        %v4726 = vsel %vm492, %v4717, 0.0
        %4727 = vadd.xlane.f32.xlu0 %v4726
        %v4728 = vpop.xlane.xlu0 %4727
        %v4729 = vsel %vm492, %v4719, 0.0
        %4730 = vadd.xlane.f32.xlu0 %v4729
        %v4731 = vpop.xlane.xlu0 %4730
        %v4732 = vrcp.pop %v4722
        %v4733 = vrcp.pop %v4725
        %v4734 = vrcp.pop %v4728
        %v4735 = vrcp.pop %v4731
        %v4736 = vmul.f32 %v4713, %v4732
        %v4737 = vmul.f32 %v4715, %v4733
        %v4738 = vmul.f32 %v4717, %v4734
        %v4739 = vmul.f32 %v4719, %v4735
        %v4740 = vpack.c.bf16 %v4737, %v4736
        %v4741 = vpack.c.bf16 %v4739, %v4738
        %v4742 = vpack.c.bf16 %v4602, %v4600
        %v4743 = vpack.c.bf16 %v4607, %v4605
        %v4745 = vsel %vm492, %v4740, 0
        %v4748 = vsel %vm492, %v4741, 0
        %4750 = vmatpush.bf16.msra.mxu0 0
        %4751 = vmatpush.bf16.msra.mxu0 0
        %4752 = vmatpush.bf16.msra.mxu0 0
        %4753 = vmatpush.bf16.msra.mxu0 0
        %4754 = vmatpush.bf16.msra.mxu0 0
        %4755 = vmatpush.bf16.msra.mxu0 0
        %4756 = vmatpush.bf16.msra.mxu0 %v4743
        %4757 = vmatpush.bf16.msra.mxu0 %v4742
        %4758 = vmatmul.bf16.gmra.mxu0 %v4745
        %v4759 = vpop.f32.mrf.mxu0
        %v4760 = vadd.f32 0.0, %v4759
        %v4761 = vpop.f32.mrf.mxu0
        %v4762 = vadd.f32 0.0, %v4761
        %4763 = vmatmul.bf16.gmra.mxu0 %v4748
        %v4764 = vpop.f32.mrf.mxu0
        %v4765 = vadd.f32 0.0, %v4764
        %v4766 = vpop.f32.mrf.mxu0
        %v4767 = vadd.f32 0.0, %v4766
        %4768 = vdwg.mxu0
        %4771 = vrot.lane.b32.xlu0 %v4661, 64
        %v4772 = vpop.permute.xlu0 %4771
        %4773 = vrot.lane.b32.xlu0 %v4662, 64
        %v4774 = vpop.permute.xlu0 %4773
        %4777 = vrot.lane.b32.xlu0 %v4663, 64
        %v4778 = vpop.permute.xlu0 %4777
        %4779 = vrot.lane.b32.xlu0 %v4664, 64
        %v4780 = vpop.permute.xlu0 %4779
        %v4782 = vsel %vm497, %v4772, 0
        %v4785 = vsel %vm497, %v4774, 0
        %v4788 = vsel %vm497, %v4778, 0
        %v4791 = vsel %vm497, %v4780, 0
        %4793 = vmatpush.bf16.xpose.msra.mxu0 0
        %4794 = vmatpush.bf16.xpose.msra.mxu0 0
        %4795 = vmatpush.bf16.xpose.msra.mxu0 0
        %4796 = vmatpush.bf16.xpose.msra.mxu0 0
        %4797 = vmatpush.bf16.xpose.msra.mxu0 0
        %4798 = vmatpush.bf16.xpose.msra.mxu0 0
        %4799 = vmatpush.bf16.xpose.msra.mxu0 %v4791
        %4800 = vmatpush.bf16.xpose.msra.mxu0 %v4788
        %4801 = vmatmul.bf16.gmra.mxu0 %v4782
        %v4802 = vpop.f32.mrf.mxu0
        %v4803 = vadd.f32 %v448, %v4802
        %v4804 = vpop.f32.mrf.mxu0
        %v4805 = vadd.f32 %v449, %v4804
        %4806 = vmatmul.bf16.gmra.mxu0 %v4785
        %v4807 = vpop.f32.mrf.mxu0
        %v4808 = vadd.f32 %v450, %v4807
        %v4809 = vpop.f32.mrf.mxu0
        %v4810 = vadd.f32 %v451, %v4809
        %4811 = vdwg.mxu0
        %v4812 = vsel %vm492, %v4803, -inf
        %4813 = vmax.xlane.f32.xlu0 %v4812
        %v4814 = vpop.xlane.xlu0 %4813
        %v4815 = vsel %vm492, %v4805, -inf
        %4816 = vmax.xlane.f32.xlu0 %v4815
        %v4817 = vpop.xlane.xlu0 %4816
        %v4818 = vsel %vm492, %v4808, -inf
        %4819 = vmax.xlane.f32.xlu0 %v4818
        %v4820 = vpop.xlane.xlu0 %4819
        %v4821 = vsel %vm492, %v4810, -inf
        %4822 = vmax.xlane.f32.xlu0 %v4821
        %v4823 = vpop.xlane.xlu0 %4822
        %v4824 = vsub.f32 %v4803, %v4814
        %v4825 = vsub.f32 %v4805, %v4817
        %v4826 = vsub.f32 %v4808, %v4820
        %v4827 = vsub.f32 %v4810, %v4823
        %v4828 = vmul.f32 %v4824, 1.442695
        %v4829 = vpow.pop %v4828
        %v4830 = vmul.f32 %v4825, 1.442695
        %v4831 = vpow.pop %v4830
        %v4832 = vmul.f32 %v4826, 1.442695
        %v4833 = vpow.pop %v4832
        %v4834 = vmul.f32 %v4827, 1.442695
        %v4835 = vpow.pop %v4834
        %v4836 = vsel %vm492, %v4829, 0.0
        %4837 = vadd.xlane.f32.xlu0 %v4836
        %v4838 = vpop.xlane.xlu0 %4837
        %v4839 = vsel %vm492, %v4831, 0.0
        %4840 = vadd.xlane.f32.xlu0 %v4839
        %v4841 = vpop.xlane.xlu0 %4840
        %v4842 = vsel %vm492, %v4833, 0.0
        %4843 = vadd.xlane.f32.xlu0 %v4842
        %v4844 = vpop.xlane.xlu0 %4843
        %v4845 = vsel %vm492, %v4835, 0.0
        %4846 = vadd.xlane.f32.xlu0 %v4845
        %v4847 = vpop.xlane.xlu0 %4846
        %v4848 = vrcp.pop %v4838
        %v4849 = vrcp.pop %v4841
        %v4850 = vrcp.pop %v4844
        %v4851 = vrcp.pop %v4847
        %v4852 = vmul.f32 %v4829, %v4848
        %v4853 = vmul.f32 %v4831, %v4849
        %v4854 = vmul.f32 %v4833, %v4850
        %v4855 = vmul.f32 %v4835, %v4851
        %v4856 = vpack.c.bf16 %v4853, %v4852
        %v4857 = vpack.c.bf16 %v4855, %v4854
        %4860 = vrot.lane.b32.xlu0 %v4742, 64
        %v4861 = vpop.permute.xlu0 %4860
        %4862 = vrot.lane.b32.xlu0 %v4743, 64
        %v4863 = vpop.permute.xlu0 %4862
        %v4867 = vsel %vm492, %v4856, 0
        %v4870 = vsel %vm492, %v4857, 0
        %4872 = vmatpush.bf16.msra.mxu0 0
        %4873 = vmatpush.bf16.msra.mxu0 0
        %4874 = vmatpush.bf16.msra.mxu0 0
        %4875 = vmatpush.bf16.msra.mxu0 0
        %4876 = vmatpush.bf16.msra.mxu0 0
        %4877 = vmatpush.bf16.msra.mxu0 0
        %4878 = vmatpush.bf16.msra.mxu0 %v4863
        %4879 = vmatpush.bf16.msra.mxu0 %v4861
        %4880 = vmatmul.bf16.gmra.mxu0 %v4867
        %v4881 = vpop.f32.mrf.mxu0
        %v4882 = vadd.f32 0.0, %v4881
        %v4883 = vpop.f32.mrf.mxu0
        %v4884 = vadd.f32 0.0, %v4883
        %4885 = vmatmul.bf16.gmra.mxu0 %v4870
        %v4886 = vpop.f32.mrf.mxu0
        %v4887 = vadd.f32 0.0, %v4886
        %v4888 = vpop.f32.mrf.mxu0
        %v4889 = vadd.f32 0.0, %v4888
        %4890 = vdwg.mxu0
        %v4891 = vpack.c.bf16 %v4545, %v4543
        %v4892 = vpack.c.bf16 %v4550, %v4548
        %v4893 = vpack.c.bf16 %v4583, %v4581
        %v4894 = vpack.c.bf16 %v4588, %v4586
        %v4896 = vsel %vm497, %v4891, 0
        %v4899 = vsel %vm497, %v4892, 0
        %v4902 = vsel %vm497, %v4893, 0
        %v4905 = vsel %vm497, %v4894, 0
        %4907 = vmatpush.bf16.xpose.msra.mxu0 0
        %4908 = vmatpush.bf16.xpose.msra.mxu0 0
        %4909 = vmatpush.bf16.xpose.msra.mxu0 0
        %4910 = vmatpush.bf16.xpose.msra.mxu0 0
        %4911 = vmatpush.bf16.xpose.msra.mxu0 0
        %4912 = vmatpush.bf16.xpose.msra.mxu0 0
        %4913 = vmatpush.bf16.xpose.msra.mxu0 %v4905
        %4914 = vmatpush.bf16.xpose.msra.mxu0 %v4902
        %4915 = vmatmul.bf16.gmra.mxu0 %v4896
        %v4916 = vpop.f32.mrf.mxu0
        %v4917 = vadd.f32 %v448, %v4916
        %v4918 = vpop.f32.mrf.mxu0
        %v4919 = vadd.f32 %v449, %v4918
        %4920 = vmatmul.bf16.gmra.mxu0 %v4899
        %v4921 = vpop.f32.mrf.mxu0
        %v4922 = vadd.f32 %v450, %v4921
        %v4923 = vpop.f32.mrf.mxu0
        %v4924 = vadd.f32 %v451, %v4923
        %4925 = vdwg.mxu0
        %v4926 = vsel %vm492, %v4917, -inf
        %4927 = vmax.xlane.f32.xlu0 %v4926
        %v4928 = vpop.xlane.xlu0 %4927
        %v4929 = vsel %vm492, %v4919, -inf
        %4930 = vmax.xlane.f32.xlu0 %v4929
        %v4931 = vpop.xlane.xlu0 %4930
        %v4932 = vsel %vm492, %v4922, -inf
        %4933 = vmax.xlane.f32.xlu0 %v4932
        %v4934 = vpop.xlane.xlu0 %4933
        %v4935 = vsel %vm492, %v4924, -inf
        %4936 = vmax.xlane.f32.xlu0 %v4935
        %v4937 = vpop.xlane.xlu0 %4936
        %v4938 = vsub.f32 %v4917, %v4928
        %v4939 = vsub.f32 %v4919, %v4931
        %v4940 = vsub.f32 %v4922, %v4934
        %v4941 = vsub.f32 %v4924, %v4937
        %v4942 = vmul.f32 %v4938, 1.442695
        %v4943 = vpow.pop %v4942
        %v4944 = vmul.f32 %v4939, 1.442695
        %v4945 = vpow.pop %v4944
        %v4946 = vmul.f32 %v4940, 1.442695
        %v4947 = vpow.pop %v4946
        %v4948 = vmul.f32 %v4941, 1.442695
        %v4949 = vpow.pop %v4948
        %v4950 = vsel %vm492, %v4943, 0.0
        %4951 = vadd.xlane.f32.xlu0 %v4950
        %v4952 = vpop.xlane.xlu0 %4951
        %v4953 = vsel %vm492, %v4945, 0.0
        %4954 = vadd.xlane.f32.xlu0 %v4953
        %v4955 = vpop.xlane.xlu0 %4954
        %v4956 = vsel %vm492, %v4947, 0.0
        %4957 = vadd.xlane.f32.xlu0 %v4956
        %v4958 = vpop.xlane.xlu0 %4957
        %v4959 = vsel %vm492, %v4949, 0.0
        %4960 = vadd.xlane.f32.xlu0 %v4959
        %v4961 = vpop.xlane.xlu0 %4960
        %v4962 = vrcp.pop %v4952
        %v4963 = vrcp.pop %v4955
        %v4964 = vrcp.pop %v4958
        %v4965 = vrcp.pop %v4961
        %v4966 = vmul.f32 %v4943, %v4962
        %v4967 = vmul.f32 %v4945, %v4963
        %v4968 = vmul.f32 %v4947, %v4964
        %v4969 = vmul.f32 %v4949, %v4965
        %v4970 = vpack.c.bf16 %v4967, %v4966
        %v4971 = vpack.c.bf16 %v4969, %v4968
        %v4972 = vpack.c.bf16 %v4621, %v4619
        %v4973 = vpack.c.bf16 %v4626, %v4624
        %v4975 = vsel %vm492, %v4970, 0
        %v4978 = vsel %vm492, %v4971, 0
        %4980 = vmatpush.bf16.msra.mxu0 0
        %4981 = vmatpush.bf16.msra.mxu0 0
        %4982 = vmatpush.bf16.msra.mxu0 0
        %4983 = vmatpush.bf16.msra.mxu0 0
        %4984 = vmatpush.bf16.msra.mxu0 0
        %4985 = vmatpush.bf16.msra.mxu0 0
        %4986 = vmatpush.bf16.msra.mxu0 %v4973
        %4987 = vmatpush.bf16.msra.mxu0 %v4972
        %4988 = vmatmul.bf16.gmra.mxu0 %v4975
        %v4989 = vpop.f32.mrf.mxu0
        %v4990 = vadd.f32 0.0, %v4989
        %v4991 = vpop.f32.mrf.mxu0
        %v4992 = vadd.f32 0.0, %v4991
        %4993 = vmatmul.bf16.gmra.mxu0 %v4978
        %v4994 = vpop.f32.mrf.mxu0
        %v4995 = vadd.f32 0.0, %v4994
        %v4996 = vpop.f32.mrf.mxu0
        %v4997 = vadd.f32 0.0, %v4996
        %4998 = vdwg.mxu0
        %5001 = vrot.lane.b32.xlu0 %v4891, 64
        %v5002 = vpop.permute.xlu0 %5001
        %5003 = vrot.lane.b32.xlu0 %v4892, 64
        %v5004 = vpop.permute.xlu0 %5003
        %5007 = vrot.lane.b32.xlu0 %v4893, 64
        %v5008 = vpop.permute.xlu0 %5007
        %5009 = vrot.lane.b32.xlu0 %v4894, 64
        %v5010 = vpop.permute.xlu0 %5009
        %v5012 = vsel %vm497, %v5002, 0
        %v5015 = vsel %vm497, %v5004, 0
        %v5018 = vsel %vm497, %v5008, 0
        %v5021 = vsel %vm497, %v5010, 0
        %5023 = vmatpush.bf16.xpose.msra.mxu0 0
        %5024 = vmatpush.bf16.xpose.msra.mxu0 0
        %5025 = vmatpush.bf16.xpose.msra.mxu0 0
        %5026 = vmatpush.bf16.xpose.msra.mxu0 0
        %5027 = vmatpush.bf16.xpose.msra.mxu0 0
        %5028 = vmatpush.bf16.xpose.msra.mxu0 0
        %5029 = vmatpush.bf16.xpose.msra.mxu0 %v5021
        %5030 = vmatpush.bf16.xpose.msra.mxu0 %v5018
        %5031 = vmatmul.bf16.gmra.mxu0 %v5012
        %v5032 = vpop.f32.mrf.mxu0
        %v5033 = vadd.f32 %v448, %v5032
        %v5034 = vpop.f32.mrf.mxu0
        %v5035 = vadd.f32 %v449, %v5034
        %5036 = vmatmul.bf16.gmra.mxu0 %v5015
        %v5037 = vpop.f32.mrf.mxu0
        %v5038 = vadd.f32 %v450, %v5037
        %v5039 = vpop.f32.mrf.mxu0
        %v5040 = vadd.f32 %v451, %v5039
        %5041 = vdwg.mxu0
        %v5042 = vsel %vm492, %v5033, -inf
        %5043 = vmax.xlane.f32.xlu0 %v5042
        %v5044 = vpop.xlane.xlu0 %5043
        %v5045 = vsel %vm492, %v5035, -inf
        %5046 = vmax.xlane.f32.xlu0 %v5045
        %v5047 = vpop.xlane.xlu0 %5046
        %v5048 = vsel %vm492, %v5038, -inf
        %5049 = vmax.xlane.f32.xlu0 %v5048
        %v5050 = vpop.xlane.xlu0 %5049
        %v5051 = vsel %vm492, %v5040, -inf
        %5052 = vmax.xlane.f32.xlu0 %v5051
        %v5053 = vpop.xlane.xlu0 %5052
        %v5054 = vsub.f32 %v5033, %v5044
        %v5055 = vsub.f32 %v5035, %v5047
        %v5056 = vsub.f32 %v5038, %v5050
        %v5057 = vsub.f32 %v5040, %v5053
        %v5058 = vmul.f32 %v5054, 1.442695
        %v5059 = vpow.pop %v5058
        %v5060 = vmul.f32 %v5055, 1.442695
        %v5061 = vpow.pop %v5060
        %v5062 = vmul.f32 %v5056, 1.442695
        %v5063 = vpow.pop %v5062
        %v5064 = vmul.f32 %v5057, 1.442695
        %v5065 = vpow.pop %v5064
        %v5066 = vsel %vm492, %v5059, 0.0
        %5067 = vadd.xlane.f32.xlu0 %v5066
        %v5068 = vpop.xlane.xlu0 %5067
        %v5069 = vsel %vm492, %v5061, 0.0
        %5070 = vadd.xlane.f32.xlu0 %v5069
        %v5071 = vpop.xlane.xlu0 %5070
        %v5072 = vsel %vm492, %v5063, 0.0
        %5073 = vadd.xlane.f32.xlu0 %v5072
        %v5074 = vpop.xlane.xlu0 %5073
        %v5075 = vsel %vm492, %v5065, 0.0
        %5076 = vadd.xlane.f32.xlu0 %v5075
        %v5077 = vpop.xlane.xlu0 %5076
        %v5078 = vrcp.pop %v5068
        %v5079 = vrcp.pop %v5071
        %v5080 = vrcp.pop %v5074
        %v5081 = vrcp.pop %v5077
        %v5082 = vmul.f32 %v5059, %v5078
        %v5083 = vmul.f32 %v5061, %v5079
        %v5084 = vmul.f32 %v5063, %v5080
        %v5085 = vmul.f32 %v5065, %v5081
        %v5086 = vpack.c.bf16 %v5083, %v5082
        %v5087 = vpack.c.bf16 %v5085, %v5084
        %5090 = vrot.lane.b32.xlu0 %v4972, 64
        %v5091 = vpop.permute.xlu0 %5090
        %5092 = vrot.lane.b32.xlu0 %v4973, 64
        %v5093 = vpop.permute.xlu0 %5092
        %v5097 = vsel %vm492, %v5086, 0
        %v5100 = vsel %vm492, %v5087, 0
        %5102 = vmatpush.bf16.msra.mxu0 0
        %5103 = vmatpush.bf16.msra.mxu0 0
        %5104 = vmatpush.bf16.msra.mxu0 0
        %5105 = vmatpush.bf16.msra.mxu0 0
        %5106 = vmatpush.bf16.msra.mxu0 0
        %5107 = vmatpush.bf16.msra.mxu0 0
        %5108 = vmatpush.bf16.msra.mxu0 %v5093
        %5109 = vmatpush.bf16.msra.mxu0 %v5091
        %5110 = vmatmul.bf16.gmra.mxu0 %v5097
        %v5111 = vpop.f32.mrf.mxu0
        %v5112 = vadd.f32 0.0, %v5111
        %v5113 = vpop.f32.mrf.mxu0
        %v5114 = vadd.f32 0.0, %v5113
        %5115 = vmatmul.bf16.gmra.mxu0 %v5100
        %v5116 = vpop.f32.mrf.mxu0
        %v5117 = vadd.f32 0.0, %v5116
        %v5118 = vpop.f32.mrf.mxu0
        %v5119 = vadd.f32 0.0, %v5118
        %5120 = vdwg.mxu0
        %5125 = vrot.lane.b32.xlu0 %v4882, 64
        %v5126 = vpop.permute.xlu0 %5125
        %5127 = vrot.lane.b32.xlu0 %v4884, 64
        %v5128 = vpop.permute.xlu0 %5127
        %5129 = vrot.lane.b32.xlu0 %v4887, 64
        %v5130 = vpop.permute.xlu0 %5129
        %5131 = vrot.lane.b32.xlu0 %v4889, 64
        %v5132 = vpop.permute.xlu0 %5131
        %5141 = vrot.lane.b32.xlu0 %v5112, 64
        %v5142 = vpop.permute.xlu0 %5141
        %5143 = vrot.lane.b32.xlu0 %v5114, 64
        %v5144 = vpop.permute.xlu0 %5143
        %5145 = vrot.lane.b32.xlu0 %v5117, 64
        %v5146 = vpop.permute.xlu0 %5145
        %5147 = vrot.lane.b32.xlu0 %v5119, 64
        %v5148 = vpop.permute.xlu0 %5147
        %v5153 = vsel %vm497, %v4760, %v5126
        %v5154 = vsel %vm497, %v4762, %v5128
        %v5155 = vsel %vm497, %v4765, %v5130
        %v5156 = vsel %vm497, %v4767, %v5132
        %v5157 = vsel %vm497, %v4990, %v5142
        %v5158 = vsel %vm497, %v4992, %v5144
        %v5159 = vsel %vm497, %v4995, %v5146
        %v5160 = vsel %vm497, %v4997, %v5148
        %v5161 = vpack.c.bf16 %v5154, %v5153
        %v5162 = vpack.c.bf16 %v5158, %v5157
        %v5163 = vpack.c.bf16 %v5156, %v5155
        %v5164 = vpack.c.bf16 %v5160, %v5159
        %v5166 = vperm.slane %v4660, 0
        %v5200 = vunpack.c.l.b16 %v4628
        %v5201 = vunpack.c.l.b16 %v4629
        %v5202 = vunpack.c.l.b16 %v4630
        %v5203 = vunpack.c.l.b16 %v4631
        %v5204 = vunpack.c.l.b16 %v4632
        %v5205 = vunpack.c.l.b16 %v4633
        %v5206 = vunpack.c.l.b16 %v4634
        %v5207 = vunpack.c.l.b16 %v4635
        %v5208 = vunpack.c.l.b16 %v4636
        %v5209 = vunpack.c.l.b16 %v4637
        %v5210 = vunpack.c.l.b16 %v4638
        %v5211 = vunpack.c.l.b16 %v4639
        %v5212 = vunpack.c.l.b16 %v4640
        %v5213 = vunpack.c.l.b16 %v4641
        %v5214 = vunpack.c.l.b16 %v4642
        %v5215 = vunpack.c.l.b16 %v4643
        %v5216 = vunpack.c.l.b16 %v4644
        %v5217 = vunpack.c.l.b16 %v4645
        %v5218 = vunpack.c.l.b16 %v4646
        %v5219 = vunpack.c.l.b16 %v4647
        %v5220 = vunpack.c.l.b16 %v4648
        %v5221 = vunpack.c.l.b16 %v4649
        %v5222 = vunpack.c.l.b16 %v4650
        %v5223 = vunpack.c.l.b16 %v4651
        %v5224 = vunpack.c.l.b16 %v4652
        %v5225 = vunpack.c.l.b16 %v4653
        %v5226 = vunpack.c.l.b16 %v4654
        %v5227 = vunpack.c.l.b16 %v4655
        %v5228 = vunpack.c.l.b16 %v4656
        %v5229 = vunpack.c.l.b16 %v4657
        %v5230 = vunpack.c.l.b16 %v4658
        %v5231 = vunpack.c.l.b16 %v4659
        %v5232 = vpack.c.b16 %v5201, %v5200
        %v5233 = vpack.c.b16 %v5203, %v5202
        %v5234 = vpack.c.b16 %v5205, %v5204
        %v5235 = vpack.c.b16 %v5207, %v5206
        %v5236 = vpack.c.b16 %v5209, %v5208
        %v5237 = vpack.c.b16 %v5211, %v5210
        %v5238 = vpack.c.b16 %v5213, %v5212
        %v5239 = vpack.c.b16 %v5215, %v5214
        %v5240 = vpack.c.b16 %v5217, %v5216
        %v5241 = vpack.c.b16 %v5219, %v5218
        %v5242 = vpack.c.b16 %v5221, %v5220
        %v5243 = vpack.c.b16 %v5223, %v5222
        %v5244 = vpack.c.b16 %v5225, %v5224
        %v5245 = vpack.c.b16 %v5227, %v5226
        %v5246 = vpack.c.b16 %v5229, %v5228
        %v5247 = vpack.c.b16 %v5231, %v5230
        %5264 = vmatpush.bf16.msra.mxu0 %v5239
        %5265 = vmatpush.bf16.msra.mxu0 %v5238
        %5266 = vmatpush.bf16.msra.mxu0 %v5237
        %5267 = vmatpush.bf16.msra.mxu0 %v5236
        %5268 = vmatpush.bf16.msra.mxu0 %v5235
        %5269 = vmatpush.bf16.msra.mxu0 %v5234
        %5270 = vmatpush.bf16.msra.mxu0 %v5233
        %5271 = vmatpush.bf16.msra.mxu0 %v5232
        %5272 = vmatmul.bf16.gmra.mxu0 %v5161
        %v5273 = vpop.f32.mrf.mxu0
        %v5274 = vadd.f32 %v5166, %v5273
        %v5275 = vpop.f32.mrf.mxu0
        %v5276 = vadd.f32 %v5166, %v5275
        %5277 = vmatmul.bf16.gmra.mxu0 %v5163
        %v5278 = vpop.f32.mrf.mxu0
        %v5279 = vadd.f32 %v5166, %v5278
        %v5280 = vpop.f32.mrf.mxu0
        %v5281 = vadd.f32 %v5166, %v5280
        %5282 = vdwg.mxu0
        %5283 = vmatpush.bf16.msra.mxu0 %v5247
        %5284 = vmatpush.bf16.msra.mxu0 %v5246
        %5285 = vmatpush.bf16.msra.mxu0 %v5245
        %5286 = vmatpush.bf16.msra.mxu0 %v5244
        %5287 = vmatpush.bf16.msra.mxu0 %v5243
        %5288 = vmatpush.bf16.msra.mxu0 %v5242
        %5289 = vmatpush.bf16.msra.mxu0 %v5241
        %5290 = vmatpush.bf16.msra.mxu0 %v5240
        %5291 = vmatmul.bf16.gmra.mxu0 %v5162
        %v5292 = vpop.f32.mrf.mxu0
        %v5293 = vadd.f32 %v5274, %v5292
        %v5294 = vpop.f32.mrf.mxu0
        %v5295 = vadd.f32 %v5276, %v5294
        %5296 = vmatmul.bf16.gmra.mxu0 %v5164
        %v5297 = vpop.f32.mrf.mxu0
        %v5298 = vadd.f32 %v5279, %v5297
        %v5299 = vpop.f32.mrf.mxu0
        %v5300 = vadd.f32 %v5281, %v5299
        %5301 = vdwg.mxu0
        %v5302 = vadd.f32 %v4326, %v5293
        %v5303 = vadd.f32 %v4327, %v5295
        %v5304 = vadd.f32 %v4328, %v5298
        %v5305 = vadd.f32 %v4329, %v5300
        %v5306 = vld [vmem:[#allocation2 + $0x19] sm:$0x1]
        %v5307 = vld [vmem:[#allocation2 + $0x1a] sm:$0x1]
        %v5308 = vsel %vm492, %v5302, 0.0
        %5309 = vadd.xlane.f32.xlu0 %v5308
        %v5310 = vpop.xlane.xlu0 %5309
        %v5311 = vsel %vm492, %v5303, 0.0
        %5312 = vadd.xlane.f32.xlu0 %v5311
        %v5313 = vpop.xlane.xlu0 %5312
        %v5314 = vsel %vm492, %v5304, 0.0
        %5315 = vadd.xlane.f32.xlu0 %v5314
        %v5316 = vpop.xlane.xlu0 %5315
        %v5317 = vsel %vm492, %v5305, 0.0
        %5318 = vadd.xlane.f32.xlu0 %v5317
        %v5319 = vpop.xlane.xlu0 %5318
        %v5320 = vmul.f32 %v5310, %v575
        %v5321 = vmul.f32 %v5313, %v575
        %v5322 = vmul.f32 %v5316, %v575
        %v5323 = vmul.f32 %v5319, %v575
        %v5324 = vsub.f32 %v5302, %v5320
        %v5325 = vsub.f32 %v5303, %v5321
        %v5326 = vsub.f32 %v5304, %v5322
        %v5327 = vsub.f32 %v5305, %v5323
        %v5328 = vmul.f32 %v5324, %v5324
        %v5329 = vmul.f32 %v5325, %v5325
        %v5330 = vmul.f32 %v5326, %v5326
        %v5331 = vmul.f32 %v5327, %v5327
        %v5332 = vsel %vm492, %v5328, 0.0
        %5333 = vadd.xlane.f32.xlu0 %v5332
        %v5334 = vpop.xlane.xlu0 %5333
        %v5335 = vsel %vm492, %v5329, 0.0
        %5336 = vadd.xlane.f32.xlu0 %v5335
        %v5337 = vpop.xlane.xlu0 %5336
        %v5338 = vsel %vm492, %v5330, 0.0
        %5339 = vadd.xlane.f32.xlu0 %v5338
        %v5340 = vpop.xlane.xlu0 %5339
        %v5341 = vsel %vm492, %v5331, 0.0
        %5342 = vadd.xlane.f32.xlu0 %v5341
        %v5343 = vpop.xlane.xlu0 %5342
        %v5344 = vmul.f32 %v5334, %v575
        %v5345 = vmul.f32 %v5337, %v575
        %v5346 = vmul.f32 %v5340, %v575
        %v5347 = vmul.f32 %v5343, %v575
        %v5348 = vadd.f32 %v5344, 1e-05
        %v5349 = vadd.f32 %v5345, 1e-05
        %v5350 = vadd.f32 %v5346, 1e-05
        %v5351 = vadd.f32 %v5347, 1e-05
        %v5352 = vrsqrt.pop %v5348
        %v5353 = vmul.f32 %v5352, %v5348
        %v5354 = vmul.f32 %v5353, %v5352
        %v5355 = vmul.f32 0.5, %v5354
        %v5356 = vsub.f32 1.5, %v5355
        %v5357 = vmul.f32 %v5352, %v5356
        %vm5358 = vweird.f32 %v5348
        %vm5359 = vweird.f32 %v5352
        %vm5360 = vmor %vm5358, %vm5359
        %v5361 = vsel %vm5360, %v5352, %v5357
        %v5362 = vrsqrt.pop %v5349
        %v5363 = vmul.f32 %v5362, %v5349
        %v5364 = vmul.f32 %v5363, %v5362
        %v5365 = vmul.f32 0.5, %v5364
        %v5366 = vsub.f32 1.5, %v5365
        %v5367 = vmul.f32 %v5362, %v5366
        %vm5368 = vweird.f32 %v5349
        %vm5369 = vweird.f32 %v5362
        %vm5370 = vmor %vm5368, %vm5369
        %v5371 = vsel %vm5370, %v5362, %v5367
        %v5372 = vrsqrt.pop %v5350
        %v5373 = vmul.f32 %v5372, %v5350
        %v5374 = vmul.f32 %v5373, %v5372
        %v5375 = vmul.f32 0.5, %v5374
        %v5376 = vsub.f32 1.5, %v5375
        %v5377 = vmul.f32 %v5372, %v5376
        %vm5378 = vweird.f32 %v5350
        %vm5379 = vweird.f32 %v5372
        %vm5380 = vmor %vm5378, %vm5379
        %v5381 = vsel %vm5380, %v5372, %v5377
        %v5382 = vrsqrt.pop %v5351
        %v5383 = vmul.f32 %v5382, %v5351
        %v5384 = vmul.f32 %v5383, %v5382
        %v5385 = vmul.f32 0.5, %v5384
        %v5386 = vsub.f32 1.5, %v5385
        %v5387 = vmul.f32 %v5382, %v5386
        %vm5388 = vweird.f32 %v5351
        %vm5389 = vweird.f32 %v5382
        %vm5390 = vmor %vm5388, %vm5389
        %v5391 = vsel %vm5390, %v5382, %v5387
        %v5392 = vmul.f32 %v5324, %v5361
        %v5393 = vmul.f32 %v5325, %v5371
        %v5394 = vmul.f32 %v5326, %v5381
        %v5395 = vmul.f32 %v5327, %v5391
        %v5397 = vperm.slane %v5306, 0
        %v5399 = vmul.f32 %v5392, %v5397
        %v5400 = vmul.f32 %v5393, %v5397
        %v5401 = vmul.f32 %v5394, %v5397
        %v5402 = vmul.f32 %v5395, %v5397
        %v5404 = vperm.slane %v5307, 0
        %v5406 = vadd.f32 %v5399, %v5404
        %v5407 = vadd.f32 %v5400, %v5404
        %v5408 = vadd.f32 %v5401, %v5404
        %v5409 = vadd.f32 %v5402, %v5404
        %v5410 = vld [vmem:[%s4 + $0x6c] sm:$0xf]
        %v5411 = vld [vmem:[%s4 + $0x10c] sm:$0xf]
        %v5412 = vld [vmem:[%s4 + $0x1ac] sm:$0xf]
        %v5413 = vld [vmem:[%s4 + $0x24c] sm:$0xf]
        %v5414 = vld [vmem:[#allocation2 + $0x1b] sm:$0x1]
        %v5415 = vld [vmem:[#allocation6 + $0xc] sm:$0xf]
        %v5416 = vld [vmem:[#allocation6 + $0x28] sm:$0xf]
        %v5417 = vld [vmem:[#allocation6 + $0x44] sm:$0xf]
        %v5418 = vld [vmem:[#allocation6 + $0x60] sm:$0xf]
        %v5419 = vld [vmem:[#allocation6 + $0x7c] sm:$0xf]
        %v5420 = vld [vmem:[#allocation6 + $0x98] sm:$0xf]
        %v5421 = vld [vmem:[#allocation6 + $0xb4] sm:$0xf]
        %v5422 = vld [vmem:[#allocation6 + $0xd0] sm:$0xf]
        %v5423 = vld [vmem:[#allocation6 + $0xec] sm:$0xf]
        %v5424 = vld [vmem:[#allocation6 + $0x108] sm:$0xf]
        %v5425 = vld [vmem:[#allocation6 + $0x124] sm:$0xf]
        %v5426 = vld [vmem:[#allocation6 + $0x140] sm:$0xf]
        %v5427 = vld [vmem:[#allocation6 + $0x15c] sm:$0xf]
        %v5428 = vld [vmem:[#allocation6 + $0x178] sm:$0xf]
        %v5429 = vld [vmem:[#allocation6 + $0x194] sm:$0xf]
        %v5430 = vld [vmem:[#allocation6 + $0x1b0] sm:$0xf]
        %v5431 = vld [vmem:[#allocation2 + $0x1c] sm:$0x1]
        %v5432 = vpack.c.bf16 %v5407, %v5406
        %v5433 = vpack.c.bf16 %v5409, %v5408
        %v5435 = vperm.slane %v5414, 0
        %v5441 = vunpack.c.l.b16 %v5410
        %v5442 = vunpack.c.l.b16 %v5411
        %v5443 = vunpack.c.l.b16 %v5412
        %v5444 = vunpack.c.l.b16 %v5413
        %v5445 = vpack.c.b16 %v5442, %v5441
        %v5446 = vpack.c.b16 %v5444, %v5443
        %v5450 = vsel %vm492, %v5432, 0
        %v5453 = vsel %vm492, %v5433, 0
        %5455 = vmatpush.bf16.msra.mxu0 0
        %5456 = vmatpush.bf16.msra.mxu0 0
        %5457 = vmatpush.bf16.msra.mxu0 0
        %5458 = vmatpush.bf16.msra.mxu0 0
        %5459 = vmatpush.bf16.msra.mxu0 0
        %5460 = vmatpush.bf16.msra.mxu0 0
        %5461 = vmatpush.bf16.msra.mxu0 %v5446
        %5462 = vmatpush.bf16.msra.mxu0 %v5445
        %5463 = vmatmul.bf16.gmra.mxu0 %v5450
        %v5464 = vpop.f32.mrf.mxu0
        %v5465 = vadd.f32 %v5435, %v5464
        %v5466 = vpop.f32.mrf.mxu0
        %v5467 = vadd.f32 %v5435, %v5466
        %5468 = vmatmul.bf16.gmra.mxu0 %v5453
        %v5469 = vpop.f32.mrf.mxu0
        %v5470 = vadd.f32 %v5435, %v5469
        %v5471 = vpop.f32.mrf.mxu0
        %v5472 = vadd.f32 %v5435, %v5471
        %5473 = vdwg.mxu0
        %v5474 = vmul.f32 %v5465, 0.5
        %v5475 = vmul.f32 %v5467, 0.5
        %v5476 = vmul.f32 %v5470, 0.5
        %v5477 = vmul.f32 %v5472, 0.5
        %v5478 = vmul.f32 %v5465, 0.044715
        %v5479 = vmul.f32 %v5467, 0.044715
        %v5480 = vmul.f32 %v5470, 0.044715
        %v5481 = vmul.f32 %v5472, 0.044715
        %v5482 = vmul.f32 %v5478, %v5465
        %v5483 = vmul.f32 %v5479, %v5467
        %v5484 = vmul.f32 %v5480, %v5470
        %v5485 = vmul.f32 %v5481, %v5472
        %v5486 = vmul.f32 %v5482, %v5465
        %v5487 = vmul.f32 %v5483, %v5467
        %v5488 = vmul.f32 %v5484, %v5470
        %v5489 = vmul.f32 %v5485, %v5472
        %v5490 = vadd.f32 %v5465, %v5486
        %v5491 = vadd.f32 %v5467, %v5487
        %v5492 = vadd.f32 %v5470, %v5488
        %v5493 = vadd.f32 %v5472, %v5489
        %v5494 = vmul.f32 %v5490, 0.7978846
        %v5495 = vmul.f32 %v5491, 0.7978846
        %v5496 = vmul.f32 %v5492, 0.7978846
        %v5497 = vmul.f32 %v5493, 0.7978846
        %v5498 = vtanh.pop %v5494
        %v5499 = vtanh.pop %v5495
        %v5500 = vtanh.pop %v5496
        %v5501 = vtanh.pop %v5497
        %v5502 = vadd.f32 %v5498, 1.0
        %v5503 = vadd.f32 %v5499, 1.0
        %v5504 = vadd.f32 %v5500, 1.0
        %v5505 = vadd.f32 %v5501, 1.0
        %v5506 = vmul.f32 %v5474, %v5502
        %v5507 = vmul.f32 %v5475, %v5503
        %v5508 = vmul.f32 %v5476, %v5504
        %v5509 = vmul.f32 %v5477, %v5505
        %v5510 = vpack.c.bf16 %v5507, %v5506
        %v5511 = vpack.c.bf16 %v5509, %v5508
        %v5513 = vperm.slane %v5431, 0
        %v5531 = vunpack.c.l.b16 %v5415
        %v5532 = vunpack.c.l.b16 %v5416
        %v5533 = vunpack.c.l.b16 %v5417
        %v5534 = vunpack.c.l.b16 %v5418
        %v5535 = vunpack.c.l.b16 %v5419
        %v5536 = vunpack.c.l.b16 %v5420
        %v5537 = vunpack.c.l.b16 %v5421
        %v5538 = vunpack.c.l.b16 %v5422
        %v5539 = vunpack.c.l.b16 %v5423
        %v5540 = vunpack.c.l.b16 %v5424
        %v5541 = vunpack.c.l.b16 %v5425
        %v5542 = vunpack.c.l.b16 %v5426
        %v5543 = vunpack.c.l.b16 %v5427
        %v5544 = vunpack.c.l.b16 %v5428
        %v5545 = vunpack.c.l.b16 %v5429
        %v5546 = vunpack.c.l.b16 %v5430
        %v5547 = vpack.c.b16 %v5532, %v5531
        %v5548 = vpack.c.b16 %v5534, %v5533
        %v5549 = vpack.c.b16 %v5536, %v5535
        %v5550 = vpack.c.b16 %v5538, %v5537
        %v5551 = vpack.c.b16 %v5540, %v5539
        %v5552 = vpack.c.b16 %v5542, %v5541
        %v5553 = vpack.c.b16 %v5544, %v5543
        %v5554 = vpack.c.b16 %v5546, %v5545
        %5563 = vmatpush.bf16.msra.mxu0 %v5554
        %5564 = vmatpush.bf16.msra.mxu0 %v5553
        %5565 = vmatpush.bf16.msra.mxu0 %v5552
        %5566 = vmatpush.bf16.msra.mxu0 %v5551
        %5567 = vmatpush.bf16.msra.mxu0 %v5550
        %5568 = vmatpush.bf16.msra.mxu0 %v5549
        %5569 = vmatpush.bf16.msra.mxu0 %v5548
        %5570 = vmatpush.bf16.msra.mxu0 %v5547
        %5571 = vmatmul.bf16.gmra.mxu0 %v5510
        %v5572 = vpop.f32.mrf.mxu0
        %v5573 = vadd.f32 %v5513, %v5572
        %v5574 = vpop.f32.mrf.mxu0
        %v5575 = vadd.f32 %v5513, %v5574
        %5576 = vmatmul.bf16.gmra.mxu0 %v5511
        %v5577 = vpop.f32.mrf.mxu0
        %v5578 = vadd.f32 %v5513, %v5577
        %v5579 = vpop.f32.mrf.mxu0
        %v5580 = vadd.f32 %v5513, %v5579
        %5581 = vdwg.mxu0
        %v5582 = vadd.f32 %v5302, %v5573
        %v5583 = vadd.f32 %v5303, %v5575
        %v5584 = vadd.f32 %v5304, %v5578
        %v5585 = vadd.f32 %v5305, %v5580
        %v5586 = vld [vmem:[#allocation2 + $0x1d] sm:$0x1]
        %v5587 = vld [vmem:[#allocation2 + $0x1e] sm:$0x1]
        %v5588 = vsel %vm492, %v5582, 0.0
        %5589 = vadd.xlane.f32.xlu0 %v5588
        %v5590 = vpop.xlane.xlu0 %5589
        %v5591 = vsel %vm492, %v5583, 0.0
        %5592 = vadd.xlane.f32.xlu0 %v5591
        %v5593 = vpop.xlane.xlu0 %5592
        %v5594 = vsel %vm492, %v5584, 0.0
        %5595 = vadd.xlane.f32.xlu0 %v5594
        %v5596 = vpop.xlane.xlu0 %5595
        %v5597 = vsel %vm492, %v5585, 0.0
        %5598 = vadd.xlane.f32.xlu0 %v5597
        %v5599 = vpop.xlane.xlu0 %5598
        %v5600 = vmul.f32 %v5590, %v575
        %v5601 = vmul.f32 %v5593, %v575
        %v5602 = vmul.f32 %v5596, %v575
        %v5603 = vmul.f32 %v5599, %v575
        %v5604 = vsub.f32 %v5582, %v5600
        %v5605 = vsub.f32 %v5583, %v5601
        %v5606 = vsub.f32 %v5584, %v5602
        %v5607 = vsub.f32 %v5585, %v5603
        %v5608 = vmul.f32 %v5604, %v5604
        %v5609 = vmul.f32 %v5605, %v5605
        %v5610 = vmul.f32 %v5606, %v5606
        %v5611 = vmul.f32 %v5607, %v5607
        %v5612 = vsel %vm492, %v5608, 0.0
        %5613 = vadd.xlane.f32.xlu0 %v5612
        %v5614 = vpop.xlane.xlu0 %5613
        %v5615 = vsel %vm492, %v5609, 0.0
        %5616 = vadd.xlane.f32.xlu0 %v5615
        %v5617 = vpop.xlane.xlu0 %5616
        %v5618 = vsel %vm492, %v5610, 0.0
        %5619 = vadd.xlane.f32.xlu0 %v5618
        %v5620 = vpop.xlane.xlu0 %5619
        %v5621 = vsel %vm492, %v5611, 0.0
        %5622 = vadd.xlane.f32.xlu0 %v5621
        %v5623 = vpop.xlane.xlu0 %5622
        %v5624 = vmul.f32 %v5614, %v575
        %v5625 = vmul.f32 %v5617, %v575
        %v5626 = vmul.f32 %v5620, %v575
        %v5627 = vmul.f32 %v5623, %v575
        %v5628 = vadd.f32 %v5624, 1e-05
        %v5629 = vadd.f32 %v5625, 1e-05
        %v5630 = vadd.f32 %v5626, 1e-05
        %v5631 = vadd.f32 %v5627, 1e-05
        %v5632 = vrsqrt.pop %v5628
        %v5633 = vmul.f32 %v5632, %v5628
        %v5634 = vmul.f32 %v5633, %v5632
        %v5635 = vmul.f32 0.5, %v5634
        %v5636 = vsub.f32 1.5, %v5635
        %v5637 = vmul.f32 %v5632, %v5636
        %vm5638 = vweird.f32 %v5628
        %vm5639 = vweird.f32 %v5632
        %vm5640 = vmor %vm5638, %vm5639
        %v5641 = vsel %vm5640, %v5632, %v5637
        %v5642 = vrsqrt.pop %v5629
        %v5643 = vmul.f32 %v5642, %v5629
        %v5644 = vmul.f32 %v5643, %v5642
        %v5645 = vmul.f32 0.5, %v5644
        %v5646 = vsub.f32 1.5, %v5645
        %v5647 = vmul.f32 %v5642, %v5646
        %vm5648 = vweird.f32 %v5629
        %vm5649 = vweird.f32 %v5642
        %vm5650 = vmor %vm5648, %vm5649
        %v5651 = vsel %vm5650, %v5642, %v5647
        %v5652 = vrsqrt.pop %v5630
        %v5653 = vmul.f32 %v5652, %v5630
        %v5654 = vmul.f32 %v5653, %v5652
        %v5655 = vmul.f32 0.5, %v5654
        %v5656 = vsub.f32 1.5, %v5655
        %v5657 = vmul.f32 %v5652, %v5656
        %vm5658 = vweird.f32 %v5630
        %vm5659 = vweird.f32 %v5652
        %vm5660 = vmor %vm5658, %vm5659
        %v5661 = vsel %vm5660, %v5652, %v5657
        %v5662 = vrsqrt.pop %v5631
        %v5663 = vmul.f32 %v5662, %v5631
        %v5664 = vmul.f32 %v5663, %v5662
        %v5665 = vmul.f32 0.5, %v5664
        %v5666 = vsub.f32 1.5, %v5665
        %v5667 = vmul.f32 %v5662, %v5666
        %vm5668 = vweird.f32 %v5631
        %vm5669 = vweird.f32 %v5662
        %vm5670 = vmor %vm5668, %vm5669
        %v5671 = vsel %vm5670, %v5662, %v5667
        %v5672 = vmul.f32 %v5604, %v5641
        %v5673 = vmul.f32 %v5605, %v5651
        %v5674 = vmul.f32 %v5606, %v5661
        %v5675 = vmul.f32 %v5607, %v5671
        %v5677 = vperm.slane %v5586, 0
        %v5679 = vmul.f32 %v5672, %v5677
        %v5680 = vmul.f32 %v5673, %v5677
        %v5681 = vmul.f32 %v5674, %v5677
        %v5682 = vmul.f32 %v5675, %v5677
        %v5684 = vperm.slane %v5587, 0
        %v5686 = vadd.f32 %v5679, %v5684
        %v5687 = vadd.f32 %v5680, %v5684
        %v5688 = vadd.f32 %v5681, %v5684
        %v5689 = vadd.f32 %v5682, %v5684
        %v5690 = vld [vmem:[#allocation2 + $0x1f] sm:$0x1]
        %v5691 = vld [vmem:[#allocation2 + $0x20] sm:$0x1]
        %v5692 = vsel %vm492, %v542, 0.0
        %5693 = vadd.xlane.f32.xlu0 %v5692
        %v5694 = vpop.xlane.xlu0 %5693
        %v5695 = vsel %vm492, %v544, 0.0
        %5696 = vadd.xlane.f32.xlu0 %v5695
        %v5697 = vpop.xlane.xlu0 %5696
        %v5698 = vsel %vm492, %v547, 0.0
        %5699 = vadd.xlane.f32.xlu0 %v5698
        %v5700 = vpop.xlane.xlu0 %5699
        %v5701 = vsel %vm492, %v549, 0.0
        %5702 = vadd.xlane.f32.xlu0 %v5701
        %v5703 = vpop.xlane.xlu0 %5702
        %v5704 = vmul.f32 %v5694, %v575
        %v5705 = vmul.f32 %v5697, %v575
        %v5706 = vmul.f32 %v5700, %v575
        %v5707 = vmul.f32 %v5703, %v575
        %v5708 = vsub.f32 %v542, %v5704
        %v5709 = vsub.f32 %v544, %v5705
        %v5710 = vsub.f32 %v547, %v5706
        %v5711 = vsub.f32 %v549, %v5707
        %v5712 = vmul.f32 %v5708, %v5708
        %v5713 = vmul.f32 %v5709, %v5709
        %v5714 = vmul.f32 %v5710, %v5710
        %v5715 = vmul.f32 %v5711, %v5711
        %v5716 = vsel %vm492, %v5712, 0.0
        %5717 = vadd.xlane.f32.xlu0 %v5716
        %v5718 = vpop.xlane.xlu0 %5717
        %v5719 = vsel %vm492, %v5713, 0.0
        %5720 = vadd.xlane.f32.xlu0 %v5719
        %v5721 = vpop.xlane.xlu0 %5720
        %v5722 = vsel %vm492, %v5714, 0.0
        %5723 = vadd.xlane.f32.xlu0 %v5722
        %v5724 = vpop.xlane.xlu0 %5723
        %v5725 = vsel %vm492, %v5715, 0.0
        %5726 = vadd.xlane.f32.xlu0 %v5725
        %v5727 = vpop.xlane.xlu0 %5726
        %v5728 = vmul.f32 %v5718, %v575
        %v5729 = vmul.f32 %v5721, %v575
        %v5730 = vmul.f32 %v5724, %v575
        %v5731 = vmul.f32 %v5727, %v575
        %v5732 = vadd.f32 %v5728, 1e-05
        %v5733 = vadd.f32 %v5729, 1e-05
        %v5734 = vadd.f32 %v5730, 1e-05
        %v5735 = vadd.f32 %v5731, 1e-05
        %v5736 = vrsqrt.pop %v5732
        %v5737 = vmul.f32 %v5736, %v5732
        %v5738 = vmul.f32 %v5737, %v5736
        %v5739 = vmul.f32 0.5, %v5738
        %v5740 = vsub.f32 1.5, %v5739
        %v5741 = vmul.f32 %v5736, %v5740
        %vm5742 = vweird.f32 %v5732
        %vm5743 = vweird.f32 %v5736
        %vm5744 = vmor %vm5742, %vm5743
        %v5745 = vsel %vm5744, %v5736, %v5741
        %v5746 = vrsqrt.pop %v5733
        %v5747 = vmul.f32 %v5746, %v5733
        %v5748 = vmul.f32 %v5747, %v5746
        %v5749 = vmul.f32 0.5, %v5748
        %v5750 = vsub.f32 1.5, %v5749
        %v5751 = vmul.f32 %v5746, %v5750
        %vm5752 = vweird.f32 %v5733
        %vm5753 = vweird.f32 %v5746
        %vm5754 = vmor %vm5752, %vm5753
        %v5755 = vsel %vm5754, %v5746, %v5751
        %v5756 = vrsqrt.pop %v5734
        %v5757 = vmul.f32 %v5756, %v5734
        %v5758 = vmul.f32 %v5757, %v5756
        %v5759 = vmul.f32 0.5, %v5758
        %v5760 = vsub.f32 1.5, %v5759
        %v5761 = vmul.f32 %v5756, %v5760
        %vm5762 = vweird.f32 %v5734
        %vm5763 = vweird.f32 %v5756
        %vm5764 = vmor %vm5762, %vm5763
        %v5765 = vsel %vm5764, %v5756, %v5761
        %v5766 = vrsqrt.pop %v5735
        %v5767 = vmul.f32 %v5766, %v5735
        %v5768 = vmul.f32 %v5767, %v5766
        %v5769 = vmul.f32 0.5, %v5768
        %v5770 = vsub.f32 1.5, %v5769
        %v5771 = vmul.f32 %v5766, %v5770
        %vm5772 = vweird.f32 %v5735
        %vm5773 = vweird.f32 %v5766
        %vm5774 = vmor %vm5772, %vm5773
        %v5775 = vsel %vm5774, %v5766, %v5771
        %v5776 = vmul.f32 %v5708, %v5745
        %v5777 = vmul.f32 %v5709, %v5755
        %v5778 = vmul.f32 %v5710, %v5765
        %v5779 = vmul.f32 %v5711, %v5775
        %v5781 = vperm.slane %v5690, 0
        %v5783 = vmul.f32 %v5776, %v5781
        %v5784 = vmul.f32 %v5777, %v5781
        %v5785 = vmul.f32 %v5778, %v5781
        %v5786 = vmul.f32 %v5779, %v5781
        %v5788 = vperm.slane %v5691, 0
        %v5790 = vadd.f32 %v5783, %v5788
        %v5791 = vadd.f32 %v5784, %v5788
        %v5792 = vadd.f32 %v5785, %v5788
        %v5793 = vadd.f32 %v5786, %v5788
        %v5794 = vld [vmem:[%s4 + $0x70] sm:$0xf]
        %v5795 = vld [vmem:[%s4 + $0x110] sm:$0xf]
        %v5796 = vld [vmem:[%s4 + $0x1b0] sm:$0xf]
        %v5797 = vld [vmem:[%s4 + $0x250] sm:$0xf]
        %v5798 = vpack.c.bf16 %v5687, %v5686
        %v5799 = vpack.c.bf16 %v5689, %v5688
        %v5804 = vunpack.c.l.b16 %v5794
        %v5805 = vunpack.c.l.b16 %v5795
        %v5806 = vunpack.c.l.b16 %v5796
        %v5807 = vunpack.c.l.b16 %v5797
        %v5808 = vpack.c.b16 %v5805, %v5804
        %v5809 = vpack.c.b16 %v5807, %v5806
        %v5813 = vsel %vm492, %v5798, 0
        %v5816 = vsel %vm492, %v5799, 0
        %5818 = vmatpush.bf16.msra.mxu0 0
        %5819 = vmatpush.bf16.msra.mxu0 0
        %5820 = vmatpush.bf16.msra.mxu0 0
        %5821 = vmatpush.bf16.msra.mxu0 0
        %5822 = vmatpush.bf16.msra.mxu0 0
        %5823 = vmatpush.bf16.msra.mxu0 0
        %5824 = vmatpush.bf16.msra.mxu0 %v5809
        %5825 = vmatpush.bf16.msra.mxu0 %v5808
        %5826 = vmatmul.bf16.gmra.mxu0 %v5813
        %v5827 = vpop.f32.mrf.mxu0
        %v5828 = vadd.f32 0.0, %v5827
        %v5829 = vpop.f32.mrf.mxu0
        %v5830 = vadd.f32 0.0, %v5829
        %5831 = vmatmul.bf16.gmra.mxu0 %v5816
        %v5832 = vpop.f32.mrf.mxu0
        %v5833 = vadd.f32 0.0, %v5832
        %v5834 = vpop.f32.mrf.mxu0
        %v5835 = vadd.f32 0.0, %v5834
        %5836 = vdwg.mxu0
        %v5837 = vld [vmem:[%s4 + $0x74] sm:$0xf]
        %v5838 = vld [vmem:[%s4 + $0x114] sm:$0xf]
        %v5839 = vld [vmem:[%s4 + $0x1b4] sm:$0xf]
        %v5840 = vld [vmem:[%s4 + $0x254] sm:$0xf]
        %v5841 = vpack.c.bf16 %v5791, %v5790
        %v5842 = vpack.c.bf16 %v5793, %v5792
        %v5847 = vunpack.c.l.b16 %v5837
        %v5848 = vunpack.c.l.b16 %v5838
        %v5849 = vunpack.c.l.b16 %v5839
        %v5850 = vunpack.c.l.b16 %v5840
        %v5851 = vpack.c.b16 %v5848, %v5847
        %v5852 = vpack.c.b16 %v5850, %v5849
        %v5856 = vsel %vm492, %v5841, 0
        %v5859 = vsel %vm492, %v5842, 0
        %5861 = vmatpush.bf16.msra.mxu0 0
        %5862 = vmatpush.bf16.msra.mxu0 0
        %5863 = vmatpush.bf16.msra.mxu0 0
        %5864 = vmatpush.bf16.msra.mxu0 0
        %5865 = vmatpush.bf16.msra.mxu0 0
        %5866 = vmatpush.bf16.msra.mxu0 0
        %5867 = vmatpush.bf16.msra.mxu0 %v5852
        %5868 = vmatpush.bf16.msra.mxu0 %v5851
        %5869 = vmatmul.bf16.gmra.mxu0 %v5856
        %v5870 = vpop.f32.mrf.mxu0
        %v5871 = vadd.f32 0.0, %v5870
        %v5872 = vpop.f32.mrf.mxu0
        %v5873 = vadd.f32 0.0, %v5872
        %5874 = vmatmul.bf16.gmra.mxu0 %v5859
        %v5875 = vpop.f32.mrf.mxu0
        %v5876 = vadd.f32 0.0, %v5875
        %v5877 = vpop.f32.mrf.mxu0
        %v5878 = vadd.f32 0.0, %v5877
        %5879 = vdwg.mxu0
        %v5880 = vld [vmem:[#allocation4] sm:$0xf]
        %v5881 = vld [vmem:[#allocation4 + $0x10] sm:$0xf]
        %v5882 = vld [vmem:[#allocation4 + $0x20] sm:$0xf]
        %v5883 = vld [vmem:[#allocation4 + $0x30] sm:$0xf]
        %v5884 = vld [vmem:[#allocation4 + $0x40] sm:$0xf]
        %v5885 = vld [vmem:[#allocation4 + $0x50] sm:$0xf]
        %v5886 = vld [vmem:[#allocation4 + $0x60] sm:$0xf]
        %v5887 = vld [vmem:[#allocation4 + $0x70] sm:$0xf]
        %v5888 = vld [vmem:[#allocation2 + $0x21] sm:$0x1]
        %v5889 = vpack.c.bf16 %v5830, %v5828
        %v5890 = vpack.c.bf16 %v5835, %v5833
        %v5891 = vpack.c.bf16 %v5873, %v5871
        %v5892 = vpack.c.bf16 %v5878, %v5876
        %v5894 = vsel %vm497, %v5889, 0
        %v5897 = vsel %vm497, %v5890, 0
        %v5900 = vsel %vm497, %v5891, 0
        %v5903 = vsel %vm497, %v5892, 0
        %5905 = vmatpush.bf16.xpose.msra.mxu0 0
        %5906 = vmatpush.bf16.xpose.msra.mxu0 0
        %5907 = vmatpush.bf16.xpose.msra.mxu0 0
        %5908 = vmatpush.bf16.xpose.msra.mxu0 0
        %5909 = vmatpush.bf16.xpose.msra.mxu0 0
        %5910 = vmatpush.bf16.xpose.msra.mxu0 0
        %5911 = vmatpush.bf16.xpose.msra.mxu0 %v5903
        %5912 = vmatpush.bf16.xpose.msra.mxu0 %v5900
        %5913 = vmatmul.bf16.gmra.mxu0 %v5894
        %v5914 = vpop.f32.mrf.mxu0
        %v5915 = vadd.f32 %v448, %v5914
        %v5916 = vpop.f32.mrf.mxu0
        %v5917 = vadd.f32 %v449, %v5916
        %5918 = vmatmul.bf16.gmra.mxu0 %v5897
        %v5919 = vpop.f32.mrf.mxu0
        %v5920 = vadd.f32 %v450, %v5919
        %v5921 = vpop.f32.mrf.mxu0
        %v5922 = vadd.f32 %v451, %v5921
        %5923 = vdwg.mxu0
        %v5924 = vsel %vm492, %v5915, -inf
        %5925 = vmax.xlane.f32.xlu0 %v5924
        %v5926 = vpop.xlane.xlu0 %5925
        %v5927 = vsel %vm492, %v5917, -inf
        %5928 = vmax.xlane.f32.xlu0 %v5927
        %v5929 = vpop.xlane.xlu0 %5928
        %v5930 = vsel %vm492, %v5920, -inf
        %5931 = vmax.xlane.f32.xlu0 %v5930
        %v5932 = vpop.xlane.xlu0 %5931
        %v5933 = vsel %vm492, %v5922, -inf
        %5934 = vmax.xlane.f32.xlu0 %v5933
        %v5935 = vpop.xlane.xlu0 %5934
        %v5936 = vsub.f32 %v5915, %v5926
        %v5937 = vsub.f32 %v5917, %v5929
        %v5938 = vsub.f32 %v5920, %v5932
        %v5939 = vsub.f32 %v5922, %v5935
        %v5940 = vmul.f32 %v5936, 1.442695
        %v5941 = vpow.pop %v5940
        %v5942 = vmul.f32 %v5937, 1.442695
        %v5943 = vpow.pop %v5942
        %v5944 = vmul.f32 %v5938, 1.442695
        %v5945 = vpow.pop %v5944
        %v5946 = vmul.f32 %v5939, 1.442695
        %v5947 = vpow.pop %v5946
        %v5948 = vsel %vm492, %v5941, 0.0
        %5949 = vadd.xlane.f32.xlu0 %v5948
        %v5950 = vpop.xlane.xlu0 %5949
        %v5951 = vsel %vm492, %v5943, 0.0
        %5952 = vadd.xlane.f32.xlu0 %v5951
        %v5953 = vpop.xlane.xlu0 %5952
        %v5954 = vsel %vm492, %v5945, 0.0
        %5955 = vadd.xlane.f32.xlu0 %v5954
        %v5956 = vpop.xlane.xlu0 %5955
        %v5957 = vsel %vm492, %v5947, 0.0
        %5958 = vadd.xlane.f32.xlu0 %v5957
        %v5959 = vpop.xlane.xlu0 %5958
        %v5960 = vrcp.pop %v5950
        %v5961 = vrcp.pop %v5953
        %v5962 = vrcp.pop %v5956
        %v5963 = vrcp.pop %v5959
        %v5964 = vmul.f32 %v5941, %v5960
        %v5965 = vmul.f32 %v5943, %v5961
        %v5966 = vmul.f32 %v5945, %v5962
        %v5967 = vmul.f32 %v5947, %v5963
        %v5968 = vpack.c.bf16 %v5965, %v5964
        %v5969 = vpack.c.bf16 %v5967, %v5966
        %5972 = vrot.lane.b32.xlu0 %v5891, 64
        %v5973 = vpop.permute.xlu0 %5972
        %5974 = vrot.lane.b32.xlu0 %v5892, 64
        %v5975 = vpop.permute.xlu0 %5974
        %v5979 = vsel %vm492, %v5968, 0
        %v5982 = vsel %vm492, %v5969, 0
        %5984 = vmatpush.bf16.msra.mxu0 0
        %5985 = vmatpush.bf16.msra.mxu0 0
        %5986 = vmatpush.bf16.msra.mxu0 0
        %5987 = vmatpush.bf16.msra.mxu0 0
        %5988 = vmatpush.bf16.msra.mxu0 0
        %5989 = vmatpush.bf16.msra.mxu0 0
        %5990 = vmatpush.bf16.msra.mxu0 %v5975
        %5991 = vmatpush.bf16.msra.mxu0 %v5973
        %5992 = vmatmul.bf16.gmra.mxu0 %v5979
        %v5993 = vpop.f32.mrf.mxu0
        %v5994 = vadd.f32 0.0, %v5993
        %v5995 = vpop.f32.mrf.mxu0
        %v5996 = vadd.f32 0.0, %v5995
        %5997 = vmatmul.bf16.gmra.mxu0 %v5982
        %v5998 = vpop.f32.mrf.mxu0
        %v5999 = vadd.f32 0.0, %v5998
        %v6000 = vpop.f32.mrf.mxu0
        %v6001 = vadd.f32 0.0, %v6000
        %6002 = vdwg.mxu0
        %v6003 = vpack.c.bf16 %v5996, %v5994
        %v6004 = vpack.c.bf16 %v6001, %v5999
        %v6006 = vperm.slane %v5888, 0
        %v6016 = vunpack.c.l.b16 %v5880
        %v6017 = vunpack.c.l.b16 %v5881
        %v6018 = vunpack.c.l.b16 %v5882
        %v6019 = vunpack.c.l.b16 %v5883
        %v6020 = vunpack.c.l.b16 %v5884
        %v6021 = vunpack.c.l.b16 %v5885
        %v6022 = vunpack.c.l.b16 %v5886
        %v6023 = vunpack.c.l.b16 %v5887
        %v6024 = vpack.c.b16 %v6017, %v6016
        %v6025 = vpack.c.b16 %v6019, %v6018
        %v6026 = vpack.c.b16 %v6021, %v6020
        %v6027 = vpack.c.b16 %v6023, %v6022
        %v6033 = vsel %vm497, %v6003, 0
        %v6036 = vsel %vm497, %v6004, 0
        %6038 = vmatpush.bf16.msra.mxu0 0
        %6039 = vmatpush.bf16.msra.mxu0 0
        %6040 = vmatpush.bf16.msra.mxu0 0
        %6041 = vmatpush.bf16.msra.mxu0 0
        %6042 = vmatpush.bf16.msra.mxu0 %v6027
        %6043 = vmatpush.bf16.msra.mxu0 %v6026
        %6044 = vmatpush.bf16.msra.mxu0 %v6025
        %6045 = vmatpush.bf16.msra.mxu0 %v6024
        %6046 = vmatmul.bf16.gmra.mxu0 %v6033
        %v6047 = vpop.f32.mrf.mxu0
        %v6048 = vadd.f32 %v6006, %v6047
        %v6049 = vpop.f32.mrf.mxu0
        %v6050 = vadd.f32 %v6006, %v6049
        %6051 = vmatmul.bf16.gmra.mxu0 %v6036
        %v6052 = vpop.f32.mrf.mxu0
        %v6053 = vadd.f32 %v6006, %v6052
        %v6054 = vpop.f32.mrf.mxu0
        %v6055 = vadd.f32 %v6006, %v6054
        %6056 = vdwg.mxu0
        %v6057 = vadd.f32 %v5582, %v6048
        %v6058 = vadd.f32 %v5583, %v6050
        %v6059 = vadd.f32 %v5584, %v6053
        %v6060 = vadd.f32 %v5585, %v6055
        %v6061 = vld [vmem:[#allocation2 + $0x22] sm:$0x1]
        %v6062 = vld [vmem:[#allocation2 + $0x23] sm:$0x1]
        %v6063 = vsel %vm492, %v6057, 0.0
        %6064 = vadd.xlane.f32.xlu0 %v6063
        %v6065 = vpop.xlane.xlu0 %6064
        %v6066 = vsel %vm492, %v6058, 0.0
        %6067 = vadd.xlane.f32.xlu0 %v6066
        %v6068 = vpop.xlane.xlu0 %6067
        %v6069 = vsel %vm492, %v6059, 0.0
        %6070 = vadd.xlane.f32.xlu0 %v6069
        %v6071 = vpop.xlane.xlu0 %6070
        %v6072 = vsel %vm492, %v6060, 0.0
        %6073 = vadd.xlane.f32.xlu0 %v6072
        %v6074 = vpop.xlane.xlu0 %6073
        %v6075 = vmul.f32 %v6065, %v575
        %v6076 = vmul.f32 %v6068, %v575
        %v6077 = vmul.f32 %v6071, %v575
        %v6078 = vmul.f32 %v6074, %v575
        %v6079 = vsub.f32 %v6057, %v6075
        %v6080 = vsub.f32 %v6058, %v6076
        %v6081 = vsub.f32 %v6059, %v6077
        %v6082 = vsub.f32 %v6060, %v6078
        %v6083 = vmul.f32 %v6079, %v6079
        %v6084 = vmul.f32 %v6080, %v6080
        %v6085 = vmul.f32 %v6081, %v6081
        %v6086 = vmul.f32 %v6082, %v6082
        %v6087 = vsel %vm492, %v6083, 0.0
        %6088 = vadd.xlane.f32.xlu0 %v6087
        %v6089 = vpop.xlane.xlu0 %6088
        %v6090 = vsel %vm492, %v6084, 0.0
        %6091 = vadd.xlane.f32.xlu0 %v6090
        %v6092 = vpop.xlane.xlu0 %6091
        %v6093 = vsel %vm492, %v6085, 0.0
        %6094 = vadd.xlane.f32.xlu0 %v6093
        %v6095 = vpop.xlane.xlu0 %6094
        %v6096 = vsel %vm492, %v6086, 0.0
        %6097 = vadd.xlane.f32.xlu0 %v6096
        %v6098 = vpop.xlane.xlu0 %6097
        %v6099 = vmul.f32 %v6089, %v575
        %v6100 = vmul.f32 %v6092, %v575
        %v6101 = vmul.f32 %v6095, %v575
        %v6102 = vmul.f32 %v6098, %v575
        %v6103 = vadd.f32 %v6099, 1e-05
        %v6104 = vadd.f32 %v6100, 1e-05
        %v6105 = vadd.f32 %v6101, 1e-05
        %v6106 = vadd.f32 %v6102, 1e-05
        %v6107 = vrsqrt.pop %v6103
        %v6108 = vmul.f32 %v6107, %v6103
        %v6109 = vmul.f32 %v6108, %v6107
        %v6110 = vmul.f32 0.5, %v6109
        %v6111 = vsub.f32 1.5, %v6110
        %v6112 = vmul.f32 %v6107, %v6111
        %vm6113 = vweird.f32 %v6103
        %vm6114 = vweird.f32 %v6107
        %vm6115 = vmor %vm6113, %vm6114
        %v6116 = vsel %vm6115, %v6107, %v6112
        %v6117 = vrsqrt.pop %v6104
        %v6118 = vmul.f32 %v6117, %v6104
        %v6119 = vmul.f32 %v6118, %v6117
        %v6120 = vmul.f32 0.5, %v6119
        %v6121 = vsub.f32 1.5, %v6120
        %v6122 = vmul.f32 %v6117, %v6121
        %vm6123 = vweird.f32 %v6104
        %vm6124 = vweird.f32 %v6117
        %vm6125 = vmor %vm6123, %vm6124
        %v6126 = vsel %vm6125, %v6117, %v6122
        %v6127 = vrsqrt.pop %v6105
        %v6128 = vmul.f32 %v6127, %v6105
        %v6129 = vmul.f32 %v6128, %v6127
        %v6130 = vmul.f32 0.5, %v6129
        %v6131 = vsub.f32 1.5, %v6130
        %v6132 = vmul.f32 %v6127, %v6131
        %vm6133 = vweird.f32 %v6105
        %vm6134 = vweird.f32 %v6127
        %vm6135 = vmor %vm6133, %vm6134
        %v6136 = vsel %vm6135, %v6127, %v6132
        %v6137 = vrsqrt.pop %v6106
        %v6138 = vmul.f32 %v6137, %v6106
        %v6139 = vmul.f32 %v6138, %v6137
        %v6140 = vmul.f32 0.5, %v6139
        %v6141 = vsub.f32 1.5, %v6140
        %v6142 = vmul.f32 %v6137, %v6141
        %vm6143 = vweird.f32 %v6106
        %vm6144 = vweird.f32 %v6137
        %vm6145 = vmor %vm6143, %vm6144
        %v6146 = vsel %vm6145, %v6137, %v6142
        %v6147 = vmul.f32 %v6079, %v6116
        %v6148 = vmul.f32 %v6080, %v6126
        %v6149 = vmul.f32 %v6081, %v6136
        %v6150 = vmul.f32 %v6082, %v6146
        %v6152 = vperm.slane %v6061, 0
        %v6154 = vmul.f32 %v6147, %v6152
        %v6155 = vmul.f32 %v6148, %v6152
        %v6156 = vmul.f32 %v6149, %v6152
        %v6157 = vmul.f32 %v6150, %v6152
        %v6159 = vperm.slane %v6062, 0
        %v6161 = vadd.f32 %v6154, %v6159
        %v6162 = vadd.f32 %v6155, %v6159
        %v6163 = vadd.f32 %v6156, %v6159
        %v6164 = vadd.f32 %v6157, %v6159
        %v6165 = vld [vmem:[%s4 + $0x78] sm:$0xf]
        %v6166 = vld [vmem:[%s4 + $0x118] sm:$0xf]
        %v6167 = vld [vmem:[%s4 + $0x1b8] sm:$0xf]
        %v6168 = vld [vmem:[%s4 + $0x258] sm:$0xf]
        %v6169 = vld [vmem:[#allocation2 + $0x24] sm:$0x1]
        %v6170 = vld [vmem:[#allocation6 + $0x10] sm:$0xf]
        %v6171 = vld [vmem:[#allocation6 + $0x2c] sm:$0xf]
        %v6172 = vld [vmem:[#allocation6 + $0x48] sm:$0xf]
        %v6173 = vld [vmem:[#allocation6 + $0x64] sm:$0xf]
        %v6174 = vld [vmem:[#allocation6 + $0x80] sm:$0xf]
        %v6175 = vld [vmem:[#allocation6 + $0x9c] sm:$0xf]
        %v6176 = vld [vmem:[#allocation6 + $0xb8] sm:$0xf]
        %v6177 = vld [vmem:[#allocation6 + $0xd4] sm:$0xf]
        %v6178 = vld [vmem:[#allocation6 + $0xf0] sm:$0xf]
        %v6179 = vld [vmem:[#allocation6 + $0x10c] sm:$0xf]
        %v6180 = vld [vmem:[#allocation6 + $0x128] sm:$0xf]
        %v6181 = vld [vmem:[#allocation6 + $0x144] sm:$0xf]
        %v6182 = vld [vmem:[#allocation6 + $0x160] sm:$0xf]
        %v6183 = vld [vmem:[#allocation6 + $0x17c] sm:$0xf]
        %v6184 = vld [vmem:[#allocation6 + $0x198] sm:$0xf]
        %v6185 = vld [vmem:[#allocation6 + $0x1b4] sm:$0xf]
        %v6186 = vld [vmem:[#allocation2 + $0x25] sm:$0x1]
        %v6187 = vpack.c.bf16 %v6162, %v6161
        %v6188 = vpack.c.bf16 %v6164, %v6163
        %v6190 = vperm.slane %v6169, 0
        %v6196 = vunpack.c.l.b16 %v6165
        %v6197 = vunpack.c.l.b16 %v6166
        %v6198 = vunpack.c.l.b16 %v6167
        %v6199 = vunpack.c.l.b16 %v6168
        %v6200 = vpack.c.b16 %v6197, %v6196
        %v6201 = vpack.c.b16 %v6199, %v6198
        %v6205 = vsel %vm492, %v6187, 0
        %v6208 = vsel %vm492, %v6188, 0
        %6210 = vmatpush.bf16.msra.mxu0 0
        %6211 = vmatpush.bf16.msra.mxu0 0
        %6212 = vmatpush.bf16.msra.mxu0 0
        %6213 = vmatpush.bf16.msra.mxu0 0
        %6214 = vmatpush.bf16.msra.mxu0 0
        %6215 = vmatpush.bf16.msra.mxu0 0
        %6216 = vmatpush.bf16.msra.mxu0 %v6201
        %6217 = vmatpush.bf16.msra.mxu0 %v6200
        %6218 = vmatmul.bf16.gmra.mxu0 %v6205
        %v6219 = vpop.f32.mrf.mxu0
        %v6220 = vadd.f32 %v6190, %v6219
        %v6221 = vpop.f32.mrf.mxu0
        %v6222 = vadd.f32 %v6190, %v6221
        %6223 = vmatmul.bf16.gmra.mxu0 %v6208
        %v6224 = vpop.f32.mrf.mxu0
        %v6225 = vadd.f32 %v6190, %v6224
        %v6226 = vpop.f32.mrf.mxu0
        %v6227 = vadd.f32 %v6190, %v6226
        %6228 = vdwg.mxu0
        %v6229 = vmul.f32 %v6220, 0.5
        %v6230 = vmul.f32 %v6222, 0.5
        %v6231 = vmul.f32 %v6225, 0.5
        %v6232 = vmul.f32 %v6227, 0.5
        %v6233 = vmul.f32 %v6220, 0.044715
        %v6234 = vmul.f32 %v6222, 0.044715
        %v6235 = vmul.f32 %v6225, 0.044715
        %v6236 = vmul.f32 %v6227, 0.044715
        %v6237 = vmul.f32 %v6233, %v6220
        %v6238 = vmul.f32 %v6234, %v6222
        %v6239 = vmul.f32 %v6235, %v6225
        %v6240 = vmul.f32 %v6236, %v6227
        %v6241 = vmul.f32 %v6237, %v6220
        %v6242 = vmul.f32 %v6238, %v6222
        %v6243 = vmul.f32 %v6239, %v6225
        %v6244 = vmul.f32 %v6240, %v6227
        %v6245 = vadd.f32 %v6220, %v6241
        %v6246 = vadd.f32 %v6222, %v6242
        %v6247 = vadd.f32 %v6225, %v6243
        %v6248 = vadd.f32 %v6227, %v6244
        %v6249 = vmul.f32 %v6245, 0.7978846
        %v6250 = vmul.f32 %v6246, 0.7978846
        %v6251 = vmul.f32 %v6247, 0.7978846
        %v6252 = vmul.f32 %v6248, 0.7978846
        %v6253 = vtanh.pop %v6249
        %v6254 = vtanh.pop %v6250
        %v6255 = vtanh.pop %v6251
        %v6256 = vtanh.pop %v6252
        %v6257 = vadd.f32 %v6253, 1.0
        %v6258 = vadd.f32 %v6254, 1.0
        %v6259 = vadd.f32 %v6255, 1.0
        %v6260 = vadd.f32 %v6256, 1.0
        %v6261 = vmul.f32 %v6229, %v6257
        %v6262 = vmul.f32 %v6230, %v6258
        %v6263 = vmul.f32 %v6231, %v6259
        %v6264 = vmul.f32 %v6232, %v6260
        %v6265 = vpack.c.bf16 %v6262, %v6261
        %v6266 = vpack.c.bf16 %v6264, %v6263
        %v6268 = vperm.slane %v6186, 0
        %v6286 = vunpack.c.l.b16 %v6170
        %v6287 = vunpack.c.l.b16 %v6171
        %v6288 = vunpack.c.l.b16 %v6172
        %v6289 = vunpack.c.l.b16 %v6173
        %v6290 = vunpack.c.l.b16 %v6174
        %v6291 = vunpack.c.l.b16 %v6175
        %v6292 = vunpack.c.l.b16 %v6176
        %v6293 = vunpack.c.l.b16 %v6177
        %v6294 = vunpack.c.l.b16 %v6178
        %v6295 = vunpack.c.l.b16 %v6179
        %v6296 = vunpack.c.l.b16 %v6180
        %v6297 = vunpack.c.l.b16 %v6181
        %v6298 = vunpack.c.l.b16 %v6182
        %v6299 = vunpack.c.l.b16 %v6183
        %v6300 = vunpack.c.l.b16 %v6184
        %v6301 = vunpack.c.l.b16 %v6185
        %v6302 = vpack.c.b16 %v6287, %v6286
        %v6303 = vpack.c.b16 %v6289, %v6288
        %v6304 = vpack.c.b16 %v6291, %v6290
        %v6305 = vpack.c.b16 %v6293, %v6292
        %v6306 = vpack.c.b16 %v6295, %v6294
        %v6307 = vpack.c.b16 %v6297, %v6296
        %v6308 = vpack.c.b16 %v6299, %v6298
        %v6309 = vpack.c.b16 %v6301, %v6300
        %6318 = vmatpush.bf16.msra.mxu0 %v6309
        %6319 = vmatpush.bf16.msra.mxu0 %v6308
        %6320 = vmatpush.bf16.msra.mxu0 %v6307
        %6321 = vmatpush.bf16.msra.mxu0 %v6306
        %6322 = vmatpush.bf16.msra.mxu0 %v6305
        %6323 = vmatpush.bf16.msra.mxu0 %v6304
        %6324 = vmatpush.bf16.msra.mxu0 %v6303
        %6325 = vmatpush.bf16.msra.mxu0 %v6302
        %6326 = vmatmul.bf16.gmra.mxu0 %v6265
        %v6327 = vpop.f32.mrf.mxu0
        %v6328 = vadd.f32 %v6268, %v6327
        %v6329 = vpop.f32.mrf.mxu0
        %v6330 = vadd.f32 %v6268, %v6329
        %6331 = vmatmul.bf16.gmra.mxu0 %v6266
        %v6332 = vpop.f32.mrf.mxu0
        %v6333 = vadd.f32 %v6268, %v6332
        %v6334 = vpop.f32.mrf.mxu0
        %v6335 = vadd.f32 %v6268, %v6334
        %6336 = vdwg.mxu0
        %v6337 = vadd.f32 %v6057, %v6328
        %v6338 = vadd.f32 %v6058, %v6330
        %v6339 = vadd.f32 %v6059, %v6333
        %v6340 = vadd.f32 %v6060, %v6335
        %v6341 = vld [vmem:[#allocation2 + $0x26] sm:$0x1]
        %v6342 = vld [vmem:[#allocation2 + $0x27] sm:$0x1]
        %v6343 = vsel %vm492, %v6337, 0.0
        %6344 = vadd.xlane.f32.xlu0 %v6343
        %v6345 = vpop.xlane.xlu0 %6344
        %v6346 = vsel %vm492, %v6338, 0.0
        %6347 = vadd.xlane.f32.xlu0 %v6346
        %v6348 = vpop.xlane.xlu0 %6347
        %v6349 = vsel %vm492, %v6339, 0.0
        %6350 = vadd.xlane.f32.xlu0 %v6349
        %v6351 = vpop.xlane.xlu0 %6350
        %v6352 = vsel %vm492, %v6340, 0.0
        %6353 = vadd.xlane.f32.xlu0 %v6352
        %v6354 = vpop.xlane.xlu0 %6353
        %v6355 = vmul.f32 %v6345, %v575
        %v6356 = vmul.f32 %v6348, %v575
        %v6357 = vmul.f32 %v6351, %v575
        %v6358 = vmul.f32 %v6354, %v575
        %v6359 = vsub.f32 %v6337, %v6355
        %v6360 = vsub.f32 %v6338, %v6356
        %v6361 = vsub.f32 %v6339, %v6357
        %v6362 = vsub.f32 %v6340, %v6358
        %v6363 = vmul.f32 %v6359, %v6359
        %v6364 = vmul.f32 %v6360, %v6360
        %v6365 = vmul.f32 %v6361, %v6361
        %v6366 = vmul.f32 %v6362, %v6362
        %v6367 = vsel %vm492, %v6363, 0.0
        %6368 = vadd.xlane.f32.xlu0 %v6367
        %v6369 = vpop.xlane.xlu0 %6368
        %v6370 = vsel %vm492, %v6364, 0.0
        %6371 = vadd.xlane.f32.xlu0 %v6370
        %v6372 = vpop.xlane.xlu0 %6371
        %v6373 = vsel %vm492, %v6365, 0.0
        %6374 = vadd.xlane.f32.xlu0 %v6373
        %v6375 = vpop.xlane.xlu0 %6374
        %v6376 = vsel %vm492, %v6366, 0.0
        %6377 = vadd.xlane.f32.xlu0 %v6376
        %v6378 = vpop.xlane.xlu0 %6377
        %v6379 = vmul.f32 %v6369, %v575
        %v6380 = vmul.f32 %v6372, %v575
        %v6381 = vmul.f32 %v6375, %v575
        %v6382 = vmul.f32 %v6378, %v575
        %v6383 = vadd.f32 %v6379, 1e-05
        %v6384 = vadd.f32 %v6380, 1e-05
        %v6385 = vadd.f32 %v6381, 1e-05
        %v6386 = vadd.f32 %v6382, 1e-05
        %v6387 = vrsqrt.pop %v6383
        %v6388 = vmul.f32 %v6387, %v6383
        %v6389 = vmul.f32 %v6388, %v6387
        %v6390 = vmul.f32 0.5, %v6389
        %v6391 = vsub.f32 1.5, %v6390
        %v6392 = vmul.f32 %v6387, %v6391
        %vm6393 = vweird.f32 %v6383
        %vm6394 = vweird.f32 %v6387
        %vm6395 = vmor %vm6393, %vm6394
        %v6396 = vsel %vm6395, %v6387, %v6392
        %v6397 = vrsqrt.pop %v6384
        %v6398 = vmul.f32 %v6397, %v6384
        %v6399 = vmul.f32 %v6398, %v6397
        %v6400 = vmul.f32 0.5, %v6399
        %v6401 = vsub.f32 1.5, %v6400
        %v6402 = vmul.f32 %v6397, %v6401
        %vm6403 = vweird.f32 %v6384
        %vm6404 = vweird.f32 %v6397
        %vm6405 = vmor %vm6403, %vm6404
        %v6406 = vsel %vm6405, %v6397, %v6402
        %v6407 = vrsqrt.pop %v6385
        %v6408 = vmul.f32 %v6407, %v6385
        %v6409 = vmul.f32 %v6408, %v6407
        %v6410 = vmul.f32 0.5, %v6409
        %v6411 = vsub.f32 1.5, %v6410
        %v6412 = vmul.f32 %v6407, %v6411
        %vm6413 = vweird.f32 %v6385
        %vm6414 = vweird.f32 %v6407
        %vm6415 = vmor %vm6413, %vm6414
        %v6416 = vsel %vm6415, %v6407, %v6412
        %v6417 = vrsqrt.pop %v6386
        %v6418 = vmul.f32 %v6417, %v6386
        %v6419 = vmul.f32 %v6418, %v6417
        %v6420 = vmul.f32 0.5, %v6419
        %v6421 = vsub.f32 1.5, %v6420
        %v6422 = vmul.f32 %v6417, %v6421
        %vm6423 = vweird.f32 %v6386
        %vm6424 = vweird.f32 %v6417
        %vm6425 = vmor %vm6423, %vm6424
        %v6426 = vsel %vm6425, %v6417, %v6422
        %v6427 = vmul.f32 %v6359, %v6396
        %v6428 = vmul.f32 %v6360, %v6406
        %v6429 = vmul.f32 %v6361, %v6416
        %v6430 = vmul.f32 %v6362, %v6426
        %v6432 = vperm.slane %v6341, 0
        %v6434 = vmul.f32 %v6427, %v6432
        %v6435 = vmul.f32 %v6428, %v6432
        %v6436 = vmul.f32 %v6429, %v6432
        %v6437 = vmul.f32 %v6430, %v6432
        %v6439 = vperm.slane %v6342, 0
        %v6441 = vadd.f32 %v6434, %v6439
        %v6442 = vadd.f32 %v6435, %v6439
        %v6443 = vadd.f32 %v6436, %v6439
        %v6444 = vadd.f32 %v6437, %v6439
        %v6445 = vld [vmem:[#allocation2 + $0x28] sm:$0x1]
        %v6446 = vld [vmem:[#allocation2 + $0x29] sm:$0x1]
        %v6448 = vperm.slane %v6445, 0
        %v6450 = vmul.f32 %v5776, %v6448
        %v6451 = vmul.f32 %v5777, %v6448
        %v6452 = vmul.f32 %v5778, %v6448
        %v6453 = vmul.f32 %v5779, %v6448
        %v6455 = vperm.slane %v6446, 0
        %v6457 = vadd.f32 %v6450, %v6455
        %v6458 = vadd.f32 %v6451, %v6455
        %v6459 = vadd.f32 %v6452, %v6455
        %v6460 = vadd.f32 %v6453, %v6455
        %v6461 = vld [vmem:[%s4 + $0x7c] sm:$0xf]
        %v6462 = vld [vmem:[%s4 + $0x11c] sm:$0xf]
        %v6463 = vld [vmem:[%s4 + $0x1bc] sm:$0xf]
        %v6464 = vld [vmem:[%s4 + $0x25c] sm:$0xf]
        %v6465 = vpack.c.bf16 %v6442, %v6441
        %v6466 = vpack.c.bf16 %v6444, %v6443
        %v6471 = vunpack.c.l.b16 %v6461
        %v6472 = vunpack.c.l.b16 %v6462
        %v6473 = vunpack.c.l.b16 %v6463
        %v6474 = vunpack.c.l.b16 %v6464
        %v6475 = vpack.c.b16 %v6472, %v6471
        %v6476 = vpack.c.b16 %v6474, %v6473
        %v6480 = vsel %vm492, %v6465, 0
        %v6483 = vsel %vm492, %v6466, 0
        %6485 = vmatpush.bf16.msra.mxu0 0
        %6486 = vmatpush.bf16.msra.mxu0 0
        %6487 = vmatpush.bf16.msra.mxu0 0
        %6488 = vmatpush.bf16.msra.mxu0 0
        %6489 = vmatpush.bf16.msra.mxu0 0
        %6490 = vmatpush.bf16.msra.mxu0 0
        %6491 = vmatpush.bf16.msra.mxu0 %v6476
        %6492 = vmatpush.bf16.msra.mxu0 %v6475
        %6493 = vmatmul.bf16.gmra.mxu0 %v6480
        %v6494 = vpop.f32.mrf.mxu0
        %v6495 = vadd.f32 0.0, %v6494
        %v6496 = vpop.f32.mrf.mxu0
        %v6497 = vadd.f32 0.0, %v6496
        %6498 = vmatmul.bf16.gmra.mxu0 %v6483
        %v6499 = vpop.f32.mrf.mxu0
        %v6500 = vadd.f32 0.0, %v6499
        %v6501 = vpop.f32.mrf.mxu0
        %v6502 = vadd.f32 0.0, %v6501
        %6503 = vdwg.mxu0
        %v6504 = vld [vmem:[%s4 + $0x80] sm:$0xf]
        %v6505 = vld [vmem:[%s4 + $0x120] sm:$0xf]
        %v6506 = vld [vmem:[%s4 + $0x1c0] sm:$0xf]
        %v6507 = vld [vmem:[%s4 + $0x260] sm:$0xf]
        %v6508 = vpack.c.bf16 %v6458, %v6457
        %v6509 = vpack.c.bf16 %v6460, %v6459
        %v6514 = vunpack.c.l.b16 %v6504
        %v6515 = vunpack.c.l.b16 %v6505
        %v6516 = vunpack.c.l.b16 %v6506
        %v6517 = vunpack.c.l.b16 %v6507
        %v6518 = vpack.c.b16 %v6515, %v6514
        %v6519 = vpack.c.b16 %v6517, %v6516
        %v6523 = vsel %vm492, %v6508, 0
        %v6526 = vsel %vm492, %v6509, 0
        %6528 = vmatpush.bf16.msra.mxu0 0
        %6529 = vmatpush.bf16.msra.mxu0 0
        %6530 = vmatpush.bf16.msra.mxu0 0
        %6531 = vmatpush.bf16.msra.mxu0 0
        %6532 = vmatpush.bf16.msra.mxu0 0
        %6533 = vmatpush.bf16.msra.mxu0 0
        %6534 = vmatpush.bf16.msra.mxu0 %v6519
        %6535 = vmatpush.bf16.msra.mxu0 %v6518
        %6536 = vmatmul.bf16.gmra.mxu0 %v6523
        %v6537 = vpop.f32.mrf.mxu0
        %v6538 = vadd.f32 0.0, %v6537
        %v6539 = vpop.f32.mrf.mxu0
        %v6540 = vadd.f32 0.0, %v6539
        %6541 = vmatmul.bf16.gmra.mxu0 %v6526
        %v6542 = vpop.f32.mrf.mxu0
        %v6543 = vadd.f32 0.0, %v6542
        %v6544 = vpop.f32.mrf.mxu0
        %v6545 = vadd.f32 0.0, %v6544
        %6546 = vdwg.mxu0
        %v6547 = vld [vmem:[#allocation4 + $0x4] sm:$0xf]
        %v6548 = vld [vmem:[#allocation4 + $0x14] sm:$0xf]
        %v6549 = vld [vmem:[#allocation4 + $0x24] sm:$0xf]
        %v6550 = vld [vmem:[#allocation4 + $0x34] sm:$0xf]
        %v6551 = vld [vmem:[#allocation4 + $0x44] sm:$0xf]
        %v6552 = vld [vmem:[#allocation4 + $0x54] sm:$0xf]
        %v6553 = vld [vmem:[#allocation4 + $0x64] sm:$0xf]
        %v6554 = vld [vmem:[#allocation4 + $0x74] sm:$0xf]
        %v6555 = vld [vmem:[#allocation2 + $0x2a] sm:$0x1]
        %v6556 = vpack.c.bf16 %v6497, %v6495
        %v6557 = vpack.c.bf16 %v6502, %v6500
        %v6558 = vpack.c.bf16 %v6540, %v6538
        %v6559 = vpack.c.bf16 %v6545, %v6543
        %v6561 = vsel %vm497, %v6556, 0
        %v6564 = vsel %vm497, %v6557, 0
        %v6567 = vsel %vm497, %v6558, 0
        %v6570 = vsel %vm497, %v6559, 0
        %6572 = vmatpush.bf16.xpose.msra.mxu0 0
        %6573 = vmatpush.bf16.xpose.msra.mxu0 0
        %6574 = vmatpush.bf16.xpose.msra.mxu0 0
        %6575 = vmatpush.bf16.xpose.msra.mxu0 0
        %6576 = vmatpush.bf16.xpose.msra.mxu0 0
        %6577 = vmatpush.bf16.xpose.msra.mxu0 0
        %6578 = vmatpush.bf16.xpose.msra.mxu0 %v6570
        %6579 = vmatpush.bf16.xpose.msra.mxu0 %v6567
        %6580 = vmatmul.bf16.gmra.mxu0 %v6561
        %v6581 = vpop.f32.mrf.mxu0
        %v6582 = vadd.f32 %v448, %v6581
        %v6583 = vpop.f32.mrf.mxu0
        %v6584 = vadd.f32 %v449, %v6583
        %6585 = vmatmul.bf16.gmra.mxu0 %v6564
        %v6586 = vpop.f32.mrf.mxu0
        %v6587 = vadd.f32 %v450, %v6586
        %v6588 = vpop.f32.mrf.mxu0
        %v6589 = vadd.f32 %v451, %v6588
        %6590 = vdwg.mxu0
        %v6591 = vsel %vm492, %v6582, -inf
        %6592 = vmax.xlane.f32.xlu0 %v6591
        %v6593 = vpop.xlane.xlu0 %6592
        %v6594 = vsel %vm492, %v6584, -inf
        %6595 = vmax.xlane.f32.xlu0 %v6594
        %v6596 = vpop.xlane.xlu0 %6595
        %v6597 = vsel %vm492, %v6587, -inf
        %6598 = vmax.xlane.f32.xlu0 %v6597
        %v6599 = vpop.xlane.xlu0 %6598
        %v6600 = vsel %vm492, %v6589, -inf
        %6601 = vmax.xlane.f32.xlu0 %v6600
        %v6602 = vpop.xlane.xlu0 %6601
        %v6603 = vsub.f32 %v6582, %v6593
        %v6604 = vsub.f32 %v6584, %v6596
        %v6605 = vsub.f32 %v6587, %v6599
        %v6606 = vsub.f32 %v6589, %v6602
        %v6607 = vmul.f32 %v6603, 1.442695
        %v6608 = vpow.pop %v6607
        %v6609 = vmul.f32 %v6604, 1.442695
        %v6610 = vpow.pop %v6609
        %v6611 = vmul.f32 %v6605, 1.442695
        %v6612 = vpow.pop %v6611
        %v6613 = vmul.f32 %v6606, 1.442695
        %v6614 = vpow.pop %v6613
        %v6615 = vsel %vm492, %v6608, 0.0
        %6616 = vadd.xlane.f32.xlu0 %v6615
        %v6617 = vpop.xlane.xlu0 %6616
        %v6618 = vsel %vm492, %v6610, 0.0
        %6619 = vadd.xlane.f32.xlu0 %v6618
        %v6620 = vpop.xlane.xlu0 %6619
        %v6621 = vsel %vm492, %v6612, 0.0
        %6622 = vadd.xlane.f32.xlu0 %v6621
        %v6623 = vpop.xlane.xlu0 %6622
        %v6624 = vsel %vm492, %v6614, 0.0
        %6625 = vadd.xlane.f32.xlu0 %v6624
        %v6626 = vpop.xlane.xlu0 %6625
        %v6627 = vrcp.pop %v6617
        %v6628 = vrcp.pop %v6620
        %v6629 = vrcp.pop %v6623
        %v6630 = vrcp.pop %v6626
        %v6631 = vmul.f32 %v6608, %v6627
        %v6632 = vmul.f32 %v6610, %v6628
        %v6633 = vmul.f32 %v6612, %v6629
        %v6634 = vmul.f32 %v6614, %v6630
        %v6635 = vpack.c.bf16 %v6632, %v6631
        %v6636 = vpack.c.bf16 %v6634, %v6633
        %6639 = vrot.lane.b32.xlu0 %v6558, 64
        %v6640 = vpop.permute.xlu0 %6639
        %6641 = vrot.lane.b32.xlu0 %v6559, 64
        %v6642 = vpop.permute.xlu0 %6641
        %v6646 = vsel %vm492, %v6635, 0
        %v6649 = vsel %vm492, %v6636, 0
        %6651 = vmatpush.bf16.msra.mxu0 0
        %6652 = vmatpush.bf16.msra.mxu0 0
        %6653 = vmatpush.bf16.msra.mxu0 0
        %6654 = vmatpush.bf16.msra.mxu0 0
        %6655 = vmatpush.bf16.msra.mxu0 0
        %6656 = vmatpush.bf16.msra.mxu0 0
        %6657 = vmatpush.bf16.msra.mxu0 %v6642
        %6658 = vmatpush.bf16.msra.mxu0 %v6640
        %6659 = vmatmul.bf16.gmra.mxu0 %v6646
        %v6660 = vpop.f32.mrf.mxu0
        %v6661 = vadd.f32 0.0, %v6660
        %v6662 = vpop.f32.mrf.mxu0
        %v6663 = vadd.f32 0.0, %v6662
        %6664 = vmatmul.bf16.gmra.mxu0 %v6649
        %v6665 = vpop.f32.mrf.mxu0
        %v6666 = vadd.f32 0.0, %v6665
        %v6667 = vpop.f32.mrf.mxu0
        %v6668 = vadd.f32 0.0, %v6667
        %6669 = vdwg.mxu0
        %v6670 = vpack.c.bf16 %v6663, %v6661
        %v6671 = vpack.c.bf16 %v6668, %v6666
        %v6673 = vperm.slane %v6555, 0
        %v6683 = vunpack.c.l.b16 %v6547
        %v6684 = vunpack.c.l.b16 %v6548
        %v6685 = vunpack.c.l.b16 %v6549
        %v6686 = vunpack.c.l.b16 %v6550
        %v6687 = vunpack.c.l.b16 %v6551
        %v6688 = vunpack.c.l.b16 %v6552
        %v6689 = vunpack.c.l.b16 %v6553
        %v6690 = vunpack.c.l.b16 %v6554
        %v6691 = vpack.c.b16 %v6684, %v6683
        %v6692 = vpack.c.b16 %v6686, %v6685
        %v6693 = vpack.c.b16 %v6688, %v6687
        %v6694 = vpack.c.b16 %v6690, %v6689
        %v6700 = vsel %vm497, %v6670, 0
        %v6703 = vsel %vm497, %v6671, 0
        %6705 = vmatpush.bf16.msra.mxu0 0
        %6706 = vmatpush.bf16.msra.mxu0 0
        %6707 = vmatpush.bf16.msra.mxu0 0
        %6708 = vmatpush.bf16.msra.mxu0 0
        %6709 = vmatpush.bf16.msra.mxu0 %v6694
        %6710 = vmatpush.bf16.msra.mxu0 %v6693
        %6711 = vmatpush.bf16.msra.mxu0 %v6692
        %6712 = vmatpush.bf16.msra.mxu0 %v6691
        %6713 = vmatmul.bf16.gmra.mxu0 %v6700
        %v6714 = vpop.f32.mrf.mxu0
        %v6715 = vadd.f32 %v6673, %v6714
        %v6716 = vpop.f32.mrf.mxu0
        %v6717 = vadd.f32 %v6673, %v6716
        %6718 = vmatmul.bf16.gmra.mxu0 %v6703
        %v6719 = vpop.f32.mrf.mxu0
        %v6720 = vadd.f32 %v6673, %v6719
        %v6721 = vpop.f32.mrf.mxu0
        %v6722 = vadd.f32 %v6673, %v6721
        %6723 = vdwg.mxu0
        %v6724 = vadd.f32 %v6337, %v6715
        %v6725 = vadd.f32 %v6338, %v6717
        %v6726 = vadd.f32 %v6339, %v6720
        %v6727 = vadd.f32 %v6340, %v6722
        %v6728 = vld [vmem:[#allocation2 + $0x2b] sm:$0x1]
        %v6729 = vld [vmem:[#allocation2 + $0x2c] sm:$0x1]
        %v6730 = vsel %vm492, %v6724, 0.0
        %6731 = vadd.xlane.f32.xlu0 %v6730
        %v6732 = vpop.xlane.xlu0 %6731
        %v6733 = vsel %vm492, %v6725, 0.0
        %6734 = vadd.xlane.f32.xlu0 %v6733
        %v6735 = vpop.xlane.xlu0 %6734
        %v6736 = vsel %vm492, %v6726, 0.0
        %6737 = vadd.xlane.f32.xlu0 %v6736
        %v6738 = vpop.xlane.xlu0 %6737
        %v6739 = vsel %vm492, %v6727, 0.0
        %6740 = vadd.xlane.f32.xlu0 %v6739
        %v6741 = vpop.xlane.xlu0 %6740
        %v6742 = vmul.f32 %v6732, %v575
        %v6743 = vmul.f32 %v6735, %v575
        %v6744 = vmul.f32 %v6738, %v575
        %v6745 = vmul.f32 %v6741, %v575
        %v6746 = vsub.f32 %v6724, %v6742
        %v6747 = vsub.f32 %v6725, %v6743
        %v6748 = vsub.f32 %v6726, %v6744
        %v6749 = vsub.f32 %v6727, %v6745
        %v6750 = vmul.f32 %v6746, %v6746
        %v6751 = vmul.f32 %v6747, %v6747
        %v6752 = vmul.f32 %v6748, %v6748
        %v6753 = vmul.f32 %v6749, %v6749
        %v6754 = vsel %vm492, %v6750, 0.0
        %6755 = vadd.xlane.f32.xlu0 %v6754
        %v6756 = vpop.xlane.xlu0 %6755
        %v6757 = vsel %vm492, %v6751, 0.0
        %6758 = vadd.xlane.f32.xlu0 %v6757
        %v6759 = vpop.xlane.xlu0 %6758
        %v6760 = vsel %vm492, %v6752, 0.0
        %6761 = vadd.xlane.f32.xlu0 %v6760
        %v6762 = vpop.xlane.xlu0 %6761
        %v6763 = vsel %vm492, %v6753, 0.0
        %6764 = vadd.xlane.f32.xlu0 %v6763
        %v6765 = vpop.xlane.xlu0 %6764
        %v6766 = vmul.f32 %v6756, %v575
        %v6767 = vmul.f32 %v6759, %v575
        %v6768 = vmul.f32 %v6762, %v575
        %v6769 = vmul.f32 %v6765, %v575
        %v6770 = vadd.f32 %v6766, 1e-05
        %v6771 = vadd.f32 %v6767, 1e-05
        %v6772 = vadd.f32 %v6768, 1e-05
        %v6773 = vadd.f32 %v6769, 1e-05
        %v6774 = vrsqrt.pop %v6770
        %v6775 = vmul.f32 %v6774, %v6770
        %v6776 = vmul.f32 %v6775, %v6774
        %v6777 = vmul.f32 0.5, %v6776
        %v6778 = vsub.f32 1.5, %v6777
        %v6779 = vmul.f32 %v6774, %v6778
        %vm6780 = vweird.f32 %v6770
        %vm6781 = vweird.f32 %v6774
        %vm6782 = vmor %vm6780, %vm6781
        %v6783 = vsel %vm6782, %v6774, %v6779
        %v6784 = vrsqrt.pop %v6771
        %v6785 = vmul.f32 %v6784, %v6771
        %v6786 = vmul.f32 %v6785, %v6784
        %v6787 = vmul.f32 0.5, %v6786
        %v6788 = vsub.f32 1.5, %v6787
        %v6789 = vmul.f32 %v6784, %v6788
        %vm6790 = vweird.f32 %v6771
        %vm6791 = vweird.f32 %v6784
        %vm6792 = vmor %vm6790, %vm6791
        %v6793 = vsel %vm6792, %v6784, %v6789
        %v6794 = vrsqrt.pop %v6772
        %v6795 = vmul.f32 %v6794, %v6772
        %v6796 = vmul.f32 %v6795, %v6794
        %v6797 = vmul.f32 0.5, %v6796
        %v6798 = vsub.f32 1.5, %v6797
        %v6799 = vmul.f32 %v6794, %v6798
        %vm6800 = vweird.f32 %v6772
        %vm6801 = vweird.f32 %v6794
        %vm6802 = vmor %vm6800, %vm6801
        %v6803 = vsel %vm6802, %v6794, %v6799
        %v6804 = vrsqrt.pop %v6773
        %v6805 = vmul.f32 %v6804, %v6773
        %v6806 = vmul.f32 %v6805, %v6804
        %v6807 = vmul.f32 0.5, %v6806
        %v6808 = vsub.f32 1.5, %v6807
        %v6809 = vmul.f32 %v6804, %v6808
        %vm6810 = vweird.f32 %v6773
        %vm6811 = vweird.f32 %v6804
        %vm6812 = vmor %vm6810, %vm6811
        %v6813 = vsel %vm6812, %v6804, %v6809
        %v6814 = vmul.f32 %v6746, %v6783
        %v6815 = vmul.f32 %v6747, %v6793
        %v6816 = vmul.f32 %v6748, %v6803
        %v6817 = vmul.f32 %v6749, %v6813
        %v6819 = vperm.slane %v6728, 0
        %v6821 = vmul.f32 %v6814, %v6819
        %v6822 = vmul.f32 %v6815, %v6819
        %v6823 = vmul.f32 %v6816, %v6819
        %v6824 = vmul.f32 %v6817, %v6819
        %v6826 = vperm.slane %v6729, 0
        %v6828 = vadd.f32 %v6821, %v6826
        %v6829 = vadd.f32 %v6822, %v6826
        %v6830 = vadd.f32 %v6823, %v6826
        %v6831 = vadd.f32 %v6824, %v6826
        %v6832 = vld [vmem:[%s4 + $0x84] sm:$0xf]
        %v6833 = vld [vmem:[%s4 + $0x124] sm:$0xf]
        %v6834 = vld [vmem:[%s4 + $0x1c4] sm:$0xf]
        %v6835 = vld [vmem:[%s4 + $0x264] sm:$0xf]
        %v6836 = vld [vmem:[#allocation2 + $0x2d] sm:$0x1]
        %v6837 = vld [vmem:[#allocation6 + $0x14] sm:$0xf]
        %v6838 = vld [vmem:[#allocation6 + $0x30] sm:$0xf]
        %v6839 = vld [vmem:[#allocation6 + $0x4c] sm:$0xf]
        %v6840 = vld [vmem:[#allocation6 + $0x68] sm:$0xf]
        %v6841 = vld [vmem:[#allocation6 + $0x84] sm:$0xf]
        %v6842 = vld [vmem:[#allocation6 + $0xa0] sm:$0xf]
        %v6843 = vld [vmem:[#allocation6 + $0xbc] sm:$0xf]
        %v6844 = vld [vmem:[#allocation6 + $0xd8] sm:$0xf]
        %v6845 = vld [vmem:[#allocation6 + $0xf4] sm:$0xf]
        %v6846 = vld [vmem:[#allocation6 + $0x110] sm:$0xf]
        %v6847 = vld [vmem:[#allocation6 + $0x12c] sm:$0xf]
        %v6848 = vld [vmem:[#allocation6 + $0x148] sm:$0xf]
        %v6849 = vld [vmem:[#allocation6 + $0x164] sm:$0xf]
        %v6850 = vld [vmem:[#allocation6 + $0x180] sm:$0xf]
        %v6851 = vld [vmem:[#allocation6 + $0x19c] sm:$0xf]
        %v6852 = vld [vmem:[#allocation6 + $0x1b8] sm:$0xf]
        %v6853 = vld [vmem:[#allocation2 + $0x2e] sm:$0x1]
        %v6854 = vpack.c.bf16 %v6829, %v6828
        %v6855 = vpack.c.bf16 %v6831, %v6830
        %v6857 = vperm.slane %v6836, 0
        %v6863 = vunpack.c.l.b16 %v6832
        %v6864 = vunpack.c.l.b16 %v6833
        %v6865 = vunpack.c.l.b16 %v6834
        %v6866 = vunpack.c.l.b16 %v6835
        %v6867 = vpack.c.b16 %v6864, %v6863
        %v6868 = vpack.c.b16 %v6866, %v6865
        %v6872 = vsel %vm492, %v6854, 0
        %v6875 = vsel %vm492, %v6855, 0
        %6877 = vmatpush.bf16.msra.mxu0 0
        %6878 = vmatpush.bf16.msra.mxu0 0
        %6879 = vmatpush.bf16.msra.mxu0 0
        %6880 = vmatpush.bf16.msra.mxu0 0
        %6881 = vmatpush.bf16.msra.mxu0 0
        %6882 = vmatpush.bf16.msra.mxu0 0
        %6883 = vmatpush.bf16.msra.mxu0 %v6868
        %6884 = vmatpush.bf16.msra.mxu0 %v6867
        %6885 = vmatmul.bf16.gmra.mxu0 %v6872
        %v6886 = vpop.f32.mrf.mxu0
        %v6887 = vadd.f32 %v6857, %v6886
        %v6888 = vpop.f32.mrf.mxu0
        %v6889 = vadd.f32 %v6857, %v6888
        %6890 = vmatmul.bf16.gmra.mxu0 %v6875
        %v6891 = vpop.f32.mrf.mxu0
        %v6892 = vadd.f32 %v6857, %v6891
        %v6893 = vpop.f32.mrf.mxu0
        %v6894 = vadd.f32 %v6857, %v6893
        %6895 = vdwg.mxu0
        %v6896 = vmul.f32 %v6887, 0.5
        %v6897 = vmul.f32 %v6889, 0.5
        %v6898 = vmul.f32 %v6892, 0.5
        %v6899 = vmul.f32 %v6894, 0.5
        %v6900 = vmul.f32 %v6887, 0.044715
        %v6901 = vmul.f32 %v6889, 0.044715
        %v6902 = vmul.f32 %v6892, 0.044715
        %v6903 = vmul.f32 %v6894, 0.044715
        %v6904 = vmul.f32 %v6900, %v6887
        %v6905 = vmul.f32 %v6901, %v6889
        %v6906 = vmul.f32 %v6902, %v6892
        %v6907 = vmul.f32 %v6903, %v6894
        %v6908 = vmul.f32 %v6904, %v6887
        %v6909 = vmul.f32 %v6905, %v6889
        %v6910 = vmul.f32 %v6906, %v6892
        %v6911 = vmul.f32 %v6907, %v6894
        %v6912 = vadd.f32 %v6887, %v6908
        %v6913 = vadd.f32 %v6889, %v6909
        %v6914 = vadd.f32 %v6892, %v6910
        %v6915 = vadd.f32 %v6894, %v6911
        %v6916 = vmul.f32 %v6912, 0.7978846
        %v6917 = vmul.f32 %v6913, 0.7978846
        %v6918 = vmul.f32 %v6914, 0.7978846
        %v6919 = vmul.f32 %v6915, 0.7978846
        %v6920 = vtanh.pop %v6916
        %v6921 = vtanh.pop %v6917
        %v6922 = vtanh.pop %v6918
        %v6923 = vtanh.pop %v6919
        %v6924 = vadd.f32 %v6920, 1.0
        %v6925 = vadd.f32 %v6921, 1.0
        %v6926 = vadd.f32 %v6922, 1.0
        %v6927 = vadd.f32 %v6923, 1.0
        %v6928 = vmul.f32 %v6896, %v6924
        %v6929 = vmul.f32 %v6897, %v6925
        %v6930 = vmul.f32 %v6898, %v6926
        %v6931 = vmul.f32 %v6899, %v6927
        %v6932 = vpack.c.bf16 %v6929, %v6928
        %v6933 = vpack.c.bf16 %v6931, %v6930
        %v6935 = vperm.slane %v6853, 0
        %v6953 = vunpack.c.l.b16 %v6837
        %v6954 = vunpack.c.l.b16 %v6838
        %v6955 = vunpack.c.l.b16 %v6839
        %v6956 = vunpack.c.l.b16 %v6840
        %v6957 = vunpack.c.l.b16 %v6841
        %v6958 = vunpack.c.l.b16 %v6842
        %v6959 = vunpack.c.l.b16 %v6843
        %v6960 = vunpack.c.l.b16 %v6844
        %v6961 = vunpack.c.l.b16 %v6845
        %v6962 = vunpack.c.l.b16 %v6846
        %v6963 = vunpack.c.l.b16 %v6847
        %v6964 = vunpack.c.l.b16 %v6848
        %v6965 = vunpack.c.l.b16 %v6849
        %v6966 = vunpack.c.l.b16 %v6850
        %v6967 = vunpack.c.l.b16 %v6851
        %v6968 = vunpack.c.l.b16 %v6852
        %v6969 = vpack.c.b16 %v6954, %v6953
        %v6970 = vpack.c.b16 %v6956, %v6955
        %v6971 = vpack.c.b16 %v6958, %v6957
        %v6972 = vpack.c.b16 %v6960, %v6959
        %v6973 = vpack.c.b16 %v6962, %v6961
        %v6974 = vpack.c.b16 %v6964, %v6963
        %v6975 = vpack.c.b16 %v6966, %v6965
        %v6976 = vpack.c.b16 %v6968, %v6967
        %6985 = vmatpush.bf16.msra.mxu0 %v6976
        %6986 = vmatpush.bf16.msra.mxu0 %v6975
        %6987 = vmatpush.bf16.msra.mxu0 %v6974
        %6988 = vmatpush.bf16.msra.mxu0 %v6973
        %6989 = vmatpush.bf16.msra.mxu0 %v6972
        %6990 = vmatpush.bf16.msra.mxu0 %v6971
        %6991 = vmatpush.bf16.msra.mxu0 %v6970
        %6992 = vmatpush.bf16.msra.mxu0 %v6969
        %6993 = vmatmul.bf16.gmra.mxu0 %v6932
        %v6994 = vpop.f32.mrf.mxu0
        %v6995 = vadd.f32 %v6935, %v6994
        %v6996 = vpop.f32.mrf.mxu0
        %v6997 = vadd.f32 %v6935, %v6996
        %6998 = vmatmul.bf16.gmra.mxu0 %v6933
        %v6999 = vpop.f32.mrf.mxu0
        %v7000 = vadd.f32 %v6935, %v6999
        %v7001 = vpop.f32.mrf.mxu0
        %v7002 = vadd.f32 %v6935, %v7001
        %7003 = vdwg.mxu0
        %v7004 = vadd.f32 %v6724, %v6995
        %v7005 = vadd.f32 %v6725, %v6997
        %v7006 = vadd.f32 %v6726, %v7000
        %v7007 = vadd.f32 %v6727, %v7002
        %v7008 = vld [vmem:[%s4 + $0x94] sm:$0xff]
        %v7009 = vld [vmem:[%s4 + $0x134] sm:$0xff]
        %v7010 = vld [vmem:[%s4 + $0x1d4] sm:$0xff]
        %v7011 = vld [vmem:[%s4 + $0x274] sm:$0xff]
        %v7012 = vpack.c.bf16 %v7005, %v7004
        %v7013 = vpack.c.bf16 %v7007, %v7006
        %v7014 = vld [vmem:[#allocation2 + $0x38] sm:$0x3]
        %v7016 = vperm.slane %v7014, 0
        %v7017 = vperm.slane %v7014, 1
        %v7024 = vunpack.c.l.b16 %v7008
        %v7025 = vunpack.c.h.b16 %v7008
        %v7026 = vunpack.c.l.b16 %v7009
        %v7027 = vunpack.c.h.b16 %v7009
        %v7028 = vunpack.c.l.b16 %v7010
        %v7029 = vunpack.c.h.b16 %v7010
        %v7030 = vunpack.c.l.b16 %v7011
        %v7031 = vunpack.c.h.b16 %v7011
        %v7032 = vpack.c.b16 %v7026, %v7024
        %v7033 = vpack.c.b16 %v7027, %v7025
        %v7034 = vpack.c.b16 %v7030, %v7028
        %v7035 = vpack.c.b16 %v7031, %v7029
        %v7041 = vsel %vm492, %v7012, 0
        %v7044 = vsel %vm492, %v7013, 0
        %7046 = vmatpush.bf16.msra.mxu0 0
        %7047 = vmatpush.bf16.msra.mxu0 0
        %7048 = vmatpush.bf16.msra.mxu0 0
        %7049 = vmatpush.bf16.msra.mxu0 0
        %7050 = vmatpush.bf16.msra.mxu0 0
        %7051 = vmatpush.bf16.msra.mxu0 0
        %7052 = vmatpush.bf16.msra.mxu0 %v7034
        %7053 = vmatpush.bf16.msra.mxu0 %v7032
        %7054 = vmatmul.bf16.gmra.mxu0 %v7041
        %v7055 = vpop.f32.mrf.mxu0
        %v7056 = vadd.f32 %v7016, %v7055
        %v7057 = vpop.f32.mrf.mxu0
        %v7058 = vadd.f32 %v7016, %v7057
        %7059 = vmatmul.bf16.gmra.mxu0 %v7044
        %v7060 = vpop.f32.mrf.mxu0
        %v7061 = vadd.f32 %v7016, %v7060
        %v7062 = vpop.f32.mrf.mxu0
        %v7063 = vadd.f32 %v7016, %v7062
        %7064 = vdwg.mxu0
        %7065 = vmatpush.bf16.msra.mxu0 0
        %7066 = vmatpush.bf16.msra.mxu0 0
        %7067 = vmatpush.bf16.msra.mxu0 0
        %7068 = vmatpush.bf16.msra.mxu0 0
        %7069 = vmatpush.bf16.msra.mxu0 0
        %7070 = vmatpush.bf16.msra.mxu0 0
        %7071 = vmatpush.bf16.msra.mxu0 %v7035
        %7072 = vmatpush.bf16.msra.mxu0 %v7033
        %7073 = vmatmul.bf16.gmra.mxu0 %v7041
        %v7074 = vpop.f32.mrf.mxu0
        %v7075 = vadd.f32 %v7017, %v7074
        %v7076 = vpop.f32.mrf.mxu0
        %v7077 = vadd.f32 %v7017, %v7076
        %7078 = vmatmul.bf16.gmra.mxu0 %v7044
        %v7079 = vpop.f32.mrf.mxu0
        %v7080 = vadd.f32 %v7017, %v7079
        %v7081 = vpop.f32.mrf.mxu0
        %v7082 = vadd.f32 %v7017, %v7081
        %7083 = vdwg.mxu0
        %7088 = vrot.lane.b32.xlu0 %v7056, 96
        %v7089 = vpop.permute.xlu0 %7088
        %7090 = vrot.lane.b32.xlu0 %v7058, 96
        %v7091 = vpop.permute.xlu0 %7090
        %7092 = vrot.lane.b32.xlu0 %v7061, 96
        %v7093 = vpop.permute.xlu0 %7092
        %7094 = vrot.lane.b32.xlu0 %v7063, 96
        %v7095 = vpop.permute.xlu0 %7094
        %7100 = vrot.lane.b32.xlu0 %v7056, 64
        %v7101 = vpop.permute.xlu0 %7100
        %7102 = vrot.lane.b32.xlu0 %v7058, 64
        %v7103 = vpop.permute.xlu0 %7102
        %7104 = vrot.lane.b32.xlu0 %v7061, 64
        %v7105 = vpop.permute.xlu0 %7104
        %7106 = vrot.lane.b32.xlu0 %v7063, 64
        %v7107 = vpop.permute.xlu0 %7106
        %7112 = vrot.lane.b32.xlu0 %v7056, 32
        %v7113 = vpop.permute.xlu0 %7112
        %7114 = vrot.lane.b32.xlu0 %v7058, 32
        %v7115 = vpop.permute.xlu0 %7114
        %7116 = vrot.lane.b32.xlu0 %v7061, 32
        %v7117 = vpop.permute.xlu0 %7116
        %7118 = vrot.lane.b32.xlu0 %v7063, 32
        %v7119 = vpop.permute.xlu0 %7118
        %7128 = vrot.lane.b32.xlu0 %v7075, 96
        %v7129 = vpop.permute.xlu0 %7128
        %7130 = vrot.lane.b32.xlu0 %v7077, 96
        %v7131 = vpop.permute.xlu0 %7130
        %7132 = vrot.lane.b32.xlu0 %v7080, 96
        %v7133 = vpop.permute.xlu0 %7132
        %7134 = vrot.lane.b32.xlu0 %v7082, 96
        %v7135 = vpop.permute.xlu0 %7134
        %7140 = vrot.lane.b32.xlu0 %v7075, 64
        %v7141 = vpop.permute.xlu0 %7140
        %7142 = vrot.lane.b32.xlu0 %v7077, 64
        %v7143 = vpop.permute.xlu0 %7142
        %7144 = vrot.lane.b32.xlu0 %v7080, 64
        %v7145 = vpop.permute.xlu0 %7144
        %7146 = vrot.lane.b32.xlu0 %v7082, 64
        %v7147 = vpop.permute.xlu0 %7146
        %7152 = vrot.lane.b32.xlu0 %v7075, 32
        %v7153 = vpop.permute.xlu0 %7152
        %7154 = vrot.lane.b32.xlu0 %v7077, 32
        %v7155 = vpop.permute.xlu0 %7154
        %7156 = vrot.lane.b32.xlu0 %v7080, 32
        %v7157 = vpop.permute.xlu0 %7156
        %7158 = vrot.lane.b32.xlu0 %v7082, 32
        %v7159 = vpop.permute.xlu0 %7158
        %v7164 = vld [vmem:[#allocation2 + $0x2f] sm:$0x1]
        %v7165 = vld [vmem:[#allocation2 + $0x30] sm:$0x1]
        %v7167 = vperm.slane %v7164, 0
        %v7169 = vmul.f32 %v5776, %v7167
        %v7170 = vmul.f32 %v5777, %v7167
        %v7171 = vmul.f32 %v5778, %v7167
        %v7172 = vmul.f32 %v5779, %v7167
        %v7174 = vperm.slane %v7165, 0
        %v7176 = vadd.f32 %v7169, %v7174
        %v7177 = vadd.f32 %v7170, %v7174
        %v7178 = vadd.f32 %v7171, %v7174
        %v7179 = vadd.f32 %v7172, %v7174
        %v7180 = vld [vmem:[#allocation2 + $0x31] sm:$0x1]
        %v7181 = vld [vmem:[#allocation2 + $0x32] sm:$0x1]
        %v7182 = vsel %vm492, %v7056, 0.0
        %7183 = vadd.xlane.f32.xlu0 %v7182
        %v7184 = vpop.xlane.xlu0 %7183
        %v7185 = vsel %vm492, %v7058, 0.0
        %7186 = vadd.xlane.f32.xlu0 %v7185
        %v7187 = vpop.xlane.xlu0 %7186
        %v7188 = vsel %vm492, %v7061, 0.0
        %7189 = vadd.xlane.f32.xlu0 %v7188
        %v7190 = vpop.xlane.xlu0 %7189
        %v7191 = vsel %vm492, %v7063, 0.0
        %7192 = vadd.xlane.f32.xlu0 %v7191
        %v7193 = vpop.xlane.xlu0 %7192
        %v7194 = vsel %vm492, %v7089, 0.0
        %7195 = vadd.xlane.f32.xlu0 %v7194
        %v7196 = vpop.xlane.xlu0 %7195
        %v7197 = vsel %vm492, %v7091, 0.0
        %7198 = vadd.xlane.f32.xlu0 %v7197
        %v7199 = vpop.xlane.xlu0 %7198
        %v7200 = vsel %vm492, %v7093, 0.0
        %7201 = vadd.xlane.f32.xlu0 %v7200
        %v7202 = vpop.xlane.xlu0 %7201
        %v7203 = vsel %vm492, %v7095, 0.0
        %7204 = vadd.xlane.f32.xlu0 %v7203
        %v7205 = vpop.xlane.xlu0 %7204
        %v7206 = vsel %vm492, %v7101, 0.0
        %7207 = vadd.xlane.f32.xlu0 %v7206
        %v7208 = vpop.xlane.xlu0 %7207
        %v7209 = vsel %vm492, %v7103, 0.0
        %7210 = vadd.xlane.f32.xlu0 %v7209
        %v7211 = vpop.xlane.xlu0 %7210
        %v7212 = vsel %vm492, %v7105, 0.0
        %7213 = vadd.xlane.f32.xlu0 %v7212
        %v7214 = vpop.xlane.xlu0 %7213
        %v7215 = vsel %vm492, %v7107, 0.0
        %7216 = vadd.xlane.f32.xlu0 %v7215
        %v7217 = vpop.xlane.xlu0 %7216
        %v7218 = vsel %vm492, %v7113, 0.0
        %7219 = vadd.xlane.f32.xlu0 %v7218
        %v7220 = vpop.xlane.xlu0 %7219
        %v7221 = vsel %vm492, %v7115, 0.0
        %7222 = vadd.xlane.f32.xlu0 %v7221
        %v7223 = vpop.xlane.xlu0 %7222
        %v7224 = vsel %vm492, %v7117, 0.0
        %7225 = vadd.xlane.f32.xlu0 %v7224
        %v7226 = vpop.xlane.xlu0 %7225
        %v7227 = vsel %vm492, %v7119, 0.0
        %7228 = vadd.xlane.f32.xlu0 %v7227
        %v7229 = vpop.xlane.xlu0 %7228
        %v7230 = vsel %vm492, %v7075, 0.0
        %7231 = vadd.xlane.f32.xlu0 %v7230
        %v7232 = vpop.xlane.xlu0 %7231
        %v7233 = vsel %vm492, %v7077, 0.0
        %7234 = vadd.xlane.f32.xlu0 %v7233
        %v7235 = vpop.xlane.xlu0 %7234
        %v7236 = vsel %vm492, %v7080, 0.0
        %7237 = vadd.xlane.f32.xlu0 %v7236
        %v7238 = vpop.xlane.xlu0 %7237
        %v7239 = vsel %vm492, %v7082, 0.0
        %7240 = vadd.xlane.f32.xlu0 %v7239
        %v7241 = vpop.xlane.xlu0 %7240
        %v7242 = vsel %vm492, %v7129, 0.0
        %7243 = vadd.xlane.f32.xlu0 %v7242
        %v7244 = vpop.xlane.xlu0 %7243
        %v7245 = vsel %vm492, %v7131, 0.0
        %7246 = vadd.xlane.f32.xlu0 %v7245
        %v7247 = vpop.xlane.xlu0 %7246
        %v7248 = vsel %vm492, %v7133, 0.0
        %7249 = vadd.xlane.f32.xlu0 %v7248
        %v7250 = vpop.xlane.xlu0 %7249
        %v7251 = vsel %vm492, %v7135, 0.0
        %7252 = vadd.xlane.f32.xlu0 %v7251
        %v7253 = vpop.xlane.xlu0 %7252
        %v7254 = vsel %vm492, %v7141, 0.0
        %7255 = vadd.xlane.f32.xlu0 %v7254
        %v7256 = vpop.xlane.xlu0 %7255
        %v7257 = vsel %vm492, %v7143, 0.0
        %7258 = vadd.xlane.f32.xlu0 %v7257
        %v7259 = vpop.xlane.xlu0 %7258
        %v7260 = vsel %vm492, %v7145, 0.0
        %7261 = vadd.xlane.f32.xlu0 %v7260
        %v7262 = vpop.xlane.xlu0 %7261
        %v7263 = vsel %vm492, %v7147, 0.0
        %7264 = vadd.xlane.f32.xlu0 %v7263
        %v7265 = vpop.xlane.xlu0 %7264
        %v7266 = vsel %vm492, %v7153, 0.0
        %7267 = vadd.xlane.f32.xlu0 %v7266
        %v7268 = vpop.xlane.xlu0 %7267
        %v7269 = vsel %vm492, %v7155, 0.0
        %7270 = vadd.xlane.f32.xlu0 %v7269
        %v7271 = vpop.xlane.xlu0 %7270
        %v7272 = vsel %vm492, %v7157, 0.0
        %7273 = vadd.xlane.f32.xlu0 %v7272
        %v7274 = vpop.xlane.xlu0 %7273
        %v7275 = vsel %vm492, %v7159, 0.0
        %7276 = vadd.xlane.f32.xlu0 %v7275
        %v7277 = vpop.xlane.xlu0 %7276
        %v7278 = vmul.f32 %v7184, %v575
        %v7279 = vmul.f32 %v7187, %v575
        %v7280 = vmul.f32 %v7190, %v575
        %v7281 = vmul.f32 %v7193, %v575
        %v7282 = vmul.f32 %v7196, %v575
        %v7283 = vmul.f32 %v7199, %v575
        %v7284 = vmul.f32 %v7202, %v575
        %v7285 = vmul.f32 %v7205, %v575
        %v7286 = vmul.f32 %v7208, %v575
        %v7287 = vmul.f32 %v7211, %v575
        %v7288 = vmul.f32 %v7214, %v575
        %v7289 = vmul.f32 %v7217, %v575
        %v7290 = vmul.f32 %v7220, %v575
        %v7291 = vmul.f32 %v7223, %v575
        %v7292 = vmul.f32 %v7226, %v575
        %v7293 = vmul.f32 %v7229, %v575
        %v7294 = vmul.f32 %v7232, %v575
        %v7295 = vmul.f32 %v7235, %v575
        %v7296 = vmul.f32 %v7238, %v575
        %v7297 = vmul.f32 %v7241, %v575
        %v7298 = vmul.f32 %v7244, %v575
        %v7299 = vmul.f32 %v7247, %v575
        %v7300 = vmul.f32 %v7250, %v575
        %v7301 = vmul.f32 %v7253, %v575
        %v7302 = vmul.f32 %v7256, %v575
        %v7303 = vmul.f32 %v7259, %v575
        %v7304 = vmul.f32 %v7262, %v575
        %v7305 = vmul.f32 %v7265, %v575
        %v7306 = vmul.f32 %v7268, %v575
        %v7307 = vmul.f32 %v7271, %v575
        %v7308 = vmul.f32 %v7274, %v575
        %v7309 = vmul.f32 %v7277, %v575
        %v7310 = vsub.f32 %v7056, %v7278
        %v7311 = vsub.f32 %v7058, %v7279
        %v7312 = vsub.f32 %v7061, %v7280
        %v7313 = vsub.f32 %v7063, %v7281
        %v7314 = vsub.f32 %v7089, %v7282
        %v7315 = vsub.f32 %v7091, %v7283
        %v7316 = vsub.f32 %v7093, %v7284
        %v7317 = vsub.f32 %v7095, %v7285
        %v7318 = vsub.f32 %v7101, %v7286
        %v7319 = vsub.f32 %v7103, %v7287
        %v7320 = vsub.f32 %v7105, %v7288
        %v7321 = vsub.f32 %v7107, %v7289
        %v7322 = vsub.f32 %v7113, %v7290
        %v7323 = vsub.f32 %v7115, %v7291
        %v7324 = vsub.f32 %v7117, %v7292
        %v7325 = vsub.f32 %v7119, %v7293
        %v7326 = vsub.f32 %v7075, %v7294
        %v7327 = vsub.f32 %v7077, %v7295
        %v7328 = vsub.f32 %v7080, %v7296
        %v7329 = vsub.f32 %v7082, %v7297
        %v7330 = vsub.f32 %v7129, %v7298
        %v7331 = vsub.f32 %v7131, %v7299
        %v7332 = vsub.f32 %v7133, %v7300
        %v7333 = vsub.f32 %v7135, %v7301
        %v7334 = vsub.f32 %v7141, %v7302
        %v7335 = vsub.f32 %v7143, %v7303
        %v7336 = vsub.f32 %v7145, %v7304
        %v7337 = vsub.f32 %v7147, %v7305
        %v7338 = vsub.f32 %v7153, %v7306
        %v7339 = vsub.f32 %v7155, %v7307
        %v7340 = vsub.f32 %v7157, %v7308
        %v7341 = vsub.f32 %v7159, %v7309
        %v7342 = vmul.f32 %v7310, %v7310
        %v7343 = vmul.f32 %v7311, %v7311
        %v7344 = vmul.f32 %v7312, %v7312
        %v7345 = vmul.f32 %v7313, %v7313
        %v7346 = vmul.f32 %v7314, %v7314
        %v7347 = vmul.f32 %v7315, %v7315
        %v7348 = vmul.f32 %v7316, %v7316
        %v7349 = vmul.f32 %v7317, %v7317
        %v7350 = vmul.f32 %v7318, %v7318
        %v7351 = vmul.f32 %v7319, %v7319
        %v7352 = vmul.f32 %v7320, %v7320
        %v7353 = vmul.f32 %v7321, %v7321
        %v7354 = vmul.f32 %v7322, %v7322
        %v7355 = vmul.f32 %v7323, %v7323
        %v7356 = vmul.f32 %v7324, %v7324
        %v7357 = vmul.f32 %v7325, %v7325
        %v7358 = vmul.f32 %v7326, %v7326
        %v7359 = vmul.f32 %v7327, %v7327
        %v7360 = vmul.f32 %v7328, %v7328
        %v7361 = vmul.f32 %v7329, %v7329
        %v7362 = vmul.f32 %v7330, %v7330
        %v7363 = vmul.f32 %v7331, %v7331
        %v7364 = vmul.f32 %v7332, %v7332
        %v7365 = vmul.f32 %v7333, %v7333
        %v7366 = vmul.f32 %v7334, %v7334
        %v7367 = vmul.f32 %v7335, %v7335
        %v7368 = vmul.f32 %v7336, %v7336
        %v7369 = vmul.f32 %v7337, %v7337
        %v7370 = vmul.f32 %v7338, %v7338
        %v7371 = vmul.f32 %v7339, %v7339
        %v7372 = vmul.f32 %v7340, %v7340
        %v7373 = vmul.f32 %v7341, %v7341
        %v7374 = vsel %vm492, %v7342, 0.0
        %7375 = vadd.xlane.f32.xlu0 %v7374
        %v7376 = vpop.xlane.xlu0 %7375
        %v7377 = vsel %vm492, %v7343, 0.0
        %7378 = vadd.xlane.f32.xlu0 %v7377
        %v7379 = vpop.xlane.xlu0 %7378
        %v7380 = vsel %vm492, %v7344, 0.0
        %7381 = vadd.xlane.f32.xlu0 %v7380
        %v7382 = vpop.xlane.xlu0 %7381
        %v7383 = vsel %vm492, %v7345, 0.0
        %7384 = vadd.xlane.f32.xlu0 %v7383
        %v7385 = vpop.xlane.xlu0 %7384
        %v7386 = vsel %vm492, %v7346, 0.0
        %7387 = vadd.xlane.f32.xlu0 %v7386
        %v7388 = vpop.xlane.xlu0 %7387
        %v7389 = vsel %vm492, %v7347, 0.0
        %7390 = vadd.xlane.f32.xlu0 %v7389
        %v7391 = vpop.xlane.xlu0 %7390
        %v7392 = vsel %vm492, %v7348, 0.0
        %7393 = vadd.xlane.f32.xlu0 %v7392
        %v7394 = vpop.xlane.xlu0 %7393
        %v7395 = vsel %vm492, %v7349, 0.0
        %7396 = vadd.xlane.f32.xlu0 %v7395
        %v7397 = vpop.xlane.xlu0 %7396
        %v7398 = vsel %vm492, %v7350, 0.0
        %7399 = vadd.xlane.f32.xlu0 %v7398
        %v7400 = vpop.xlane.xlu0 %7399
        %v7401 = vsel %vm492, %v7351, 0.0
        %7402 = vadd.xlane.f32.xlu0 %v7401
        %v7403 = vpop.xlane.xlu0 %7402
        %v7404 = vsel %vm492, %v7352, 0.0
        %7405 = vadd.xlane.f32.xlu0 %v7404
        %v7406 = vpop.xlane.xlu0 %7405
        %v7407 = vsel %vm492, %v7353, 0.0
        %7408 = vadd.xlane.f32.xlu0 %v7407
        %v7409 = vpop.xlane.xlu0 %7408
        %v7410 = vsel %vm492, %v7354, 0.0
        %7411 = vadd.xlane.f32.xlu0 %v7410
        %v7412 = vpop.xlane.xlu0 %7411
        %v7413 = vsel %vm492, %v7355, 0.0
        %7414 = vadd.xlane.f32.xlu0 %v7413
        %v7415 = vpop.xlane.xlu0 %7414
        %v7416 = vsel %vm492, %v7356, 0.0
        %7417 = vadd.xlane.f32.xlu0 %v7416
        %v7418 = vpop.xlane.xlu0 %7417
        %v7419 = vsel %vm492, %v7357, 0.0
        %7420 = vadd.xlane.f32.xlu0 %v7419
        %v7421 = vpop.xlane.xlu0 %7420
        %v7422 = vsel %vm492, %v7358, 0.0
        %7423 = vadd.xlane.f32.xlu0 %v7422
        %v7424 = vpop.xlane.xlu0 %7423
        %v7425 = vsel %vm492, %v7359, 0.0
        %7426 = vadd.xlane.f32.xlu0 %v7425
        %v7427 = vpop.xlane.xlu0 %7426
        %v7428 = vsel %vm492, %v7360, 0.0
        %7429 = vadd.xlane.f32.xlu0 %v7428
        %v7430 = vpop.xlane.xlu0 %7429
        %v7431 = vsel %vm492, %v7361, 0.0
        %7432 = vadd.xlane.f32.xlu0 %v7431
        %v7433 = vpop.xlane.xlu0 %7432
        %v7434 = vsel %vm492, %v7362, 0.0
        %7435 = vadd.xlane.f32.xlu0 %v7434
        %v7436 = vpop.xlane.xlu0 %7435
        %v7437 = vsel %vm492, %v7363, 0.0
        %7438 = vadd.xlane.f32.xlu0 %v7437
        %v7439 = vpop.xlane.xlu0 %7438
        %v7440 = vsel %vm492, %v7364, 0.0
        %7441 = vadd.xlane.f32.xlu0 %v7440
        %v7442 = vpop.xlane.xlu0 %7441
        %v7443 = vsel %vm492, %v7365, 0.0
        %7444 = vadd.xlane.f32.xlu0 %v7443
        %v7445 = vpop.xlane.xlu0 %7444
        %v7446 = vsel %vm492, %v7366, 0.0
        %7447 = vadd.xlane.f32.xlu0 %v7446
        %v7448 = vpop.xlane.xlu0 %7447
        %v7449 = vsel %vm492, %v7367, 0.0
        %7450 = vadd.xlane.f32.xlu0 %v7449
        %v7451 = vpop.xlane.xlu0 %7450
        %v7452 = vsel %vm492, %v7368, 0.0
        %7453 = vadd.xlane.f32.xlu0 %v7452
        %v7454 = vpop.xlane.xlu0 %7453
        %v7455 = vsel %vm492, %v7369, 0.0
        %7456 = vadd.xlane.f32.xlu0 %v7455
        %v7457 = vpop.xlane.xlu0 %7456
        %v7458 = vsel %vm492, %v7370, 0.0
        %7459 = vadd.xlane.f32.xlu0 %v7458
        %v7460 = vpop.xlane.xlu0 %7459
        %v7461 = vsel %vm492, %v7371, 0.0
        %7462 = vadd.xlane.f32.xlu0 %v7461
        %v7463 = vpop.xlane.xlu0 %7462
        %v7464 = vsel %vm492, %v7372, 0.0
        %7465 = vadd.xlane.f32.xlu0 %v7464
        %v7466 = vpop.xlane.xlu0 %7465
        %v7467 = vsel %vm492, %v7373, 0.0
        %7468 = vadd.xlane.f32.xlu0 %v7467
        %v7469 = vpop.xlane.xlu0 %7468
        %v7470 = vmul.f32 %v7376, %v575
        %v7471 = vmul.f32 %v7379, %v575
        %v7472 = vmul.f32 %v7382, %v575
        %v7473 = vmul.f32 %v7385, %v575
        %v7474 = vmul.f32 %v7388, %v575
        %v7475 = vmul.f32 %v7391, %v575
        %v7476 = vmul.f32 %v7394, %v575
        %v7477 = vmul.f32 %v7397, %v575
        %v7478 = vmul.f32 %v7400, %v575
        %v7479 = vmul.f32 %v7403, %v575
        %v7480 = vmul.f32 %v7406, %v575
        %v7481 = vmul.f32 %v7409, %v575
        %v7482 = vmul.f32 %v7412, %v575
        %v7483 = vmul.f32 %v7415, %v575
        %v7484 = vmul.f32 %v7418, %v575
        %v7485 = vmul.f32 %v7421, %v575
        %v7486 = vmul.f32 %v7424, %v575
        %v7487 = vmul.f32 %v7427, %v575
        %v7488 = vmul.f32 %v7430, %v575
        %v7489 = vmul.f32 %v7433, %v575
        %v7490 = vmul.f32 %v7436, %v575
        %v7491 = vmul.f32 %v7439, %v575
        %v7492 = vmul.f32 %v7442, %v575
        %v7493 = vmul.f32 %v7445, %v575
        %v7494 = vmul.f32 %v7448, %v575
        %v7495 = vmul.f32 %v7451, %v575
        %v7496 = vmul.f32 %v7454, %v575
        %v7497 = vmul.f32 %v7457, %v575
        %v7498 = vmul.f32 %v7460, %v575
        %v7499 = vmul.f32 %v7463, %v575
        %v7500 = vmul.f32 %v7466, %v575
        %v7501 = vmul.f32 %v7469, %v575
        %v7502 = vadd.f32 %v7470, 1e-05
        %v7503 = vadd.f32 %v7471, 1e-05
        %v7504 = vadd.f32 %v7472, 1e-05
        %v7505 = vadd.f32 %v7473, 1e-05
        %v7506 = vadd.f32 %v7474, 1e-05
        %v7507 = vadd.f32 %v7475, 1e-05
        %v7508 = vadd.f32 %v7476, 1e-05
        %v7509 = vadd.f32 %v7477, 1e-05
        %v7510 = vadd.f32 %v7478, 1e-05
        %v7511 = vadd.f32 %v7479, 1e-05
        %v7512 = vadd.f32 %v7480, 1e-05
        %v7513 = vadd.f32 %v7481, 1e-05
        %v7514 = vadd.f32 %v7482, 1e-05
        %v7515 = vadd.f32 %v7483, 1e-05
        %v7516 = vadd.f32 %v7484, 1e-05
        %v7517 = vadd.f32 %v7485, 1e-05
        %v7518 = vadd.f32 %v7486, 1e-05
        %v7519 = vadd.f32 %v7487, 1e-05
        %v7520 = vadd.f32 %v7488, 1e-05
        %v7521 = vadd.f32 %v7489, 1e-05
        %v7522 = vadd.f32 %v7490, 1e-05
        %v7523 = vadd.f32 %v7491, 1e-05
        %v7524 = vadd.f32 %v7492, 1e-05
        %v7525 = vadd.f32 %v7493, 1e-05
        %v7526 = vadd.f32 %v7494, 1e-05
        %v7527 = vadd.f32 %v7495, 1e-05
        %v7528 = vadd.f32 %v7496, 1e-05
        %v7529 = vadd.f32 %v7497, 1e-05
        %v7530 = vadd.f32 %v7498, 1e-05
        %v7531 = vadd.f32 %v7499, 1e-05
        %v7532 = vadd.f32 %v7500, 1e-05
        %v7533 = vadd.f32 %v7501, 1e-05
        %v7534 = vrsqrt.pop %v7502
        %v7535 = vmul.f32 %v7534, %v7502
        %v7536 = vmul.f32 %v7535, %v7534
        %v7537 = vmul.f32 0.5, %v7536
        %v7538 = vsub.f32 1.5, %v7537
        %v7539 = vmul.f32 %v7534, %v7538
        %vm7540 = vweird.f32 %v7502
        %vm7541 = vweird.f32 %v7534
        %vm7542 = vmor %vm7540, %vm7541
        %v7543 = vsel %vm7542, %v7534, %v7539
        %v7544 = vrsqrt.pop %v7503
        %v7545 = vmul.f32 %v7544, %v7503
        %v7546 = vmul.f32 %v7545, %v7544
        %v7547 = vmul.f32 0.5, %v7546
        %v7548 = vsub.f32 1.5, %v7547
        %v7549 = vmul.f32 %v7544, %v7548
        %vm7550 = vweird.f32 %v7503
        %vm7551 = vweird.f32 %v7544
        %vm7552 = vmor %vm7550, %vm7551
        %v7553 = vsel %vm7552, %v7544, %v7549
        %v7554 = vrsqrt.pop %v7504
        %v7555 = vmul.f32 %v7554, %v7504
        %v7556 = vmul.f32 %v7555, %v7554
        %v7557 = vmul.f32 0.5, %v7556
        %v7558 = vsub.f32 1.5, %v7557
        %v7559 = vmul.f32 %v7554, %v7558
        %vm7560 = vweird.f32 %v7504
        %vm7561 = vweird.f32 %v7554
        %vm7562 = vmor %vm7560, %vm7561
        %v7563 = vsel %vm7562, %v7554, %v7559
        %v7564 = vrsqrt.pop %v7505
        %v7565 = vmul.f32 %v7564, %v7505
        %v7566 = vmul.f32 %v7565, %v7564
        %v7567 = vmul.f32 0.5, %v7566
        %v7568 = vsub.f32 1.5, %v7567
        %v7569 = vmul.f32 %v7564, %v7568
        %vm7570 = vweird.f32 %v7505
        %vm7571 = vweird.f32 %v7564
        %vm7572 = vmor %vm7570, %vm7571
        %v7573 = vsel %vm7572, %v7564, %v7569
        %v7574 = vrsqrt.pop %v7506
        %v7575 = vmul.f32 %v7574, %v7506
        %v7576 = vmul.f32 %v7575, %v7574
        %v7577 = vmul.f32 0.5, %v7576
        %v7578 = vsub.f32 1.5, %v7577
        %v7579 = vmul.f32 %v7574, %v7578
        %vm7580 = vweird.f32 %v7506
        %vm7581 = vweird.f32 %v7574
        %vm7582 = vmor %vm7580, %vm7581
        %v7583 = vsel %vm7582, %v7574, %v7579
        %v7584 = vrsqrt.pop %v7507
        %v7585 = vmul.f32 %v7584, %v7507
        %v7586 = vmul.f32 %v7585, %v7584
        %v7587 = vmul.f32 0.5, %v7586
        %v7588 = vsub.f32 1.5, %v7587
        %v7589 = vmul.f32 %v7584, %v7588
        %vm7590 = vweird.f32 %v7507
        %vm7591 = vweird.f32 %v7584
        %vm7592 = vmor %vm7590, %vm7591
        %v7593 = vsel %vm7592, %v7584, %v7589
        %v7594 = vrsqrt.pop %v7508
        %v7595 = vmul.f32 %v7594, %v7508
        %v7596 = vmul.f32 %v7595, %v7594
        %v7597 = vmul.f32 0.5, %v7596
        %v7598 = vsub.f32 1.5, %v7597
        %v7599 = vmul.f32 %v7594, %v7598
        %vm7600 = vweird.f32 %v7508
        %vm7601 = vweird.f32 %v7594
        %vm7602 = vmor %vm7600, %vm7601
        %v7603 = vsel %vm7602, %v7594, %v7599
        %v7604 = vrsqrt.pop %v7509
        %v7605 = vmul.f32 %v7604, %v7509
        %v7606 = vmul.f32 %v7605, %v7604
        %v7607 = vmul.f32 0.5, %v7606
        %v7608 = vsub.f32 1.5, %v7607
        %v7609 = vmul.f32 %v7604, %v7608
        %vm7610 = vweird.f32 %v7509
        %vm7611 = vweird.f32 %v7604
        %vm7612 = vmor %vm7610, %vm7611
        %v7613 = vsel %vm7612, %v7604, %v7609
        %v7614 = vrsqrt.pop %v7510
        %v7615 = vmul.f32 %v7614, %v7510
        %v7616 = vmul.f32 %v7615, %v7614
        %v7617 = vmul.f32 0.5, %v7616
        %v7618 = vsub.f32 1.5, %v7617
        %v7619 = vmul.f32 %v7614, %v7618
        %vm7620 = vweird.f32 %v7510
        %vm7621 = vweird.f32 %v7614
        %vm7622 = vmor %vm7620, %vm7621
        %v7623 = vsel %vm7622, %v7614, %v7619
        %v7624 = vrsqrt.pop %v7511
        %v7625 = vmul.f32 %v7624, %v7511
        %v7626 = vmul.f32 %v7625, %v7624
        %v7627 = vmul.f32 0.5, %v7626
        %v7628 = vsub.f32 1.5, %v7627
        %v7629 = vmul.f32 %v7624, %v7628
        %vm7630 = vweird.f32 %v7511
        %vm7631 = vweird.f32 %v7624
        %vm7632 = vmor %vm7630, %vm7631
        %v7633 = vsel %vm7632, %v7624, %v7629
        %v7634 = vrsqrt.pop %v7512
        %v7635 = vmul.f32 %v7634, %v7512
        %v7636 = vmul.f32 %v7635, %v7634
        %v7637 = vmul.f32 0.5, %v7636
        %v7638 = vsub.f32 1.5, %v7637
        %v7639 = vmul.f32 %v7634, %v7638
        %vm7640 = vweird.f32 %v7512
        %vm7641 = vweird.f32 %v7634
        %vm7642 = vmor %vm7640, %vm7641
        %v7643 = vsel %vm7642, %v7634, %v7639
        %v7644 = vrsqrt.pop %v7513
        %v7645 = vmul.f32 %v7644, %v7513
        %v7646 = vmul.f32 %v7645, %v7644
        %v7647 = vmul.f32 0.5, %v7646
        %v7648 = vsub.f32 1.5, %v7647
        %v7649 = vmul.f32 %v7644, %v7648
        %vm7650 = vweird.f32 %v7513
        %vm7651 = vweird.f32 %v7644
        %vm7652 = vmor %vm7650, %vm7651
        %v7653 = vsel %vm7652, %v7644, %v7649
        %v7654 = vrsqrt.pop %v7514
        %v7655 = vmul.f32 %v7654, %v7514
        %v7656 = vmul.f32 %v7655, %v7654
        %v7657 = vmul.f32 0.5, %v7656
        %v7658 = vsub.f32 1.5, %v7657
        %v7659 = vmul.f32 %v7654, %v7658
        %vm7660 = vweird.f32 %v7514
        %vm7661 = vweird.f32 %v7654
        %vm7662 = vmor %vm7660, %vm7661
        %v7663 = vsel %vm7662, %v7654, %v7659
        %v7664 = vrsqrt.pop %v7515
        %v7665 = vmul.f32 %v7664, %v7515
        %v7666 = vmul.f32 %v7665, %v7664
        %v7667 = vmul.f32 0.5, %v7666
        %v7668 = vsub.f32 1.5, %v7667
        %v7669 = vmul.f32 %v7664, %v7668
        %vm7670 = vweird.f32 %v7515
        %vm7671 = vweird.f32 %v7664
        %vm7672 = vmor %vm7670, %vm7671
        %v7673 = vsel %vm7672, %v7664, %v7669
        %v7674 = vrsqrt.pop %v7516
        %v7675 = vmul.f32 %v7674, %v7516
        %v7676 = vmul.f32 %v7675, %v7674
        %v7677 = vmul.f32 0.5, %v7676
        %v7678 = vsub.f32 1.5, %v7677
        %v7679 = vmul.f32 %v7674, %v7678
        %vm7680 = vweird.f32 %v7516
        %vm7681 = vweird.f32 %v7674
        %vm7682 = vmor %vm7680, %vm7681
        %v7683 = vsel %vm7682, %v7674, %v7679
        %v7684 = vrsqrt.pop %v7517
        %v7685 = vmul.f32 %v7684, %v7517
        %v7686 = vmul.f32 %v7685, %v7684
        %v7687 = vmul.f32 0.5, %v7686
        %v7688 = vsub.f32 1.5, %v7687
        %v7689 = vmul.f32 %v7684, %v7688
        %vm7690 = vweird.f32 %v7517
        %vm7691 = vweird.f32 %v7684
        %vm7692 = vmor %vm7690, %vm7691
        %v7693 = vsel %vm7692, %v7684, %v7689
        %v7694 = vrsqrt.pop %v7518
        %v7695 = vmul.f32 %v7694, %v7518
        %v7696 = vmul.f32 %v7695, %v7694
        %v7697 = vmul.f32 0.5, %v7696
        %v7698 = vsub.f32 1.5, %v7697
        %v7699 = vmul.f32 %v7694, %v7698
        %vm7700 = vweird.f32 %v7518
        %vm7701 = vweird.f32 %v7694
        %vm7702 = vmor %vm7700, %vm7701
        %v7703 = vsel %vm7702, %v7694, %v7699
        %v7704 = vrsqrt.pop %v7519
        %v7705 = vmul.f32 %v7704, %v7519
        %v7706 = vmul.f32 %v7705, %v7704
        %v7707 = vmul.f32 0.5, %v7706
        %v7708 = vsub.f32 1.5, %v7707
        %v7709 = vmul.f32 %v7704, %v7708
        %vm7710 = vweird.f32 %v7519
        %vm7711 = vweird.f32 %v7704
        %vm7712 = vmor %vm7710, %vm7711
        %v7713 = vsel %vm7712, %v7704, %v7709
        %v7714 = vrsqrt.pop %v7520
        %v7715 = vmul.f32 %v7714, %v7520
        %v7716 = vmul.f32 %v7715, %v7714
        %v7717 = vmul.f32 0.5, %v7716
        %v7718 = vsub.f32 1.5, %v7717
        %v7719 = vmul.f32 %v7714, %v7718
        %vm7720 = vweird.f32 %v7520
        %vm7721 = vweird.f32 %v7714
        %vm7722 = vmor %vm7720, %vm7721
        %v7723 = vsel %vm7722, %v7714, %v7719
        %v7724 = vrsqrt.pop %v7521
        %v7725 = vmul.f32 %v7724, %v7521
        %v7726 = vmul.f32 %v7725, %v7724
        %v7727 = vmul.f32 0.5, %v7726
        %v7728 = vsub.f32 1.5, %v7727
        %v7729 = vmul.f32 %v7724, %v7728
        %vm7730 = vweird.f32 %v7521
        %vm7731 = vweird.f32 %v7724
        %vm7732 = vmor %vm7730, %vm7731
        %v7733 = vsel %vm7732, %v7724, %v7729
        %v7734 = vrsqrt.pop %v7522
        %v7735 = vmul.f32 %v7734, %v7522
        %v7736 = vmul.f32 %v7735, %v7734
        %v7737 = vmul.f32 0.5, %v7736
        %v7738 = vsub.f32 1.5, %v7737
        %v7739 = vmul.f32 %v7734, %v7738
        %vm7740 = vweird.f32 %v7522
        %vm7741 = vweird.f32 %v7734
        %vm7742 = vmor %vm7740, %vm7741
        %v7743 = vsel %vm7742, %v7734, %v7739
        %v7744 = vrsqrt.pop %v7523
        %v7745 = vmul.f32 %v7744, %v7523
        %v7746 = vmul.f32 %v7745, %v7744
        %v7747 = vmul.f32 0.5, %v7746
        %v7748 = vsub.f32 1.5, %v7747
        %v7749 = vmul.f32 %v7744, %v7748
        %vm7750 = vweird.f32 %v7523
        %vm7751 = vweird.f32 %v7744
        %vm7752 = vmor %vm7750, %vm7751
        %v7753 = vsel %vm7752, %v7744, %v7749
        %v7754 = vrsqrt.pop %v7524
        %v7755 = vmul.f32 %v7754, %v7524
        %v7756 = vmul.f32 %v7755, %v7754
        %v7757 = vmul.f32 0.5, %v7756
        %v7758 = vsub.f32 1.5, %v7757
        %v7759 = vmul.f32 %v7754, %v7758
        %vm7760 = vweird.f32 %v7524
        %vm7761 = vweird.f32 %v7754
        %vm7762 = vmor %vm7760, %vm7761
        %v7763 = vsel %vm7762, %v7754, %v7759
        %v7764 = vrsqrt.pop %v7525
        %v7765 = vmul.f32 %v7764, %v7525
        %v7766 = vmul.f32 %v7765, %v7764
        %v7767 = vmul.f32 0.5, %v7766
        %v7768 = vsub.f32 1.5, %v7767
        %v7769 = vmul.f32 %v7764, %v7768
        %vm7770 = vweird.f32 %v7525
        %vm7771 = vweird.f32 %v7764
        %vm7772 = vmor %vm7770, %vm7771
        %v7773 = vsel %vm7772, %v7764, %v7769
        %v7774 = vrsqrt.pop %v7526
        %v7775 = vmul.f32 %v7774, %v7526
        %v7776 = vmul.f32 %v7775, %v7774
        %v7777 = vmul.f32 0.5, %v7776
        %v7778 = vsub.f32 1.5, %v7777
        %v7779 = vmul.f32 %v7774, %v7778
        %vm7780 = vweird.f32 %v7526
        %vm7781 = vweird.f32 %v7774
        %vm7782 = vmor %vm7780, %vm7781
        %v7783 = vsel %vm7782, %v7774, %v7779
        %v7784 = vrsqrt.pop %v7527
        %v7785 = vmul.f32 %v7784, %v7527
        %v7786 = vmul.f32 %v7785, %v7784
        %v7787 = vmul.f32 0.5, %v7786
        %v7788 = vsub.f32 1.5, %v7787
        %v7789 = vmul.f32 %v7784, %v7788
        %vm7790 = vweird.f32 %v7527
        %vm7791 = vweird.f32 %v7784
        %vm7792 = vmor %vm7790, %vm7791
        %v7793 = vsel %vm7792, %v7784, %v7789
        %v7794 = vrsqrt.pop %v7528
        %v7795 = vmul.f32 %v7794, %v7528
        %v7796 = vmul.f32 %v7795, %v7794
        %v7797 = vmul.f32 0.5, %v7796
        %v7798 = vsub.f32 1.5, %v7797
        %v7799 = vmul.f32 %v7794, %v7798
        %vm7800 = vweird.f32 %v7528
        %vm7801 = vweird.f32 %v7794
        %vm7802 = vmor %vm7800, %vm7801
        %v7803 = vsel %vm7802, %v7794, %v7799
        %v7804 = vrsqrt.pop %v7529
        %v7805 = vmul.f32 %v7804, %v7529
        %v7806 = vmul.f32 %v7805, %v7804
        %v7807 = vmul.f32 0.5, %v7806
        %v7808 = vsub.f32 1.5, %v7807
        %v7809 = vmul.f32 %v7804, %v7808
        %vm7810 = vweird.f32 %v7529
        %vm7811 = vweird.f32 %v7804
        %vm7812 = vmor %vm7810, %vm7811
        %v7813 = vsel %vm7812, %v7804, %v7809
        %v7814 = vrsqrt.pop %v7530
        %v7815 = vmul.f32 %v7814, %v7530
        %v7816 = vmul.f32 %v7815, %v7814
        %v7817 = vmul.f32 0.5, %v7816
        %v7818 = vsub.f32 1.5, %v7817
        %v7819 = vmul.f32 %v7814, %v7818
        %vm7820 = vweird.f32 %v7530
        %vm7821 = vweird.f32 %v7814
        %vm7822 = vmor %vm7820, %vm7821
        %v7823 = vsel %vm7822, %v7814, %v7819
        %v7824 = vrsqrt.pop %v7531
        %v7825 = vmul.f32 %v7824, %v7531
        %v7826 = vmul.f32 %v7825, %v7824
        %v7827 = vmul.f32 0.5, %v7826
        %v7828 = vsub.f32 1.5, %v7827
        %v7829 = vmul.f32 %v7824, %v7828
        %vm7830 = vweird.f32 %v7531
        %vm7831 = vweird.f32 %v7824
        %vm7832 = vmor %vm7830, %vm7831
        %v7833 = vsel %vm7832, %v7824, %v7829
        %v7834 = vrsqrt.pop %v7532
        %v7835 = vmul.f32 %v7834, %v7532
        %v7836 = vmul.f32 %v7835, %v7834
        %v7837 = vmul.f32 0.5, %v7836
        %v7838 = vsub.f32 1.5, %v7837
        %v7839 = vmul.f32 %v7834, %v7838
        %vm7840 = vweird.f32 %v7532
        %vm7841 = vweird.f32 %v7834
        %vm7842 = vmor %vm7840, %vm7841
        %v7843 = vsel %vm7842, %v7834, %v7839
        %v7844 = vrsqrt.pop %v7533
        %v7845 = vmul.f32 %v7844, %v7533
        %v7846 = vmul.f32 %v7845, %v7844
        %v7847 = vmul.f32 0.5, %v7846
        %v7848 = vsub.f32 1.5, %v7847
        %v7849 = vmul.f32 %v7844, %v7848
        %vm7850 = vweird.f32 %v7533
        %vm7851 = vweird.f32 %v7844
        %vm7852 = vmor %vm7850, %vm7851
        %v7853 = vsel %vm7852, %v7844, %v7849
        %v7854 = vmul.f32 %v7310, %v7543
        %v7855 = vmul.f32 %v7311, %v7553
        %v7856 = vmul.f32 %v7312, %v7563
        %v7857 = vmul.f32 %v7313, %v7573
        %v7858 = vmul.f32 %v7314, %v7583
        %v7859 = vmul.f32 %v7315, %v7593
        %v7860 = vmul.f32 %v7316, %v7603
        %v7861 = vmul.f32 %v7317, %v7613
        %v7862 = vmul.f32 %v7318, %v7623
        %v7863 = vmul.f32 %v7319, %v7633
        %v7864 = vmul.f32 %v7320, %v7643
        %v7865 = vmul.f32 %v7321, %v7653
        %v7866 = vmul.f32 %v7322, %v7663
        %v7867 = vmul.f32 %v7323, %v7673
        %v7868 = vmul.f32 %v7324, %v7683
        %v7869 = vmul.f32 %v7325, %v7693
        %v7870 = vmul.f32 %v7326, %v7703
        %v7871 = vmul.f32 %v7327, %v7713
        %v7872 = vmul.f32 %v7328, %v7723
        %v7873 = vmul.f32 %v7329, %v7733
        %v7874 = vmul.f32 %v7330, %v7743
        %v7875 = vmul.f32 %v7331, %v7753
        %v7876 = vmul.f32 %v7332, %v7763
        %v7877 = vmul.f32 %v7333, %v7773
        %v7878 = vmul.f32 %v7334, %v7783
        %v7879 = vmul.f32 %v7335, %v7793
        %v7880 = vmul.f32 %v7336, %v7803
        %v7881 = vmul.f32 %v7337, %v7813
        %v7882 = vmul.f32 %v7338, %v7823
        %v7883 = vmul.f32 %v7339, %v7833
        %v7884 = vmul.f32 %v7340, %v7843
        %v7885 = vmul.f32 %v7341, %v7853
        %v7887 = vperm.slane %v7180, 0
        %v7889 = vmul.f32 %v7854, %v7887
        %v7890 = vmul.f32 %v7855, %v7887
        %v7891 = vmul.f32 %v7856, %v7887
        %v7892 = vmul.f32 %v7857, %v7887
        %v7893 = vmul.f32 %v7858, %v7887
        %v7894 = vmul.f32 %v7859, %v7887
        %v7895 = vmul.f32 %v7860, %v7887
        %v7896 = vmul.f32 %v7861, %v7887
        %v7897 = vmul.f32 %v7862, %v7887
        %v7898 = vmul.f32 %v7863, %v7887
        %v7899 = vmul.f32 %v7864, %v7887
        %v7900 = vmul.f32 %v7865, %v7887
        %v7901 = vmul.f32 %v7866, %v7887
        %v7902 = vmul.f32 %v7867, %v7887
        %v7903 = vmul.f32 %v7868, %v7887
        %v7904 = vmul.f32 %v7869, %v7887
        %v7905 = vmul.f32 %v7870, %v7887
        %v7906 = vmul.f32 %v7871, %v7887
        %v7907 = vmul.f32 %v7872, %v7887
        %v7908 = vmul.f32 %v7873, %v7887
        %v7909 = vmul.f32 %v7874, %v7887
        %v7910 = vmul.f32 %v7875, %v7887
        %v7911 = vmul.f32 %v7876, %v7887
        %v7912 = vmul.f32 %v7877, %v7887
        %v7913 = vmul.f32 %v7878, %v7887
        %v7914 = vmul.f32 %v7879, %v7887
        %v7915 = vmul.f32 %v7880, %v7887
        %v7916 = vmul.f32 %v7881, %v7887
        %v7917 = vmul.f32 %v7882, %v7887
        %v7918 = vmul.f32 %v7883, %v7887
        %v7919 = vmul.f32 %v7884, %v7887
        %v7920 = vmul.f32 %v7885, %v7887
        %v7922 = vperm.slane %v7181, 0
        %v7924 = vadd.f32 %v7889, %v7922
        %v7925 = vadd.f32 %v7890, %v7922
        %v7926 = vadd.f32 %v7891, %v7922
        %v7927 = vadd.f32 %v7892, %v7922
        %v7928 = vadd.f32 %v7893, %v7922
        %v7929 = vadd.f32 %v7894, %v7922
        %v7930 = vadd.f32 %v7895, %v7922
        %v7931 = vadd.f32 %v7896, %v7922
        %v7932 = vadd.f32 %v7897, %v7922
        %v7933 = vadd.f32 %v7898, %v7922
        %v7934 = vadd.f32 %v7899, %v7922
        %v7935 = vadd.f32 %v7900, %v7922
        %v7936 = vadd.f32 %v7901, %v7922
        %v7937 = vadd.f32 %v7902, %v7922
        %v7938 = vadd.f32 %v7903, %v7922
        %v7939 = vadd.f32 %v7904, %v7922
        %v7940 = vadd.f32 %v7905, %v7922
        %v7941 = vadd.f32 %v7906, %v7922
        %v7942 = vadd.f32 %v7907, %v7922
        %v7943 = vadd.f32 %v7908, %v7922
        %v7944 = vadd.f32 %v7909, %v7922
        %v7945 = vadd.f32 %v7910, %v7922
        %v7946 = vadd.f32 %v7911, %v7922
        %v7947 = vadd.f32 %v7912, %v7922
        %v7948 = vadd.f32 %v7913, %v7922
        %v7949 = vadd.f32 %v7914, %v7922
        %v7950 = vadd.f32 %v7915, %v7922
        %v7951 = vadd.f32 %v7916, %v7922
        %v7952 = vadd.f32 %v7917, %v7922
        %v7953 = vadd.f32 %v7918, %v7922
        %v7954 = vadd.f32 %v7919, %v7922
        %v7955 = vadd.f32 %v7920, %v7922
        %v7956 = vld [vmem:[%s4 + $0x88] sm:$0xf]
        %v7957 = vld [vmem:[%s4 + $0x128] sm:$0xf]
        %v7958 = vld [vmem:[%s4 + $0x1c8] sm:$0xf]
        %v7959 = vld [vmem:[%s4 + $0x268] sm:$0xf]
        %v7960 = vpack.c.bf16 %v7177, %v7176
        %v7961 = vpack.c.bf16 %v7179, %v7178
        %v7966 = vunpack.c.l.b16 %v7956
        %v7967 = vunpack.c.l.b16 %v7957
        %v7968 = vunpack.c.l.b16 %v7958
        %v7969 = vunpack.c.l.b16 %v7959
        %v7970 = vpack.c.b16 %v7967, %v7966
        %v7971 = vpack.c.b16 %v7969, %v7968
        %v7975 = vsel %vm492, %v7960, 0
        %v7978 = vsel %vm492, %v7961, 0
        %7980 = vmatpush.bf16.msra.mxu0 0
        %7981 = vmatpush.bf16.msra.mxu0 0
        %7982 = vmatpush.bf16.msra.mxu0 0
        %7983 = vmatpush.bf16.msra.mxu0 0
        %7984 = vmatpush.bf16.msra.mxu0 0
        %7985 = vmatpush.bf16.msra.mxu0 0
        %7986 = vmatpush.bf16.msra.mxu0 %v7971
        %7987 = vmatpush.bf16.msra.mxu0 %v7970
        %7988 = vmatmul.bf16.gmra.mxu0 %v7975
        %v7989 = vpop.f32.mrf.mxu0
        %v7990 = vadd.f32 0.0, %v7989
        %v7991 = vpop.f32.mrf.mxu0
        %v7992 = vadd.f32 0.0, %v7991
        %7993 = vmatmul.bf16.gmra.mxu0 %v7978
        %v7994 = vpop.f32.mrf.mxu0
        %v7995 = vadd.f32 0.0, %v7994
        %v7996 = vpop.f32.mrf.mxu0
        %v7997 = vadd.f32 0.0, %v7996
        %7998 = vdwg.mxu0
        %v7999 = vld [vmem:[%s4 + $0x8c] sm:$0xf]
        %v8000 = vld [vmem:[%s4 + $0x12c] sm:$0xf]
        %v8001 = vld [vmem:[%s4 + $0x1cc] sm:$0xf]
        %v8002 = vld [vmem:[%s4 + $0x26c] sm:$0xf]
        %v8003 = vpack.c.bf16 %v7925, %v7924
        %v8004 = vpack.c.bf16 %v7927, %v7926
        %v8005 = vpack.c.bf16 %v7929, %v7928
        %v8006 = vpack.c.bf16 %v7931, %v7930
        %v8007 = vpack.c.bf16 %v7933, %v7932
        %v8008 = vpack.c.bf16 %v7935, %v7934
        %v8009 = vpack.c.bf16 %v7937, %v7936
        %v8010 = vpack.c.bf16 %v7939, %v7938
        %v8011 = vpack.c.bf16 %v7941, %v7940
        %v8012 = vpack.c.bf16 %v7943, %v7942
        %v8013 = vpack.c.bf16 %v7945, %v7944
        %v8014 = vpack.c.bf16 %v7947, %v7946
        %v8015 = vpack.c.bf16 %v7949, %v7948
        %v8016 = vpack.c.bf16 %v7951, %v7950
        %v8017 = vpack.c.bf16 %v7953, %v7952
        %v8018 = vpack.c.bf16 %v7955, %v7954
        %v8023 = vunpack.c.l.b16 %v7999
        %v8024 = vunpack.c.l.b16 %v8000
        %v8025 = vunpack.c.l.b16 %v8001
        %v8026 = vunpack.c.l.b16 %v8002
        %v8027 = vpack.c.b16 %v8024, %v8023
        %v8028 = vpack.c.b16 %v8026, %v8025
        %v8032 = vsel %vm492, %v8003, 0
        %v8035 = vsel %vm492, %v8004, 0
        %v8038 = vsel %vm492, %v8005, 0
        %v8041 = vsel %vm492, %v8006, 0
        %v8044 = vsel %vm492, %v8007, 0
        %v8047 = vsel %vm492, %v8008, 0
        %v8050 = vsel %vm492, %v8009, 0
        %v8053 = vsel %vm492, %v8010, 0
        %v8056 = vsel %vm492, %v8011, 0
        %v8059 = vsel %vm492, %v8012, 0
        %v8062 = vsel %vm492, %v8013, 0
        %v8065 = vsel %vm492, %v8014, 0
        %v8068 = vsel %vm492, %v8015, 0
        %v8071 = vsel %vm492, %v8016, 0
        %v8074 = vsel %vm492, %v8017, 0
        %v8077 = vsel %vm492, %v8018, 0
        %8079 = vmatpush.bf16.msra.mxu0 0
        %8080 = vmatpush.bf16.msra.mxu0 0
        %8081 = vmatpush.bf16.msra.mxu0 0
        %8082 = vmatpush.bf16.msra.mxu0 0
        %8083 = vmatpush.bf16.msra.mxu0 0
        %8084 = vmatpush.bf16.msra.mxu0 0
        %8085 = vmatpush.bf16.msra.mxu0 %v8028
        %8086 = vmatpush.bf16.msra.mxu0 %v8027
        %8087 = vmatmul.bf16.gmra.mxu0 %v8032
        %v8088 = vpop.f32.mrf.mxu0
        %v8089 = vadd.f32 0.0, %v8088
        %v8090 = vpop.f32.mrf.mxu0
        %v8091 = vadd.f32 0.0, %v8090
        %8092 = vmatmul.bf16.gmra.mxu0 %v8035
        %v8093 = vpop.f32.mrf.mxu0
        %v8094 = vadd.f32 0.0, %v8093
        %v8095 = vpop.f32.mrf.mxu0
        %v8096 = vadd.f32 0.0, %v8095
        %8097 = vmatmul.bf16.gmra.mxu0 %v8038
        %v8098 = vpop.f32.mrf.mxu0
        %v8099 = vadd.f32 0.0, %v8098
        %v8100 = vpop.f32.mrf.mxu0
        %v8101 = vadd.f32 0.0, %v8100
        %8102 = vmatmul.bf16.gmra.mxu0 %v8041
        %v8103 = vpop.f32.mrf.mxu0
        %v8104 = vadd.f32 0.0, %v8103
        %v8105 = vpop.f32.mrf.mxu0
        %v8106 = vadd.f32 0.0, %v8105
        %8107 = vmatmul.bf16.gmra.mxu0 %v8044
        %v8108 = vpop.f32.mrf.mxu0
        %v8109 = vadd.f32 0.0, %v8108
        %v8110 = vpop.f32.mrf.mxu0
        %v8111 = vadd.f32 0.0, %v8110
        %8112 = vmatmul.bf16.gmra.mxu0 %v8047
        %v8113 = vpop.f32.mrf.mxu0
        %v8114 = vadd.f32 0.0, %v8113
        %v8115 = vpop.f32.mrf.mxu0
        %v8116 = vadd.f32 0.0, %v8115
        %8117 = vmatmul.bf16.gmra.mxu0 %v8050
        %v8118 = vpop.f32.mrf.mxu0
        %v8119 = vadd.f32 0.0, %v8118
        %v8120 = vpop.f32.mrf.mxu0
        %v8121 = vadd.f32 0.0, %v8120
        %8122 = vmatmul.bf16.gmra.mxu0 %v8053
        %v8123 = vpop.f32.mrf.mxu0
        %v8124 = vadd.f32 0.0, %v8123
        %v8125 = vpop.f32.mrf.mxu0
        %v8126 = vadd.f32 0.0, %v8125
        %8127 = vmatmul.bf16.gmra.mxu0 %v8056
        %v8128 = vpop.f32.mrf.mxu0
        %v8129 = vadd.f32 0.0, %v8128
        %v8130 = vpop.f32.mrf.mxu0
        %v8131 = vadd.f32 0.0, %v8130
        %8132 = vmatmul.bf16.gmra.mxu0 %v8059
        %v8133 = vpop.f32.mrf.mxu0
        %v8134 = vadd.f32 0.0, %v8133
        %v8135 = vpop.f32.mrf.mxu0
        %v8136 = vadd.f32 0.0, %v8135
        %8137 = vmatmul.bf16.gmra.mxu0 %v8062
        %v8138 = vpop.f32.mrf.mxu0
        %v8139 = vadd.f32 0.0, %v8138
        %v8140 = vpop.f32.mrf.mxu0
        %v8141 = vadd.f32 0.0, %v8140
        %8142 = vmatmul.bf16.gmra.mxu0 %v8065
        %v8143 = vpop.f32.mrf.mxu0
        %v8144 = vadd.f32 0.0, %v8143
        %v8145 = vpop.f32.mrf.mxu0
        %v8146 = vadd.f32 0.0, %v8145
        %8147 = vmatmul.bf16.gmra.mxu0 %v8068
        %v8148 = vpop.f32.mrf.mxu0
        %v8149 = vadd.f32 0.0, %v8148
        %v8150 = vpop.f32.mrf.mxu0
        %v8151 = vadd.f32 0.0, %v8150
        %8152 = vmatmul.bf16.gmra.mxu0 %v8071
        %v8153 = vpop.f32.mrf.mxu0
        %v8154 = vadd.f32 0.0, %v8153
        %v8155 = vpop.f32.mrf.mxu0
        %v8156 = vadd.f32 0.0, %v8155
        %8157 = vmatmul.bf16.gmra.mxu0 %v8074
        %v8158 = vpop.f32.mrf.mxu0
        %v8159 = vadd.f32 0.0, %v8158
        %v8160 = vpop.f32.mrf.mxu0
        %v8161 = vadd.f32 0.0, %v8160
        %8162 = vmatmul.bf16.gmra.mxu0 %v8077
        %v8163 = vpop.f32.mrf.mxu0
        %v8164 = vadd.f32 0.0, %v8163
        %v8165 = vpop.f32.mrf.mxu0
        %v8166 = vadd.f32 0.0, %v8165
        %8167 = vdwg.mxu0
        %v8168 = vld [vmem:[#allocation4 + $0x8] sm:$0xf]
        %v8169 = vld [vmem:[#allocation4 + $0x18] sm:$0xf]
        %v8170 = vld [vmem:[#allocation4 + $0x28] sm:$0xf]
        %v8171 = vld [vmem:[#allocation4 + $0x38] sm:$0xf]
        %v8172 = vld [vmem:[#allocation4 + $0x48] sm:$0xf]
        %v8173 = vld [vmem:[#allocation4 + $0x58] sm:$0xf]
        %v8174 = vld [vmem:[#allocation4 + $0x68] sm:$0xf]
        %v8175 = vld [vmem:[#allocation4 + $0x78] sm:$0xf]
        %v8176 = vld [vmem:[#allocation2 + $0x33] sm:$0x1]
        %v8177 = vpack.c.bf16 %v7992, %v7990
        %v8178 = vpack.c.bf16 %v7997, %v7995
        %v8179 = vpack.c.bf16 %v8091, %v8089
        %v8180 = vpack.c.bf16 %v8096, %v8094
        %v8181 = vpack.c.bf16 %v8101, %v8099
        %v8182 = vpack.c.bf16 %v8106, %v8104
        %v8183 = vpack.c.bf16 %v8111, %v8109
        %v8184 = vpack.c.bf16 %v8116, %v8114
        %v8185 = vpack.c.bf16 %v8121, %v8119
        %v8186 = vpack.c.bf16 %v8126, %v8124
        %v8187 = vpack.c.bf16 %v8131, %v8129
        %v8188 = vpack.c.bf16 %v8136, %v8134
        %v8189 = vpack.c.bf16 %v8141, %v8139
        %v8190 = vpack.c.bf16 %v8146, %v8144
        %v8191 = vpack.c.bf16 %v8151, %v8149
        %v8192 = vpack.c.bf16 %v8156, %v8154
        %v8193 = vpack.c.bf16 %v8161, %v8159
        %v8194 = vpack.c.bf16 %v8166, %v8164
        %v8196 = vsel %vm497, %v8177, 0
        %v8199 = vsel %vm497, %v8178, 0
        %v8202 = vsel %vm497, %v8179, 0
        %v8205 = vsel %vm497, %v8180, 0
        %v8208 = vsel %vm497, %v8181, 0
        %v8211 = vsel %vm497, %v8182, 0
        %v8214 = vsel %vm497, %v8183, 0
        %v8217 = vsel %vm497, %v8184, 0
        %v8220 = vsel %vm497, %v8185, 0
        %v8223 = vsel %vm497, %v8186, 0
        %v8226 = vsel %vm497, %v8187, 0
        %v8229 = vsel %vm497, %v8188, 0
        %v8232 = vsel %vm497, %v8189, 0
        %v8235 = vsel %vm497, %v8190, 0
        %v8238 = vsel %vm497, %v8191, 0
        %v8241 = vsel %vm497, %v8192, 0
        %v8244 = vsel %vm497, %v8193, 0
        %v8247 = vsel %vm497, %v8194, 0
        %8249 = vmatpush.bf16.xpose.msra.mxu0 %v8223
        %8250 = vmatpush.bf16.xpose.msra.mxu0 %v8220
        %8251 = vmatpush.bf16.xpose.msra.mxu0 %v8217
        %8252 = vmatpush.bf16.xpose.msra.mxu0 %v8214
        %8253 = vmatpush.bf16.xpose.msra.mxu0 %v8211
        %8254 = vmatpush.bf16.xpose.msra.mxu0 %v8208
        %8255 = vmatpush.bf16.xpose.msra.mxu0 %v8205
        %8256 = vmatpush.bf16.xpose.msra.mxu0 %v8202
        %8257 = vmatmul.bf16.gmra.mxu0 %v8196
        %v8258 = vpop.f32.mrf.mxu0
        %v8259 = vadd.f32 %v503, %v8258
        %v8260 = vpop.f32.mrf.mxu0
        %v8261 = vadd.f32 %v504, %v8260
        %8262 = vmatmul.bf16.gmra.mxu0 %v8199
        %v8263 = vpop.f32.mrf.mxu0
        %v8264 = vadd.f32 %v505, %v8263
        %v8265 = vpop.f32.mrf.mxu0
        %v8266 = vadd.f32 %v506, %v8265
        %8267 = vdwg.mxu0
        %8268 = vmatpush.bf16.xpose.msra.mxu0 %v8247
        %8269 = vmatpush.bf16.xpose.msra.mxu0 %v8244
        %8270 = vmatpush.bf16.xpose.msra.mxu0 %v8241
        %8271 = vmatpush.bf16.xpose.msra.mxu0 %v8238
        %8272 = vmatpush.bf16.xpose.msra.mxu0 %v8235
        %8273 = vmatpush.bf16.xpose.msra.mxu0 %v8232
        %8274 = vmatpush.bf16.xpose.msra.mxu0 %v8229
        %8275 = vmatpush.bf16.xpose.msra.mxu0 %v8226
        %8276 = vmatmul.bf16.gmra.mxu0 %v8196
        %v8277 = vpop.f32.mrf.mxu0
        %v8278 = vadd.f32 %v503, %v8277
        %v8279 = vpop.f32.mrf.mxu0
        %v8280 = vadd.f32 %v504, %v8279
        %8281 = vmatmul.bf16.gmra.mxu0 %v8199
        %v8282 = vpop.f32.mrf.mxu0
        %v8283 = vadd.f32 %v505, %v8282
        %v8284 = vpop.f32.mrf.mxu0
        %v8285 = vadd.f32 %v506, %v8284
        %8286 = vdwg.mxu0
        %v8287 = vmax.f32 %v8259, %v8278
        %8288 = vmax.xlane.f32.xlu0 %v8287
        %v8289 = vpop.xlane.xlu0 %8288
        %v8290 = vmax.f32 %v8261, %v8280
        %8291 = vmax.xlane.f32.xlu0 %v8290
        %v8292 = vpop.xlane.xlu0 %8291
        %v8293 = vmax.f32 %v8264, %v8283
        %8294 = vmax.xlane.f32.xlu0 %v8293
        %v8295 = vpop.xlane.xlu0 %8294
        %v8296 = vmax.f32 %v8266, %v8285
        %8297 = vmax.xlane.f32.xlu0 %v8296
        %v8298 = vpop.xlane.xlu0 %8297
        %v8299 = vsub.f32 %v8259, %v8289
        %v8300 = vsub.f32 %v8278, %v8289
        %v8301 = vsub.f32 %v8261, %v8292
        %v8302 = vsub.f32 %v8280, %v8292
        %v8303 = vsub.f32 %v8264, %v8295
        %v8304 = vsub.f32 %v8283, %v8295
        %v8305 = vsub.f32 %v8266, %v8298
        %v8306 = vsub.f32 %v8285, %v8298
        %v8307 = vmul.f32 %v8299, 1.442695
        %v8308 = vpow.pop %v8307
        %v8309 = vmul.f32 %v8300, 1.442695
        %v8310 = vpow.pop %v8309
        %v8311 = vmul.f32 %v8301, 1.442695
        %v8312 = vpow.pop %v8311
        %v8313 = vmul.f32 %v8302, 1.442695
        %v8314 = vpow.pop %v8313
        %v8315 = vmul.f32 %v8303, 1.442695
        %v8316 = vpow.pop %v8315
        %v8317 = vmul.f32 %v8304, 1.442695
        %v8318 = vpow.pop %v8317
        %v8319 = vmul.f32 %v8305, 1.442695
        %v8320 = vpow.pop %v8319
        %v8321 = vmul.f32 %v8306, 1.442695
        %v8322 = vpow.pop %v8321
        %v8323 = vadd.f32 %v8308, %v8310
        %8324 = vadd.xlane.f32.xlu0 %v8323
        %v8325 = vpop.xlane.xlu0 %8324
        %v8326 = vadd.f32 %v8312, %v8314
        %8327 = vadd.xlane.f32.xlu0 %v8326
        %v8328 = vpop.xlane.xlu0 %8327
        %v8329 = vadd.f32 %v8316, %v8318
        %8330 = vadd.xlane.f32.xlu0 %v8329
        %v8331 = vpop.xlane.xlu0 %8330
        %v8332 = vadd.f32 %v8320, %v8322
        %8333 = vadd.xlane.f32.xlu0 %v8332
        %v8334 = vpop.xlane.xlu0 %8333
        %v8335 = vrcp.pop %v8325
        %v8336 = vrcp.pop %v8328
        %v8337 = vrcp.pop %v8331
        %v8338 = vrcp.pop %v8334
        %v8339 = vmul.f32 %v8308, %v8335
        %v8340 = vmul.f32 %v8310, %v8335
        %v8341 = vmul.f32 %v8312, %v8336
        %v8342 = vmul.f32 %v8314, %v8336
        %v8343 = vmul.f32 %v8316, %v8337
        %v8344 = vmul.f32 %v8318, %v8337
        %v8345 = vmul.f32 %v8320, %v8338
        %v8346 = vmul.f32 %v8322, %v8338
        %v8347 = vpack.c.bf16 %v8341, %v8339
        %v8348 = vpack.c.bf16 %v8342, %v8340
        %v8349 = vpack.c.bf16 %v8345, %v8343
        %v8350 = vpack.c.bf16 %v8346, %v8344
        %8367 = vrot.lane.b32.xlu0 %v8179, 64
        %v8368 = vpop.permute.xlu0 %8367
        %8369 = vrot.lane.b32.xlu0 %v8180, 64
        %v8370 = vpop.permute.xlu0 %8369
        %8371 = vrot.lane.b32.xlu0 %v8181, 64
        %v8372 = vpop.permute.xlu0 %8371
        %8373 = vrot.lane.b32.xlu0 %v8182, 64
        %v8374 = vpop.permute.xlu0 %8373
        %8375 = vrot.lane.b32.xlu0 %v8183, 64
        %v8376 = vpop.permute.xlu0 %8375
        %8377 = vrot.lane.b32.xlu0 %v8184, 64
        %v8378 = vpop.permute.xlu0 %8377
        %8379 = vrot.lane.b32.xlu0 %v8185, 64
        %v8380 = vpop.permute.xlu0 %8379
        %8381 = vrot.lane.b32.xlu0 %v8186, 64
        %v8382 = vpop.permute.xlu0 %8381
        %8383 = vrot.lane.b32.xlu0 %v8187, 64
        %v8384 = vpop.permute.xlu0 %8383
        %8385 = vrot.lane.b32.xlu0 %v8188, 64
        %v8386 = vpop.permute.xlu0 %8385
        %8387 = vrot.lane.b32.xlu0 %v8189, 64
        %v8388 = vpop.permute.xlu0 %8387
        %8389 = vrot.lane.b32.xlu0 %v8190, 64
        %v8390 = vpop.permute.xlu0 %8389
        %8391 = vrot.lane.b32.xlu0 %v8191, 64
        %v8392 = vpop.permute.xlu0 %8391
        %8393 = vrot.lane.b32.xlu0 %v8192, 64
        %v8394 = vpop.permute.xlu0 %8393
        %8395 = vrot.lane.b32.xlu0 %v8193, 64
        %v8396 = vpop.permute.xlu0 %8395
        %8397 = vrot.lane.b32.xlu0 %v8194, 64
        %v8398 = vpop.permute.xlu0 %8397
        %8415 = vmatpush.bf16.msra.mxu0 %v8382
        %8416 = vmatpush.bf16.msra.mxu0 %v8380
        %8417 = vmatpush.bf16.msra.mxu0 %v8378
        %8418 = vmatpush.bf16.msra.mxu0 %v8376
        %8419 = vmatpush.bf16.msra.mxu0 %v8374
        %8420 = vmatpush.bf16.msra.mxu0 %v8372
        %8421 = vmatpush.bf16.msra.mxu0 %v8370
        %8422 = vmatpush.bf16.msra.mxu0 %v8368
        %8423 = vmatmul.bf16.gmra.mxu0 %v8347
        %v8424 = vpop.f32.mrf.mxu0
        %v8425 = vadd.f32 0.0, %v8424
        %v8426 = vpop.f32.mrf.mxu0
        %v8427 = vadd.f32 0.0, %v8426
        %8428 = vmatmul.bf16.gmra.mxu0 %v8349
        %v8429 = vpop.f32.mrf.mxu0
        %v8430 = vadd.f32 0.0, %v8429
        %v8431 = vpop.f32.mrf.mxu0
        %v8432 = vadd.f32 0.0, %v8431
        %8433 = vdwg.mxu0
        %8434 = vmatpush.bf16.msra.mxu0 %v8398
        %8435 = vmatpush.bf16.msra.mxu0 %v8396
        %8436 = vmatpush.bf16.msra.mxu0 %v8394
        %8437 = vmatpush.bf16.msra.mxu0 %v8392
        %8438 = vmatpush.bf16.msra.mxu0 %v8390
        %8439 = vmatpush.bf16.msra.mxu0 %v8388
        %8440 = vmatpush.bf16.msra.mxu0 %v8386
        %8441 = vmatpush.bf16.msra.mxu0 %v8384
        %8442 = vmatmul.bf16.gmra.mxu0 %v8348
        %v8443 = vpop.f32.mrf.mxu0
        %v8444 = vadd.f32 %v8425, %v8443
        %v8445 = vpop.f32.mrf.mxu0
        %v8446 = vadd.f32 %v8427, %v8445
        %8447 = vmatmul.bf16.gmra.mxu0 %v8350
        %v8448 = vpop.f32.mrf.mxu0
        %v8449 = vadd.f32 %v8430, %v8448
        %v8450 = vpop.f32.mrf.mxu0
        %v8451 = vadd.f32 %v8432, %v8450
        %8452 = vdwg.mxu0
        %v8453 = vpack.c.bf16 %v8446, %v8444
        %v8454 = vpack.c.bf16 %v8451, %v8449
        %v8456 = vperm.slane %v8176, 0
        %v8466 = vunpack.c.l.b16 %v8168
        %v8467 = vunpack.c.l.b16 %v8169
        %v8468 = vunpack.c.l.b16 %v8170
        %v8469 = vunpack.c.l.b16 %v8171
        %v8470 = vunpack.c.l.b16 %v8172
        %v8471 = vunpack.c.l.b16 %v8173
        %v8472 = vunpack.c.l.b16 %v8174
        %v8473 = vunpack.c.l.b16 %v8175
        %v8474 = vpack.c.b16 %v8467, %v8466
        %v8475 = vpack.c.b16 %v8469, %v8468
        %v8476 = vpack.c.b16 %v8471, %v8470
        %v8477 = vpack.c.b16 %v8473, %v8472
        %v8483 = vsel %vm497, %v8453, 0
        %v8486 = vsel %vm497, %v8454, 0
        %8488 = vmatpush.bf16.msra.mxu0 0
        %8489 = vmatpush.bf16.msra.mxu0 0
        %8490 = vmatpush.bf16.msra.mxu0 0
        %8491 = vmatpush.bf16.msra.mxu0 0
        %8492 = vmatpush.bf16.msra.mxu0 %v8477
        %8493 = vmatpush.bf16.msra.mxu0 %v8476
        %8494 = vmatpush.bf16.msra.mxu0 %v8475
        %8495 = vmatpush.bf16.msra.mxu0 %v8474
        %8496 = vmatmul.bf16.gmra.mxu0 %v8483
        %v8497 = vpop.f32.mrf.mxu0
        %v8498 = vadd.f32 %v8456, %v8497
        %v8499 = vpop.f32.mrf.mxu0
        %v8500 = vadd.f32 %v8456, %v8499
        %8501 = vmatmul.bf16.gmra.mxu0 %v8486
        %v8502 = vpop.f32.mrf.mxu0
        %v8503 = vadd.f32 %v8456, %v8502
        %v8504 = vpop.f32.mrf.mxu0
        %v8505 = vadd.f32 %v8456, %v8504
        %8506 = vdwg.mxu0
        %v8507 = vadd.f32 %v542, %v8498
        %v8508 = vadd.f32 %v544, %v8500
        %v8509 = vadd.f32 %v547, %v8503
        %v8510 = vadd.f32 %v549, %v8505
        %v8511 = vld [vmem:[#allocation2 + $0x34] sm:$0x1]
        %v8512 = vld [vmem:[#allocation2 + $0x35] sm:$0x1]
        %v8513 = vsel %vm492, %v8507, 0.0
        %8514 = vadd.xlane.f32.xlu0 %v8513
        %v8515 = vpop.xlane.xlu0 %8514
        %v8516 = vsel %vm492, %v8508, 0.0
        %8517 = vadd.xlane.f32.xlu0 %v8516
        %v8518 = vpop.xlane.xlu0 %8517
        %v8519 = vsel %vm492, %v8509, 0.0
        %8520 = vadd.xlane.f32.xlu0 %v8519
        %v8521 = vpop.xlane.xlu0 %8520
        %v8522 = vsel %vm492, %v8510, 0.0
        %8523 = vadd.xlane.f32.xlu0 %v8522
        %v8524 = vpop.xlane.xlu0 %8523
        %v8525 = vmul.f32 %v8515, %v575
        %v8526 = vmul.f32 %v8518, %v575
        %v8527 = vmul.f32 %v8521, %v575
        %v8528 = vmul.f32 %v8524, %v575
        %v8529 = vsub.f32 %v8507, %v8525
        %v8530 = vsub.f32 %v8508, %v8526
        %v8531 = vsub.f32 %v8509, %v8527
        %v8532 = vsub.f32 %v8510, %v8528
        %v8533 = vmul.f32 %v8529, %v8529
        %v8534 = vmul.f32 %v8530, %v8530
        %v8535 = vmul.f32 %v8531, %v8531
        %v8536 = vmul.f32 %v8532, %v8532
        %v8537 = vsel %vm492, %v8533, 0.0
        %8538 = vadd.xlane.f32.xlu0 %v8537
        %v8539 = vpop.xlane.xlu0 %8538
        %v8540 = vsel %vm492, %v8534, 0.0
        %8541 = vadd.xlane.f32.xlu0 %v8540
        %v8542 = vpop.xlane.xlu0 %8541
        %v8543 = vsel %vm492, %v8535, 0.0
        %8544 = vadd.xlane.f32.xlu0 %v8543
        %v8545 = vpop.xlane.xlu0 %8544
        %v8546 = vsel %vm492, %v8536, 0.0
        %8547 = vadd.xlane.f32.xlu0 %v8546
        %v8548 = vpop.xlane.xlu0 %8547
        %v8549 = vmul.f32 %v8539, %v575
        %v8550 = vmul.f32 %v8542, %v575
        %v8551 = vmul.f32 %v8545, %v575
        %v8552 = vmul.f32 %v8548, %v575
        %v8553 = vadd.f32 %v8549, 1e-05
        %v8554 = vadd.f32 %v8550, 1e-05
        %v8555 = vadd.f32 %v8551, 1e-05
        %v8556 = vadd.f32 %v8552, 1e-05
        %v8557 = vrsqrt.pop %v8553
        %v8558 = vmul.f32 %v8557, %v8553
        %v8559 = vmul.f32 %v8558, %v8557
        %v8560 = vmul.f32 0.5, %v8559
        %v8561 = vsub.f32 1.5, %v8560
        %v8562 = vmul.f32 %v8557, %v8561
        %vm8563 = vweird.f32 %v8553
        %vm8564 = vweird.f32 %v8557
        %vm8565 = vmor %vm8563, %vm8564
        %v8566 = vsel %vm8565, %v8557, %v8562
        %v8567 = vrsqrt.pop %v8554
        %v8568 = vmul.f32 %v8567, %v8554
        %v8569 = vmul.f32 %v8568, %v8567
        %v8570 = vmul.f32 0.5, %v8569
        %v8571 = vsub.f32 1.5, %v8570
        %v8572 = vmul.f32 %v8567, %v8571
        %vm8573 = vweird.f32 %v8554
        %vm8574 = vweird.f32 %v8567
        %vm8575 = vmor %vm8573, %vm8574
        %v8576 = vsel %vm8575, %v8567, %v8572
        %v8577 = vrsqrt.pop %v8555
        %v8578 = vmul.f32 %v8577, %v8555
        %v8579 = vmul.f32 %v8578, %v8577
        %v8580 = vmul.f32 0.5, %v8579
        %v8581 = vsub.f32 1.5, %v8580
        %v8582 = vmul.f32 %v8577, %v8581
        %vm8583 = vweird.f32 %v8555
        %vm8584 = vweird.f32 %v8577
        %vm8585 = vmor %vm8583, %vm8584
        %v8586 = vsel %vm8585, %v8577, %v8582
        %v8587 = vrsqrt.pop %v8556
        %v8588 = vmul.f32 %v8587, %v8556
        %v8589 = vmul.f32 %v8588, %v8587
        %v8590 = vmul.f32 0.5, %v8589
        %v8591 = vsub.f32 1.5, %v8590
        %v8592 = vmul.f32 %v8587, %v8591
        %vm8593 = vweird.f32 %v8556
        %vm8594 = vweird.f32 %v8587
        %vm8595 = vmor %vm8593, %vm8594
        %v8596 = vsel %vm8595, %v8587, %v8592
        %v8597 = vmul.f32 %v8529, %v8566
        %v8598 = vmul.f32 %v8530, %v8576
        %v8599 = vmul.f32 %v8531, %v8586
        %v8600 = vmul.f32 %v8532, %v8596
        %v8602 = vperm.slane %v8511, 0
        %v8604 = vmul.f32 %v8597, %v8602
        %v8605 = vmul.f32 %v8598, %v8602
        %v8606 = vmul.f32 %v8599, %v8602
        %v8607 = vmul.f32 %v8600, %v8602
        %v8609 = vperm.slane %v8512, 0
        %v8611 = vadd.f32 %v8604, %v8609
        %v8612 = vadd.f32 %v8605, %v8609
        %v8613 = vadd.f32 %v8606, %v8609
        %v8614 = vadd.f32 %v8607, %v8609
        %v8615 = vld [vmem:[%s4 + $0x90] sm:$0xf]
        %v8616 = vld [vmem:[%s4 + $0x130] sm:$0xf]
        %v8617 = vld [vmem:[%s4 + $0x1d0] sm:$0xf]
        %v8618 = vld [vmem:[%s4 + $0x270] sm:$0xf]
        %v8619 = vld [vmem:[#allocation2 + $0x36] sm:$0x1]
        %v8620 = vld [vmem:[#allocation6 + $0x18] sm:$0xf]
        %v8621 = vld [vmem:[#allocation6 + $0x34] sm:$0xf]
        %v8622 = vld [vmem:[#allocation6 + $0x50] sm:$0xf]
        %v8623 = vld [vmem:[#allocation6 + $0x6c] sm:$0xf]
        %v8624 = vld [vmem:[#allocation6 + $0x88] sm:$0xf]
        %v8625 = vld [vmem:[#allocation6 + $0xa4] sm:$0xf]
        %v8626 = vld [vmem:[#allocation6 + $0xc0] sm:$0xf]
        %v8627 = vld [vmem:[#allocation6 + $0xdc] sm:$0xf]
        %v8628 = vld [vmem:[#allocation6 + $0xf8] sm:$0xf]
        %v8629 = vld [vmem:[#allocation6 + $0x114] sm:$0xf]
        %v8630 = vld [vmem:[#allocation6 + $0x130] sm:$0xf]
        %v8631 = vld [vmem:[#allocation6 + $0x14c] sm:$0xf]
        %v8632 = vld [vmem:[#allocation6 + $0x168] sm:$0xf]
        %v8633 = vld [vmem:[#allocation6 + $0x184] sm:$0xf]
        %v8634 = vld [vmem:[#allocation6 + $0x1a0] sm:$0xf]
        %v8635 = vld [vmem:[#allocation6 + $0x1bc] sm:$0xf]
        %v8636 = vld [vmem:[#allocation2 + $0x37] sm:$0x1]
        %v8637 = vpack.c.bf16 %v8612, %v8611
        %v8638 = vpack.c.bf16 %v8614, %v8613
        %v8640 = vperm.slane %v8619, 0
        %v8646 = vunpack.c.l.b16 %v8615
        %v8647 = vunpack.c.l.b16 %v8616
        %v8648 = vunpack.c.l.b16 %v8617
        %v8649 = vunpack.c.l.b16 %v8618
        %v8650 = vpack.c.b16 %v8647, %v8646
        %v8651 = vpack.c.b16 %v8649, %v8648
        %v8655 = vsel %vm492, %v8637, 0
        %v8658 = vsel %vm492, %v8638, 0
        %8660 = vmatpush.bf16.msra.mxu0 0
        %8661 = vmatpush.bf16.msra.mxu0 0
        %8662 = vmatpush.bf16.msra.mxu0 0
        %8663 = vmatpush.bf16.msra.mxu0 0
        %8664 = vmatpush.bf16.msra.mxu0 0
        %8665 = vmatpush.bf16.msra.mxu0 0
        %8666 = vmatpush.bf16.msra.mxu0 %v8651
        %8667 = vmatpush.bf16.msra.mxu0 %v8650
        %8668 = vmatmul.bf16.gmra.mxu0 %v8655
        %v8669 = vpop.f32.mrf.mxu0
        %v8670 = vadd.f32 %v8640, %v8669
        %v8671 = vpop.f32.mrf.mxu0
        %v8672 = vadd.f32 %v8640, %v8671
        %8673 = vmatmul.bf16.gmra.mxu0 %v8658
        %v8674 = vpop.f32.mrf.mxu0
        %v8675 = vadd.f32 %v8640, %v8674
        %v8676 = vpop.f32.mrf.mxu0
        %v8677 = vadd.f32 %v8640, %v8676
        %8678 = vdwg.mxu0
        %v8679 = vmul.f32 %v8670, 0.5
        %v8680 = vmul.f32 %v8672, 0.5
        %v8681 = vmul.f32 %v8675, 0.5
        %v8682 = vmul.f32 %v8677, 0.5
        %v8683 = vmul.f32 %v8670, 0.044715
        %v8684 = vmul.f32 %v8672, 0.044715
        %v8685 = vmul.f32 %v8675, 0.044715
        %v8686 = vmul.f32 %v8677, 0.044715
        %v8687 = vmul.f32 %v8683, %v8670
        %v8688 = vmul.f32 %v8684, %v8672
        %v8689 = vmul.f32 %v8685, %v8675
        %v8690 = vmul.f32 %v8686, %v8677
        %v8691 = vmul.f32 %v8687, %v8670
        %v8692 = vmul.f32 %v8688, %v8672
        %v8693 = vmul.f32 %v8689, %v8675
        %v8694 = vmul.f32 %v8690, %v8677
        %v8695 = vadd.f32 %v8670, %v8691
        %v8696 = vadd.f32 %v8672, %v8692
        %v8697 = vadd.f32 %v8675, %v8693
        %v8698 = vadd.f32 %v8677, %v8694
        %v8699 = vmul.f32 %v8695, 0.7978846
        %v8700 = vmul.f32 %v8696, 0.7978846
        %v8701 = vmul.f32 %v8697, 0.7978846
        %v8702 = vmul.f32 %v8698, 0.7978846
        %v8703 = vtanh.pop %v8699
        %v8704 = vtanh.pop %v8700
        %v8705 = vtanh.pop %v8701
        %v8706 = vtanh.pop %v8702
        %v8707 = vadd.f32 %v8703, 1.0
        %v8708 = vadd.f32 %v8704, 1.0
        %v8709 = vadd.f32 %v8705, 1.0
        %v8710 = vadd.f32 %v8706, 1.0
        %v8711 = vmul.f32 %v8679, %v8707
        %v8712 = vmul.f32 %v8680, %v8708
        %v8713 = vmul.f32 %v8681, %v8709
        %v8714 = vmul.f32 %v8682, %v8710
        %v8715 = vpack.c.bf16 %v8712, %v8711
        %v8716 = vpack.c.bf16 %v8714, %v8713
        %v8718 = vperm.slane %v8636, 0
        %v8736 = vunpack.c.l.b16 %v8620
        %v8737 = vunpack.c.l.b16 %v8621
        %v8738 = vunpack.c.l.b16 %v8622
        %v8739 = vunpack.c.l.b16 %v8623
        %v8740 = vunpack.c.l.b16 %v8624
        %v8741 = vunpack.c.l.b16 %v8625
        %v8742 = vunpack.c.l.b16 %v8626
        %v8743 = vunpack.c.l.b16 %v8627
        %v8744 = vunpack.c.l.b16 %v8628
        %v8745 = vunpack.c.l.b16 %v8629
        %v8746 = vunpack.c.l.b16 %v8630
        %v8747 = vunpack.c.l.b16 %v8631
        %v8748 = vunpack.c.l.b16 %v8632
        %v8749 = vunpack.c.l.b16 %v8633
        %v8750 = vunpack.c.l.b16 %v8634
        %v8751 = vunpack.c.l.b16 %v8635
        %v8752 = vpack.c.b16 %v8737, %v8736
        %v8753 = vpack.c.b16 %v8739, %v8738
        %v8754 = vpack.c.b16 %v8741, %v8740
        %v8755 = vpack.c.b16 %v8743, %v8742
        %v8756 = vpack.c.b16 %v8745, %v8744
        %v8757 = vpack.c.b16 %v8747, %v8746
        %v8758 = vpack.c.b16 %v8749, %v8748
        %v8759 = vpack.c.b16 %v8751, %v8750
        %8768 = vmatpush.bf16.msra.mxu0 %v8759
        %8769 = vmatpush.bf16.msra.mxu0 %v8758
        %8770 = vmatpush.bf16.msra.mxu0 %v8757
        %8771 = vmatpush.bf16.msra.mxu0 %v8756
        %8772 = vmatpush.bf16.msra.mxu0 %v8755
        %8773 = vmatpush.bf16.msra.mxu0 %v8754
        %8774 = vmatpush.bf16.msra.mxu0 %v8753
        %8775 = vmatpush.bf16.msra.mxu0 %v8752
        %8776 = vmatmul.bf16.gmra.mxu0 %v8715
        %v8777 = vpop.f32.mrf.mxu0
        %v8778 = vadd.f32 %v8718, %v8777
        %v8779 = vpop.f32.mrf.mxu0
        %v8780 = vadd.f32 %v8718, %v8779
        %8781 = vmatmul.bf16.gmra.mxu0 %v8716
        %v8782 = vpop.f32.mrf.mxu0
        %v8783 = vadd.f32 %v8718, %v8782
        %v8784 = vpop.f32.mrf.mxu0
        %v8785 = vadd.f32 %v8718, %v8784
        %8786 = vdwg.mxu0
        %v8787 = vadd.f32 %v8507, %v8778
        %v8788 = vadd.f32 %v8508, %v8780
        %v8789 = vadd.f32 %v8509, %v8783
        %v8790 = vadd.f32 %v8510, %v8785
        %v8791 = vld [vmem:[%s4 + $0x9c] sm:$0xf]
        %v8792 = vld [vmem:[%s4 + $0x13c] sm:$0xf]
        %v8793 = vld [vmem:[%s4 + $0x1dc] sm:$0xf]
        %v8794 = vld [vmem:[%s4 + $0x27c] sm:$0xf]
        %v8795 = vpack.c.bf16 %v8788, %v8787
        %v8796 = vpack.c.bf16 %v8790, %v8789
        %v8797 = vld [vmem:[#allocation2 + $0x3a] sm:$0x1]
        %v8799 = vperm.slane %v8797, 0
        %v8805 = vunpack.c.l.b16 %v8791
        %v8806 = vunpack.c.l.b16 %v8792
        %v8807 = vunpack.c.l.b16 %v8793
        %v8808 = vunpack.c.l.b16 %v8794
        %v8809 = vpack.c.b16 %v8806, %v8805
        %v8810 = vpack.c.b16 %v8808, %v8807
        %v8814 = vsel %vm492, %v8795, 0
        %v8817 = vsel %vm492, %v8796, 0
        %8819 = vmatpush.bf16.msra.mxu0 0
        %8820 = vmatpush.bf16.msra.mxu0 0
        %8821 = vmatpush.bf16.msra.mxu0 0
        %8822 = vmatpush.bf16.msra.mxu0 0
        %8823 = vmatpush.bf16.msra.mxu0 0
        %8824 = vmatpush.bf16.msra.mxu0 0
        %8825 = vmatpush.bf16.msra.mxu0 %v8810
        %8826 = vmatpush.bf16.msra.mxu0 %v8809
        %8827 = vmatmul.bf16.gmra.mxu0 %v8814
        %v8828 = vpop.f32.mrf.mxu0
        %v8829 = vadd.f32 %v8799, %v8828
        %v8830 = vpop.f32.mrf.mxu0
        %v8831 = vadd.f32 %v8799, %v8830
        %8832 = vmatmul.bf16.gmra.mxu0 %v8817
        %v8833 = vpop.f32.mrf.mxu0
        %v8834 = vadd.f32 %v8799, %v8833
        %v8835 = vpop.f32.mrf.mxu0
        %v8836 = vadd.f32 %v8799, %v8835
        %8837 = vdwg.mxu0
        %v8838 = vmul.f32 %v8829, 0.5
        %v8839 = vmul.f32 %v8831, 0.5
        %v8840 = vmul.f32 %v8834, 0.5
        %v8841 = vmul.f32 %v8836, 0.5
        %v8842 = vmul.f32 %v8829, 0.044715
        %v8843 = vmul.f32 %v8831, 0.044715
        %v8844 = vmul.f32 %v8834, 0.044715
        %v8845 = vmul.f32 %v8836, 0.044715
        %v8846 = vmul.f32 %v8842, %v8829
        %v8847 = vmul.f32 %v8843, %v8831
        %v8848 = vmul.f32 %v8844, %v8834
        %v8849 = vmul.f32 %v8845, %v8836
        %v8850 = vmul.f32 %v8846, %v8829
        %v8851 = vmul.f32 %v8847, %v8831
        %v8852 = vmul.f32 %v8848, %v8834
        %v8853 = vmul.f32 %v8849, %v8836
        %v8854 = vadd.f32 %v8829, %v8850
        %v8855 = vadd.f32 %v8831, %v8851
        %v8856 = vadd.f32 %v8834, %v8852
        %v8857 = vadd.f32 %v8836, %v8853
        %v8858 = vmul.f32 %v8854, 0.7978846
        %v8859 = vmul.f32 %v8855, 0.7978846
        %v8860 = vmul.f32 %v8856, 0.7978846
        %v8861 = vmul.f32 %v8857, 0.7978846
        %v8862 = vtanh.pop %v8858
        %v8863 = vtanh.pop %v8859
        %v8864 = vtanh.pop %v8860
        %v8865 = vtanh.pop %v8861
        %v8866 = vadd.f32 %v8862, 1.0
        %v8867 = vadd.f32 %v8863, 1.0
        %v8868 = vadd.f32 %v8864, 1.0
        %v8869 = vadd.f32 %v8865, 1.0
        %v8870 = vmul.f32 %v8838, %v8866
        %v8871 = vmul.f32 %v8839, %v8867
        %v8872 = vmul.f32 %v8840, %v8868
        %v8873 = vmul.f32 %v8841, %v8869
        %v8874 = vld [vmem:[#allocation4 + $0xc] sm:$0xf]
        %v8875 = vld [vmem:[#allocation4 + $0x1c] sm:$0xf]
        %v8876 = vld [vmem:[#allocation4 + $0x2c] sm:$0xf]
        %v8877 = vld [vmem:[#allocation4 + $0x3c] sm:$0xf]
        %v8878 = vld [vmem:[#allocation4 + $0x4c] sm:$0xf]
        %v8879 = vld [vmem:[#allocation4 + $0x5c] sm:$0xf]
        %v8880 = vld [vmem:[#allocation4 + $0x6c] sm:$0xf]
        %v8881 = vld [vmem:[#allocation4 + $0x7c] sm:$0xf]
        %v8882 = vpack.c.bf16 %v8871, %v8870
        %v8883 = vpack.c.bf16 %v8873, %v8872
        %v8884 = vld [vmem:[#allocation2 + $0x3b] sm:$0x1]
        %v8886 = vperm.slane %v8884, 0
        %v8896 = vunpack.c.l.b16 %v8874
        %v8897 = vunpack.c.l.b16 %v8875
        %v8898 = vunpack.c.l.b16 %v8876
        %v8899 = vunpack.c.l.b16 %v8877
        %v8900 = vunpack.c.l.b16 %v8878
        %v8901 = vunpack.c.l.b16 %v8879
        %v8902 = vunpack.c.l.b16 %v8880
        %v8903 = vunpack.c.l.b16 %v8881
        %v8904 = vpack.c.b16 %v8897, %v8896
        %v8905 = vpack.c.b16 %v8899, %v8898
        %v8906 = vpack.c.b16 %v8901, %v8900
        %v8907 = vpack.c.b16 %v8903, %v8902
        %v8913 = vsel %vm497, %v8882, 0
        %v8916 = vsel %vm497, %v8883, 0
        %8918 = vmatpush.bf16.msra.mxu0 0
        %8919 = vmatpush.bf16.msra.mxu0 0
        %8920 = vmatpush.bf16.msra.mxu0 0
        %8921 = vmatpush.bf16.msra.mxu0 0
        %8922 = vmatpush.bf16.msra.mxu0 %v8907
        %8923 = vmatpush.bf16.msra.mxu0 %v8906
        %8924 = vmatpush.bf16.msra.mxu0 %v8905
        %8925 = vmatpush.bf16.msra.mxu0 %v8904
        %8926 = vmatmul.bf16.gmra.mxu0 %v8913
        %v8927 = vpop.f32.mrf.mxu0
        %v8928 = vadd.f32 %v8886, %v8927
        %v8929 = vpop.f32.mrf.mxu0
        %v8930 = vadd.f32 %v8886, %v8929
        %8931 = vmatmul.bf16.gmra.mxu0 %v8916
        %v8932 = vpop.f32.mrf.mxu0
        %v8933 = vadd.f32 %v8886, %v8932
        %v8934 = vpop.f32.mrf.mxu0
        %v8935 = vadd.f32 %v8886, %v8934
        %8936 = vdwg.mxu0
        %8937 = vst [vmem:[%s394] sm:$0xff] %v8928
        %8938 = vst [vmem:[%s394 + $0x8] sm:$0xff] %v8930
        %8939 = vst [vmem:[%s394 + $0x10] sm:$0xff] %v8933
        %8940 = vst [vmem:[%s394 + $0x18] sm:$0xff] %v8935
        %s8941 = smul.u32 4, %s22
        %p8942 = scmp.lt.s32.totalorder %s8941, 7
        %s8943 = scalar_select %p8942, %s8941, 7
        %s8944 = smul.addr %s8943, 8
        %s8945 = scalar_lea.vmem %s8, %s8944
        // Predicated region
        $region69: #{decoder_forward.1} parent=51 // pred_check
          %p8946 = pneg %p218
        $region70: #{decoder_forward.1} parent=51 // pred_check_branch
          %8948 = sbr.rel (%p8946) target = $region72
        $region71: #{decoder_forward.1} parent=51 // pred_region
          %s8949 = smul.u32 4, %s22
        $region72: #{decoder_forward.1} parent=51 // pred_fallthru
          _
      $region52: #{decoder_forward.1} parent=5 // pred_fallthru
        _
      %p8950 = scmp.le.s32.totalorder 2, %s17
      // Predicated region
      $region73: #{decoder_forward.1} parent=5 // pred_check
        %p8951 = pneg %p8950
      $region74: #{decoder_forward.1} parent=5 // pred_check_branch
        %8953 = sbr.rel (%p8951) target = $region76
      $region75: #{decoder_forward.1} parent=5 // pred_region
        %s8954 = ssub.s32 %s17, 2
        // Predicated region
        $region77: #{decoder_forward.1} parent=75 // pred_check
          %p8955 = pneg %p224
        $region78: #{decoder_forward.1} parent=75 // pred_check_branch
          %8957 = sbr.rel (%p8955) target = $region80
        $region79: #{decoder_forward.1} parent=75 // pred_region
          %s8958 = smul.u32 4, %s23
          %p8959 = scmp.lt.s32.totalorder %s8958, 7
          %s8960 = scalar_select %p8959, %s8958, 7
          %s8961 = smul.addr %s8960, 8
          %s8962 = scalar_lea.vmem %s8, %s8961
        $region80: #{decoder_forward.1} parent=75 // pred_fallthru
          _
      $region76: #{decoder_forward.1} parent=5 // pred_fallthru
        _
    $region6: #{decoder_forward.1} parent=1 // loop_footer
      %s21 = sadd.s32 1, %s17
    $region7: #{decoder_forward.1} parent=1 // loop_footer_branch
      %16 = sbr.rel target = $region3
    $region8: #{decoder_forward.1} parent=1 // loop_exit
      _
    %8963 = vsyncpa [#allocation3], 1
    %s8964 = scalar_lea.sflag [#allocation3], 1
    %8965 = vsyncpa %s8964, 1
    %8966 = vsyncpa [#allocation5], 1
    %8967 = vsyncpa [#allocation8], 1

</llo_original>
